<compile_context>
chip_gen: v7x
topology: tpu7x:2x2x1
jax: 0.10.0
libtpu: 0.0.40
codegen_flags: <defaults>
</compile_context>

<pallas_src>
import functools

import jax
import jax.numpy as jnp
import numpy as np
from jax.experimental import pallas as pl
from jax.experimental.pallas import tpu as pltpu

HIDDEN = 16
EA_DIM = 3
OUT_DIM = 3
MSG_DIMS = [70, 140, 20]
UPD_DIMS = [70]
FINAL_DIMS = [64, 32]
STEPS = 3

WA_COLS = 128           # main packed weight buffer width
WB_COLS = 256           # only the 70->140 message layers need 256 lanes
EA_COLS = 8             # edge_attr shipped as [E, 8] (true cols 0:3)


def _round_up(n, m):
    return ((n + m - 1) // m) * m


# -----------------------------------------------------------------------------
# Static layout of every Linear inside the two packed weight buffers.
# All weight blocks start at 8-aligned (actually >=8-multiple) row offsets and
# span the full buffer width, so every kernel-side slice is a plain static
# (rows, 128|256) window.  Biases are packed one-per-row in shared blocks.
# -----------------------------------------------------------------------------
def _build_layout():
    a_blocks, b_blocks = {}, {}
    a_off = b_off = 0

    def alloc_a(name, rows):
        nonlocal a_off
        a_blocks[name] = (a_off, rows)
        a_off += rows

    def alloc_b(name, rows):
        nonlocal b_off
        b_blocks[name] = (b_off, rows)
        b_off += rows

    alloc_a('enc', HIDDEN)                      # node encoder, K = 16
    for s in range(STEPS):
        alloc_a(f'w1a_{s}', 128)                # message L1, x_i segment
        alloc_a(f'w1b_{s}', 128)                # message L1, x_j segment
        alloc_a(f'w1c_{s}', EA_COLS)            # message L1, edge_attr segment
        alloc_b(f'w2_{s}', 128)                 # 70 -> 140  (256-wide output)
        alloc_a(f'w3_{s}', 256)                 # 140 -> 20
        alloc_a(f'w4_{s}', 128)                 # 20 -> 16, cols placed @16:32
        alloc_a(f'u1_{s}', 128)                 # [h|aggr] (lanes 0:32) -> 70
        alloc_a(f'u2_{s}', 128)                 # 70 -> 16
    alloc_a('fin1', 128)                        # 16 -> 64
    alloc_a('fin2', 128)                        # 64 -> 32
    alloc_a('fin3', 128)                        # 32 -> 3

    a_bias_names = (['encb'] +
                    [f'{n}_{s}' for s in range(STEPS)
                     for n in ('b1', 'b3', 'b4', 'ub1', 'ub2')] +
                    ['fb1', 'fb2', 'fb3'])
    b_bias_names = [f'b2_{s}' for s in range(STEPS)]

    a_bias_row = {n: a_off + i for i, n in enumerate(a_bias_names)}
    a_off += _round_up(len(a_bias_names), 8)
    b_bias_row = {n: b_off + i for i, n in enumerate(b_bias_names)}
    b_off += _round_up(len(b_bias_names), 8)

    return a_blocks, b_blocks, a_bias_row, b_bias_row, a_off, b_off


(_A_BLOCKS, _B_BLOCKS, _A_BIAS_ROW, _B_BIAS_ROW,
 WA_ROWS, WB_ROWS) = _build_layout()            # WA_ROWS=3136, WB_ROWS=392


# -----------------------------------------------------------------------------
# Pallas kernel: whole GNN forward on full-array VMEM blocks (grid-less).
# Inputs:
#   x_ref    [Np, 16]   node features (row-padded only)
#   ea_ref   [Ep, 8]    edge attributes (true cols 0:3)
#   dsti_ref [Ep, 1]    int32 target index per edge   (gather x_i)
#   srci_ref [Ep, 1]    int32 source index per edge   (gather x_j)
#   dstr_ref [1, Ep]    int32 target index per edge   (scatter-mean / degree)
#   bat_ref  [1, Np]    int32 graph id per node       (pooling)
#   wa_ref   [WA_ROWS, 128]  packed weights/biases (main)
#   wb_ref   [WB_ROWS, 256]  packed weights/biases (140-wide layers)
# Output:
#   out_ref  [B, 128]   lane-dense prediction slab (true values in cols 0:3)
# Padded edges/nodes carry sentinel indices that match no iota value, so they
# contribute exactly zero to every gather/scatter/pool sum and count.
# -----------------------------------------------------------------------------
def _gnn_kernel(x_ref, ea_ref, dsti_ref, srci_ref, dstr_ref, bat_ref,
                wa_ref, wb_ref, out_ref):
    f32 = jnp.float32
    Np = x_ref.shape[0]
    Ep = ea_ref.shape[0]
    Bg = out_ref.shape[0]

    def wA(name):
        off, rows = _A_BLOCKS[name]
        return wa_ref[off:off + rows, :]

    def wBm(name):
        off, rows = _B_BLOCKS[name]
        return wb_ref[off:off + rows, :]

    def bA(name):
        r = _A_BIAS_ROW[name]
        return wa_ref[r:r + 1, :]

    def bBm(name):
        r = _B_BIAS_ROW[name]
        return wb_ref[r:r + 1, :]

    def mm(v, w):
        return jnp.dot(v, w, preferred_element_type=f32)

    def relu(v):
        return jnp.maximum(v, 0.0)

    # Exact 0/1 gather / scatter / pool operators built on the VPU from tiny
    # int32 index arrays (no dense operator matrices ever touch HBM).
    gat_i = (jax.lax.broadcasted_iota(jnp.int32, (Ep, Np), 1)
             == dsti_ref[...]).astype(f32)                        # [Ep, Np]
    gat_j = (jax.lax.broadcasted_iota(jnp.int32, (Ep, Np), 1)
             == srci_ref[...]).astype(f32)                        # [Ep, Np]
    scat = (jax.lax.broadcasted_iota(jnp.int32, (Np, Ep), 0)
            == dstr_ref[...]).astype(f32)                         # [Np, Ep]
    pool = (jax.lax.broadcasted_iota(jnp.int32, (Bg, Np), 0)
            == bat_ref[...]).astype(f32)                          # [Bg, Np]
    inv_deg = 1.0 / jnp.maximum(jnp.sum(scat, axis=1, keepdims=True), 1.0)
    inv_cnt = 1.0 / jnp.maximum(jnp.sum(pool, axis=1, keepdims=True), 1.0)

    ea = ea_ref[...]                                              # [Ep, 8]

    # node encoder (K = 16: only the true weight rows are stored)
    h = mm(x_ref[...], wA('enc')) + bA('encb')                    # [Np, 128]

    for s in range(STEPS):
        # gathers x_i = h[dst], x_j = h[src] as exact 0/1 MXU matmuls
        x_i = mm(gat_i, h)                                        # [Ep, 128]
        x_j = mm(gat_j, h)                                        # [Ep, 128]
        # message MLP; L1 = x_i@W1[0:16] + x_j@W1[16:32] + ea@W1[32:35] + b1
        m = relu(mm(x_i, wA(f'w1a_{s}')) + mm(x_j, wA(f'w1b_{s}'))
                 + mm(ea, wA(f'w1c_{s}')) + bA(f'b1_{s}'))        # true 70
        m = relu(mm(m, wBm(f'w2_{s}')) + bBm(f'b2_{s}'))          # true 140
        m = relu(mm(m, wA(f'w3_{s}')) + bA(f'b3_{s}'))            # true 20
        m = mm(m, wA(f'w4_{s}')) + bA(f'b4_{s}')                  # true 16 @16:32
        # mean aggregation: exact 0/1 sum, then f32 1/deg scale on the VPU
        aggr = mm(scat, m) * inv_deg                              # [Np,128] @16:32
        # update MLP; concat([h, aggr]) is free: h @0:16, aggr @16:32
        u = relu(mm(h + aggr, wA(f'u1_{s}')) + bA(f'ub1_{s}'))    # true 70
        h = mm(u, wA(f'u2_{s}')) + bA(f'ub2_{s}')                 # true 16 @0:16

    p = relu(mm(h, wA('fin1')) + bA('fb1'))                       # true 64
    p = relu(mm(p, wA('fin2')) + bA('fb2'))                       # true 32
    p = mm(p, wA('fin3')) + bA('fb3')                             # true 3

    # graph mean pooling -> lane-dense [Bg, 128] slab (f32 1/count scale)
    out_ref[...] = mm(pool, p) * inv_cnt


# -----------------------------------------------------------------------------
# Parameter init (deterministic, PyTorch-Linear-like uniform init), true sizes.
# Weights are stored in math layout [fan_in, fan_out].
# -----------------------------------------------------------------------------
def _init_linear(key, fan_in, fan_out):
    kw, kb = jax.random.split(key)
    bound = 1.0 / np.sqrt(fan_in)
    W = jax.random.uniform(kw, (fan_in, fan_out), jnp.float32, -bound, bound)
    b = jax.random.uniform(kb, (1, fan_out), jnp.float32, -bound, bound)
    return W, b


def init_params(seed=42):
    key = jax.random.PRNGKey(seed)
    flat = []

    def add_linear(fan_in, fan_out):
        nonlocal key
        key, sub = jax.random.split(key)
        W, b = _init_linear(sub, fan_in, fan_out)
        flat.extend([W, b])

    add_linear(HIDDEN, HIDDEN)
    for _ in range(STEPS):
        prev = 2 * HIDDEN + EA_DIM
        for d in MSG_DIMS:
            add_linear(prev, d); prev = d
        add_linear(prev, HIDDEN)
        prev = 2 * HIDDEN
        for d in UPD_DIMS:
            add_linear(prev, d); prev = d
        add_linear(prev, HIDDEN)
    prev = HIDDEN
    for d in FINAL_DIMS:
        add_linear(prev, d); prev = d
    add_linear(prev, OUT_DIM)
    return flat


def pack_params(params):
    """Zero-pad and pack all weights & biases into the two packed buffers."""
    assert len(params) == 2 * (1 + STEPS * 6 + 3)
    A = np.zeros((WA_ROWS, WA_COLS), np.float32)
    Bm = np.zeros((WB_ROWS, WB_COLS), np.float32)
    it = iter(params)

    def nxt():
        return np.asarray(next(it), np.float32)

    def put_w_a(name, W, col_off=0):
        off, rows = _A_BLOCKS[name]
        r, c = W.shape
        assert r <= rows and col_off + c <= WA_COLS
        A[off:off + r, col_off:col_off + c] = W

    def put_w_b(name, W):
        off, rows = _B_BLOCKS[name]
        r, c = W.shape
        assert r <= rows and c <= WB_COLS
        Bm[off:off + r, :c] = W

    def put_b_a(name, b, col_off=0):
        b = np.asarray(b, np.float32).reshape(-1)
        A[_A_BIAS_ROW[name], col_off:col_off + b.shape[0]] = b

    def put_b_b(name, b):
        b = np.asarray(b, np.float32).reshape(-1)
        Bm[_B_BIAS_ROW[name], :b.shape[0]] = b

    put_w_a('enc', nxt()); put_b_a('encb', nxt())
    for s in range(STEPS):
        W1 = nxt(); b1 = nxt()
        put_w_a(f'w1a_{s}', W1[0:HIDDEN, :])                    # x_i rows
        put_w_a(f'w1b_{s}', W1[HIDDEN:2 * HIDDEN, :])           # x_j rows
        put_w_a(f'w1c_{s}', W1[2 * HIDDEN:2 * HIDDEN + EA_DIM, :])
        put_b_a(f'b1_{s}', b1)
        put_w_b(f'w2_{s}', nxt()); put_b_b(f'b2_{s}', nxt())
        put_w_a(f'w3_{s}', nxt()); put_b_a(f'b3_{s}', nxt())
        # message output placed at lanes 16:32 so concat([h, aggr]) is h+aggr
        put_w_a(f'w4_{s}', nxt(), col_off=HIDDEN)
        put_b_a(f'b4_{s}', nxt(), col_off=HIDDEN)
        put_w_a(f'u1_{s}', nxt()); put_b_a(f'ub1_{s}', nxt())
        put_w_a(f'u2_{s}', nxt()); put_b_a(f'ub2_{s}', nxt())
    put_w_a('fin1', nxt()); put_b_a('fb1', nxt())
    put_w_a('fin2', nxt()); put_b_a('fb2', nxt())
    put_w_a('fin3', nxt()); put_b_a('fb3', nxt())
    return jnp.asarray(A), jnp.asarray(Bm)


# -----------------------------------------------------------------------------
# Wrapper: row-pad inputs, build tiny index vectors, call the kernel.
# -----------------------------------------------------------------------------
@functools.partial(jax.jit, static_argnums=(6,))
def gnn_forward(wa, wb, x, edge_index, edge_attr, batch, num_graphs):
    N = x.shape[0]
    E = edge_attr.shape[0]
    N_pad = _round_up(N, 8)
    E_pad = _round_up(E, 128)
    B = num_graphs

    x_p = jnp.zeros((N_pad, HIDDEN), jnp.float32).at[:N, :].set(x)
    ea_p = jnp.zeros((E_pad, EA_COLS), jnp.float32).at[:E, :EA_DIM].set(edge_attr)

    src = edge_index[0].astype(jnp.int32)
    dst = edge_index[1].astype(jnp.int32)
    sent_n = jnp.int32(N_pad)                       # matches no node row
    dst_col = jnp.full((E_pad, 1), sent_n, jnp.int32).at[:E, 0].set(dst)
    src_col = jnp.full((E_pad, 1), sent_n, jnp.int32).at[:E, 0].set(src)
    dst_row = jnp.full((1, E_pad), sent_n, jnp.int32).at[0, :E].set(dst)
    if batch is None:
        bat_row = jnp.full((1, N_pad), jnp.int32(B), jnp.int32).at[0, :N].set(0)
    else:
        bat_row = (jnp.full((1, N_pad), jnp.int32(B), jnp.int32)
                   .at[0, :N].set(batch.astype(jnp.int32)))

    vmem = pl.BlockSpec(memory_space=pltpu.MemorySpace.VMEM)
    out_p = pl.pallas_call(
        _gnn_kernel,
        out_shape=jax.ShapeDtypeStruct((B, 128), jnp.float32),
        in_specs=[vmem] * 8,
        out_specs=vmem,
        compiler_params=pltpu.CompilerParams(
            vmem_limit_bytes=32 * 1024 * 1024),
    )(x_p, ea_p, dst_col, src_col, dst_row, bat_row, wa, wb)
    return out_p[:, :OUT_DIM]


# -----------------------------------------------------------------------------
# Pure-JAX reference (same math, segment_sum based) for validation.
# -----------------------------------------------------------------------------
def gnn_reference(params, x, edge_index, edge_attr, batch, num_graphs):
    it = iter(params)

    def nxt():
        return next(it)

    def lin(v, W, b):
        return jnp.dot(v, W, precision=jax.lax.Precision.HIGHEST) + b

    relu = jax.nn.relu
    N = x.shape[0]
    src, dst = edge_index[0], edge_index[1]

    h = lin(x, nxt(), nxt())
    for _ in range(STEPS):
        W1, b1, W2, b2, W3, b3, W4, b4 = (nxt() for _ in range(8))
        U1, ub1, U2, ub2 = (nxt() for _ in range(4))
        x_j = h[src]
        x_i = h[dst]
        m = jnp.concatenate([x_i, x_j, edge_attr], axis=-1)
        m = relu(lin(m, W1, b1))
        m = relu(lin(m, W2, b2))
        m = relu(lin(m, W3, b3))
        m = lin(m, W4, b4)
        s = jax.ops.segment_sum(m, dst, num_segments=N)
        cnt = jax.ops.segment_sum(jnp.ones((m.shape[0],), jnp.float32), dst,
                                  num_segments=N)
        aggr = s / jnp.maximum(cnt, 1.0)[:, None]
        u = jnp.concatenate([h, aggr], axis=-1)
        u = relu(lin(u, U1, ub1))
        h = lin(u, U2, ub2)

    F1, f1, F2, f2, F3, f3 = (nxt() for _ in range(6))
    p = relu(lin(h, F1, f1))
    p = relu(lin(p, F2, f2))
    p = lin(p, F3, f3)

    if batch is None:
        return jnp.mean(p, axis=0, keepdims=True)
    s = jax.ops.segment_sum(p, batch, num_segments=num_graphs)
    c = jax.ops.segment_sum(jnp.ones((N,), jnp.float32), batch,
                            num_segments=num_graphs)
    return s / jnp.maximum(c, 1.0)[:, None]


if __name__ == "__main__":
    N, E, B = 32, 64, 2

    params = init_params(seed=42)
    wa, wb = pack_params(params)

    key = jax.random.PRNGKey(0)
    kx, ks, kd, ke = jax.random.split(key, 4)
    x = jax.random.normal(kx, (N, HIDDEN), jnp.float32)
    src = jax.random.randint(ks, (E,), 0, N, jnp.int32)
    dst = jax.random.randint(kd, (E,), 0, N, jnp.int32)
    edge_index = jnp.stack([src, dst], axis=0)                   # [2, E]
    edge_attr = jax.random.normal(ke, (E, EA_DIM), jnp.float32)  # [E, 3]
    batch = jnp.concatenate([jnp.zeros((N // 2,), jnp.int32),
                             jnp.ones((N - N // 2,), jnp.int32)])  # [N]

    out = gnn_forward(wa, wb, x, edge_index, edge_attr, batch, B)
    out = jax.block_until_ready(out)

    ref = gnn_reference(params, x, edge_index, edge_attr, batch, B)
    np.testing.assert_allclose(np.asarray(out), np.asarray(ref),
                               rtol=1e-4, atol=1e-4)
    assert out.shape == (B, OUT_DIM)

    print("KERNEL_OK")
</pallas_src>

<mosaic_0001>
module attributes {stable_mosaic.version = 11 : i64} {
  func.func @_gnn_kernel(%arg0: memref<32x16xf32, #tpu.memory_space<vmem>>, %arg1: memref<128x8xf32, #tpu.memory_space<vmem>>, %arg2: memref<128x1xi32, #tpu.memory_space<vmem>>, %arg3: memref<128x1xi32, #tpu.memory_space<vmem>>, %arg4: memref<1x128xi32, #tpu.memory_space<vmem>>, %arg5: memref<1x32xi32, #tpu.memory_space<vmem>>, %arg6: memref<3136x128xf32, #tpu.memory_space<vmem>>, %arg7: memref<392x256xf32, #tpu.memory_space<vmem>>, %arg8: memref<2x128xf32, #tpu.memory_space<vmem>>) attributes {dimension_semantics = [], scalar_prefetch = 0 : i64, scratch_operands = 0 : i64, tpu.core_type = #tpu.core_type<tc>} {
    %0 = tpu.iota {dimensions = array<i32: 1>} : vector<128x32xi32>
    %c0 = arith.constant 0 : index
    %c0_0 = arith.constant 0 : index
    %1 = vector.load %arg2[%c0, %c0_0] : memref<128x1xi32, #tpu.memory_space<vmem>>, vector<128x1xi32>
    %2 = vector.broadcast %1 : vector<128x1xi32> to vector<128x32xi32>
    %3 = arith.cmpi eq, %0, %2 : vector<128x32xi32>
    %4 = arith.extui %3 : vector<128x32xi1> to vector<128x32xi32>
    %5 = arith.sitofp %4 : vector<128x32xi32> to vector<128x32xf32>
    %6 = tpu.iota {dimensions = array<i32: 1>} : vector<128x32xi32>
    %c0_1 = arith.constant 0 : index
    %c0_2 = arith.constant 0 : index
    %7 = vector.load %arg3[%c0_1, %c0_2] : memref<128x1xi32, #tpu.memory_space<vmem>>, vector<128x1xi32>
    %8 = vector.broadcast %7 : vector<128x1xi32> to vector<128x32xi32>
    %9 = arith.cmpi eq, %6, %8 : vector<128x32xi32>
    %10 = arith.extui %9 : vector<128x32xi1> to vector<128x32xi32>
    %11 = arith.sitofp %10 : vector<128x32xi32> to vector<128x32xf32>
    %12 = tpu.iota {dimensions = array<i32: 0>} : vector<32x128xi32>
    %c0_3 = arith.constant 0 : index
    %c0_4 = arith.constant 0 : index
    %13 = vector.load %arg4[%c0_3, %c0_4] : memref<1x128xi32, #tpu.memory_space<vmem>>, vector<1x128xi32>
    %14 = vector.broadcast %13 : vector<1x128xi32> to vector<32x128xi32>
    %15 = arith.cmpi eq, %12, %14 : vector<32x128xi32>
    %16 = arith.extui %15 : vector<32x128xi1> to vector<32x128xi32>
    %17 = arith.sitofp %16 : vector<32x128xi32> to vector<32x128xf32>
    %18 = tpu.iota {dimensions = array<i32: 0>} : vector<2x32xi32>
    %c0_5 = arith.constant 0 : index
    %c0_6 = arith.constant 0 : index
    %19 = vector.load %arg5[%c0_5, %c0_6] : memref<1x32xi32, #tpu.memory_space<vmem>>, vector<1x32xi32>
    %20 = vector.broadcast %19 : vector<1x32xi32> to vector<2x32xi32>
    %21 = arith.cmpi eq, %18, %20 : vector<2x32xi32>
    %22 = arith.extui %21 : vector<2x32xi1> to vector<2x32xi32>
    %23 = arith.sitofp %22 : vector<2x32xi32> to vector<2x32xf32>
    %cst = arith.constant dense<0.000000e+00> : vector<32xf32>
    %24 = vector.multi_reduction <add>, %17, %cst [1] : vector<32x128xf32> to vector<32xf32>
    %25 = vector.shape_cast %24 : vector<32xf32> to vector<32x1xf32>
    %cst_7 = arith.constant 1.000000e+00 : f32
    %26 = vector.broadcast %cst_7 : f32 to vector<32x1xf32>
    %27 = arith.maximumf %25, %26 : vector<32x1xf32>
    %cst_8 = arith.constant 1.000000e+00 : f32
    %28 = vector.broadcast %cst_8 : f32 to vector<32x1xf32>
    %29 = arith.divf %28, %27 : vector<32x1xf32>
    %cst_9 = arith.constant dense<0.000000e+00> : vector<2xf32>
    %30 = vector.multi_reduction <add>, %23, %cst_9 [1] : vector<2x32xf32> to vector<2xf32>
    %31 = vector.shape_cast %30 : vector<2xf32> to vector<2x1xf32>
    %cst_10 = arith.constant 1.000000e+00 : f32
    %32 = vector.broadcast %cst_10 : f32 to vector<2x1xf32>
    %33 = arith.maximumf %31, %32 : vector<2x1xf32>
    %cst_11 = arith.constant 1.000000e+00 : f32
    %34 = vector.broadcast %cst_11 : f32 to vector<2x1xf32>
    %35 = arith.divf %34, %33 : vector<2x1xf32>
    %c0_12 = arith.constant 0 : index
    %c0_13 = arith.constant 0 : index
    %36 = vector.load %arg1[%c0_12, %c0_13] : memref<128x8xf32, #tpu.memory_space<vmem>>, vector<128x8xf32>
    %c0_14 = arith.constant 0 : index
    %c0_15 = arith.constant 0 : index
    %37 = vector.load %arg0[%c0_14, %c0_15] : memref<32x16xf32, #tpu.memory_space<vmem>>, vector<32x16xf32>
    %c0_16 = arith.constant 0 : index
    %c0_17 = arith.constant 0 : index
    %38 = vector.load %arg6[%c0_16, %c0_17] : memref<3136x128xf32, #tpu.memory_space<vmem>>, vector<16x128xf32>
    %cst_18 = arith.constant dense<0.000000e+00> : vector<32x128xf32>
    %39 = tpu.matmul %37, %38, %cst_18 {dimension_numbers = #tpu.dot_dimension_numbers<[1], [0], [0], [1], [0, 0, 1, 1], [], []>} : vector<32x16xf32>, vector<16x128xf32>, vector<32x128xf32> -> vector<32x128xf32>
    %c3112 = arith.constant 3112 : index
    %c0_19 = arith.constant 0 : index
    %40 = vector.load %arg6[%c3112, %c0_19] : memref<3136x128xf32, #tpu.memory_space<vmem>>, vector<1x128xf32>
    %41 = vector.broadcast %40 : vector<1x128xf32> to vector<32x128xf32>
    %42 = arith.addf %39, %41 : vector<32x128xf32>
    %cst_20 = arith.constant dense<0.000000e+00> : vector<128x128xf32>
    %43 = tpu.matmul %5, %42, %cst_20 {dimension_numbers = #tpu.dot_dimension_numbers<[1], [0], [0], [1], [0, 0, 1, 1], [], []>} : vector<128x32xf32>, vector<32x128xf32>, vector<128x128xf32> -> vector<128x128xf32>
    %cst_21 = arith.constant dense<0.000000e+00> : vector<128x128xf32>
    %44 = tpu.matmul %11, %42, %cst_21 {dimension_numbers = #tpu.dot_dimension_numbers<[1], [0], [0], [1], [0, 0, 1, 1], [], []>} : vector<128x32xf32>, vector<32x128xf32>, vector<128x128xf32> -> vector<128x128xf32>
    %c16 = arith.constant 16 : index
    %c0_22 = arith.constant 0 : index
    %45 = vector.load %arg6[%c16, %c0_22] : memref<3136x128xf32, #tpu.memory_space<vmem>>, vector<128x128xf32>
    %cst_23 = arith.constant dense<0.000000e+00> : vector<128x128xf32>
    %46 = tpu.matmul %43, %45, %cst_23 {dimension_numbers = #tpu.dot_dimension_numbers<[1], [0], [0], [1], [0, 0, 1, 1], [], []>} : vector<128x128xf32>, vector<128x128xf32>, vector<128x128xf32> -> vector<128x128xf32>
    %c144 = arith.constant 144 : index
    %c0_24 = arith.constant 0 : index
    %47 = vector.load %arg6[%c144, %c0_24] : memref<3136x128xf32, #tpu.memory_space<vmem>>, vector<128x128xf32>
    %cst_25 = arith.constant dense<0.000000e+00> : vector<128x128xf32>
    %48 = tpu.matmul %44, %47, %cst_25 {dimension_numbers = #tpu.dot_dimension_numbers<[1], [0], [0], [1], [0, 0, 1, 1], [], []>} : vector<128x128xf32>, vector<128x128xf32>, vector<128x128xf32> -> vector<128x128xf32>
    %49 = arith.addf %46, %48 : vector<128x128xf32>
    %c272 = arith.constant 272 : index
    %c0_26 = arith.constant 0 : index
    %50 = vector.load %arg6[%c272, %c0_26] : memref<3136x128xf32, #tpu.memory_space<vmem>>, vector<8x128xf32>
    %cst_27 = arith.constant dense<0.000000e+00> : vector<128x128xf32>
    %51 = tpu.matmul %36, %50, %cst_27 {dimension_numbers = #tpu.dot_dimension_numbers<[1], [0], [0], [1], [0, 0, 1, 1], [], []>} : vector<128x8xf32>, vector<8x128xf32>, vector<128x128xf32> -> vector<128x128xf32>
    %52 = arith.addf %49, %51 : vector<128x128xf32>
    %c3113 = arith.constant 3113 : index
    %c0_28 = arith.constant 0 : index
    %53 = vector.load %arg6[%c3113, %c0_28] : memref<3136x128xf32, #tpu.memory_space<vmem>>, vector<1x128xf32>
    %54 = vector.broadcast %53 : vector<1x128xf32> to vector<128x128xf32>
    %55 = arith.addf %52, %54 : vector<128x128xf32>
    %cst_29 = arith.constant 0.000000e+00 : f32
    %56 = vector.broadcast %cst_29 : f32 to vector<128x128xf32>
    %57 = arith.maximumf %55, %56 : vector<128x128xf32>
    %c0_30 = arith.constant 0 : index
    %c0_31 = arith.constant 0 : index
    %58 = vector.load %arg7[%c0_30, %c0_31] : memref<392x256xf32, #tpu.memory_space<vmem>>, vector<128x256xf32>
    %cst_32 = arith.constant dense<0.000000e+00> : vector<128x256xf32>
    %59 = tpu.matmul %57, %58, %cst_32 {dimension_numbers = #tpu.dot_dimension_numbers<[1], [0], [0], [1], [0, 0, 1, 1], [], []>} : vector<128x128xf32>, vector<128x256xf32>, vector<128x256xf32> -> vector<128x256xf32>
    %c384 = arith.constant 384 : index
    %c0_33 = arith.constant 0 : index
    %60 = vector.load %arg7[%c384, %c0_33] : memref<392x256xf32, #tpu.memory_space<vmem>>, vector<1x256xf32>
    %61 = vector.broadcast %60 : vector<1x256xf32> to vector<128x256xf32>
    %62 = arith.addf %59, %61 : vector<128x256xf32>
    %cst_34 = arith.constant 0.000000e+00 : f32
    %63 = vector.broadcast %cst_34 : f32 to vector<128x256xf32>
    %64 = arith.maximumf %62, %63 : vector<128x256xf32>
    %c280 = arith.constant 280 : index
    %c0_35 = arith.constant 0 : index
    %65 = vector.load %arg6[%c280, %c0_35] : memref<3136x128xf32, #tpu.memory_space<vmem>>, vector<256x128xf32>
    %cst_36 = arith.constant dense<0.000000e+00> : vector<128x128xf32>
    %66 = tpu.matmul %64, %65, %cst_36 {dimension_numbers = #tpu.dot_dimension_numbers<[1], [0], [0], [1], [0, 0, 1, 1], [], []>} : vector<128x256xf32>, vector<256x128xf32>, vector<128x128xf32> -> vector<128x128xf32>
    %c3114 = arith.constant 3114 : index
    %c0_37 = arith.constant 0 : index
    %67 = vector.load %arg6[%c3114, %c0_37] : memref<3136x128xf32, #tpu.memory_space<vmem>>, vector<1x128xf32>
    %68 = vector.broadcast %67 : vector<1x128xf32> to vector<128x128xf32>
    %69 = arith.addf %66, %68 : vector<128x128xf32>
    %cst_38 = arith.constant 0.000000e+00 : f32
    %70 = vector.broadcast %cst_38 : f32 to vector<128x128xf32>
    %71 = arith.maximumf %69, %70 : vector<128x128xf32>
    %c536 = arith.constant 536 : index
    %c0_39 = arith.constant 0 : index
    %72 = vector.load %arg6[%c536, %c0_39] : memref<3136x128xf32, #tpu.memory_space<vmem>>, vector<128x128xf32>
    %cst_40 = arith.constant dense<0.000000e+00> : vector<128x128xf32>
    %73 = tpu.matmul %71, %72, %cst_40 {dimension_numbers = #tpu.dot_dimension_numbers<[1], [0], [0], [1], [0, 0, 1, 1], [], []>} : vector<128x128xf32>, vector<128x128xf32>, vector<128x128xf32> -> vector<128x128xf32>
    %c3115 = arith.constant 3115 : index
    %c0_41 = arith.constant 0 : index
    %74 = vector.load %arg6[%c3115, %c0_41] : memref<3136x128xf32, #tpu.memory_space<vmem>>, vector<1x128xf32>
    %75 = vector.broadcast %74 : vector<1x128xf32> to vector<128x128xf32>
    %76 = arith.addf %73, %75 : vector<128x128xf32>
    %cst_42 = arith.constant dense<0.000000e+00> : vector<32x128xf32>
    %77 = tpu.matmul %17, %76, %cst_42 {dimension_numbers = #tpu.dot_dimension_numbers<[1], [0], [0], [1], [0, 0, 1, 1], [], []>} : vector<32x128xf32>, vector<128x128xf32>, vector<32x128xf32> -> vector<32x128xf32>
    %78 = vector.broadcast %29 : vector<32x1xf32> to vector<32x128xf32>
    %79 = arith.mulf %77, %78 : vector<32x128xf32>
    %80 = arith.addf %42, %79 : vector<32x128xf32>
    %c664 = arith.constant 664 : index
    %c0_43 = arith.constant 0 : index
    %81 = vector.load %arg6[%c664, %c0_43] : memref<3136x128xf32, #tpu.memory_space<vmem>>, vector<128x128xf32>
    %cst_44 = arith.constant dense<0.000000e+00> : vector<32x128xf32>
    %82 = tpu.matmul %80, %81, %cst_44 {dimension_numbers = #tpu.dot_dimension_numbers<[1], [0], [0], [1], [0, 0, 1, 1], [], []>} : vector<32x128xf32>, vector<128x128xf32>, vector<32x128xf32> -> vector<32x128xf32>
    %c3116 = arith.constant 3116 : index
    %c0_45 = arith.constant 0 : index
    %83 = vector.load %arg6[%c3116, %c0_45] : memref<3136x128xf32, #tpu.memory_space<vmem>>, vector<1x128xf32>
    %84 = vector.broadcast %83 : vector<1x128xf32> to vector<32x128xf32>
    %85 = arith.addf %82, %84 : vector<32x128xf32>
    %cst_46 = arith.constant 0.000000e+00 : f32
    %86 = vector.broadcast %cst_46 : f32 to vector<32x128xf32>
    %87 = arith.maximumf %85, %86 : vector<32x128xf32>
    %c792 = arith.constant 792 : index
    %c0_47 = arith.constant 0 : index
    %88 = vector.load %arg6[%c792, %c0_47] : memref<3136x128xf32, #tpu.memory_space<vmem>>, vector<128x128xf32>
    %cst_48 = arith.constant dense<0.000000e+00> : vector<32x128xf32>
    %89 = tpu.matmul %87, %88, %cst_48 {dimension_numbers = #tpu.dot_dimension_numbers<[1], [0], [0], [1], [0, 0, 1, 1], [], []>} : vector<32x128xf32>, vector<128x128xf32>, vector<32x128xf32> -> vector<32x128xf32>
    %c3117 = arith.constant 3117 : index
    %c0_49 = arith.constant 0 : index
    %90 = vector.load %arg6[%c3117, %c0_49] : memref<3136x128xf32, #tpu.memory_space<vmem>>, vector<1x128xf32>
    %91 = vector.broadcast %90 : vector<1x128xf32> to vector<32x128xf32>
    %92 = arith.addf %89, %91 : vector<32x128xf32>
    %cst_50 = arith.constant dense<0.000000e+00> : vector<128x128xf32>
    %93 = tpu.matmul %5, %92, %cst_50 {dimension_numbers = #tpu.dot_dimension_numbers<[1], [0], [0], [1], [0, 0, 1, 1], [], []>} : vector<128x32xf32>, vector<32x128xf32>, vector<128x128xf32> -> vector<128x128xf32>
    %cst_51 = arith.constant dense<0.000000e+00> : vector<128x128xf32>
    %94 = tpu.matmul %11, %92, %cst_51 {dimension_numbers = #tpu.dot_dimension_numbers<[1], [0], [0], [1], [0, 0, 1, 1], [], []>} : vector<128x32xf32>, vector<32x128xf32>, vector<128x128xf32> -> vector<128x128xf32>
    %c920 = arith.constant 920 : index
    %c0_52 = arith.constant 0 : index
    %95 = vector.load %arg6[%c920, %c0_52] : memref<3136x128xf32, #tpu.memory_space<vmem>>, vector<128x128xf32>
    %cst_53 = arith.constant dense<0.000000e+00> : vector<128x128xf32>
    %96 = tpu.matmul %93, %95, %cst_53 {dimension_numbers = #tpu.dot_dimension_numbers<[1], [0], [0], [1], [0, 0, 1, 1], [], []>} : vector<128x128xf32>, vector<128x128xf32>, vector<128x128xf32> -> vector<128x128xf32>
    %c1048 = arith.constant 1048 : index
    %c0_54 = arith.constant 0 : index
    %97 = vector.load %arg6[%c1048, %c0_54] : memref<3136x128xf32, #tpu.memory_space<vmem>>, vector<128x128xf32>
    %cst_55 = arith.constant dense<0.000000e+00> : vector<128x128xf32>
    %98 = tpu.matmul %94, %97, %cst_55 {dimension_numbers = #tpu.dot_dimension_numbers<[1], [0], [0], [1], [0, 0, 1, 1], [], []>} : vector<128x128xf32>, vector<128x128xf32>, vector<128x128xf32> -> vector<128x128xf32>
    %99 = arith.addf %96, %98 : vector<128x128xf32>
    %c1176 = arith.constant 1176 : index
    %c0_56 = arith.constant 0 : index
    %100 = vector.load %arg6[%c1176, %c0_56] : memref<3136x128xf32, #tpu.memory_space<vmem>>, vector<8x128xf32>
    %cst_57 = arith.constant dense<0.000000e+00> : vector<128x128xf32>
    %101 = tpu.matmul %36, %100, %cst_57 {dimension_numbers = #tpu.dot_dimension_numbers<[1], [0], [0], [1], [0, 0, 1, 1], [], []>} : vector<128x8xf32>, vector<8x128xf32>, vector<128x128xf32> -> vector<128x128xf32>
    %102 = arith.addf %99, %101 : vector<128x128xf32>
    %c3118 = arith.constant 3118 : index
    %c0_58 = arith.constant 0 : index
    %103 = vector.load %arg6[%c3118, %c0_58] : memref<3136x128xf32, #tpu.memory_space<vmem>>, vector<1x128xf32>
    %104 = vector.broadcast %103 : vector<1x128xf32> to vector<128x128xf32>
    %105 = arith.addf %102, %104 : vector<128x128xf32>
    %cst_59 = arith.constant 0.000000e+00 : f32
    %106 = vector.broadcast %cst_59 : f32 to vector<128x128xf32>
    %107 = arith.maximumf %105, %106 : vector<128x128xf32>
    %c128 = arith.constant 128 : index
    %c0_60 = arith.constant 0 : index
    %108 = vector.load %arg7[%c128, %c0_60] : memref<392x256xf32, #tpu.memory_space<vmem>>, vector<128x256xf32>
    %cst_61 = arith.constant dense<0.000000e+00> : vector<128x256xf32>
    %109 = tpu.matmul %107, %108, %cst_61 {dimension_numbers = #tpu.dot_dimension_numbers<[1], [0], [0], [1], [0, 0, 1, 1], [], []>} : vector<128x128xf32>, vector<128x256xf32>, vector<128x256xf32> -> vector<128x256xf32>
    %c385 = arith.constant 385 : index
    %c0_62 = arith.constant 0 : index
    %110 = vector.load %arg7[%c385, %c0_62] : memref<392x256xf32, #tpu.memory_space<vmem>>, vector<1x256xf32>
    %111 = vector.broadcast %110 : vector<1x256xf32> to vector<128x256xf32>
    %112 = arith.addf %109, %111 : vector<128x256xf32>
    %cst_63 = arith.constant 0.000000e+00 : f32
    %113 = vector.broadcast %cst_63 : f32 to vector<128x256xf32>
    %114 = arith.maximumf %112, %113 : vector<128x256xf32>
    %c1184 = arith.constant 1184 : index
    %c0_64 = arith.constant 0 : index
    %115 = vector.load %arg6[%c1184, %c0_64] : memref<3136x128xf32, #tpu.memory_space<vmem>>, vector<256x128xf32>
    %cst_65 = arith.constant dense<0.000000e+00> : vector<128x128xf32>
    %116 = tpu.matmul %114, %115, %cst_65 {dimension_numbers = #tpu.dot_dimension_numbers<[1], [0], [0], [1], [0, 0, 1, 1], [], []>} : vector<128x256xf32>, vector<256x128xf32>, vector<128x128xf32> -> vector<128x128xf32>
    %c3119 = arith.constant 3119 : index
    %c0_66 = arith.constant 0 : index
    %117 = vector.load %arg6[%c3119, %c0_66] : memref<3136x128xf32, #tpu.memory_space<vmem>>, vector<1x128xf32>
    %118 = vector.broadcast %117 : vector<1x128xf32> to vector<128x128xf32>
    %119 = arith.addf %116, %118 : vector<128x128xf32>
    %cst_67 = arith.constant 0.000000e+00 : f32
    %120 = vector.broadcast %cst_67 : f32 to vector<128x128xf32>
    %121 = arith.maximumf %119, %120 : vector<128x128xf32>
    %c1440 = arith.constant 1440 : index
    %c0_68 = arith.constant 0 : index
    %122 = vector.load %arg6[%c1440, %c0_68] : memref<3136x128xf32, #tpu.memory_space<vmem>>, vector<128x128xf32>
    %cst_69 = arith.constant dense<0.000000e+00> : vector<128x128xf32>
    %123 = tpu.matmul %121, %122, %cst_69 {dimension_numbers = #tpu.dot_dimension_numbers<[1], [0], [0], [1], [0, 0, 1, 1], [], []>} : vector<128x128xf32>, vector<128x128xf32>, vector<128x128xf32> -> vector<128x128xf32>
    %c3120 = arith.constant 3120 : index
    %c0_70 = arith.constant 0 : index
    %124 = vector.load %arg6[%c3120, %c0_70] : memref<3136x128xf32, #tpu.memory_space<vmem>>, vector<1x128xf32>
    %125 = vector.broadcast %124 : vector<1x128xf32> to vector<128x128xf32>
    %126 = arith.addf %123, %125 : vector<128x128xf32>
    %cst_71 = arith.constant dense<0.000000e+00> : vector<32x128xf32>
    %127 = tpu.matmul %17, %126, %cst_71 {dimension_numbers = #tpu.dot_dimension_numbers<[1], [0], [0], [1], [0, 0, 1, 1], [], []>} : vector<32x128xf32>, vector<128x128xf32>, vector<32x128xf32> -> vector<32x128xf32>
    %128 = vector.broadcast %29 : vector<32x1xf32> to vector<32x128xf32>
    %129 = arith.mulf %127, %128 : vector<32x128xf32>
    %130 = arith.addf %92, %129 : vector<32x128xf32>
    %c1568 = arith.constant 1568 : index
    %c0_72 = arith.constant 0 : index
    %131 = vector.load %arg6[%c1568, %c0_72] : memref<3136x128xf32, #tpu.memory_space<vmem>>, vector<128x128xf32>
    %cst_73 = arith.constant dense<0.000000e+00> : vector<32x128xf32>
    %132 = tpu.matmul %130, %131, %cst_73 {dimension_numbers = #tpu.dot_dimension_numbers<[1], [0], [0], [1], [0, 0, 1, 1], [], []>} : vector<32x128xf32>, vector<128x128xf32>, vector<32x128xf32> -> vector<32x128xf32>
    %c3121 = arith.constant 3121 : index
    %c0_74 = arith.constant 0 : index
    %133 = vector.load %arg6[%c3121, %c0_74] : memref<3136x128xf32, #tpu.memory_space<vmem>>, vector<1x128xf32>
    %134 = vector.broadcast %133 : vector<1x128xf32> to vector<32x128xf32>
    %135 = arith.addf %132, %134 : vector<32x128xf32>
    %cst_75 = arith.constant 0.000000e+00 : f32
    %136 = vector.broadcast %cst_75 : f32 to vector<32x128xf32>
    %137 = arith.maximumf %135, %136 : vector<32x128xf32>
    %c1696 = arith.constant 1696 : index
    %c0_76 = arith.constant 0 : index
    %138 = vector.load %arg6[%c1696, %c0_76] : memref<3136x128xf32, #tpu.memory_space<vmem>>, vector<128x128xf32>
    %cst_77 = arith.constant dense<0.000000e+00> : vector<32x128xf32>
    %139 = tpu.matmul %137, %138, %cst_77 {dimension_numbers = #tpu.dot_dimension_numbers<[1], [0], [0], [1], [0, 0, 1, 1], [], []>} : vector<32x128xf32>, vector<128x128xf32>, vector<32x128xf32> -> vector<32x128xf32>
    %c3122 = arith.constant 3122 : index
    %c0_78 = arith.constant 0 : index
    %140 = vector.load %arg6[%c3122, %c0_78] : memref<3136x128xf32, #tpu.memory_space<vmem>>, vector<1x128xf32>
    %141 = vector.broadcast %140 : vector<1x128xf32> to vector<32x128xf32>
    %142 = arith.addf %139, %141 : vector<32x128xf32>
    %cst_79 = arith.constant dense<0.000000e+00> : vector<128x128xf32>
    %143 = tpu.matmul %5, %142, %cst_79 {dimension_numbers = #tpu.dot_dimension_numbers<[1], [0], [0], [1], [0, 0, 1, 1], [], []>} : vector<128x32xf32>, vector<32x128xf32>, vector<128x128xf32> -> vector<128x128xf32>
    %cst_80 = arith.constant dense<0.000000e+00> : vector<128x128xf32>
    %144 = tpu.matmul %11, %142, %cst_80 {dimension_numbers = #tpu.dot_dimension_numbers<[1], [0], [0], [1], [0, 0, 1, 1], [], []>} : vector<128x32xf32>, vector<32x128xf32>, vector<128x128xf32> -> vector<128x128xf32>
    %c1824 = arith.constant 1824 : index
    %c0_81 = arith.constant 0 : index
    %145 = vector.load %arg6[%c1824, %c0_81] : memref<3136x128xf32, #tpu.memory_space<vmem>>, vector<128x128xf32>
    %cst_82 = arith.constant dense<0.000000e+00> : vector<128x128xf32>
    %146 = tpu.matmul %143, %145, %cst_82 {dimension_numbers = #tpu.dot_dimension_numbers<[1], [0], [0], [1], [0, 0, 1, 1], [], []>} : vector<128x128xf32>, vector<128x128xf32>, vector<128x128xf32> -> vector<128x128xf32>
    %c1952 = arith.constant 1952 : index
    %c0_83 = arith.constant 0 : index
    %147 = vector.load %arg6[%c1952, %c0_83] : memref<3136x128xf32, #tpu.memory_space<vmem>>, vector<128x128xf32>
    %cst_84 = arith.constant dense<0.000000e+00> : vector<128x128xf32>
    %148 = tpu.matmul %144, %147, %cst_84 {dimension_numbers = #tpu.dot_dimension_numbers<[1], [0], [0], [1], [0, 0, 1, 1], [], []>} : vector<128x128xf32>, vector<128x128xf32>, vector<128x128xf32> -> vector<128x128xf32>
    %149 = arith.addf %146, %148 : vector<128x128xf32>
    %c2080 = arith.constant 2080 : index
    %c0_85 = arith.constant 0 : index
    %150 = vector.load %arg6[%c2080, %c0_85] : memref<3136x128xf32, #tpu.memory_space<vmem>>, vector<8x128xf32>
    %cst_86 = arith.constant dense<0.000000e+00> : vector<128x128xf32>
    %151 = tpu.matmul %36, %150, %cst_86 {dimension_numbers = #tpu.dot_dimension_numbers<[1], [0], [0], [1], [0, 0, 1, 1], [], []>} : vector<128x8xf32>, vector<8x128xf32>, vector<128x128xf32> -> vector<128x128xf32>
    %152 = arith.addf %149, %151 : vector<128x128xf32>
    %c3123 = arith.constant 3123 : index
    %c0_87 = arith.constant 0 : index
    %153 = vector.load %arg6[%c3123, %c0_87] : memref<3136x128xf32, #tpu.memory_space<vmem>>, vector<1x128xf32>
    %154 = vector.broadcast %153 : vector<1x128xf32> to vector<128x128xf32>
    %155 = arith.addf %152, %154 : vector<128x128xf32>
    %cst_88 = arith.constant 0.000000e+00 : f32
    %156 = vector.broadcast %cst_88 : f32 to vector<128x128xf32>
    %157 = arith.maximumf %155, %156 : vector<128x128xf32>
    %c256 = arith.constant 256 : index
    %c0_89 = arith.constant 0 : index
    %158 = vector.load %arg7[%c256, %c0_89] : memref<392x256xf32, #tpu.memory_space<vmem>>, vector<128x256xf32>
    %cst_90 = arith.constant dense<0.000000e+00> : vector<128x256xf32>
    %159 = tpu.matmul %157, %158, %cst_90 {dimension_numbers = #tpu.dot_dimension_numbers<[1], [0], [0], [1], [0, 0, 1, 1], [], []>} : vector<128x128xf32>, vector<128x256xf32>, vector<128x256xf32> -> vector<128x256xf32>
    %c386 = arith.constant 386 : index
    %c0_91 = arith.constant 0 : index
    %160 = vector.load %arg7[%c386, %c0_91] : memref<392x256xf32, #tpu.memory_space<vmem>>, vector<1x256xf32>
    %161 = vector.broadcast %160 : vector<1x256xf32> to vector<128x256xf32>
    %162 = arith.addf %159, %161 : vector<128x256xf32>
    %cst_92 = arith.constant 0.000000e+00 : f32
    %163 = vector.broadcast %cst_92 : f32 to vector<128x256xf32>
    %164 = arith.maximumf %162, %163 : vector<128x256xf32>
    %c2088 = arith.constant 2088 : index
    %c0_93 = arith.constant 0 : index
    %165 = vector.load %arg6[%c2088, %c0_93] : memref<3136x128xf32, #tpu.memory_space<vmem>>, vector<256x128xf32>
    %cst_94 = arith.constant dense<0.000000e+00> : vector<128x128xf32>
    %166 = tpu.matmul %164, %165, %cst_94 {dimension_numbers = #tpu.dot_dimension_numbers<[1], [0], [0], [1], [0, 0, 1, 1], [], []>} : vector<128x256xf32>, vector<256x128xf32>, vector<128x128xf32> -> vector<128x128xf32>
    %c3124 = arith.constant 3124 : index
    %c0_95 = arith.constant 0 : index
    %167 = vector.load %arg6[%c3124, %c0_95] : memref<3136x128xf32, #tpu.memory_space<vmem>>, vector<1x128xf32>
    %168 = vector.broadcast %167 : vector<1x128xf32> to vector<128x128xf32>
    %169 = arith.addf %166, %168 : vector<128x128xf32>
    %cst_96 = arith.constant 0.000000e+00 : f32
    %170 = vector.broadcast %cst_96 : f32 to vector<128x128xf32>
    %171 = arith.maximumf %169, %170 : vector<128x128xf32>
    %c2344 = arith.constant 2344 : index
    %c0_97 = arith.constant 0 : index
    %172 = vector.load %arg6[%c2344, %c0_97] : memref<3136x128xf32, #tpu.memory_space<vmem>>, vector<128x128xf32>
    %cst_98 = arith.constant dense<0.000000e+00> : vector<128x128xf32>
    %173 = tpu.matmul %171, %172, %cst_98 {dimension_numbers = #tpu.dot_dimension_numbers<[1], [0], [0], [1], [0, 0, 1, 1], [], []>} : vector<128x128xf32>, vector<128x128xf32>, vector<128x128xf32> -> vector<128x128xf32>
    %c3125 = arith.constant 3125 : index
    %c0_99 = arith.constant 0 : index
    %174 = vector.load %arg6[%c3125, %c0_99] : memref<3136x128xf32, #tpu.memory_space<vmem>>, vector<1x128xf32>
    %175 = vector.broadcast %174 : vector<1x128xf32> to vector<128x128xf32>
    %176 = arith.addf %173, %175 : vector<128x128xf32>
    %cst_100 = arith.constant dense<0.000000e+00> : vector<32x128xf32>
    %177 = tpu.matmul %17, %176, %cst_100 {dimension_numbers = #tpu.dot_dimension_numbers<[1], [0], [0], [1], [0, 0, 1, 1], [], []>} : vector<32x128xf32>, vector<128x128xf32>, vector<32x128xf32> -> vector<32x128xf32>
    %178 = vector.broadcast %29 : vector<32x1xf32> to vector<32x128xf32>
    %179 = arith.mulf %177, %178 : vector<32x128xf32>
    %180 = arith.addf %142, %179 : vector<32x128xf32>
    %c2472 = arith.constant 2472 : index
    %c0_101 = arith.constant 0 : index
    %181 = vector.load %arg6[%c2472, %c0_101] : memref<3136x128xf32, #tpu.memory_space<vmem>>, vector<128x128xf32>
    %cst_102 = arith.constant dense<0.000000e+00> : vector<32x128xf32>
    %182 = tpu.matmul %180, %181, %cst_102 {dimension_numbers = #tpu.dot_dimension_numbers<[1], [0], [0], [1], [0, 0, 1, 1], [], []>} : vector<32x128xf32>, vector<128x128xf32>, vector<32x128xf32> -> vector<32x128xf32>
    %c3126 = arith.constant 3126 : index
    %c0_103 = arith.constant 0 : index
    %183 = vector.load %arg6[%c3126, %c0_103] : memref<3136x128xf32, #tpu.memory_space<vmem>>, vector<1x128xf32>
    %184 = vector.broadcast %183 : vector<1x128xf32> to vector<32x128xf32>
    %185 = arith.addf %182, %184 : vector<32x128xf32>
    %cst_104 = arith.constant 0.000000e+00 : f32
    %186 = vector.broadcast %cst_104 : f32 to vector<32x128xf32>
    %187 = arith.maximumf %185, %186 : vector<32x128xf32>
    %c2600 = arith.constant 2600 : index
    %c0_105 = arith.constant 0 : index
    %188 = vector.load %arg6[%c2600, %c0_105] : memref<3136x128xf32, #tpu.memory_space<vmem>>, vector<128x128xf32>
    %cst_106 = arith.constant dense<0.000000e+00> : vector<32x128xf32>
    %189 = tpu.matmul %187, %188, %cst_106 {dimension_numbers = #tpu.dot_dimension_numbers<[1], [0], [0], [1], [0, 0, 1, 1], [], []>} : vector<32x128xf32>, vector<128x128xf32>, vector<32x128xf32> -> vector<32x128xf32>
    %c3127 = arith.constant 3127 : index
    %c0_107 = arith.constant 0 : index
    %190 = vector.load %arg6[%c3127, %c0_107] : memref<3136x128xf32, #tpu.memory_space<vmem>>, vector<1x128xf32>
    %191 = vector.broadcast %190 : vector<1x128xf32> to vector<32x128xf32>
    %192 = arith.addf %189, %191 : vector<32x128xf32>
    %c2728 = arith.constant 2728 : index
    %c0_108 = arith.constant 0 : index
    %193 = vector.load %arg6[%c2728, %c0_108] : memref<3136x128xf32, #tpu.memory_space<vmem>>, vector<128x128xf32>
    %cst_109 = arith.constant dense<0.000000e+00> : vector<32x128xf32>
    %194 = tpu.matmul %192, %193, %cst_109 {dimension_numbers = #tpu.dot_dimension_numbers<[1], [0], [0], [1], [0, 0, 1, 1], [], []>} : vector<32x128xf32>, vector<128x128xf32>, vector<32x128xf32> -> vector<32x128xf32>
    %c3128 = arith.constant 3128 : index
    %c0_110 = arith.constant 0 : index
    %195 = vector.load %arg6[%c3128, %c0_110] : memref<3136x128xf32, #tpu.memory_space<vmem>>, vector<1x128xf32>
    %196 = vector.broadcast %195 : vector<1x128xf32> to vector<32x128xf32>
    %197 = arith.addf %194, %196 : vector<32x128xf32>
    %cst_111 = arith.constant 0.000000e+00 : f32
    %198 = vector.broadcast %cst_111 : f32 to vector<32x128xf32>
    %199 = arith.maximumf %197, %198 : vector<32x128xf32>
    %c2856 = arith.constant 2856 : index
    %c0_112 = arith.constant 0 : index
    %200 = vector.load %arg6[%c2856, %c0_112] : memref<3136x128xf32, #tpu.memory_space<vmem>>, vector<128x128xf32>
    %cst_113 = arith.constant dense<0.000000e+00> : vector<32x128xf32>
    %201 = tpu.matmul %199, %200, %cst_113 {dimension_numbers = #tpu.dot_dimension_numbers<[1], [0], [0], [1], [0, 0, 1, 1], [], []>} : vector<32x128xf32>, vector<128x128xf32>, vector<32x128xf32> -> vector<32x128xf32>
    %c3129 = arith.constant 3129 : index
    %c0_114 = arith.constant 0 : index
    %202 = vector.load %arg6[%c3129, %c0_114] : memref<3136x128xf32, #tpu.memory_space<vmem>>, vector<1x128xf32>
    %203 = vector.broadcast %202 : vector<1x128xf32> to vector<32x128xf32>
    %204 = arith.addf %201, %203 : vector<32x128xf32>
    %cst_115 = arith.constant 0.000000e+00 : f32
    %205 = vector.broadcast %cst_115 : f32 to vector<32x128xf32>
    %206 = arith.maximumf %204, %205 : vector<32x128xf32>
    %c2984 = arith.constant 2984 : index
    %c0_116 = arith.constant 0 : index
    %207 = vector.load %arg6[%c2984, %c0_116] : memref<3136x128xf32, #tpu.memory_space<vmem>>, vector<128x128xf32>
    %cst_117 = arith.constant dense<0.000000e+00> : vector<32x128xf32>
    %208 = tpu.matmul %206, %207, %cst_117 {dimension_numbers = #tpu.dot_dimension_numbers<[1], [0], [0], [1], [0, 0, 1, 1], [], []>} : vector<32x128xf32>, vector<128x128xf32>, vector<32x128xf32> -> vector<32x128xf32>
    %c3130 = arith.constant 3130 : index
    %c0_118 = arith.constant 0 : index
    %209 = vector.load %arg6[%c3130, %c0_118] : memref<3136x128xf32, #tpu.memory_space<vmem>>, vector<1x128xf32>
    %210 = vector.broadcast %209 : vector<1x128xf32> to vector<32x128xf32>
    %211 = arith.addf %208, %210 : vector<32x128xf32>
    %cst_119 = arith.constant dense<0.000000e+00> : vector<2x128xf32>
    %212 = tpu.matmul %23, %211, %cst_119 {dimension_numbers = #tpu.dot_dimension_numbers<[1], [0], [0], [1], [0, 0, 1, 1], [], []>} : vector<2x32xf32>, vector<32x128xf32>, vector<2x128xf32> -> vector<2x128xf32>
    %213 = vector.broadcast %35 : vector<2x1xf32> to vector<2x128xf32>
    %214 = arith.mulf %212, %213 : vector<2x128xf32>
    %c0_120 = arith.constant 0 : index
    %c0_121 = arith.constant 0 : index
    %215 = vector.load %arg8[%c0_120, %c0_121] : memref<2x128xf32, #tpu.memory_space<vmem>>, vector<2x128xf32>
    tpu.vector_store %arg8[%c0_120, %c0_121], %214 {strides = array<i32>} : memref<2x128xf32, #tpu.memory_space<vmem>>, vector<2x128xf32>,
    return
  }
}

</mosaic_0001>

<llo_original>
// kernel: gnn_forward.1
$region0: #{gnn_forward.1}
  #allocation0 [shape = 'u32[]', space=smem, size = 0x4, offset = 0x4, fixed_abs, tag = 'smem constant byte address 0x4 - core index']
  #allocation1 [shape = 'u32[144,128]{1,0:T(1,128)}', space=vmem, size = 0x12000, scoped, tag = 'internal scratch']
  %s0 = inlined_call_operand.vmem [shape: f32[32,16], index: 0, kind: input, shape index: {}]
  %s1 = inlined_call_operand.vmem [shape: f32[128,8], index: 1, kind: input, shape index: {}]
  %s2 = inlined_call_operand.vmem [shape: s32[128,1], index: 2, kind: input, shape index: {}]
  %s3 = inlined_call_operand.vmem [shape: s32[128,1], index: 3, kind: input, shape index: {}]
  %s4 = inlined_call_operand.vmem [shape: s32[1,128], index: 4, kind: input, shape index: {}]
  %s5 = inlined_call_operand.hbm [shape: s32[1,32], index: 5, kind: input, shape index: {}]
  %s6 = inlined_call_operand.hbm [shape: f32[3136,128], index: 6, kind: input, shape index: {}]
  %s7 = inlined_call_operand.hbm [shape: f32[392,256], index: 7, kind: input, shape index: {}]
  %s8 = inlined_call_operand.hbm [shape: f32[2,128], index: 8, kind: output, shape index: {}]
  %s9 = sld [smem:[#allocation0]]
  $region54: #{gnn_forward.1} parent=0
    _
  %s11 = ssub.s32 1, %s9
  %s12 = scalar_select 0, %s11, %s9
  $region1: #{gnn_forward.1} parent=0
    #allocation2 [shape = 'u8[512]{0}', space=vmem, size = 0x400, scoped, tag = 'input window, operand 5, single buffered']
    #allocation3 [shape = 's32[1]{0}', space=sflag, size = 0x4, scoped, tag = 'scoped memory for gnn_forward.1']
    #allocation4 [shape = 's32[1]{0}', space=sflag, size = 0x4, scoped, tag = 'scoped memory for gnn_forward.1']
    #allocation5 [shape = 'u8[1605632]{0}', space=vmem, size = 0x188000, scoped, tag = 'input window, operand 6, single buffered']
    #allocation6 [shape = 's32[1]{0}', space=sflag, size = 0x4, scoped, tag = 'scoped memory for gnn_forward.1']
    #allocation7 [shape = 'u8[401408]{0}', space=vmem, size = 0x62000, scoped, tag = 'input window, operand 7, single buffered']
    #allocation8 [shape = 'u8[1024]{0}', space=vmem, size = 0x400, scoped, tag = 'output window, operand 0, single buffered']
    %13 = vsyncpa [#allocation3], 0
    %14 = vsyncpa [#allocation6], 0
    %15 = vsyncpa [#allocation4], 0
    // Predicated region
    $region2: #{gnn_forward.1} parent=1 // pred_check
      _
    $region3: #{gnn_forward.1} parent=1 // pred_check_branch
      %17 = sbr.rel (0) target = $region5
    $region4: #{gnn_forward.1} parent=1 // pred_region
      _
    $region5: #{gnn_forward.1} parent=1 // pred_fallthru
      _
    // Predicated region
    $region6: #{gnn_forward.1} parent=1 // pred_check
      _
    $region7: #{gnn_forward.1} parent=1 // pred_check_branch
      %19 = sbr.rel (0) target = $region9
    $region8: #{gnn_forward.1} parent=1 // pred_region
      _
    $region9: #{gnn_forward.1} parent=1 // pred_fallthru
      _
    // Predicated region
    $region10: #{gnn_forward.1} parent=1 // pred_check
      _
    $region11: #{gnn_forward.1} parent=1 // pred_check_branch
      %21 = sbr.rel (0) target = $region13
    $region12: #{gnn_forward.1} parent=1 // pred_region
      _
    $region13: #{gnn_forward.1} parent=1 // pred_fallthru
      _
    // Predicated region
    $region14: #{gnn_forward.1} parent=1 // pred_check
      _
    $region15: #{gnn_forward.1} parent=1 // pred_check_branch
      %23 = sbr.rel (0) target = $region17
    $region16: #{gnn_forward.1} parent=1 // pred_region
      _
    $region17: #{gnn_forward.1} parent=1 // pred_fallthru
      _
    // Predicated region
    $region18: #{gnn_forward.1} parent=1 // pred_check
      _
    $region19: #{gnn_forward.1} parent=1 // pred_check_branch
      %25 = sbr.rel (0) target = $region21
    $region20: #{gnn_forward.1} parent=1 // pred_region
      _
    $region21: #{gnn_forward.1} parent=1 // pred_fallthru
      _
    // Predicated region
    $region22: #{gnn_forward.1} parent=1 // pred_check
      _
    $region23: #{gnn_forward.1} parent=1 // pred_check_branch
      %27 = sbr.rel (0) target = $region25
    $region24: #{gnn_forward.1} parent=1 // pred_region
      %s29 = ssub.s32 16, 16
      %30 = vsyncadd [#allocation3], %s29
      %s32 = sshll.u32 [#allocation2], 4
      %s33 = int_to_ptr.vmem [resolvable:$true] %s32
      %35 = dma.hbm_to_vmem [thread:$0]  %s5, 16, %s33, [#allocation3]
    $region25: #{gnn_forward.1} parent=1 // pred_fallthru
      _
    // Predicated region
    $region26: #{gnn_forward.1} parent=1 // pred_check
      _
    $region27: #{gnn_forward.1} parent=1 // pred_check_branch
      %37 = sbr.rel (0) target = $region29
    $region28: #{gnn_forward.1} parent=1 // pred_region
      %s39 = ssub.s32 50176, 50176
      %40 = vsyncadd [#allocation6], %s39
      %s41 = sshll.u32 [#allocation5], 4
      %s42 = int_to_ptr.vmem [resolvable:$true] %s41
      %47 = dma.hbm_to_vmem [thread:$0]  %s6, 50176, %s42, [#allocation6], 128, 128, 8
    $region29: #{gnn_forward.1} parent=1 // pred_fallthru
      _
    // Predicated region
    $region30: #{gnn_forward.1} parent=1 // pred_check
      _
    $region31: #{gnn_forward.1} parent=1 // pred_check_branch
      %49 = sbr.rel (0) target = $region33
    $region32: #{gnn_forward.1} parent=1 // pred_region
      %s51 = ssub.s32 12544, 12544
      %52 = vsyncadd [#allocation6], %s51
      %s53 = sshll.u32 [#allocation7], 4
      %s54 = int_to_ptr.vmem [resolvable:$true] %s53
      %59 = dma.hbm_to_vmem [thread:$0]  %s7, 12544, %s54, [#allocation6], 256, 256, 16
    $region33: #{gnn_forward.1} parent=1 // pred_fallthru
      _
    // Predicated region
    $region34: #{gnn_forward.1} parent=1 // pred_check
      _
    $region35: #{gnn_forward.1} parent=1 // pred_check_branch
      %61 = sbr.rel (0) target = $region37
    $region36: #{gnn_forward.1} parent=1 // pred_region
      %62 = dma.done [#allocation3], 16
    $region37: #{gnn_forward.1} parent=1 // pred_fallthru
      _
    // Predicated region
    $region38: #{gnn_forward.1} parent=1 // pred_check
      _
    $region39: #{gnn_forward.1} parent=1 // pred_check_branch
      %64 = sbr.rel (0) target = $region41
    $region40: #{gnn_forward.1} parent=1 // pred_region
      %65 = dma.done [#allocation6], 50176
    $region41: #{gnn_forward.1} parent=1 // pred_fallthru
      _
    // Predicated region
    $region42: #{gnn_forward.1} parent=1 // pred_check
      _
    $region43: #{gnn_forward.1} parent=1 // pred_check_branch
      %67 = sbr.rel (0) target = $region45
    $region44: #{gnn_forward.1} parent=1 // pred_region
      %68 = dma.done [#allocation6], 12544
    $region45: #{gnn_forward.1} parent=1 // pred_fallthru
      _
    %v69 = vlaneseq
    %v70 = vand.u32 %v69, 127
    %v71 = vld [vmem:[%s2] sm:$0xff]
    %v72 = vld [vmem:[%s2 + $0x8] sm:$0xff]
    %v73 = vld [vmem:[%s2 + $0x10] sm:$0xff]
    %v74 = vld [vmem:[%s2 + $0x18] sm:$0xff]
    %v75 = vld [vmem:[%s2 + $0x20] sm:$0xff]
    %v76 = vld [vmem:[%s2 + $0x28] sm:$0xff]
    %v77 = vld [vmem:[%s2 + $0x30] sm:$0xff]
    %v78 = vld [vmem:[%s2 + $0x38] sm:$0xff]
    %v79 = vld [vmem:[%s2 + $0x40] sm:$0xff]
    %v80 = vld [vmem:[%s2 + $0x48] sm:$0xff]
    %v81 = vld [vmem:[%s2 + $0x50] sm:$0xff]
    %v82 = vld [vmem:[%s2 + $0x58] sm:$0xff]
    %v83 = vld [vmem:[%s2 + $0x60] sm:$0xff]
    %v84 = vld [vmem:[%s2 + $0x68] sm:$0xff]
    %v85 = vld [vmem:[%s2 + $0x70] sm:$0xff]
    %v86 = vld [vmem:[%s2 + $0x78] sm:$0xff]
    %87 = vset.pattern.permute.xlu0 0
    %88 = vperm.xlu0 %87, %v71
    %v89 = vpop.permute.xlu0 %88
    %90 = vset.pattern.permute.xlu0 0
    %91 = vperm.xlu0 %90, %v72
    %v92 = vpop.permute.xlu0 %91
    %93 = vset.pattern.permute.xlu0 0
    %94 = vperm.xlu0 %93, %v73
    %v95 = vpop.permute.xlu0 %94
    %96 = vset.pattern.permute.xlu0 0
    %97 = vperm.xlu0 %96, %v74
    %v98 = vpop.permute.xlu0 %97
    %99 = vset.pattern.permute.xlu0 0
    %100 = vperm.xlu0 %99, %v75
    %v101 = vpop.permute.xlu0 %100
    %102 = vset.pattern.permute.xlu0 0
    %103 = vperm.xlu0 %102, %v76
    %v104 = vpop.permute.xlu0 %103
    %105 = vset.pattern.permute.xlu0 0
    %106 = vperm.xlu0 %105, %v77
    %v107 = vpop.permute.xlu0 %106
    %108 = vset.pattern.permute.xlu0 0
    %109 = vperm.xlu0 %108, %v78
    %v110 = vpop.permute.xlu0 %109
    %111 = vset.pattern.permute.xlu0 0
    %112 = vperm.xlu0 %111, %v79
    %v113 = vpop.permute.xlu0 %112
    %114 = vset.pattern.permute.xlu0 0
    %115 = vperm.xlu0 %114, %v80
    %v116 = vpop.permute.xlu0 %115
    %117 = vset.pattern.permute.xlu0 0
    %118 = vperm.xlu0 %117, %v81
    %v119 = vpop.permute.xlu0 %118
    %120 = vset.pattern.permute.xlu0 0
    %121 = vperm.xlu0 %120, %v82
    %v122 = vpop.permute.xlu0 %121
    %123 = vset.pattern.permute.xlu0 0
    %124 = vperm.xlu0 %123, %v83
    %v125 = vpop.permute.xlu0 %124
    %126 = vset.pattern.permute.xlu0 0
    %127 = vperm.xlu0 %126, %v84
    %v128 = vpop.permute.xlu0 %127
    %129 = vset.pattern.permute.xlu0 0
    %130 = vperm.xlu0 %129, %v85
    %v131 = vpop.permute.xlu0 %130
    %132 = vset.pattern.permute.xlu0 0
    %133 = vperm.xlu0 %132, %v86
    %v134 = vpop.permute.xlu0 %133
    %vm135 = vcmp.eq.s32.totalorder %v70, %v89
    %vm136 = vcmp.eq.s32.totalorder %v70, %v92
    %vm137 = vcmp.eq.s32.totalorder %v70, %v95
    %vm138 = vcmp.eq.s32.totalorder %v70, %v98
    %vm139 = vcmp.eq.s32.totalorder %v70, %v101
    %vm140 = vcmp.eq.s32.totalorder %v70, %v104
    %vm141 = vcmp.eq.s32.totalorder %v70, %v107
    %vm142 = vcmp.eq.s32.totalorder %v70, %v110
    %vm143 = vcmp.eq.s32.totalorder %v70, %v113
    %vm144 = vcmp.eq.s32.totalorder %v70, %v116
    %vm145 = vcmp.eq.s32.totalorder %v70, %v119
    %vm146 = vcmp.eq.s32.totalorder %v70, %v122
    %vm147 = vcmp.eq.s32.totalorder %v70, %v125
    %vm148 = vcmp.eq.s32.totalorder %v70, %v128
    %vm149 = vcmp.eq.s32.totalorder %v70, %v131
    %vm150 = vcmp.eq.s32.totalorder %v70, %v134
    %v151 = vsel %vm135, 1, 0
    %v152 = vsel %vm136, 1, 0
    %v153 = vsel %vm137, 1, 0
    %v154 = vsel %vm138, 1, 0
    %v155 = vsel %vm139, 1, 0
    %v156 = vsel %vm140, 1, 0
    %v157 = vsel %vm141, 1, 0
    %v158 = vsel %vm142, 1, 0
    %v159 = vsel %vm143, 1, 0
    %v160 = vsel %vm144, 1, 0
    %v161 = vsel %vm145, 1, 0
    %v162 = vsel %vm146, 1, 0
    %v163 = vsel %vm147, 1, 0
    %v164 = vsel %vm148, 1, 0
    %v165 = vsel %vm149, 1, 0
    %v166 = vsel %vm150, 1, 0
    %v167 = vcvt.s32.f32 %v151
    %v168 = vcvt.s32.f32 %v152
    %v169 = vcvt.s32.f32 %v153
    %v170 = vcvt.s32.f32 %v154
    %v171 = vcvt.s32.f32 %v155
    %v172 = vcvt.s32.f32 %v156
    %v173 = vcvt.s32.f32 %v157
    %v174 = vcvt.s32.f32 %v158
    %v175 = vcvt.s32.f32 %v159
    %v176 = vcvt.s32.f32 %v160
    %v177 = vcvt.s32.f32 %v161
    %v178 = vcvt.s32.f32 %v162
    %v179 = vcvt.s32.f32 %v163
    %v180 = vcvt.s32.f32 %v164
    %v181 = vcvt.s32.f32 %v165
    %v182 = vcvt.s32.f32 %v166
    %v183 = vld [vmem:[%s3] sm:$0xff]
    %v184 = vld [vmem:[%s3 + $0x8] sm:$0xff]
    %v185 = vld [vmem:[%s3 + $0x10] sm:$0xff]
    %v186 = vld [vmem:[%s3 + $0x18] sm:$0xff]
    %v187 = vld [vmem:[%s3 + $0x20] sm:$0xff]
    %v188 = vld [vmem:[%s3 + $0x28] sm:$0xff]
    %v189 = vld [vmem:[%s3 + $0x30] sm:$0xff]
    %v190 = vld [vmem:[%s3 + $0x38] sm:$0xff]
    %v191 = vld [vmem:[%s3 + $0x40] sm:$0xff]
    %v192 = vld [vmem:[%s3 + $0x48] sm:$0xff]
    %v193 = vld [vmem:[%s3 + $0x50] sm:$0xff]
    %v194 = vld [vmem:[%s3 + $0x58] sm:$0xff]
    %v195 = vld [vmem:[%s3 + $0x60] sm:$0xff]
    %v196 = vld [vmem:[%s3 + $0x68] sm:$0xff]
    %v197 = vld [vmem:[%s3 + $0x70] sm:$0xff]
    %v198 = vld [vmem:[%s3 + $0x78] sm:$0xff]
    %199 = vset.pattern.permute.xlu0 0
    %200 = vperm.xlu0 %199, %v183
    %v201 = vpop.permute.xlu0 %200
    %202 = vset.pattern.permute.xlu0 0
    %203 = vperm.xlu0 %202, %v184
    %v204 = vpop.permute.xlu0 %203
    %205 = vset.pattern.permute.xlu0 0
    %206 = vperm.xlu0 %205, %v185
    %v207 = vpop.permute.xlu0 %206
    %208 = vset.pattern.permute.xlu0 0
    %209 = vperm.xlu0 %208, %v186
    %v210 = vpop.permute.xlu0 %209
    %211 = vset.pattern.permute.xlu0 0
    %212 = vperm.xlu0 %211, %v187
    %v213 = vpop.permute.xlu0 %212
    %214 = vset.pattern.permute.xlu0 0
    %215 = vperm.xlu0 %214, %v188
    %v216 = vpop.permute.xlu0 %215
    %217 = vset.pattern.permute.xlu0 0
    %218 = vperm.xlu0 %217, %v189
    %v219 = vpop.permute.xlu0 %218
    %220 = vset.pattern.permute.xlu0 0
    %221 = vperm.xlu0 %220, %v190
    %v222 = vpop.permute.xlu0 %221
    %223 = vset.pattern.permute.xlu0 0
    %224 = vperm.xlu0 %223, %v191
    %v225 = vpop.permute.xlu0 %224
    %226 = vset.pattern.permute.xlu0 0
    %227 = vperm.xlu0 %226, %v192
    %v228 = vpop.permute.xlu0 %227
    %229 = vset.pattern.permute.xlu0 0
    %230 = vperm.xlu0 %229, %v193
    %v231 = vpop.permute.xlu0 %230
    %232 = vset.pattern.permute.xlu0 0
    %233 = vperm.xlu0 %232, %v194
    %v234 = vpop.permute.xlu0 %233
    %235 = vset.pattern.permute.xlu0 0
    %236 = vperm.xlu0 %235, %v195
    %v237 = vpop.permute.xlu0 %236
    %238 = vset.pattern.permute.xlu0 0
    %239 = vperm.xlu0 %238, %v196
    %v240 = vpop.permute.xlu0 %239
    %241 = vset.pattern.permute.xlu0 0
    %242 = vperm.xlu0 %241, %v197
    %v243 = vpop.permute.xlu0 %242
    %244 = vset.pattern.permute.xlu0 0
    %245 = vperm.xlu0 %244, %v198
    %v246 = vpop.permute.xlu0 %245
    %vm247 = vcmp.eq.s32.totalorder %v70, %v201
    %vm248 = vcmp.eq.s32.totalorder %v70, %v204
    %vm249 = vcmp.eq.s32.totalorder %v70, %v207
    %vm250 = vcmp.eq.s32.totalorder %v70, %v210
    %vm251 = vcmp.eq.s32.totalorder %v70, %v213
    %vm252 = vcmp.eq.s32.totalorder %v70, %v216
    %vm253 = vcmp.eq.s32.totalorder %v70, %v219
    %vm254 = vcmp.eq.s32.totalorder %v70, %v222
    %vm255 = vcmp.eq.s32.totalorder %v70, %v225
    %vm256 = vcmp.eq.s32.totalorder %v70, %v228
    %vm257 = vcmp.eq.s32.totalorder %v70, %v231
    %vm258 = vcmp.eq.s32.totalorder %v70, %v234
    %vm259 = vcmp.eq.s32.totalorder %v70, %v237
    %vm260 = vcmp.eq.s32.totalorder %v70, %v240
    %vm261 = vcmp.eq.s32.totalorder %v70, %v243
    %vm262 = vcmp.eq.s32.totalorder %v70, %v246
    %v263 = vsel %vm247, 1, 0
    %v264 = vsel %vm248, 1, 0
    %v265 = vsel %vm249, 1, 0
    %v266 = vsel %vm250, 1, 0
    %v267 = vsel %vm251, 1, 0
    %v268 = vsel %vm252, 1, 0
    %v269 = vsel %vm253, 1, 0
    %v270 = vsel %vm254, 1, 0
    %v271 = vsel %vm255, 1, 0
    %v272 = vsel %vm256, 1, 0
    %v273 = vsel %vm257, 1, 0
    %v274 = vsel %vm258, 1, 0
    %v275 = vsel %vm259, 1, 0
    %v276 = vsel %vm260, 1, 0
    %v277 = vsel %vm261, 1, 0
    %v278 = vsel %vm262, 1, 0
    %v279 = vcvt.s32.f32 %v263
    %v280 = vcvt.s32.f32 %v264
    %v281 = vcvt.s32.f32 %v265
    %v282 = vcvt.s32.f32 %v266
    %v283 = vcvt.s32.f32 %v267
    %v284 = vcvt.s32.f32 %v268
    %v285 = vcvt.s32.f32 %v269
    %v286 = vcvt.s32.f32 %v270
    %v287 = vcvt.s32.f32 %v271
    %v288 = vcvt.s32.f32 %v272
    %v289 = vcvt.s32.f32 %v273
    %v290 = vcvt.s32.f32 %v274
    %v291 = vcvt.s32.f32 %v275
    %v292 = vcvt.s32.f32 %v276
    %v293 = vcvt.s32.f32 %v277
    %v294 = vcvt.s32.f32 %v278
    %v295 = vlaneseq
    %v296 = vshrl.u32 %v295, 7
    %v297 = vadd.s32 %v296, 8
    %v298 = vadd.s32 %v296, 16
    %v299 = vadd.s32 %v296, 24
    %v300 = vld [vmem:[%s4] sm:$0x1]
    %v301 = vlaneseq
    %v302 = vshrl.u32 %v301, 7
    %v303 = vsub.s32 0, %v302
    %v304 = vrot.slane %v300, %v303
    %vm305 = vcmp.eq.s32.totalorder %v296, %v304
    %vm306 = vcmp.eq.s32.totalorder %v297, %v304
    %vm307 = vcmp.eq.s32.totalorder %v298, %v304
    %vm308 = vcmp.eq.s32.totalorder %v299, %v304
    %v309 = vsel %vm305, 1, 0
    %v310 = vsel %vm306, 1, 0
    %v311 = vsel %vm307, 1, 0
    %v312 = vsel %vm308, 1, 0
    %v313 = vcvt.s32.f32 %v309
    %v314 = vcvt.s32.f32 %v310
    %v315 = vcvt.s32.f32 %v311
    %v316 = vcvt.s32.f32 %v312
    %v317 = vld [vmem:[#allocation2] sm:$0x1]
    %v318 = vlaneseq
    %v319 = vshrl.u32 %v318, 7
    %v320 = vsub.s32 0, %v319
    %v321 = vrot.slane %v317, %v320
    %vm322 = vcmp.eq.s32.totalorder %v296, %v321
    %v323 = vsel %vm322, 1, 0
    %v324 = vcvt.s32.f32 %v323
    %325 = vadd.xlane.f32.xlu0 %v313
    %v326 = vpop.xlane.xlu0 %325
    %327 = vadd.xlane.f32.xlu0 %v314
    %v328 = vpop.xlane.xlu0 %327
    %329 = vadd.xlane.f32.xlu0 %v315
    %v330 = vpop.xlane.xlu0 %329
    %331 = vadd.xlane.f32.xlu0 %v316
    %v332 = vpop.xlane.xlu0 %331
    %v333 = vmax.f32 %v326, 1.0
    %v334 = vmax.f32 %v328, 1.0
    %v335 = vmax.f32 %v330, 1.0
    %v336 = vmax.f32 %v332, 1.0
    %v337 = vrcp.pop %v333
    %v338 = vmul.f32 1.0, %v337
    %v339 = vrcp.pop %v334
    %v340 = vmul.f32 1.0, %v339
    %v341 = vrcp.pop %v335
    %v342 = vmul.f32 1.0, %v341
    %v343 = vrcp.pop %v336
    %v344 = vmul.f32 1.0, %v343
    %vm345 = vcmask 254976
    %v346 = vsel %vm345, %v324, 0.0
    %347 = vadd.xlane.f32.xlu0 %v346
    %v348 = vpop.xlane.xlu0 %347
    %v349 = vmax.f32 %v348, 1.0
    %v350 = vrcp.pop %v349
    %v351 = vmul.f32 1.0, %v350
    %v352 = vld [vmem:[%s1] sm:$0xff]
    %v353 = vld [vmem:[%s1 + $0x8] sm:$0xff]
    %v354 = vld [vmem:[%s1 + $0x10] sm:$0xff]
    %v355 = vld [vmem:[%s1 + $0x18] sm:$0xff]
    %v356 = vld [vmem:[%s1 + $0x20] sm:$0xff]
    %v357 = vld [vmem:[%s1 + $0x28] sm:$0xff]
    %v358 = vld [vmem:[%s1 + $0x30] sm:$0xff]
    %v359 = vld [vmem:[%s1 + $0x38] sm:$0xff]
    %v360 = vld [vmem:[%s1 + $0x40] sm:$0xff]
    %v361 = vld [vmem:[%s1 + $0x48] sm:$0xff]
    %v362 = vld [vmem:[%s1 + $0x50] sm:$0xff]
    %v363 = vld [vmem:[%s1 + $0x58] sm:$0xff]
    %v364 = vld [vmem:[%s1 + $0x60] sm:$0xff]
    %v365 = vld [vmem:[%s1 + $0x68] sm:$0xff]
    %v366 = vld [vmem:[%s1 + $0x70] sm:$0xff]
    %v367 = vld [vmem:[%s1 + $0x78] sm:$0xff]
    %v368 = vld [vmem:[%s0] sm:$0xff]
    %v369 = vld [vmem:[%s0 + $0x8] sm:$0xff]
    %v370 = vld [vmem:[%s0 + $0x10] sm:$0xff]
    %v371 = vld [vmem:[%s0 + $0x18] sm:$0xff]
    %v372 = vld [vmem:[#allocation5] sm:$0xff]
    %v373 = vld [vmem:[#allocation5 + $0x8] sm:$0xff]
    %v374 = vld [vmem:[#allocation5 + $0xc28] sm:$0x1]
    %v375 = vlaneseq
    %v376 = vshrl.u32 %v375, 7
    %v377 = vsub.s32 0, %v376
    %v378 = vrot.slane %v374, %v377
    %vm379 = vcmask 130048
    %v381 = vsel %vm379, %v368, 0
    %v384 = vsel %vm379, %v369, 0
    %v387 = vsel %vm379, %v370, 0
    %v390 = vsel %vm379, %v371, 0
    %392 = vmatprep.subr.mxu0 0.0
    %393 = vmatpush1.msra.mxu0 %v372
    %394 = vmatprep.subr.mxu0 0.0
    %395 = vmatpush1.msra.mxu0 %v373
    %396 = vmatprep.subr.mxu0 0.0
    %397 = vmatpush1.msra.mxu0 0.0
    %398 = vmatprep.subr.mxu0 0.0
    %399 = vmatpush1.msra.mxu0 0.0
    %400 = vmatprep.subr.mxu0 0.0
    %401 = vmatpush1.msra.mxu0 0.0
    %402 = vmatprep.subr.mxu0 0.0
    %403 = vmatpush1.msra.mxu0 0.0
    %404 = vmatprep.subr.mxu0 0.0
    %405 = vmatpush1.msra.mxu0 0.0
    %406 = vmatprep.subr.mxu0 0.0
    %407 = vmatpush1.msra.mxu0 0.0
    %408 = vmatprep.subr.mxu0 0.0
    %409 = vmatpush1.msra.mxu0 0.0
    %410 = vmatprep.subr.mxu0 0.0
    %411 = vmatpush1.msra.mxu0 0.0
    %412 = vmatprep.subr.mxu0 0.0
    %413 = vmatpush1.msra.mxu0 0.0
    %414 = vmatprep.subr.mxu0 0.0
    %415 = vmatpush1.msra.mxu0 0.0
    %416 = vmatprep.subr.mxu0 0.0
    %417 = vmatpush1.msra.mxu0 0.0
    %418 = vmatprep.subr.mxu0 0.0
    %419 = vmatpush1.msra.mxu0 0.0
    %420 = vmatprep.subr.mxu0 0.0
    %421 = vmatpush1.msra.mxu0 0.0
    %422 = vmatprep.subr.mxu0 0.0
    %423 = vmatpush1.msra.mxu0 0.0
    %424 = vmatprep.subr.mxu0 0.0
    %425 = vmatpush1.msra.mxu0 0.0
    %426 = vmatprep.subr.mxu0 0.0
    %427 = vmatpush1.msra.mxu0 0.0
    %428 = vmatprep.subr.mxu0 0.0
    %429 = vmatpush1.msra.mxu0 0.0
    %430 = vmatprep.subr.mxu0 0.0
    %431 = vmatpush1.msra.mxu0 0.0
    %432 = vmatprep.subr.mxu0 0.0
    %433 = vmatpush1.msra.mxu0 0.0
    %434 = vmatprep.subr.mxu0 0.0
    %435 = vmatpush1.msra.mxu0 0.0
    %436 = vmatprep.subr.mxu0 0.0
    %437 = vmatpush1.msra.mxu0 0.0
    %438 = vmatprep.subr.mxu0 0.0
    %439 = vmatpush1.msra.mxu0 0.0
    %440 = vmatprep.subr.mxu0 0.0
    %441 = vmatpush1.msra.mxu0 0.0
    %442 = vmatprep.subr.mxu0 0.0
    %443 = vmatpush1.msra.mxu0 0.0
    %444 = vmatprep.subr.mxu0 0.0
    %445 = vmatpush1.msra.mxu0 0.0
    %446 = vmatprep.subr.mxu0 0.0
    %447 = vmatpush1.msra.mxu0 0.0
    %448 = vmatprep.subr.mxu0 0.0
    %449 = vmatpush1.msra.mxu0 0.0
    %450 = vmatprep.subr.mxu0 0.0
    %451 = vmatpush1.msra.mxu0 0.0
    %452 = vmatprep.subr.mxu0 0.0
    %453 = vmatpush1.msra.mxu0 0.0
    %454 = vmatprep.subr.mxu0 0.0
    %455 = vmatpush1.msra.mxu0 0.0
    %456 = vmatprep.mubr.f32.mxu0 0.0
    %457 = vmatmul.mubr.f32.gmra.mrb[0].mxu0 %v381
    %v458 = vpop.f32.mrb[0].mxu0
    %v459 = vadd.f32 %v378, %v458
    %v460 = vpop.f32.mrb[0].mxu0
    %461 = vmatprep.mubr.f32.mxu0 0.0
    %462 = vmatmul.mubr.f32.gmra.mrb[0].mxu0 %v384
    %v463 = vpop.f32.mrb[0].mxu0
    %v464 = vadd.f32 %v378, %v463
    %v465 = vpop.f32.mrb[0].mxu0
    %466 = vmatprep.mubr.f32.mxu0 0.0
    %467 = vmatmul.mubr.f32.gmra.mrb[0].mxu0 %v387
    %v468 = vpop.f32.mrb[0].mxu0
    %v469 = vadd.f32 %v378, %v468
    %v470 = vpop.f32.mrb[0].mxu0
    %471 = vmatprep.mubr.f32.mxu0 0.0
    %472 = vmatmul.mubr.f32.gmra.mrb[0].mxu0 %v390
    %v473 = vpop.f32.mrb[0].mxu0
    %v474 = vadd.f32 %v378, %v473
    %v475 = vpop.f32.mrb[0].mxu0
    %476 = vdwg.mxu0
    %vm477 = vcmask 261120
    %v479 = vsel %vm477, %v167, 0
    %v482 = vsel %vm477, %v168, 0
    %v485 = vsel %vm477, %v169, 0
    %v488 = vsel %vm477, %v170, 0
    %v491 = vsel %vm477, %v171, 0
    %v494 = vsel %vm477, %v172, 0
    %v497 = vsel %vm477, %v173, 0
    %v500 = vsel %vm477, %v174, 0
    %v503 = vsel %vm477, %v175, 0
    %v506 = vsel %vm477, %v176, 0
    %v509 = vsel %vm477, %v177, 0
    %v512 = vsel %vm477, %v178, 0
    %v515 = vsel %vm477, %v179, 0
    %v518 = vsel %vm477, %v180, 0
    %v521 = vsel %vm477, %v181, 0
    %v524 = vsel %vm477, %v182, 0
    %526 = vmatprep.subr.mxu0 0.0
    %527 = vmatpush1.msra.mxu0 %v459
    %528 = vmatprep.subr.mxu0 0.0
    %529 = vmatpush1.msra.mxu0 %v464
    %530 = vmatprep.subr.mxu0 0.0
    %531 = vmatpush1.msra.mxu0 %v469
    %532 = vmatprep.subr.mxu0 0.0
    %533 = vmatpush1.msra.mxu0 %v474
    %534 = vmatprep.subr.mxu0 0.0
    %535 = vmatpush1.msra.mxu0 0.0
    %536 = vmatprep.subr.mxu0 0.0
    %537 = vmatpush1.msra.mxu0 0.0
    %538 = vmatprep.subr.mxu0 0.0
    %539 = vmatpush1.msra.mxu0 0.0
    %540 = vmatprep.subr.mxu0 0.0
    %541 = vmatpush1.msra.mxu0 0.0
    %542 = vmatprep.subr.mxu0 0.0
    %543 = vmatpush1.msra.mxu0 0.0
    %544 = vmatprep.subr.mxu0 0.0
    %545 = vmatpush1.msra.mxu0 0.0
    %546 = vmatprep.subr.mxu0 0.0
    %547 = vmatpush1.msra.mxu0 0.0
    %548 = vmatprep.subr.mxu0 0.0
    %549 = vmatpush1.msra.mxu0 0.0
    %550 = vmatprep.subr.mxu0 0.0
    %551 = vmatpush1.msra.mxu0 0.0
    %552 = vmatprep.subr.mxu0 0.0
    %553 = vmatpush1.msra.mxu0 0.0
    %554 = vmatprep.subr.mxu0 0.0
    %555 = vmatpush1.msra.mxu0 0.0
    %556 = vmatprep.subr.mxu0 0.0
    %557 = vmatpush1.msra.mxu0 0.0
    %558 = vmatprep.subr.mxu0 0.0
    %559 = vmatpush1.msra.mxu0 0.0
    %560 = vmatprep.subr.mxu0 0.0
    %561 = vmatpush1.msra.mxu0 0.0
    %562 = vmatprep.subr.mxu0 0.0
    %563 = vmatpush1.msra.mxu0 0.0
    %564 = vmatprep.subr.mxu0 0.0
    %565 = vmatpush1.msra.mxu0 0.0
    %566 = vmatprep.subr.mxu0 0.0
    %567 = vmatpush1.msra.mxu0 0.0
    %568 = vmatprep.subr.mxu0 0.0
    %569 = vmatpush1.msra.mxu0 0.0
    %570 = vmatprep.subr.mxu0 0.0
    %571 = vmatpush1.msra.mxu0 0.0
    %572 = vmatprep.subr.mxu0 0.0
    %573 = vmatpush1.msra.mxu0 0.0
    %574 = vmatprep.subr.mxu0 0.0
    %575 = vmatpush1.msra.mxu0 0.0
    %576 = vmatprep.subr.mxu0 0.0
    %577 = vmatpush1.msra.mxu0 0.0
    %578 = vmatprep.subr.mxu0 0.0
    %579 = vmatpush1.msra.mxu0 0.0
    %580 = vmatprep.subr.mxu0 0.0
    %581 = vmatpush1.msra.mxu0 0.0
    %582 = vmatprep.subr.mxu0 0.0
    %583 = vmatpush1.msra.mxu0 0.0
    %584 = vmatprep.subr.mxu0 0.0
    %585 = vmatpush1.msra.mxu0 0.0
    %586 = vmatprep.subr.mxu0 0.0
    %587 = vmatpush1.msra.mxu0 0.0
    %588 = vmatprep.subr.mxu0 0.0
    %589 = vmatpush1.msra.mxu0 0.0
    %590 = vmatprep.mubr.f32.mxu0 0.0
    %591 = vmatmul.mubr.f32.gmra.mrb[0].mxu0 %v479
    %v592 = vpop.f32.mrb[0].mxu0
    %v593 = vadd.f32 0.0, %v592
    %v594 = vpop.f32.mrb[0].mxu0
    %595 = vmatprep.mubr.f32.mxu0 0.0
    %596 = vmatmul.mubr.f32.gmra.mrb[0].mxu0 %v482
    %v597 = vpop.f32.mrb[0].mxu0
    %v598 = vadd.f32 0.0, %v597
    %v599 = vpop.f32.mrb[0].mxu0
    %600 = vmatprep.mubr.f32.mxu0 0.0
    %601 = vmatmul.mubr.f32.gmra.mrb[0].mxu0 %v485
    %v602 = vpop.f32.mrb[0].mxu0
    %v603 = vadd.f32 0.0, %v602
    %v604 = vpop.f32.mrb[0].mxu0
    %605 = vmatprep.mubr.f32.mxu0 0.0
    %606 = vmatmul.mubr.f32.gmra.mrb[0].mxu0 %v488
    %v607 = vpop.f32.mrb[0].mxu0
    %v608 = vadd.f32 0.0, %v607
    %v609 = vpop.f32.mrb[0].mxu0
    %610 = vmatprep.mubr.f32.mxu0 0.0
    %611 = vmatmul.mubr.f32.gmra.mrb[0].mxu0 %v491
    %v612 = vpop.f32.mrb[0].mxu0
    %v613 = vadd.f32 0.0, %v612
    %v614 = vpop.f32.mrb[0].mxu0
    %615 = vmatprep.mubr.f32.mxu0 0.0
    %616 = vmatmul.mubr.f32.gmra.mrb[0].mxu0 %v494
    %v617 = vpop.f32.mrb[0].mxu0
    %v618 = vadd.f32 0.0, %v617
    %v619 = vpop.f32.mrb[0].mxu0
    %620 = vmatprep.mubr.f32.mxu0 0.0
    %621 = vmatmul.mubr.f32.gmra.mrb[0].mxu0 %v497
    %v622 = vpop.f32.mrb[0].mxu0
    %v623 = vadd.f32 0.0, %v622
    %v624 = vpop.f32.mrb[0].mxu0
    %625 = vmatprep.mubr.f32.mxu0 0.0
    %626 = vmatmul.mubr.f32.gmra.mrb[0].mxu0 %v500
    %v627 = vpop.f32.mrb[0].mxu0
    %v628 = vadd.f32 0.0, %v627
    %v629 = vpop.f32.mrb[0].mxu0
    %630 = vmatprep.mubr.f32.mxu0 0.0
    %631 = vmatmul.mubr.f32.gmra.mrb[0].mxu0 %v503
    %v632 = vpop.f32.mrb[0].mxu0
    %v633 = vadd.f32 0.0, %v632
    %v634 = vpop.f32.mrb[0].mxu0
    %635 = vmatprep.mubr.f32.mxu0 0.0
    %636 = vmatmul.mubr.f32.gmra.mrb[0].mxu0 %v506
    %v637 = vpop.f32.mrb[0].mxu0
    %v638 = vadd.f32 0.0, %v637
    %v639 = vpop.f32.mrb[0].mxu0
    %640 = vmatprep.mubr.f32.mxu0 0.0
    %641 = vmatmul.mubr.f32.gmra.mrb[0].mxu0 %v509
    %v642 = vpop.f32.mrb[0].mxu0
    %v643 = vadd.f32 0.0, %v642
    %v644 = vpop.f32.mrb[0].mxu0
    %645 = vmatprep.mubr.f32.mxu0 0.0
    %646 = vmatmul.mubr.f32.gmra.mrb[0].mxu0 %v512
    %v647 = vpop.f32.mrb[0].mxu0
    %v648 = vadd.f32 0.0, %v647
    %v649 = vpop.f32.mrb[0].mxu0
    %650 = vmatprep.mubr.f32.mxu0 0.0
    %651 = vmatmul.mubr.f32.gmra.mrb[0].mxu0 %v515
    %v652 = vpop.f32.mrb[0].mxu0
    %v653 = vadd.f32 0.0, %v652
    %v654 = vpop.f32.mrb[0].mxu0
    %655 = vmatprep.mubr.f32.mxu0 0.0
    %656 = vmatmul.mubr.f32.gmra.mrb[0].mxu0 %v518
    %v657 = vpop.f32.mrb[0].mxu0
    %v658 = vadd.f32 0.0, %v657
    %v659 = vpop.f32.mrb[0].mxu0
    %660 = vmatprep.mubr.f32.mxu0 0.0
    %661 = vmatmul.mubr.f32.gmra.mrb[0].mxu0 %v521
    %v662 = vpop.f32.mrb[0].mxu0
    %v663 = vadd.f32 0.0, %v662
    %v664 = vpop.f32.mrb[0].mxu0
    %665 = vmatprep.mubr.f32.mxu0 0.0
    %666 = vmatmul.mubr.f32.gmra.mrb[0].mxu0 %v524
    %v667 = vpop.f32.mrb[0].mxu0
    %v668 = vadd.f32 0.0, %v667
    %v669 = vpop.f32.mrb[0].mxu0
    %670 = vdwg.mxu0
    %v672 = vsel %vm477, %v279, 0
    %v675 = vsel %vm477, %v280, 0
    %v678 = vsel %vm477, %v281, 0
    %v681 = vsel %vm477, %v282, 0
    %v684 = vsel %vm477, %v283, 0
    %v687 = vsel %vm477, %v284, 0
    %v690 = vsel %vm477, %v285, 0
    %v693 = vsel %vm477, %v286, 0
    %v696 = vsel %vm477, %v287, 0
    %v699 = vsel %vm477, %v288, 0
    %v702 = vsel %vm477, %v289, 0
    %v705 = vsel %vm477, %v290, 0
    %v708 = vsel %vm477, %v291, 0
    %v711 = vsel %vm477, %v292, 0
    %v714 = vsel %vm477, %v293, 0
    %v717 = vsel %vm477, %v294, 0
    %719 = vmatprep.subr.mxu0 0.0
    %720 = vmatpush1.msra.mxu0 %v459
    %721 = vmatprep.subr.mxu0 0.0
    %722 = vmatpush1.msra.mxu0 %v464
    %723 = vmatprep.subr.mxu0 0.0
    %724 = vmatpush1.msra.mxu0 %v469
    %725 = vmatprep.subr.mxu0 0.0
    %726 = vmatpush1.msra.mxu0 %v474
    %727 = vmatprep.subr.mxu0 0.0
    %728 = vmatpush1.msra.mxu0 0.0
    %729 = vmatprep.subr.mxu0 0.0
    %730 = vmatpush1.msra.mxu0 0.0
    %731 = vmatprep.subr.mxu0 0.0
    %732 = vmatpush1.msra.mxu0 0.0
    %733 = vmatprep.subr.mxu0 0.0
    %734 = vmatpush1.msra.mxu0 0.0
    %735 = vmatprep.subr.mxu0 0.0
    %736 = vmatpush1.msra.mxu0 0.0
    %737 = vmatprep.subr.mxu0 0.0
    %738 = vmatpush1.msra.mxu0 0.0
    %739 = vmatprep.subr.mxu0 0.0
    %740 = vmatpush1.msra.mxu0 0.0
    %741 = vmatprep.subr.mxu0 0.0
    %742 = vmatpush1.msra.mxu0 0.0
    %743 = vmatprep.subr.mxu0 0.0
    %744 = vmatpush1.msra.mxu0 0.0
    %745 = vmatprep.subr.mxu0 0.0
    %746 = vmatpush1.msra.mxu0 0.0
    %747 = vmatprep.subr.mxu0 0.0
    %748 = vmatpush1.msra.mxu0 0.0
    %749 = vmatprep.subr.mxu0 0.0
    %750 = vmatpush1.msra.mxu0 0.0
    %751 = vmatprep.subr.mxu0 0.0
    %752 = vmatpush1.msra.mxu0 0.0
    %753 = vmatprep.subr.mxu0 0.0
    %754 = vmatpush1.msra.mxu0 0.0
    %755 = vmatprep.subr.mxu0 0.0
    %756 = vmatpush1.msra.mxu0 0.0
    %757 = vmatprep.subr.mxu0 0.0
    %758 = vmatpush1.msra.mxu0 0.0
    %759 = vmatprep.subr.mxu0 0.0
    %760 = vmatpush1.msra.mxu0 0.0
    %761 = vmatprep.subr.mxu0 0.0
    %762 = vmatpush1.msra.mxu0 0.0
    %763 = vmatprep.subr.mxu0 0.0
    %764 = vmatpush1.msra.mxu0 0.0
    %765 = vmatprep.subr.mxu0 0.0
    %766 = vmatpush1.msra.mxu0 0.0
    %767 = vmatprep.subr.mxu0 0.0
    %768 = vmatpush1.msra.mxu0 0.0
    %769 = vmatprep.subr.mxu0 0.0
    %770 = vmatpush1.msra.mxu0 0.0
    %771 = vmatprep.subr.mxu0 0.0
    %772 = vmatpush1.msra.mxu0 0.0
    %773 = vmatprep.subr.mxu0 0.0
    %774 = vmatpush1.msra.mxu0 0.0
    %775 = vmatprep.subr.mxu0 0.0
    %776 = vmatpush1.msra.mxu0 0.0
    %777 = vmatprep.subr.mxu0 0.0
    %778 = vmatpush1.msra.mxu0 0.0
    %779 = vmatprep.subr.mxu0 0.0
    %780 = vmatpush1.msra.mxu0 0.0
    %781 = vmatprep.subr.mxu0 0.0
    %782 = vmatpush1.msra.mxu0 0.0
    %783 = vmatprep.mubr.f32.mxu0 0.0
    %784 = vmatmul.mubr.f32.gmra.mrb[0].mxu0 %v672
    %v785 = vpop.f32.mrb[0].mxu0
    %v786 = vadd.f32 0.0, %v785
    %v787 = vpop.f32.mrb[0].mxu0
    %788 = vmatprep.mubr.f32.mxu0 0.0
    %789 = vmatmul.mubr.f32.gmra.mrb[0].mxu0 %v675
    %v790 = vpop.f32.mrb[0].mxu0
    %v791 = vadd.f32 0.0, %v790
    %v792 = vpop.f32.mrb[0].mxu0
    %793 = vmatprep.mubr.f32.mxu0 0.0
    %794 = vmatmul.mubr.f32.gmra.mrb[0].mxu0 %v678
    %v795 = vpop.f32.mrb[0].mxu0
    %v796 = vadd.f32 0.0, %v795
    %v797 = vpop.f32.mrb[0].mxu0
    %798 = vmatprep.mubr.f32.mxu0 0.0
    %799 = vmatmul.mubr.f32.gmra.mrb[0].mxu0 %v681
    %v800 = vpop.f32.mrb[0].mxu0
    %v801 = vadd.f32 0.0, %v800
    %v802 = vpop.f32.mrb[0].mxu0
    %803 = vmatprep.mubr.f32.mxu0 0.0
    %804 = vmatmul.mubr.f32.gmra.mrb[0].mxu0 %v684
    %v805 = vpop.f32.mrb[0].mxu0
    %v806 = vadd.f32 0.0, %v805
    %v807 = vpop.f32.mrb[0].mxu0
    %808 = vmatprep.mubr.f32.mxu0 0.0
    %809 = vmatmul.mubr.f32.gmra.mrb[0].mxu0 %v687
    %v810 = vpop.f32.mrb[0].mxu0
    %v811 = vadd.f32 0.0, %v810
    %v812 = vpop.f32.mrb[0].mxu0
    %813 = vmatprep.mubr.f32.mxu0 0.0
    %814 = vmatmul.mubr.f32.gmra.mrb[0].mxu0 %v690
    %v815 = vpop.f32.mrb[0].mxu0
    %v816 = vadd.f32 0.0, %v815
    %v817 = vpop.f32.mrb[0].mxu0
    %818 = vmatprep.mubr.f32.mxu0 0.0
    %819 = vmatmul.mubr.f32.gmra.mrb[0].mxu0 %v693
    %v820 = vpop.f32.mrb[0].mxu0
    %v821 = vadd.f32 0.0, %v820
    %v822 = vpop.f32.mrb[0].mxu0
    %823 = vmatprep.mubr.f32.mxu0 0.0
    %824 = vmatmul.mubr.f32.gmra.mrb[0].mxu0 %v696
    %v825 = vpop.f32.mrb[0].mxu0
    %v826 = vadd.f32 0.0, %v825
    %v827 = vpop.f32.mrb[0].mxu0
    %828 = vmatprep.mubr.f32.mxu0 0.0
    %829 = vmatmul.mubr.f32.gmra.mrb[0].mxu0 %v699
    %v830 = vpop.f32.mrb[0].mxu0
    %v831 = vadd.f32 0.0, %v830
    %v832 = vpop.f32.mrb[0].mxu0
    %833 = vmatprep.mubr.f32.mxu0 0.0
    %834 = vmatmul.mubr.f32.gmra.mrb[0].mxu0 %v702
    %v835 = vpop.f32.mrb[0].mxu0
    %v836 = vadd.f32 0.0, %v835
    %v837 = vpop.f32.mrb[0].mxu0
    %838 = vmatprep.mubr.f32.mxu0 0.0
    %839 = vmatmul.mubr.f32.gmra.mrb[0].mxu0 %v705
    %v840 = vpop.f32.mrb[0].mxu0
    %v841 = vadd.f32 0.0, %v840
    %v842 = vpop.f32.mrb[0].mxu0
    %843 = vmatprep.mubr.f32.mxu0 0.0
    %844 = vmatmul.mubr.f32.gmra.mrb[0].mxu0 %v708
    %v845 = vpop.f32.mrb[0].mxu0
    %v846 = vadd.f32 0.0, %v845
    %v847 = vpop.f32.mrb[0].mxu0
    %848 = vmatprep.mubr.f32.mxu0 0.0
    %849 = vmatmul.mubr.f32.gmra.mrb[0].mxu0 %v711
    %v850 = vpop.f32.mrb[0].mxu0
    %v851 = vadd.f32 0.0, %v850
    %v852 = vpop.f32.mrb[0].mxu0
    %853 = vmatprep.mubr.f32.mxu0 0.0
    %854 = vmatmul.mubr.f32.gmra.mrb[0].mxu0 %v714
    %v855 = vpop.f32.mrb[0].mxu0
    %v856 = vadd.f32 0.0, %v855
    %v857 = vpop.f32.mrb[0].mxu0
    %858 = vmatprep.mubr.f32.mxu0 0.0
    %859 = vmatmul.mubr.f32.gmra.mrb[0].mxu0 %v717
    %v860 = vpop.f32.mrb[0].mxu0
    %v861 = vadd.f32 0.0, %v860
    %v862 = vpop.f32.mrb[0].mxu0
    %863 = vdwg.mxu0
    %v864 = vld [vmem:[#allocation5 + $0x10] sm:$0xff]
    %v865 = vld [vmem:[#allocation5 + $0x18] sm:$0xff]
    %v866 = vld [vmem:[#allocation5 + $0x20] sm:$0xff]
    %v867 = vld [vmem:[#allocation5 + $0x28] sm:$0xff]
    %v868 = vld [vmem:[#allocation5 + $0x30] sm:$0xff]
    %v869 = vld [vmem:[#allocation5 + $0x38] sm:$0xff]
    %v870 = vld [vmem:[#allocation5 + $0x40] sm:$0xff]
    %v871 = vld [vmem:[#allocation5 + $0x48] sm:$0xff]
    %v872 = vld [vmem:[#allocation5 + $0x50] sm:$0xff]
    %v873 = vld [vmem:[#allocation5 + $0x58] sm:$0xff]
    %v874 = vld [vmem:[#allocation5 + $0x60] sm:$0xff]
    %v875 = vld [vmem:[#allocation5 + $0x68] sm:$0xff]
    %v876 = vld [vmem:[#allocation5 + $0x70] sm:$0xff]
    %v877 = vld [vmem:[#allocation5 + $0x78] sm:$0xff]
    %v878 = vld [vmem:[#allocation5 + $0x80] sm:$0xff]
    %v879 = vld [vmem:[#allocation5 + $0x88] sm:$0xff]
    %v880 = vld [vmem:[#allocation5 + $0x90] sm:$0xff]
    %v881 = vld [vmem:[#allocation5 + $0x98] sm:$0xff]
    %v882 = vld [vmem:[#allocation5 + $0xa0] sm:$0xff]
    %v883 = vld [vmem:[#allocation5 + $0xa8] sm:$0xff]
    %v884 = vld [vmem:[#allocation5 + $0xb0] sm:$0xff]
    %v885 = vld [vmem:[#allocation5 + $0xb8] sm:$0xff]
    %v886 = vld [vmem:[#allocation5 + $0xc0] sm:$0xff]
    %v887 = vld [vmem:[#allocation5 + $0xc8] sm:$0xff]
    %v888 = vld [vmem:[#allocation5 + $0xd0] sm:$0xff]
    %v889 = vld [vmem:[#allocation5 + $0xd8] sm:$0xff]
    %v890 = vld [vmem:[#allocation5 + $0xe0] sm:$0xff]
    %v891 = vld [vmem:[#allocation5 + $0xe8] sm:$0xff]
    %v892 = vld [vmem:[#allocation5 + $0xf0] sm:$0xff]
    %v893 = vld [vmem:[#allocation5 + $0xf8] sm:$0xff]
    %v894 = vld [vmem:[#allocation5 + $0x100] sm:$0xff]
    %v895 = vld [vmem:[#allocation5 + $0x108] sm:$0xff]
    %896 = vmatprep.subr.mxu0 0.0
    %897 = vmatpush1.msra.mxu0 %v880
    %898 = vmatprep.subr.mxu0 0.0
    %899 = vmatpush1.msra.mxu0 %v881
    %900 = vmatprep.subr.mxu0 0.0
    %901 = vmatpush1.msra.mxu0 %v882
    %902 = vmatprep.subr.mxu0 0.0
    %903 = vmatpush1.msra.mxu0 %v883
    %904 = vmatprep.subr.mxu0 0.0
    %905 = vmatpush1.msra.mxu0 %v884
    %906 = vmatprep.subr.mxu0 0.0
    %907 = vmatpush1.msra.mxu0 %v885
    %908 = vmatprep.subr.mxu0 0.0
    %909 = vmatpush1.msra.mxu0 %v886
    %910 = vmatprep.subr.mxu0 0.0
    %911 = vmatpush1.msra.mxu0 %v887
    %912 = vmatprep.subr.mxu0 0.0
    %913 = vmatpush1.msra.mxu0 %v888
    %914 = vmatprep.subr.mxu0 0.0
    %915 = vmatpush1.msra.mxu0 %v889
    %916 = vmatprep.subr.mxu0 0.0
    %917 = vmatpush1.msra.mxu0 %v890
    %918 = vmatprep.subr.mxu0 0.0
    %919 = vmatpush1.msra.mxu0 %v891
    %920 = vmatprep.subr.mxu0 0.0
    %921 = vmatpush1.msra.mxu0 %v892
    %922 = vmatprep.subr.mxu0 0.0
    %923 = vmatpush1.msra.mxu0 %v893
    %924 = vmatprep.subr.mxu0 0.0
    %925 = vmatpush1.msra.mxu0 %v894
    %926 = vmatprep.subr.mxu0 0.0
    %927 = vmatpush1.msra.mxu0 %v895
    %928 = vmatprep.subr.mxu0 0.0
    %929 = vmatpush1.msra.mxu0 0.0
    %930 = vmatprep.subr.mxu0 0.0
    %931 = vmatpush1.msra.mxu0 0.0
    %932 = vmatprep.subr.mxu0 0.0
    %933 = vmatpush1.msra.mxu0 0.0
    %934 = vmatprep.subr.mxu0 0.0
    %935 = vmatpush1.msra.mxu0 0.0
    %936 = vmatprep.subr.mxu0 0.0
    %937 = vmatpush1.msra.mxu0 0.0
    %938 = vmatprep.subr.mxu0 0.0
    %939 = vmatpush1.msra.mxu0 0.0
    %940 = vmatprep.subr.mxu0 0.0
    %941 = vmatpush1.msra.mxu0 0.0
    %942 = vmatprep.subr.mxu0 0.0
    %943 = vmatpush1.msra.mxu0 0.0
    %944 = vmatprep.subr.mxu0 0.0
    %945 = vmatpush1.msra.mxu0 0.0
    %946 = vmatprep.subr.mxu0 0.0
    %947 = vmatpush1.msra.mxu0 0.0
    %948 = vmatprep.subr.mxu0 0.0
    %949 = vmatpush1.msra.mxu0 0.0
    %950 = vmatprep.subr.mxu0 0.0
    %951 = vmatpush1.msra.mxu0 0.0
    %952 = vmatprep.subr.mxu0 0.0
    %953 = vmatpush1.msra.mxu0 0.0
    %954 = vmatprep.subr.mxu0 0.0
    %955 = vmatpush1.msra.mxu0 0.0
    %956 = vmatprep.subr.mxu0 0.0
    %957 = vmatpush1.msra.mxu0 0.0
    %958 = vmatprep.subr.mxu0 0.0
    %959 = vmatpush1.msra.mxu0 0.0
    %960 = vmatprep.mubr.f32.mxu0 0.0
    %961 = vmatmul.mubr.f32.gmra.mrb[0].mxu0 %v786
    %v962 = vpop.f32.mrb[0].mxu0
    %v963 = vadd.f32 0.0, %v962
    %v964 = vpop.f32.mrb[0].mxu0
    %965 = vmatprep.mubr.f32.mxu0 0.0
    %966 = vmatmul.mubr.f32.gmra.mrb[0].mxu0 %v791
    %v967 = vpop.f32.mrb[0].mxu0
    %v968 = vadd.f32 0.0, %v967
    %v969 = vpop.f32.mrb[0].mxu0
    %970 = vmatprep.mubr.f32.mxu0 0.0
    %971 = vmatmul.mubr.f32.gmra.mrb[0].mxu0 %v796
    %v972 = vpop.f32.mrb[0].mxu0
    %v973 = vadd.f32 0.0, %v972
    %v974 = vpop.f32.mrb[0].mxu0
    %975 = vmatprep.mubr.f32.mxu0 0.0
    %976 = vmatmul.mubr.f32.gmra.mrb[0].mxu0 %v801
    %v977 = vpop.f32.mrb[0].mxu0
    %v978 = vadd.f32 0.0, %v977
    %v979 = vpop.f32.mrb[0].mxu0
    %980 = vmatprep.mubr.f32.mxu0 0.0
    %981 = vmatmul.mubr.f32.gmra.mrb[0].mxu0 %v806
    %v982 = vpop.f32.mrb[0].mxu0
    %v983 = vadd.f32 0.0, %v982
    %v984 = vpop.f32.mrb[0].mxu0
    %985 = vmatprep.mubr.f32.mxu0 0.0
    %986 = vmatmul.mubr.f32.gmra.mrb[0].mxu0 %v811
    %v987 = vpop.f32.mrb[0].mxu0
    %v988 = vadd.f32 0.0, %v987
    %v989 = vpop.f32.mrb[0].mxu0
    %990 = vmatprep.mubr.f32.mxu0 0.0
    %991 = vmatmul.mubr.f32.gmra.mrb[0].mxu0 %v816
    %v992 = vpop.f32.mrb[0].mxu0
    %v993 = vadd.f32 0.0, %v992
    %v994 = vpop.f32.mrb[0].mxu0
    %995 = vmatprep.mubr.f32.mxu0 0.0
    %996 = vmatmul.mubr.f32.gmra.mrb[0].mxu0 %v821
    %v997 = vpop.f32.mrb[0].mxu0
    %v998 = vadd.f32 0.0, %v997
    %v999 = vpop.f32.mrb[0].mxu0
    %1000 = vmatprep.mubr.f32.mxu0 0.0
    %1001 = vmatmul.mubr.f32.gmra.mrb[0].mxu0 %v826
    %v1002 = vpop.f32.mrb[0].mxu0
    %v1003 = vadd.f32 0.0, %v1002
    %v1004 = vpop.f32.mrb[0].mxu0
    %1005 = vmatprep.mubr.f32.mxu0 0.0
    %1006 = vmatmul.mubr.f32.gmra.mrb[0].mxu0 %v831
    %v1007 = vpop.f32.mrb[0].mxu0
    %v1008 = vadd.f32 0.0, %v1007
    %v1009 = vpop.f32.mrb[0].mxu0
    %1010 = vmatprep.mubr.f32.mxu0 0.0
    %1011 = vmatmul.mubr.f32.gmra.mrb[0].mxu0 %v836
    %v1012 = vpop.f32.mrb[0].mxu0
    %v1013 = vadd.f32 0.0, %v1012
    %v1014 = vpop.f32.mrb[0].mxu0
    %1015 = vmatprep.mubr.f32.mxu0 0.0
    %1016 = vmatmul.mubr.f32.gmra.mrb[0].mxu0 %v841
    %v1017 = vpop.f32.mrb[0].mxu0
    %v1018 = vadd.f32 0.0, %v1017
    %v1019 = vpop.f32.mrb[0].mxu0
    %1020 = vmatprep.mubr.f32.mxu0 0.0
    %1021 = vmatmul.mubr.f32.gmra.mrb[0].mxu0 %v846
    %v1022 = vpop.f32.mrb[0].mxu0
    %v1023 = vadd.f32 0.0, %v1022
    %v1024 = vpop.f32.mrb[0].mxu0
    %1025 = vmatprep.mubr.f32.mxu0 0.0
    %1026 = vmatmul.mubr.f32.gmra.mrb[0].mxu0 %v851
    %v1027 = vpop.f32.mrb[0].mxu0
    %v1028 = vadd.f32 0.0, %v1027
    %v1029 = vpop.f32.mrb[0].mxu0
    %1030 = vmatprep.mubr.f32.mxu0 0.0
    %1031 = vmatmul.mubr.f32.gmra.mrb[0].mxu0 %v856
    %v1032 = vpop.f32.mrb[0].mxu0
    %v1033 = vadd.f32 0.0, %v1032
    %v1034 = vpop.f32.mrb[0].mxu0
    %1035 = vmatprep.mubr.f32.mxu0 0.0
    %1036 = vmatmul.mubr.f32.gmra.mrb[0].mxu0 %v861
    %v1037 = vpop.f32.mrb[0].mxu0
    %v1038 = vadd.f32 0.0, %v1037
    %v1039 = vpop.f32.mrb[0].mxu0
    %1040 = vdwg.mxu0
    %1041 = vmatprep.subr.mxu0 0.0
    %1042 = vmatpush1.msra.mxu0 %v864
    %1043 = vmatprep.subr.mxu0 0.0
    %1044 = vmatpush1.msra.mxu0 %v865
    %1045 = vmatprep.subr.mxu0 0.0
    %1046 = vmatpush1.msra.mxu0 %v866
    %1047 = vmatprep.subr.mxu0 0.0
    %1048 = vmatpush1.msra.mxu0 %v867
    %1049 = vmatprep.subr.mxu0 0.0
    %1050 = vmatpush1.msra.mxu0 %v868
    %1051 = vmatprep.subr.mxu0 0.0
    %1052 = vmatpush1.msra.mxu0 %v869
    %1053 = vmatprep.subr.mxu0 0.0
    %1054 = vmatpush1.msra.mxu0 %v870
    %1055 = vmatprep.subr.mxu0 0.0
    %1056 = vmatpush1.msra.mxu0 %v871
    %1057 = vmatprep.subr.mxu0 0.0
    %1058 = vmatpush1.msra.mxu0 %v872
    %1059 = vmatprep.subr.mxu0 0.0
    %1060 = vmatpush1.msra.mxu0 %v873
    %1061 = vmatprep.subr.mxu0 0.0
    %1062 = vmatpush1.msra.mxu0 %v874
    %1063 = vmatprep.subr.mxu0 0.0
    %1064 = vmatpush1.msra.mxu0 %v875
    %1065 = vmatprep.subr.mxu0 0.0
    %1066 = vmatpush1.msra.mxu0 %v876
    %1067 = vmatprep.subr.mxu0 0.0
    %1068 = vmatpush1.msra.mxu0 %v877
    %1069 = vmatprep.subr.mxu0 0.0
    %1070 = vmatpush1.msra.mxu0 %v878
    %1071 = vmatprep.subr.mxu0 0.0
    %1072 = vmatpush1.msra.mxu0 %v879
    %1073 = vmatprep.subr.mxu0 0.0
    %1074 = vmatpush1.msra.mxu0 0.0
    %1075 = vmatprep.subr.mxu0 0.0
    %1076 = vmatpush1.msra.mxu0 0.0
    %1077 = vmatprep.subr.mxu0 0.0
    %1078 = vmatpush1.msra.mxu0 0.0
    %1079 = vmatprep.subr.mxu0 0.0
    %1080 = vmatpush1.msra.mxu0 0.0
    %1081 = vmatprep.subr.mxu0 0.0
    %1082 = vmatpush1.msra.mxu0 0.0
    %1083 = vmatprep.subr.mxu0 0.0
    %1084 = vmatpush1.msra.mxu0 0.0
    %1085 = vmatprep.subr.mxu0 0.0
    %1086 = vmatpush1.msra.mxu0 0.0
    %1087 = vmatprep.subr.mxu0 0.0
    %1088 = vmatpush1.msra.mxu0 0.0
    %1089 = vmatprep.subr.mxu0 0.0
    %1090 = vmatpush1.msra.mxu0 0.0
    %1091 = vmatprep.subr.mxu0 0.0
    %1092 = vmatpush1.msra.mxu0 0.0
    %1093 = vmatprep.subr.mxu0 0.0
    %1094 = vmatpush1.msra.mxu0 0.0
    %1095 = vmatprep.subr.mxu0 0.0
    %1096 = vmatpush1.msra.mxu0 0.0
    %1097 = vmatprep.subr.mxu0 0.0
    %1098 = vmatpush1.msra.mxu0 0.0
    %1099 = vmatprep.subr.mxu0 0.0
    %1100 = vmatpush1.msra.mxu0 0.0
    %1101 = vmatprep.subr.mxu0 0.0
    %1102 = vmatpush1.msra.mxu0 0.0
    %1103 = vmatprep.subr.mxu0 0.0
    %1104 = vmatpush1.msra.mxu0 0.0
    %1105 = vmatprep.mubr.f32.mxu0 0.0
    %1106 = vmatmul.mubr.f32.gmra.mrb[0].mxu0 %v593
    %v1107 = vpop.f32.mrb[0].mxu0
    %v1108 = vadd.f32 %v963, %v1107
    %v1109 = vpop.f32.mrb[0].mxu0
    %1110 = vmatprep.mubr.f32.mxu0 0.0
    %1111 = vmatmul.mubr.f32.gmra.mrb[0].mxu0 %v598
    %v1112 = vpop.f32.mrb[0].mxu0
    %v1113 = vadd.f32 %v968, %v1112
    %v1114 = vpop.f32.mrb[0].mxu0
    %1115 = vmatprep.mubr.f32.mxu0 0.0
    %1116 = vmatmul.mubr.f32.gmra.mrb[0].mxu0 %v603
    %v1117 = vpop.f32.mrb[0].mxu0
    %v1118 = vadd.f32 %v973, %v1117
    %v1119 = vpop.f32.mrb[0].mxu0
    %1120 = vmatprep.mubr.f32.mxu0 0.0
    %1121 = vmatmul.mubr.f32.gmra.mrb[0].mxu0 %v608
    %v1122 = vpop.f32.mrb[0].mxu0
    %v1123 = vadd.f32 %v978, %v1122
    %v1124 = vpop.f32.mrb[0].mxu0
    %1125 = vmatprep.mubr.f32.mxu0 0.0
    %1126 = vmatmul.mubr.f32.gmra.mrb[0].mxu0 %v613
    %v1127 = vpop.f32.mrb[0].mxu0
    %v1128 = vadd.f32 %v983, %v1127
    %v1129 = vpop.f32.mrb[0].mxu0
    %1130 = vmatprep.mubr.f32.mxu0 0.0
    %1131 = vmatmul.mubr.f32.gmra.mrb[0].mxu0 %v618
    %v1132 = vpop.f32.mrb[0].mxu0
    %v1133 = vadd.f32 %v988, %v1132
    %v1134 = vpop.f32.mrb[0].mxu0
    %1135 = vmatprep.mubr.f32.mxu0 0.0
    %1136 = vmatmul.mubr.f32.gmra.mrb[0].mxu0 %v623
    %v1137 = vpop.f32.mrb[0].mxu0
    %v1138 = vadd.f32 %v993, %v1137
    %v1139 = vpop.f32.mrb[0].mxu0
    %1140 = vmatprep.mubr.f32.mxu0 0.0
    %1141 = vmatmul.mubr.f32.gmra.mrb[0].mxu0 %v628
    %v1142 = vpop.f32.mrb[0].mxu0
    %v1143 = vadd.f32 %v998, %v1142
    %v1144 = vpop.f32.mrb[0].mxu0
    %1145 = vmatprep.mubr.f32.mxu0 0.0
    %1146 = vmatmul.mubr.f32.gmra.mrb[0].mxu0 %v633
    %v1147 = vpop.f32.mrb[0].mxu0
    %v1148 = vadd.f32 %v1003, %v1147
    %v1149 = vpop.f32.mrb[0].mxu0
    %1150 = vmatprep.mubr.f32.mxu0 0.0
    %1151 = vmatmul.mubr.f32.gmra.mrb[0].mxu0 %v638
    %v1152 = vpop.f32.mrb[0].mxu0
    %v1153 = vadd.f32 %v1008, %v1152
    %v1154 = vpop.f32.mrb[0].mxu0
    %1155 = vmatprep.mubr.f32.mxu0 0.0
    %1156 = vmatmul.mubr.f32.gmra.mrb[0].mxu0 %v643
    %v1157 = vpop.f32.mrb[0].mxu0
    %v1158 = vadd.f32 %v1013, %v1157
    %v1159 = vpop.f32.mrb[0].mxu0
    %1160 = vmatprep.mubr.f32.mxu0 0.0
    %1161 = vmatmul.mubr.f32.gmra.mrb[0].mxu0 %v648
    %v1162 = vpop.f32.mrb[0].mxu0
    %v1163 = vadd.f32 %v1018, %v1162
    %v1164 = vpop.f32.mrb[0].mxu0
    %1165 = vmatprep.mubr.f32.mxu0 0.0
    %1166 = vmatmul.mubr.f32.gmra.mrb[0].mxu0 %v653
    %v1167 = vpop.f32.mrb[0].mxu0
    %v1168 = vadd.f32 %v1023, %v1167
    %v1169 = vpop.f32.mrb[0].mxu0
    %1170 = vmatprep.mubr.f32.mxu0 0.0
    %1171 = vmatmul.mubr.f32.gmra.mrb[0].mxu0 %v658
    %v1172 = vpop.f32.mrb[0].mxu0
    %v1173 = vadd.f32 %v1028, %v1172
    %v1174 = vpop.f32.mrb[0].mxu0
    %1175 = vmatprep.mubr.f32.mxu0 0.0
    %1176 = vmatmul.mubr.f32.gmra.mrb[0].mxu0 %v663
    %v1177 = vpop.f32.mrb[0].mxu0
    %v1178 = vadd.f32 %v1033, %v1177
    %v1179 = vpop.f32.mrb[0].mxu0
    %1180 = vmatprep.mubr.f32.mxu0 0.0
    %1181 = vmatmul.mubr.f32.gmra.mrb[0].mxu0 %v668
    %v1182 = vpop.f32.mrb[0].mxu0
    %v1183 = vadd.f32 %v1038, %v1182
    %v1184 = vpop.f32.mrb[0].mxu0
    %1185 = vdwg.mxu0
    %v1186 = vld [vmem:[#allocation5 + $0x110] sm:$0xff]
    %vm1187 = vcmask 64512
    %v1189 = vsel %vm1187, %v352, 0
    %v1192 = vsel %vm1187, %v353, 0
    %v1195 = vsel %vm1187, %v354, 0
    %v1198 = vsel %vm1187, %v355, 0
    %v1201 = vsel %vm1187, %v356, 0
    %v1204 = vsel %vm1187, %v357, 0
    %v1207 = vsel %vm1187, %v358, 0
    %v1210 = vsel %vm1187, %v359, 0
    %v1213 = vsel %vm1187, %v360, 0
    %v1216 = vsel %vm1187, %v361, 0
    %v1219 = vsel %vm1187, %v362, 0
    %v1222 = vsel %vm1187, %v363, 0
    %v1225 = vsel %vm1187, %v364, 0
    %v1228 = vsel %vm1187, %v365, 0
    %v1231 = vsel %vm1187, %v366, 0
    %v1234 = vsel %vm1187, %v367, 0
    %1236 = vmatprep.subr.mxu0 0.0
    %1237 = vmatpush1.msra.mxu0 %v1186
    %1238 = vmatprep.subr.mxu0 0.0
    %1239 = vmatpush1.msra.mxu0 0.0
    %1240 = vmatprep.subr.mxu0 0.0
    %1241 = vmatpush1.msra.mxu0 0.0
    %1242 = vmatprep.subr.mxu0 0.0
    %1243 = vmatpush1.msra.mxu0 0.0
    %1244 = vmatprep.subr.mxu0 0.0
    %1245 = vmatpush1.msra.mxu0 0.0
    %1246 = vmatprep.subr.mxu0 0.0
    %1247 = vmatpush1.msra.mxu0 0.0
    %1248 = vmatprep.subr.mxu0 0.0
    %1249 = vmatpush1.msra.mxu0 0.0
    %1250 = vmatprep.subr.mxu0 0.0
    %1251 = vmatpush1.msra.mxu0 0.0
    %1252 = vmatprep.subr.mxu0 0.0
    %1253 = vmatpush1.msra.mxu0 0.0
    %1254 = vmatprep.subr.mxu0 0.0
    %1255 = vmatpush1.msra.mxu0 0.0
    %1256 = vmatprep.subr.mxu0 0.0
    %1257 = vmatpush1.msra.mxu0 0.0
    %1258 = vmatprep.subr.mxu0 0.0
    %1259 = vmatpush1.msra.mxu0 0.0
    %1260 = vmatprep.subr.mxu0 0.0
    %1261 = vmatpush1.msra.mxu0 0.0
    %1262 = vmatprep.subr.mxu0 0.0
    %1263 = vmatpush1.msra.mxu0 0.0
    %1264 = vmatprep.subr.mxu0 0.0
    %1265 = vmatpush1.msra.mxu0 0.0
    %1266 = vmatprep.subr.mxu0 0.0
    %1267 = vmatpush1.msra.mxu0 0.0
    %1268 = vmatprep.subr.mxu0 0.0
    %1269 = vmatpush1.msra.mxu0 0.0
    %1270 = vmatprep.subr.mxu0 0.0
    %1271 = vmatpush1.msra.mxu0 0.0
    %1272 = vmatprep.subr.mxu0 0.0
    %1273 = vmatpush1.msra.mxu0 0.0
    %1274 = vmatprep.subr.mxu0 0.0
    %1275 = vmatpush1.msra.mxu0 0.0
    %1276 = vmatprep.subr.mxu0 0.0
    %1277 = vmatpush1.msra.mxu0 0.0
    %1278 = vmatprep.subr.mxu0 0.0
    %1279 = vmatpush1.msra.mxu0 0.0
    %1280 = vmatprep.subr.mxu0 0.0
    %1281 = vmatpush1.msra.mxu0 0.0
    %1282 = vmatprep.subr.mxu0 0.0
    %1283 = vmatpush1.msra.mxu0 0.0
    %1284 = vmatprep.subr.mxu0 0.0
    %1285 = vmatpush1.msra.mxu0 0.0
    %1286 = vmatprep.subr.mxu0 0.0
    %1287 = vmatpush1.msra.mxu0 0.0
    %1288 = vmatprep.subr.mxu0 0.0
    %1289 = vmatpush1.msra.mxu0 0.0
    %1290 = vmatprep.subr.mxu0 0.0
    %1291 = vmatpush1.msra.mxu0 0.0
    %1292 = vmatprep.subr.mxu0 0.0
    %1293 = vmatpush1.msra.mxu0 0.0
    %1294 = vmatprep.subr.mxu0 0.0
    %1295 = vmatpush1.msra.mxu0 0.0
    %1296 = vmatprep.subr.mxu0 0.0
    %1297 = vmatpush1.msra.mxu0 0.0
    %1298 = vmatprep.subr.mxu0 0.0
    %1299 = vmatpush1.msra.mxu0 0.0
    %1300 = vmatprep.mubr.f32.mxu0 0.0
    %1301 = vmatmul.mubr.f32.gmra.mrb[0].mxu0 %v1189
    %v1302 = vpop.f32.mrb[0].mxu0
    %v1303 = vadd.f32 0.0, %v1302
    %v1304 = vpop.f32.mrb[0].mxu0
    %1305 = vmatprep.mubr.f32.mxu0 0.0
    %1306 = vmatmul.mubr.f32.gmra.mrb[0].mxu0 %v1192
    %v1307 = vpop.f32.mrb[0].mxu0
    %v1308 = vadd.f32 0.0, %v1307
    %v1309 = vpop.f32.mrb[0].mxu0
    %1310 = vmatprep.mubr.f32.mxu0 0.0
    %1311 = vmatmul.mubr.f32.gmra.mrb[0].mxu0 %v1195
    %v1312 = vpop.f32.mrb[0].mxu0
    %v1313 = vadd.f32 0.0, %v1312
    %v1314 = vpop.f32.mrb[0].mxu0
    %1315 = vmatprep.mubr.f32.mxu0 0.0
    %1316 = vmatmul.mubr.f32.gmra.mrb[0].mxu0 %v1198
    %v1317 = vpop.f32.mrb[0].mxu0
    %v1318 = vadd.f32 0.0, %v1317
    %v1319 = vpop.f32.mrb[0].mxu0
    %1320 = vmatprep.mubr.f32.mxu0 0.0
    %1321 = vmatmul.mubr.f32.gmra.mrb[0].mxu0 %v1201
    %v1322 = vpop.f32.mrb[0].mxu0
    %v1323 = vadd.f32 0.0, %v1322
    %v1324 = vpop.f32.mrb[0].mxu0
    %1325 = vmatprep.mubr.f32.mxu0 0.0
    %1326 = vmatmul.mubr.f32.gmra.mrb[0].mxu0 %v1204
    %v1327 = vpop.f32.mrb[0].mxu0
    %v1328 = vadd.f32 0.0, %v1327
    %v1329 = vpop.f32.mrb[0].mxu0
    %1330 = vmatprep.mubr.f32.mxu0 0.0
    %1331 = vmatmul.mubr.f32.gmra.mrb[0].mxu0 %v1207
    %v1332 = vpop.f32.mrb[0].mxu0
    %v1333 = vadd.f32 0.0, %v1332
    %v1334 = vpop.f32.mrb[0].mxu0
    %1335 = vmatprep.mubr.f32.mxu0 0.0
    %1336 = vmatmul.mubr.f32.gmra.mrb[0].mxu0 %v1210
    %v1337 = vpop.f32.mrb[0].mxu0
    %v1338 = vadd.f32 0.0, %v1337
    %v1339 = vpop.f32.mrb[0].mxu0
    %1340 = vmatprep.mubr.f32.mxu0 0.0
    %1341 = vmatmul.mubr.f32.gmra.mrb[0].mxu0 %v1213
    %v1342 = vpop.f32.mrb[0].mxu0
    %v1343 = vadd.f32 0.0, %v1342
    %v1344 = vpop.f32.mrb[0].mxu0
    %1345 = vmatprep.mubr.f32.mxu0 0.0
    %1346 = vmatmul.mubr.f32.gmra.mrb[0].mxu0 %v1216
    %v1347 = vpop.f32.mrb[0].mxu0
    %v1348 = vadd.f32 0.0, %v1347
    %v1349 = vpop.f32.mrb[0].mxu0
    %1350 = vmatprep.mubr.f32.mxu0 0.0
    %1351 = vmatmul.mubr.f32.gmra.mrb[0].mxu0 %v1219
    %v1352 = vpop.f32.mrb[0].mxu0
    %v1353 = vadd.f32 0.0, %v1352
    %v1354 = vpop.f32.mrb[0].mxu0
    %1355 = vmatprep.mubr.f32.mxu0 0.0
    %1356 = vmatmul.mubr.f32.gmra.mrb[0].mxu0 %v1222
    %v1357 = vpop.f32.mrb[0].mxu0
    %v1358 = vadd.f32 0.0, %v1357
    %v1359 = vpop.f32.mrb[0].mxu0
    %1360 = vmatprep.mubr.f32.mxu0 0.0
    %1361 = vmatmul.mubr.f32.gmra.mrb[0].mxu0 %v1225
    %v1362 = vpop.f32.mrb[0].mxu0
    %v1363 = vadd.f32 0.0, %v1362
    %v1364 = vpop.f32.mrb[0].mxu0
    %1365 = vmatprep.mubr.f32.mxu0 0.0
    %1366 = vmatmul.mubr.f32.gmra.mrb[0].mxu0 %v1228
    %v1367 = vpop.f32.mrb[0].mxu0
    %v1368 = vadd.f32 0.0, %v1367
    %v1369 = vpop.f32.mrb[0].mxu0
    %1370 = vmatprep.mubr.f32.mxu0 0.0
    %1371 = vmatmul.mubr.f32.gmra.mrb[0].mxu0 %v1231
    %v1372 = vpop.f32.mrb[0].mxu0
    %v1373 = vadd.f32 0.0, %v1372
    %v1374 = vpop.f32.mrb[0].mxu0
    %1375 = vmatprep.mubr.f32.mxu0 0.0
    %1376 = vmatmul.mubr.f32.gmra.mrb[0].mxu0 %v1234
    %v1377 = vpop.f32.mrb[0].mxu0
    %v1378 = vadd.f32 0.0, %v1377
    %v1379 = vpop.f32.mrb[0].mxu0
    %1380 = vdwg.mxu0
    %v1381 = vadd.f32 %v1108, %v1303
    %v1382 = vadd.f32 %v1113, %v1308
    %v1383 = vadd.f32 %v1118, %v1313
    %v1384 = vadd.f32 %v1123, %v1318
    %v1385 = vadd.f32 %v1128, %v1323
    %v1386 = vadd.f32 %v1133, %v1328
    %v1387 = vadd.f32 %v1138, %v1333
    %v1388 = vadd.f32 %v1143, %v1338
    %v1389 = vadd.f32 %v1148, %v1343
    %v1390 = vadd.f32 %v1153, %v1348
    %v1391 = vadd.f32 %v1158, %v1353
    %v1392 = vadd.f32 %v1163, %v1358
    %v1393 = vadd.f32 %v1168, %v1363
    %v1394 = vadd.f32 %v1173, %v1368
    %v1395 = vadd.f32 %v1178, %v1373
    %v1396 = vadd.f32 %v1183, %v1378
    %v1397 = vld [vmem:[#allocation5 + $0xc29] sm:$0x1]
    %v1398 = vlaneseq
    %v1399 = vshrl.u32 %v1398, 7
    %v1400 = vsub.s32 0, %v1399
    %v1401 = vrot.slane %v1397, %v1400
    %v1402 = vadd.f32 %v1381, %v1401
    %v1403 = vadd.f32 %v1382, %v1401
    %v1404 = vadd.f32 %v1383, %v1401
    %v1405 = vadd.f32 %v1384, %v1401
    %v1406 = vadd.f32 %v1385, %v1401
    %v1407 = vadd.f32 %v1386, %v1401
    %v1408 = vadd.f32 %v1387, %v1401
    %v1409 = vadd.f32 %v1388, %v1401
    %v1410 = vadd.f32 %v1389, %v1401
    %v1411 = vadd.f32 %v1390, %v1401
    %v1412 = vadd.f32 %v1391, %v1401
    %v1413 = vadd.f32 %v1392, %v1401
    %v1414 = vadd.f32 %v1393, %v1401
    %v1415 = vadd.f32 %v1394, %v1401
    %v1416 = vadd.f32 %v1395, %v1401
    %v1417 = vadd.f32 %v1396, %v1401
    %v1418 = vmax.f32 %v1402, 0.0
    %v1419 = vmax.f32 %v1403, 0.0
    %v1420 = vmax.f32 %v1404, 0.0
    %v1421 = vmax.f32 %v1405, 0.0
    %v1422 = vmax.f32 %v1406, 0.0
    %v1423 = vmax.f32 %v1407, 0.0
    %v1424 = vmax.f32 %v1408, 0.0
    %v1425 = vmax.f32 %v1409, 0.0
    %v1426 = vmax.f32 %v1410, 0.0
    %v1427 = vmax.f32 %v1411, 0.0
    %v1428 = vmax.f32 %v1412, 0.0
    %v1429 = vmax.f32 %v1413, 0.0
    %v1430 = vmax.f32 %v1414, 0.0
    %v1431 = vmax.f32 %v1415, 0.0
    %v1432 = vmax.f32 %v1416, 0.0
    %v1433 = vmax.f32 %v1417, 0.0
    %v1434 = vld [vmem:[#allocation7] sm:$0xff]
    %v1435 = vld [vmem:[#allocation7 + $0x8] sm:$0xff]
    %v1436 = vld [vmem:[#allocation7 + $0x10] sm:$0xff]
    %v1437 = vld [vmem:[#allocation7 + $0x18] sm:$0xff]
    %v1438 = vld [vmem:[#allocation7 + $0x20] sm:$0xff]
    %v1439 = vld [vmem:[#allocation7 + $0x28] sm:$0xff]
    %v1440 = vld [vmem:[#allocation7 + $0x30] sm:$0xff]
    %v1441 = vld [vmem:[#allocation7 + $0x38] sm:$0xff]
    %v1442 = vld [vmem:[#allocation7 + $0x40] sm:$0xff]
    %v1443 = vld [vmem:[#allocation7 + $0x48] sm:$0xff]
    %v1444 = vld [vmem:[#allocation7 + $0x50] sm:$0xff]
    %v1445 = vld [vmem:[#allocation7 + $0x58] sm:$0xff]
    %v1446 = vld [vmem:[#allocation7 + $0x60] sm:$0xff]
    %v1447 = vld [vmem:[#allocation7 + $0x68] sm:$0xff]
    %v1448 = vld [vmem:[#allocation7 + $0x70] sm:$0xff]
    %v1449 = vld [vmem:[#allocation7 + $0x78] sm:$0xff]
    %v1450 = vld [vmem:[#allocation7 + $0x80] sm:$0xff]
    %v1451 = vld [vmem:[#allocation7 + $0x88] sm:$0xff]
    %v1452 = vld [vmem:[#allocation7 + $0x90] sm:$0xff]
    %v1453 = vld [vmem:[#allocation7 + $0x98] sm:$0xff]
    %v1454 = vld [vmem:[#allocation7 + $0xa0] sm:$0xff]
    %v1455 = vld [vmem:[#allocation7 + $0xa8] sm:$0xff]
    %v1456 = vld [vmem:[#allocation7 + $0xb0] sm:$0xff]
    %v1457 = vld [vmem:[#allocation7 + $0xb8] sm:$0xff]
    %v1458 = vld [vmem:[#allocation7 + $0xc0] sm:$0xff]
    %v1459 = vld [vmem:[#allocation7 + $0xc8] sm:$0xff]
    %v1460 = vld [vmem:[#allocation7 + $0xd0] sm:$0xff]
    %v1461 = vld [vmem:[#allocation7 + $0xd8] sm:$0xff]
    %v1462 = vld [vmem:[#allocation7 + $0xe0] sm:$0xff]
    %v1463 = vld [vmem:[#allocation7 + $0xe8] sm:$0xff]
    %v1464 = vld [vmem:[#allocation7 + $0xf0] sm:$0xff]
    %v1465 = vld [vmem:[#allocation7 + $0xf8] sm:$0xff]
    %s1466 = scalar_lea.vmem [#allocation7], 768
    %v1467 = vld [vmem:[%s1466] ss:$8 sm:$0x3]
    %v1469 = vlaneseq
    %v1470 = vshrl.u32 %v1469, 7
    %v1471 = vsub.s32 0, %v1470
    %v1472 = vrot.slane %v1467, %v1471
    %v1473 = vlaneseq
    %v1474 = vshrl.u32 %v1473, 7
    %v1475 = vsub.s32 1, %v1474
    %v1476 = vrot.slane %v1467, %v1475
    %1479 = vmatprep.subr.mxu0 %v1435
    %1480 = vmatpush1.msra.mxu0 %v1434
    %1481 = vmatprep.subr.mxu0 %v1437
    %1482 = vmatpush1.msra.mxu0 %v1436
    %1483 = vmatprep.subr.mxu0 %v1439
    %1484 = vmatpush1.msra.mxu0 %v1438
    %1485 = vmatprep.subr.mxu0 %v1441
    %1486 = vmatpush1.msra.mxu0 %v1440
    %1487 = vmatprep.subr.mxu0 %v1443
    %1488 = vmatpush1.msra.mxu0 %v1442
    %1489 = vmatprep.subr.mxu0 %v1445
    %1490 = vmatpush1.msra.mxu0 %v1444
    %1491 = vmatprep.subr.mxu0 %v1447
    %1492 = vmatpush1.msra.mxu0 %v1446
    %1493 = vmatprep.subr.mxu0 %v1449
    %1494 = vmatpush1.msra.mxu0 %v1448
    %1495 = vmatprep.subr.mxu0 %v1451
    %1496 = vmatpush1.msra.mxu0 %v1450
    %1497 = vmatprep.subr.mxu0 %v1453
    %1498 = vmatpush1.msra.mxu0 %v1452
    %1499 = vmatprep.subr.mxu0 %v1455
    %1500 = vmatpush1.msra.mxu0 %v1454
    %1501 = vmatprep.subr.mxu0 %v1457
    %1502 = vmatpush1.msra.mxu0 %v1456
    %1503 = vmatprep.subr.mxu0 %v1459
    %1504 = vmatpush1.msra.mxu0 %v1458
    %1505 = vmatprep.subr.mxu0 %v1461
    %1506 = vmatpush1.msra.mxu0 %v1460
    %1507 = vmatprep.subr.mxu0 %v1463
    %1508 = vmatpush1.msra.mxu0 %v1462
    %1509 = vmatprep.subr.mxu0 %v1465
    %1510 = vmatpush1.msra.mxu0 %v1464
    %1511 = vmatprep.subr.mxu0 0.0
    %1512 = vmatpush1.msra.mxu0 0.0
    %1513 = vmatprep.subr.mxu0 0.0
    %1514 = vmatpush1.msra.mxu0 0.0
    %1515 = vmatprep.subr.mxu0 0.0
    %1516 = vmatpush1.msra.mxu0 0.0
    %1517 = vmatprep.subr.mxu0 0.0
    %1518 = vmatpush1.msra.mxu0 0.0
    %1519 = vmatprep.subr.mxu0 0.0
    %1520 = vmatpush1.msra.mxu0 0.0
    %1521 = vmatprep.subr.mxu0 0.0
    %1522 = vmatpush1.msra.mxu0 0.0
    %1523 = vmatprep.subr.mxu0 0.0
    %1524 = vmatpush1.msra.mxu0 0.0
    %1525 = vmatprep.subr.mxu0 0.0
    %1526 = vmatpush1.msra.mxu0 0.0
    %1527 = vmatprep.subr.mxu0 0.0
    %1528 = vmatpush1.msra.mxu0 0.0
    %1529 = vmatprep.subr.mxu0 0.0
    %1530 = vmatpush1.msra.mxu0 0.0
    %1531 = vmatprep.subr.mxu0 0.0
    %1532 = vmatpush1.msra.mxu0 0.0
    %1533 = vmatprep.subr.mxu0 0.0
    %1534 = vmatpush1.msra.mxu0 0.0
    %1535 = vmatprep.subr.mxu0 0.0
    %1536 = vmatpush1.msra.mxu0 0.0
    %1537 = vmatprep.subr.mxu0 0.0
    %1538 = vmatpush1.msra.mxu0 0.0
    %1539 = vmatprep.subr.mxu0 0.0
    %1540 = vmatpush1.msra.mxu0 0.0
    %1541 = vmatprep.subr.mxu0 0.0
    %1542 = vmatpush1.msra.mxu0 0.0
    %1543 = vmatprep.mubr.f32.mxu0 0.0
    %1544 = vmatmul.mubr.f32.gmra.mrb[0].mxu0 %v1418
    %v1545 = vpop.f32.mrb[0].mxu0
    %v1546 = vadd.f32 %v1472, %v1545
    %v1547 = vpop.f32.mrb[0].mxu0
    %v1548 = vadd.f32 %v1476, %v1547
    %1549 = vmatprep.mubr.f32.mxu0 0.0
    %1550 = vmatmul.mubr.f32.gmra.mrb[0].mxu0 %v1419
    %v1551 = vpop.f32.mrb[0].mxu0
    %v1552 = vadd.f32 %v1472, %v1551
    %v1553 = vpop.f32.mrb[0].mxu0
    %v1554 = vadd.f32 %v1476, %v1553
    %1555 = vmatprep.mubr.f32.mxu0 0.0
    %1556 = vmatmul.mubr.f32.gmra.mrb[0].mxu0 %v1420
    %v1557 = vpop.f32.mrb[0].mxu0
    %v1558 = vadd.f32 %v1472, %v1557
    %v1559 = vpop.f32.mrb[0].mxu0
    %v1560 = vadd.f32 %v1476, %v1559
    %1561 = vmatprep.mubr.f32.mxu0 0.0
    %1562 = vmatmul.mubr.f32.gmra.mrb[0].mxu0 %v1421
    %v1563 = vpop.f32.mrb[0].mxu0
    %v1564 = vadd.f32 %v1472, %v1563
    %v1565 = vpop.f32.mrb[0].mxu0
    %v1566 = vadd.f32 %v1476, %v1565
    %1567 = vmatprep.mubr.f32.mxu0 0.0
    %1568 = vmatmul.mubr.f32.gmra.mrb[0].mxu0 %v1422
    %v1569 = vpop.f32.mrb[0].mxu0
    %v1570 = vadd.f32 %v1472, %v1569
    %v1571 = vpop.f32.mrb[0].mxu0
    %v1572 = vadd.f32 %v1476, %v1571
    %1573 = vmatprep.mubr.f32.mxu0 0.0
    %1574 = vmatmul.mubr.f32.gmra.mrb[0].mxu0 %v1423
    %v1575 = vpop.f32.mrb[0].mxu0
    %v1576 = vadd.f32 %v1472, %v1575
    %v1577 = vpop.f32.mrb[0].mxu0
    %v1578 = vadd.f32 %v1476, %v1577
    %1579 = vmatprep.mubr.f32.mxu0 0.0
    %1580 = vmatmul.mubr.f32.gmra.mrb[0].mxu0 %v1424
    %v1581 = vpop.f32.mrb[0].mxu0
    %v1582 = vadd.f32 %v1472, %v1581
    %v1583 = vpop.f32.mrb[0].mxu0
    %v1584 = vadd.f32 %v1476, %v1583
    %1585 = vmatprep.mubr.f32.mxu0 0.0
    %1586 = vmatmul.mubr.f32.gmra.mrb[0].mxu0 %v1425
    %v1587 = vpop.f32.mrb[0].mxu0
    %v1588 = vadd.f32 %v1472, %v1587
    %v1589 = vpop.f32.mrb[0].mxu0
    %v1590 = vadd.f32 %v1476, %v1589
    %1591 = vmatprep.mubr.f32.mxu0 0.0
    %1592 = vmatmul.mubr.f32.gmra.mrb[0].mxu0 %v1426
    %v1593 = vpop.f32.mrb[0].mxu0
    %v1594 = vadd.f32 %v1472, %v1593
    %v1595 = vpop.f32.mrb[0].mxu0
    %v1596 = vadd.f32 %v1476, %v1595
    %1597 = vmatprep.mubr.f32.mxu0 0.0
    %1598 = vmatmul.mubr.f32.gmra.mrb[0].mxu0 %v1427
    %v1599 = vpop.f32.mrb[0].mxu0
    %v1600 = vadd.f32 %v1472, %v1599
    %v1601 = vpop.f32.mrb[0].mxu0
    %v1602 = vadd.f32 %v1476, %v1601
    %1603 = vmatprep.mubr.f32.mxu0 0.0
    %1604 = vmatmul.mubr.f32.gmra.mrb[0].mxu0 %v1428
    %v1605 = vpop.f32.mrb[0].mxu0
    %v1606 = vadd.f32 %v1472, %v1605
    %v1607 = vpop.f32.mrb[0].mxu0
    %v1608 = vadd.f32 %v1476, %v1607
    %1609 = vmatprep.mubr.f32.mxu0 0.0
    %1610 = vmatmul.mubr.f32.gmra.mrb[0].mxu0 %v1429
    %v1611 = vpop.f32.mrb[0].mxu0
    %v1612 = vadd.f32 %v1472, %v1611
    %v1613 = vpop.f32.mrb[0].mxu0
    %v1614 = vadd.f32 %v1476, %v1613
    %1615 = vmatprep.mubr.f32.mxu0 0.0
    %1616 = vmatmul.mubr.f32.gmra.mrb[0].mxu0 %v1430
    %v1617 = vpop.f32.mrb[0].mxu0
    %v1618 = vadd.f32 %v1472, %v1617
    %v1619 = vpop.f32.mrb[0].mxu0
    %v1620 = vadd.f32 %v1476, %v1619
    %1621 = vmatprep.mubr.f32.mxu0 0.0
    %1622 = vmatmul.mubr.f32.gmra.mrb[0].mxu0 %v1431
    %v1623 = vpop.f32.mrb[0].mxu0
    %v1624 = vadd.f32 %v1472, %v1623
    %v1625 = vpop.f32.mrb[0].mxu0
    %v1626 = vadd.f32 %v1476, %v1625
    %1627 = vmatprep.mubr.f32.mxu0 0.0
    %1628 = vmatmul.mubr.f32.gmra.mrb[0].mxu0 %v1432
    %v1629 = vpop.f32.mrb[0].mxu0
    %v1630 = vadd.f32 %v1472, %v1629
    %v1631 = vpop.f32.mrb[0].mxu0
    %v1632 = vadd.f32 %v1476, %v1631
    %1633 = vmatprep.mubr.f32.mxu0 0.0
    %1634 = vmatmul.mubr.f32.gmra.mrb[0].mxu0 %v1433
    %v1635 = vpop.f32.mrb[0].mxu0
    %v1636 = vadd.f32 %v1472, %v1635
    %v1637 = vpop.f32.mrb[0].mxu0
    %v1638 = vadd.f32 %v1476, %v1637
    %1639 = vdwg.mxu0
    %v1640 = vmax.f32 %v1546, 0.0
    %v1641 = vmax.f32 %v1548, 0.0
    %v1642 = vmax.f32 %v1552, 0.0
    %v1643 = vmax.f32 %v1554, 0.0
    %v1644 = vmax.f32 %v1558, 0.0
    %v1645 = vmax.f32 %v1560, 0.0
    %v1646 = vmax.f32 %v1564, 0.0
    %v1647 = vmax.f32 %v1566, 0.0
    %v1648 = vmax.f32 %v1570, 0.0
    %v1649 = vmax.f32 %v1572, 0.0
    %v1650 = vmax.f32 %v1576, 0.0
    %v1651 = vmax.f32 %v1578, 0.0
    %v1652 = vmax.f32 %v1582, 0.0
    %v1653 = vmax.f32 %v1584, 0.0
    %v1654 = vmax.f32 %v1588, 0.0
    %v1655 = vmax.f32 %v1590, 0.0
    %v1656 = vmax.f32 %v1594, 0.0
    %v1657 = vmax.f32 %v1596, 0.0
    %v1658 = vmax.f32 %v1600, 0.0
    %v1659 = vmax.f32 %v1602, 0.0
    %v1660 = vmax.f32 %v1606, 0.0
    %v1661 = vmax.f32 %v1608, 0.0
    %v1662 = vmax.f32 %v1612, 0.0
    %v1663 = vmax.f32 %v1614, 0.0
    %v1664 = vmax.f32 %v1618, 0.0
    %v1665 = vmax.f32 %v1620, 0.0
    %v1666 = vmax.f32 %v1624, 0.0
    %v1667 = vmax.f32 %v1626, 0.0
    %v1668 = vmax.f32 %v1630, 0.0
    %v1669 = vmax.f32 %v1632, 0.0
    %v1670 = vmax.f32 %v1636, 0.0
    %v1671 = vmax.f32 %v1638, 0.0
    %v1672 = vld [vmem:[#allocation5 + $0x118] sm:$0xff]
    %v1673 = vld [vmem:[#allocation5 + $0x120] sm:$0xff]
    %v1674 = vld [vmem:[#allocation5 + $0x128] sm:$0xff]
    %v1675 = vld [vmem:[#allocation5 + $0x130] sm:$0xff]
    %v1676 = vld [vmem:[#allocation5 + $0x138] sm:$0xff]
    %v1677 = vld [vmem:[#allocation5 + $0x140] sm:$0xff]
    %v1678 = vld [vmem:[#allocation5 + $0x148] sm:$0xff]
    %v1679 = vld [vmem:[#allocation5 + $0x150] sm:$0xff]
    %v1680 = vld [vmem:[#allocation5 + $0x158] sm:$0xff]
    %v1681 = vld [vmem:[#allocation5 + $0x160] sm:$0xff]
    %v1682 = vld [vmem:[#allocation5 + $0x168] sm:$0xff]
    %v1683 = vld [vmem:[#allocation5 + $0x170] sm:$0xff]
    %v1684 = vld [vmem:[#allocation5 + $0x178] sm:$0xff]
    %v1685 = vld [vmem:[#allocation5 + $0x180] sm:$0xff]
    %v1686 = vld [vmem:[#allocation5 + $0x188] sm:$0xff]
    %v1687 = vld [vmem:[#allocation5 + $0x190] sm:$0xff]
    %v1688 = vld [vmem:[#allocation5 + $0x198] sm:$0xff]
    %v1689 = vld [vmem:[#allocation5 + $0x1a0] sm:$0xff]
    %v1690 = vld [vmem:[#allocation5 + $0x1a8] sm:$0xff]
    %v1691 = vld [vmem:[#allocation5 + $0x1b0] sm:$0xff]
    %v1692 = vld [vmem:[#allocation5 + $0x1b8] sm:$0xff]
    %v1693 = vld [vmem:[#allocation5 + $0x1c0] sm:$0xff]
    %v1694 = vld [vmem:[#allocation5 + $0x1c8] sm:$0xff]
    %v1695 = vld [vmem:[#allocation5 + $0x1d0] sm:$0xff]
    %v1696 = vld [vmem:[#allocation5 + $0x1d8] sm:$0xff]
    %v1697 = vld [vmem:[#allocation5 + $0x1e0] sm:$0xff]
    %v1698 = vld [vmem:[#allocation5 + $0x1e8] sm:$0xff]
    %v1699 = vld [vmem:[#allocation5 + $0x1f0] sm:$0xff]
    %v1700 = vld [vmem:[#allocation5 + $0x1f8] sm:$0xff]
    %v1701 = vld [vmem:[#allocation5 + $0x200] sm:$0xff]
    %v1702 = vld [vmem:[#allocation5 + $0x208] sm:$0xff]
    %v1703 = vld [vmem:[#allocation5 + $0x210] sm:$0xff]
    %v1704 = vld [vmem:[#allocation5 + $0xc2a] sm:$0x1]
    %v1705 = vlaneseq
    %v1706 = vshrl.u32 %v1705, 7
    %v1707 = vsub.s32 0, %v1706
    %v1708 = vrot.slane %v1704, %v1707
    %1709 = vmatprep.subr.mxu0 0.0
    %1710 = vmatpush1.msra.mxu0 %v1672
    %1711 = vmatprep.subr.mxu0 0.0
    %1712 = vmatpush1.msra.mxu0 %v1673
    %1713 = vmatprep.subr.mxu0 0.0
    %1714 = vmatpush1.msra.mxu0 %v1674
    %1715 = vmatprep.subr.mxu0 0.0
    %1716 = vmatpush1.msra.mxu0 %v1675
    %1717 = vmatprep.subr.mxu0 0.0
    %1718 = vmatpush1.msra.mxu0 %v1676
    %1719 = vmatprep.subr.mxu0 0.0
    %1720 = vmatpush1.msra.mxu0 %v1677
    %1721 = vmatprep.subr.mxu0 0.0
    %1722 = vmatpush1.msra.mxu0 %v1678
    %1723 = vmatprep.subr.mxu0 0.0
    %1724 = vmatpush1.msra.mxu0 %v1679
    %1725 = vmatprep.subr.mxu0 0.0
    %1726 = vmatpush1.msra.mxu0 %v1680
    %1727 = vmatprep.subr.mxu0 0.0
    %1728 = vmatpush1.msra.mxu0 %v1681
    %1729 = vmatprep.subr.mxu0 0.0
    %1730 = vmatpush1.msra.mxu0 %v1682
    %1731 = vmatprep.subr.mxu0 0.0
    %1732 = vmatpush1.msra.mxu0 %v1683
    %1733 = vmatprep.subr.mxu0 0.0
    %1734 = vmatpush1.msra.mxu0 %v1684
    %1735 = vmatprep.subr.mxu0 0.0
    %1736 = vmatpush1.msra.mxu0 %v1685
    %1737 = vmatprep.subr.mxu0 0.0
    %1738 = vmatpush1.msra.mxu0 %v1686
    %1739 = vmatprep.subr.mxu0 0.0
    %1740 = vmatpush1.msra.mxu0 %v1687
    %1741 = vmatprep.subr.mxu0 0.0
    %1742 = vmatpush1.msra.mxu0 %v1688
    %1743 = vmatprep.subr.mxu0 0.0
    %1744 = vmatpush1.msra.mxu0 %v1689
    %1745 = vmatprep.subr.mxu0 0.0
    %1746 = vmatpush1.msra.mxu0 %v1690
    %1747 = vmatprep.subr.mxu0 0.0
    %1748 = vmatpush1.msra.mxu0 %v1691
    %1749 = vmatprep.subr.mxu0 0.0
    %1750 = vmatpush1.msra.mxu0 %v1692
    %1751 = vmatprep.subr.mxu0 0.0
    %1752 = vmatpush1.msra.mxu0 %v1693
    %1753 = vmatprep.subr.mxu0 0.0
    %1754 = vmatpush1.msra.mxu0 %v1694
    %1755 = vmatprep.subr.mxu0 0.0
    %1756 = vmatpush1.msra.mxu0 %v1695
    %1757 = vmatprep.subr.mxu0 0.0
    %1758 = vmatpush1.msra.mxu0 %v1696
    %1759 = vmatprep.subr.mxu0 0.0
    %1760 = vmatpush1.msra.mxu0 %v1697
    %1761 = vmatprep.subr.mxu0 0.0
    %1762 = vmatpush1.msra.mxu0 %v1698
    %1763 = vmatprep.subr.mxu0 0.0
    %1764 = vmatpush1.msra.mxu0 %v1699
    %1765 = vmatprep.subr.mxu0 0.0
    %1766 = vmatpush1.msra.mxu0 %v1700
    %1767 = vmatprep.subr.mxu0 0.0
    %1768 = vmatpush1.msra.mxu0 %v1701
    %1769 = vmatprep.subr.mxu0 0.0
    %1770 = vmatpush1.msra.mxu0 %v1702
    %1771 = vmatprep.subr.mxu0 0.0
    %1772 = vmatpush1.msra.mxu0 %v1703
    %1773 = vmatprep.mubr.f32.mxu0 %v1641
    %1774 = vmatmul.mubr.f32.gmra.mrb[0].mxu0 %v1640
    %v1775 = vpop.f32.mrb[0].mxu0
    %v1776 = vadd.f32 %v1708, %v1775
    %v1777 = vpop.f32.mrb[0].mxu0
    %1778 = vmatprep.mubr.f32.mxu0 %v1643
    %1779 = vmatmul.mubr.f32.gmra.mrb[0].mxu0 %v1642
    %v1780 = vpop.f32.mrb[0].mxu0
    %v1781 = vadd.f32 %v1708, %v1780
    %v1782 = vpop.f32.mrb[0].mxu0
    %1783 = vmatprep.mubr.f32.mxu0 %v1645
    %1784 = vmatmul.mubr.f32.gmra.mrb[0].mxu0 %v1644
    %v1785 = vpop.f32.mrb[0].mxu0
    %v1786 = vadd.f32 %v1708, %v1785
    %v1787 = vpop.f32.mrb[0].mxu0
    %1788 = vmatprep.mubr.f32.mxu0 %v1647
    %1789 = vmatmul.mubr.f32.gmra.mrb[0].mxu0 %v1646
    %v1790 = vpop.f32.mrb[0].mxu0
    %v1791 = vadd.f32 %v1708, %v1790
    %v1792 = vpop.f32.mrb[0].mxu0
    %1793 = vmatprep.mubr.f32.mxu0 %v1649
    %1794 = vmatmul.mubr.f32.gmra.mrb[0].mxu0 %v1648
    %v1795 = vpop.f32.mrb[0].mxu0
    %v1796 = vadd.f32 %v1708, %v1795
    %v1797 = vpop.f32.mrb[0].mxu0
    %1798 = vmatprep.mubr.f32.mxu0 %v1651
    %1799 = vmatmul.mubr.f32.gmra.mrb[0].mxu0 %v1650
    %v1800 = vpop.f32.mrb[0].mxu0
    %v1801 = vadd.f32 %v1708, %v1800
    %v1802 = vpop.f32.mrb[0].mxu0
    %1803 = vmatprep.mubr.f32.mxu0 %v1653
    %1804 = vmatmul.mubr.f32.gmra.mrb[0].mxu0 %v1652
    %v1805 = vpop.f32.mrb[0].mxu0
    %v1806 = vadd.f32 %v1708, %v1805
    %v1807 = vpop.f32.mrb[0].mxu0
    %1808 = vmatprep.mubr.f32.mxu0 %v1655
    %1809 = vmatmul.mubr.f32.gmra.mrb[0].mxu0 %v1654
    %v1810 = vpop.f32.mrb[0].mxu0
    %v1811 = vadd.f32 %v1708, %v1810
    %v1812 = vpop.f32.mrb[0].mxu0
    %1813 = vmatprep.mubr.f32.mxu0 %v1657
    %1814 = vmatmul.mubr.f32.gmra.mrb[0].mxu0 %v1656
    %v1815 = vpop.f32.mrb[0].mxu0
    %v1816 = vadd.f32 %v1708, %v1815
    %v1817 = vpop.f32.mrb[0].mxu0
    %1818 = vmatprep.mubr.f32.mxu0 %v1659
    %1819 = vmatmul.mubr.f32.gmra.mrb[0].mxu0 %v1658
    %v1820 = vpop.f32.mrb[0].mxu0
    %v1821 = vadd.f32 %v1708, %v1820
    %v1822 = vpop.f32.mrb[0].mxu0
    %1823 = vmatprep.mubr.f32.mxu0 %v1661
    %1824 = vmatmul.mubr.f32.gmra.mrb[0].mxu0 %v1660
    %v1825 = vpop.f32.mrb[0].mxu0
    %v1826 = vadd.f32 %v1708, %v1825
    %v1827 = vpop.f32.mrb[0].mxu0
    %1828 = vmatprep.mubr.f32.mxu0 %v1663
    %1829 = vmatmul.mubr.f32.gmra.mrb[0].mxu0 %v1662
    %v1830 = vpop.f32.mrb[0].mxu0
    %v1831 = vadd.f32 %v1708, %v1830
    %v1832 = vpop.f32.mrb[0].mxu0
    %1833 = vmatprep.mubr.f32.mxu0 %v1665
    %1834 = vmatmul.mubr.f32.gmra.mrb[0].mxu0 %v1664
    %v1835 = vpop.f32.mrb[0].mxu0
    %v1836 = vadd.f32 %v1708, %v1835
    %v1837 = vpop.f32.mrb[0].mxu0
    %1838 = vmatprep.mubr.f32.mxu0 %v1667
    %1839 = vmatmul.mubr.f32.gmra.mrb[0].mxu0 %v1666
    %v1840 = vpop.f32.mrb[0].mxu0
    %v1841 = vadd.f32 %v1708, %v1840
    %v1842 = vpop.f32.mrb[0].mxu0
    %1843 = vmatprep.mubr.f32.mxu0 %v1669
    %1844 = vmatmul.mubr.f32.gmra.mrb[0].mxu0 %v1668
    %v1845 = vpop.f32.mrb[0].mxu0
    %v1846 = vadd.f32 %v1708, %v1845
    %v1847 = vpop.f32.mrb[0].mxu0
    %1848 = vmatprep.mubr.f32.mxu0 %v1671
    %1849 = vmatmul.mubr.f32.gmra.mrb[0].mxu0 %v1670
    %v1850 = vpop.f32.mrb[0].mxu0
    %v1851 = vadd.f32 %v1708, %v1850
    %v1852 = vpop.f32.mrb[0].mxu0
    %1853 = vdwg.mxu0
    %v1854 = vmax.f32 %v1776, 0.0
    %v1855 = vmax.f32 %v1781, 0.0
    %v1856 = vmax.f32 %v1786, 0.0
    %v1857 = vmax.f32 %v1791, 0.0
    %v1858 = vmax.f32 %v1796, 0.0
    %v1859 = vmax.f32 %v1801, 0.0
    %v1860 = vmax.f32 %v1806, 0.0
    %v1861 = vmax.f32 %v1811, 0.0
    %v1862 = vmax.f32 %v1816, 0.0
    %v1863 = vmax.f32 %v1821, 0.0
    %v1864 = vmax.f32 %v1826, 0.0
    %v1865 = vmax.f32 %v1831, 0.0
    %v1866 = vmax.f32 %v1836, 0.0
    %v1867 = vmax.f32 %v1841, 0.0
    %v1868 = vmax.f32 %v1846, 0.0
    %v1869 = vmax.f32 %v1851, 0.0
    %v1870 = vld [vmem:[#allocation5 + $0x218] sm:$0xff]
    %v1871 = vld [vmem:[#allocation5 + $0x220] sm:$0xff]
    %v1872 = vld [vmem:[#allocation5 + $0x228] sm:$0xff]
    %v1873 = vld [vmem:[#allocation5 + $0x230] sm:$0xff]
    %v1874 = vld [vmem:[#allocation5 + $0x238] sm:$0xff]
    %v1875 = vld [vmem:[#allocation5 + $0x240] sm:$0xff]
    %v1876 = vld [vmem:[#allocation5 + $0x248] sm:$0xff]
    %v1877 = vld [vmem:[#allocation5 + $0x250] sm:$0xff]
    %v1878 = vld [vmem:[#allocation5 + $0x258] sm:$0xff]
    %v1879 = vld [vmem:[#allocation5 + $0x260] sm:$0xff]
    %v1880 = vld [vmem:[#allocation5 + $0x268] sm:$0xff]
    %v1881 = vld [vmem:[#allocation5 + $0x270] sm:$0xff]
    %v1882 = vld [vmem:[#allocation5 + $0x278] sm:$0xff]
    %v1883 = vld [vmem:[#allocation5 + $0x280] sm:$0xff]
    %v1884 = vld [vmem:[#allocation5 + $0x288] sm:$0xff]
    %v1885 = vld [vmem:[#allocation5 + $0x290] sm:$0xff]
    %v1886 = vld [vmem:[#allocation5 + $0xc2b] sm:$0x1]
    %v1887 = vlaneseq
    %v1888 = vshrl.u32 %v1887, 7
    %v1889 = vsub.s32 0, %v1888
    %v1890 = vrot.slane %v1886, %v1889
    %1891 = vmatprep.subr.mxu0 0.0
    %1892 = vmatpush1.msra.mxu0 %v1870
    %1893 = vmatprep.subr.mxu0 0.0
    %1894 = vmatpush1.msra.mxu0 %v1871
    %1895 = vmatprep.subr.mxu0 0.0
    %1896 = vmatpush1.msra.mxu0 %v1872
    %1897 = vmatprep.subr.mxu0 0.0
    %1898 = vmatpush1.msra.mxu0 %v1873
    %1899 = vmatprep.subr.mxu0 0.0
    %1900 = vmatpush1.msra.mxu0 %v1874
    %1901 = vmatprep.subr.mxu0 0.0
    %1902 = vmatpush1.msra.mxu0 %v1875
    %1903 = vmatprep.subr.mxu0 0.0
    %1904 = vmatpush1.msra.mxu0 %v1876
    %1905 = vmatprep.subr.mxu0 0.0
    %1906 = vmatpush1.msra.mxu0 %v1877
    %1907 = vmatprep.subr.mxu0 0.0
    %1908 = vmatpush1.msra.mxu0 %v1878
    %1909 = vmatprep.subr.mxu0 0.0
    %1910 = vmatpush1.msra.mxu0 %v1879
    %1911 = vmatprep.subr.mxu0 0.0
    %1912 = vmatpush1.msra.mxu0 %v1880
    %1913 = vmatprep.subr.mxu0 0.0
    %1914 = vmatpush1.msra.mxu0 %v1881
    %1915 = vmatprep.subr.mxu0 0.0
    %1916 = vmatpush1.msra.mxu0 %v1882
    %1917 = vmatprep.subr.mxu0 0.0
    %1918 = vmatpush1.msra.mxu0 %v1883
    %1919 = vmatprep.subr.mxu0 0.0
    %1920 = vmatpush1.msra.mxu0 %v1884
    %1921 = vmatprep.subr.mxu0 0.0
    %1922 = vmatpush1.msra.mxu0 %v1885
    %1923 = vmatprep.subr.mxu0 0.0
    %1924 = vmatpush1.msra.mxu0 0.0
    %1925 = vmatprep.subr.mxu0 0.0
    %1926 = vmatpush1.msra.mxu0 0.0
    %1927 = vmatprep.subr.mxu0 0.0
    %1928 = vmatpush1.msra.mxu0 0.0
    %1929 = vmatprep.subr.mxu0 0.0
    %1930 = vmatpush1.msra.mxu0 0.0
    %1931 = vmatprep.subr.mxu0 0.0
    %1932 = vmatpush1.msra.mxu0 0.0
    %1933 = vmatprep.subr.mxu0 0.0
    %1934 = vmatpush1.msra.mxu0 0.0
    %1935 = vmatprep.subr.mxu0 0.0
    %1936 = vmatpush1.msra.mxu0 0.0
    %1937 = vmatprep.subr.mxu0 0.0
    %1938 = vmatpush1.msra.mxu0 0.0
    %1939 = vmatprep.subr.mxu0 0.0
    %1940 = vmatpush1.msra.mxu0 0.0
    %1941 = vmatprep.subr.mxu0 0.0
    %1942 = vmatpush1.msra.mxu0 0.0
    %1943 = vmatprep.subr.mxu0 0.0
    %1944 = vmatpush1.msra.mxu0 0.0
    %1945 = vmatprep.subr.mxu0 0.0
    %1946 = vmatpush1.msra.mxu0 0.0
    %1947 = vmatprep.subr.mxu0 0.0
    %1948 = vmatpush1.msra.mxu0 0.0
    %1949 = vmatprep.subr.mxu0 0.0
    %1950 = vmatpush1.msra.mxu0 0.0
    %1951 = vmatprep.subr.mxu0 0.0
    %1952 = vmatpush1.msra.mxu0 0.0
    %1953 = vmatprep.subr.mxu0 0.0
    %1954 = vmatpush1.msra.mxu0 0.0
    %1955 = vmatprep.mubr.f32.mxu0 0.0
    %1956 = vmatmul.mubr.f32.gmra.mrb[0].mxu0 %v1854
    %v1957 = vpop.f32.mrb[0].mxu0
    %v1958 = vadd.f32 %v1890, %v1957
    %v1959 = vpop.f32.mrb[0].mxu0
    %1960 = vmatprep.mubr.f32.mxu0 0.0
    %1961 = vmatmul.mubr.f32.gmra.mrb[0].mxu0 %v1855
    %v1962 = vpop.f32.mrb[0].mxu0
    %v1963 = vadd.f32 %v1890, %v1962
    %v1964 = vpop.f32.mrb[0].mxu0
    %1965 = vmatprep.mubr.f32.mxu0 0.0
    %1966 = vmatmul.mubr.f32.gmra.mrb[0].mxu0 %v1856
    %v1967 = vpop.f32.mrb[0].mxu0
    %v1968 = vadd.f32 %v1890, %v1967
    %v1969 = vpop.f32.mrb[0].mxu0
    %1970 = vmatprep.mubr.f32.mxu0 0.0
    %1971 = vmatmul.mubr.f32.gmra.mrb[0].mxu0 %v1857
    %v1972 = vpop.f32.mrb[0].mxu0
    %v1973 = vadd.f32 %v1890, %v1972
    %v1974 = vpop.f32.mrb[0].mxu0
    %1975 = vmatprep.mubr.f32.mxu0 0.0
    %1976 = vmatmul.mubr.f32.gmra.mrb[0].mxu0 %v1858
    %v1977 = vpop.f32.mrb[0].mxu0
    %v1978 = vadd.f32 %v1890, %v1977
    %v1979 = vpop.f32.mrb[0].mxu0
    %1980 = vmatprep.mubr.f32.mxu0 0.0
    %1981 = vmatmul.mubr.f32.gmra.mrb[0].mxu0 %v1859
    %v1982 = vpop.f32.mrb[0].mxu0
    %v1983 = vadd.f32 %v1890, %v1982
    %v1984 = vpop.f32.mrb[0].mxu0
    %1985 = vmatprep.mubr.f32.mxu0 0.0
    %1986 = vmatmul.mubr.f32.gmra.mrb[0].mxu0 %v1860
    %v1987 = vpop.f32.mrb[0].mxu0
    %v1988 = vadd.f32 %v1890, %v1987
    %v1989 = vpop.f32.mrb[0].mxu0
    %1990 = vmatprep.mubr.f32.mxu0 0.0
    %1991 = vmatmul.mubr.f32.gmra.mrb[0].mxu0 %v1861
    %v1992 = vpop.f32.mrb[0].mxu0
    %v1993 = vadd.f32 %v1890, %v1992
    %v1994 = vpop.f32.mrb[0].mxu0
    %1995 = vmatprep.mubr.f32.mxu0 0.0
    %1996 = vmatmul.mubr.f32.gmra.mrb[0].mxu0 %v1862
    %v1997 = vpop.f32.mrb[0].mxu0
    %v1998 = vadd.f32 %v1890, %v1997
    %v1999 = vpop.f32.mrb[0].mxu0
    %2000 = vmatprep.mubr.f32.mxu0 0.0
    %2001 = vmatmul.mubr.f32.gmra.mrb[0].mxu0 %v1863
    %v2002 = vpop.f32.mrb[0].mxu0
    %v2003 = vadd.f32 %v1890, %v2002
    %v2004 = vpop.f32.mrb[0].mxu0
    %2005 = vmatprep.mubr.f32.mxu0 0.0
    %2006 = vmatmul.mubr.f32.gmra.mrb[0].mxu0 %v1864
    %v2007 = vpop.f32.mrb[0].mxu0
    %v2008 = vadd.f32 %v1890, %v2007
    %v2009 = vpop.f32.mrb[0].mxu0
    %2010 = vmatprep.mubr.f32.mxu0 0.0
    %2011 = vmatmul.mubr.f32.gmra.mrb[0].mxu0 %v1865
    %v2012 = vpop.f32.mrb[0].mxu0
    %v2013 = vadd.f32 %v1890, %v2012
    %v2014 = vpop.f32.mrb[0].mxu0
    %2015 = vmatprep.mubr.f32.mxu0 0.0
    %2016 = vmatmul.mubr.f32.gmra.mrb[0].mxu0 %v1866
    %v2017 = vpop.f32.mrb[0].mxu0
    %v2018 = vadd.f32 %v1890, %v2017
    %v2019 = vpop.f32.mrb[0].mxu0
    %2020 = vmatprep.mubr.f32.mxu0 0.0
    %2021 = vmatmul.mubr.f32.gmra.mrb[0].mxu0 %v1867
    %v2022 = vpop.f32.mrb[0].mxu0
    %v2023 = vadd.f32 %v1890, %v2022
    %v2024 = vpop.f32.mrb[0].mxu0
    %2025 = vmatprep.mubr.f32.mxu0 0.0
    %2026 = vmatmul.mubr.f32.gmra.mrb[0].mxu0 %v1868
    %v2027 = vpop.f32.mrb[0].mxu0
    %v2028 = vadd.f32 %v1890, %v2027
    %v2029 = vpop.f32.mrb[0].mxu0
    %2030 = vmatprep.mubr.f32.mxu0 0.0
    %2031 = vmatmul.mubr.f32.gmra.mrb[0].mxu0 %v1869
    %v2032 = vpop.f32.mrb[0].mxu0
    %v2033 = vadd.f32 %v1890, %v2032
    %v2034 = vpop.f32.mrb[0].mxu0
    %2035 = vdwg.mxu0
    %2036 = vmatprep.subr.mxu0 0.0
    %2037 = vmatpush1.msra.mxu0 %v1958
    %2038 = vmatprep.subr.mxu0 0.0
    %2039 = vmatpush1.msra.mxu0 %v1963
    %2040 = vmatprep.subr.mxu0 0.0
    %2041 = vmatpush1.msra.mxu0 %v1968
    %2042 = vmatprep.subr.mxu0 0.0
    %2043 = vmatpush1.msra.mxu0 %v1973
    %2044 = vmatprep.subr.mxu0 0.0
    %2045 = vmatpush1.msra.mxu0 %v1978
    %2046 = vmatprep.subr.mxu0 0.0
    %2047 = vmatpush1.msra.mxu0 %v1983
    %2048 = vmatprep.subr.mxu0 0.0
    %2049 = vmatpush1.msra.mxu0 %v1988
    %2050 = vmatprep.subr.mxu0 0.0
    %2051 = vmatpush1.msra.mxu0 %v1993
    %2052 = vmatprep.subr.mxu0 0.0
    %2053 = vmatpush1.msra.mxu0 %v1998
    %2054 = vmatprep.subr.mxu0 0.0
    %2055 = vmatpush1.msra.mxu0 %v2003
    %2056 = vmatprep.subr.mxu0 0.0
    %2057 = vmatpush1.msra.mxu0 %v2008
    %2058 = vmatprep.subr.mxu0 0.0
    %2059 = vmatpush1.msra.mxu0 %v2013
    %2060 = vmatprep.subr.mxu0 0.0
    %2061 = vmatpush1.msra.mxu0 %v2018
    %2062 = vmatprep.subr.mxu0 0.0
    %2063 = vmatpush1.msra.mxu0 %v2023
    %2064 = vmatprep.subr.mxu0 0.0
    %2065 = vmatpush1.msra.mxu0 %v2028
    %2066 = vmatprep.subr.mxu0 0.0
    %2067 = vmatpush1.msra.mxu0 %v2033
    %2068 = vmatprep.subr.mxu0 0.0
    %2069 = vmatpush1.msra.mxu0 0.0
    %2070 = vmatprep.subr.mxu0 0.0
    %2071 = vmatpush1.msra.mxu0 0.0
    %2072 = vmatprep.subr.mxu0 0.0
    %2073 = vmatpush1.msra.mxu0 0.0
    %2074 = vmatprep.subr.mxu0 0.0
    %2075 = vmatpush1.msra.mxu0 0.0
    %2076 = vmatprep.subr.mxu0 0.0
    %2077 = vmatpush1.msra.mxu0 0.0
    %2078 = vmatprep.subr.mxu0 0.0
    %2079 = vmatpush1.msra.mxu0 0.0
    %2080 = vmatprep.subr.mxu0 0.0
    %2081 = vmatpush1.msra.mxu0 0.0
    %2082 = vmatprep.subr.mxu0 0.0
    %2083 = vmatpush1.msra.mxu0 0.0
    %2084 = vmatprep.subr.mxu0 0.0
    %2085 = vmatpush1.msra.mxu0 0.0
    %2086 = vmatprep.subr.mxu0 0.0
    %2087 = vmatpush1.msra.mxu0 0.0
    %2088 = vmatprep.subr.mxu0 0.0
    %2089 = vmatpush1.msra.mxu0 0.0
    %2090 = vmatprep.subr.mxu0 0.0
    %2091 = vmatpush1.msra.mxu0 0.0
    %2092 = vmatprep.subr.mxu0 0.0
    %2093 = vmatpush1.msra.mxu0 0.0
    %2094 = vmatprep.subr.mxu0 0.0
    %2095 = vmatpush1.msra.mxu0 0.0
    %2096 = vmatprep.subr.mxu0 0.0
    %2097 = vmatpush1.msra.mxu0 0.0
    %2098 = vmatprep.subr.mxu0 0.0
    %2099 = vmatpush1.msra.mxu0 0.0
    %2100 = vmatprep.mubr.f32.mxu0 0.0
    %2101 = vmatmul.mubr.f32.gmra.mrb[0].mxu0 %v313
    %v2102 = vpop.f32.mrb[0].mxu0
    %v2103 = vadd.f32 0.0, %v2102
    %v2104 = vpop.f32.mrb[0].mxu0
    %2105 = vmatprep.mubr.f32.mxu0 0.0
    %2106 = vmatmul.mubr.f32.gmra.mrb[0].mxu0 %v314
    %v2107 = vpop.f32.mrb[0].mxu0
    %v2108 = vadd.f32 0.0, %v2107
    %v2109 = vpop.f32.mrb[0].mxu0
    %2110 = vmatprep.mubr.f32.mxu0 0.0
    %2111 = vmatmul.mubr.f32.gmra.mrb[0].mxu0 %v315
    %v2112 = vpop.f32.mrb[0].mxu0
    %v2113 = vadd.f32 0.0, %v2112
    %v2114 = vpop.f32.mrb[0].mxu0
    %2115 = vmatprep.mubr.f32.mxu0 0.0
    %2116 = vmatmul.mubr.f32.gmra.mrb[0].mxu0 %v316
    %v2117 = vpop.f32.mrb[0].mxu0
    %v2118 = vadd.f32 0.0, %v2117
    %v2119 = vpop.f32.mrb[0].mxu0
    %2120 = vdwg.mxu0
    %v2121 = vmul.f32 %v2103, %v338
    %v2122 = vmul.f32 %v2108, %v340
    %v2123 = vmul.f32 %v2113, %v342
    %v2124 = vmul.f32 %v2118, %v344
    %v2125 = vadd.f32 %v459, %v2121
    %v2126 = vadd.f32 %v464, %v2122
    %v2127 = vadd.f32 %v469, %v2123
    %v2128 = vadd.f32 %v474, %v2124
    %v2129 = vld [vmem:[#allocation5 + $0x298] sm:$0xff]
    %v2130 = vld [vmem:[#allocation5 + $0x2a0] sm:$0xff]
    %v2131 = vld [vmem:[#allocation5 + $0x2a8] sm:$0xff]
    %v2132 = vld [vmem:[#allocation5 + $0x2b0] sm:$0xff]
    %v2133 = vld [vmem:[#allocation5 + $0x2b8] sm:$0xff]
    %v2134 = vld [vmem:[#allocation5 + $0x2c0] sm:$0xff]
    %v2135 = vld [vmem:[#allocation5 + $0x2c8] sm:$0xff]
    %v2136 = vld [vmem:[#allocation5 + $0x2d0] sm:$0xff]
    %v2137 = vld [vmem:[#allocation5 + $0x2d8] sm:$0xff]
    %v2138 = vld [vmem:[#allocation5 + $0x2e0] sm:$0xff]
    %v2139 = vld [vmem:[#allocation5 + $0x2e8] sm:$0xff]
    %v2140 = vld [vmem:[#allocation5 + $0x2f0] sm:$0xff]
    %v2141 = vld [vmem:[#allocation5 + $0x2f8] sm:$0xff]
    %v2142 = vld [vmem:[#allocation5 + $0x300] sm:$0xff]
    %v2143 = vld [vmem:[#allocation5 + $0x308] sm:$0xff]
    %v2144 = vld [vmem:[#allocation5 + $0x310] sm:$0xff]
    %v2145 = vld [vmem:[#allocation5 + $0xc2c] sm:$0x1]
    %v2146 = vlaneseq
    %v2147 = vshrl.u32 %v2146, 7
    %v2148 = vsub.s32 0, %v2147
    %v2149 = vrot.slane %v2145, %v2148
    %2150 = vmatprep.subr.mxu0 0.0
    %2151 = vmatpush1.msra.mxu0 %v2129
    %2152 = vmatprep.subr.mxu0 0.0
    %2153 = vmatpush1.msra.mxu0 %v2130
    %2154 = vmatprep.subr.mxu0 0.0
    %2155 = vmatpush1.msra.mxu0 %v2131
    %2156 = vmatprep.subr.mxu0 0.0
    %2157 = vmatpush1.msra.mxu0 %v2132
    %2158 = vmatprep.subr.mxu0 0.0
    %2159 = vmatpush1.msra.mxu0 %v2133
    %2160 = vmatprep.subr.mxu0 0.0
    %2161 = vmatpush1.msra.mxu0 %v2134
    %2162 = vmatprep.subr.mxu0 0.0
    %2163 = vmatpush1.msra.mxu0 %v2135
    %2164 = vmatprep.subr.mxu0 0.0
    %2165 = vmatpush1.msra.mxu0 %v2136
    %2166 = vmatprep.subr.mxu0 0.0
    %2167 = vmatpush1.msra.mxu0 %v2137
    %2168 = vmatprep.subr.mxu0 0.0
    %2169 = vmatpush1.msra.mxu0 %v2138
    %2170 = vmatprep.subr.mxu0 0.0
    %2171 = vmatpush1.msra.mxu0 %v2139
    %2172 = vmatprep.subr.mxu0 0.0
    %2173 = vmatpush1.msra.mxu0 %v2140
    %2174 = vmatprep.subr.mxu0 0.0
    %2175 = vmatpush1.msra.mxu0 %v2141
    %2176 = vmatprep.subr.mxu0 0.0
    %2177 = vmatpush1.msra.mxu0 %v2142
    %2178 = vmatprep.subr.mxu0 0.0
    %2179 = vmatpush1.msra.mxu0 %v2143
    %2180 = vmatprep.subr.mxu0 0.0
    %2181 = vmatpush1.msra.mxu0 %v2144
    %2182 = vmatprep.subr.mxu0 0.0
    %2183 = vmatpush1.msra.mxu0 0.0
    %2184 = vmatprep.subr.mxu0 0.0
    %2185 = vmatpush1.msra.mxu0 0.0
    %2186 = vmatprep.subr.mxu0 0.0
    %2187 = vmatpush1.msra.mxu0 0.0
    %2188 = vmatprep.subr.mxu0 0.0
    %2189 = vmatpush1.msra.mxu0 0.0
    %2190 = vmatprep.subr.mxu0 0.0
    %2191 = vmatpush1.msra.mxu0 0.0
    %2192 = vmatprep.subr.mxu0 0.0
    %2193 = vmatpush1.msra.mxu0 0.0
    %2194 = vmatprep.subr.mxu0 0.0
    %2195 = vmatpush1.msra.mxu0 0.0
    %2196 = vmatprep.subr.mxu0 0.0
    %2197 = vmatpush1.msra.mxu0 0.0
    %2198 = vmatprep.subr.mxu0 0.0
    %2199 = vmatpush1.msra.mxu0 0.0
    %2200 = vmatprep.subr.mxu0 0.0
    %2201 = vmatpush1.msra.mxu0 0.0
    %2202 = vmatprep.subr.mxu0 0.0
    %2203 = vmatpush1.msra.mxu0 0.0
    %2204 = vmatprep.subr.mxu0 0.0
    %2205 = vmatpush1.msra.mxu0 0.0
    %2206 = vmatprep.subr.mxu0 0.0
    %2207 = vmatpush1.msra.mxu0 0.0
    %2208 = vmatprep.subr.mxu0 0.0
    %2209 = vmatpush1.msra.mxu0 0.0
    %2210 = vmatprep.subr.mxu0 0.0
    %2211 = vmatpush1.msra.mxu0 0.0
    %2212 = vmatprep.subr.mxu0 0.0
    %2213 = vmatpush1.msra.mxu0 0.0
    %2214 = vmatprep.mubr.f32.mxu0 0.0
    %2215 = vmatmul.mubr.f32.gmra.mrb[0].mxu0 %v2125
    %v2216 = vpop.f32.mrb[0].mxu0
    %v2217 = vadd.f32 %v2149, %v2216
    %v2218 = vpop.f32.mrb[0].mxu0
    %2219 = vmatprep.mubr.f32.mxu0 0.0
    %2220 = vmatmul.mubr.f32.gmra.mrb[0].mxu0 %v2126
    %v2221 = vpop.f32.mrb[0].mxu0
    %v2222 = vadd.f32 %v2149, %v2221
    %v2223 = vpop.f32.mrb[0].mxu0
    %2224 = vmatprep.mubr.f32.mxu0 0.0
    %2225 = vmatmul.mubr.f32.gmra.mrb[0].mxu0 %v2127
    %v2226 = vpop.f32.mrb[0].mxu0
    %v2227 = vadd.f32 %v2149, %v2226
    %v2228 = vpop.f32.mrb[0].mxu0
    %2229 = vmatprep.mubr.f32.mxu0 0.0
    %2230 = vmatmul.mubr.f32.gmra.mrb[0].mxu0 %v2128
    %v2231 = vpop.f32.mrb[0].mxu0
    %v2232 = vadd.f32 %v2149, %v2231
    %v2233 = vpop.f32.mrb[0].mxu0
    %2234 = vdwg.mxu0
    %v2235 = vmax.f32 %v2217, 0.0
    %v2236 = vmax.f32 %v2222, 0.0
    %v2237 = vmax.f32 %v2227, 0.0
    %v2238 = vmax.f32 %v2232, 0.0
    %v2239 = vld [vmem:[#allocation5 + $0x318] sm:$0xff]
    %v2240 = vld [vmem:[#allocation5 + $0x320] sm:$0xff]
    %v2241 = vld [vmem:[#allocation5 + $0x328] sm:$0xff]
    %v2242 = vld [vmem:[#allocation5 + $0x330] sm:$0xff]
    %v2243 = vld [vmem:[#allocation5 + $0x338] sm:$0xff]
    %v2244 = vld [vmem:[#allocation5 + $0x340] sm:$0xff]
    %v2245 = vld [vmem:[#allocation5 + $0x348] sm:$0xff]
    %v2246 = vld [vmem:[#allocation5 + $0x350] sm:$0xff]
    %v2247 = vld [vmem:[#allocation5 + $0x358] sm:$0xff]
    %v2248 = vld [vmem:[#allocation5 + $0x360] sm:$0xff]
    %v2249 = vld [vmem:[#allocation5 + $0x368] sm:$0xff]
    %v2250 = vld [vmem:[#allocation5 + $0x370] sm:$0xff]
    %v2251 = vld [vmem:[#allocation5 + $0x378] sm:$0xff]
    %v2252 = vld [vmem:[#allocation5 + $0x380] sm:$0xff]
    %v2253 = vld [vmem:[#allocation5 + $0x388] sm:$0xff]
    %v2254 = vld [vmem:[#allocation5 + $0x390] sm:$0xff]
    %v2255 = vld [vmem:[#allocation5 + $0xc2d] sm:$0x1]
    %v2256 = vlaneseq
    %v2257 = vshrl.u32 %v2256, 7
    %v2258 = vsub.s32 0, %v2257
    %v2259 = vrot.slane %v2255, %v2258
    %2260 = vmatprep.subr.mxu0 0.0
    %2261 = vmatpush1.msra.mxu0 %v2239
    %2262 = vmatprep.subr.mxu0 0.0
    %2263 = vmatpush1.msra.mxu0 %v2240
    %2264 = vmatprep.subr.mxu0 0.0
    %2265 = vmatpush1.msra.mxu0 %v2241
    %2266 = vmatprep.subr.mxu0 0.0
    %2267 = vmatpush1.msra.mxu0 %v2242
    %2268 = vmatprep.subr.mxu0 0.0
    %2269 = vmatpush1.msra.mxu0 %v2243
    %2270 = vmatprep.subr.mxu0 0.0
    %2271 = vmatpush1.msra.mxu0 %v2244
    %2272 = vmatprep.subr.mxu0 0.0
    %2273 = vmatpush1.msra.mxu0 %v2245
    %2274 = vmatprep.subr.mxu0 0.0
    %2275 = vmatpush1.msra.mxu0 %v2246
    %2276 = vmatprep.subr.mxu0 0.0
    %2277 = vmatpush1.msra.mxu0 %v2247
    %2278 = vmatprep.subr.mxu0 0.0
    %2279 = vmatpush1.msra.mxu0 %v2248
    %2280 = vmatprep.subr.mxu0 0.0
    %2281 = vmatpush1.msra.mxu0 %v2249
    %2282 = vmatprep.subr.mxu0 0.0
    %2283 = vmatpush1.msra.mxu0 %v2250
    %2284 = vmatprep.subr.mxu0 0.0
    %2285 = vmatpush1.msra.mxu0 %v2251
    %2286 = vmatprep.subr.mxu0 0.0
    %2287 = vmatpush1.msra.mxu0 %v2252
    %2288 = vmatprep.subr.mxu0 0.0
    %2289 = vmatpush1.msra.mxu0 %v2253
    %2290 = vmatprep.subr.mxu0 0.0
    %2291 = vmatpush1.msra.mxu0 %v2254
    %2292 = vmatprep.subr.mxu0 0.0
    %2293 = vmatpush1.msra.mxu0 0.0
    %2294 = vmatprep.subr.mxu0 0.0
    %2295 = vmatpush1.msra.mxu0 0.0
    %2296 = vmatprep.subr.mxu0 0.0
    %2297 = vmatpush1.msra.mxu0 0.0
    %2298 = vmatprep.subr.mxu0 0.0
    %2299 = vmatpush1.msra.mxu0 0.0
    %2300 = vmatprep.subr.mxu0 0.0
    %2301 = vmatpush1.msra.mxu0 0.0
    %2302 = vmatprep.subr.mxu0 0.0
    %2303 = vmatpush1.msra.mxu0 0.0
    %2304 = vmatprep.subr.mxu0 0.0
    %2305 = vmatpush1.msra.mxu0 0.0
    %2306 = vmatprep.subr.mxu0 0.0
    %2307 = vmatpush1.msra.mxu0 0.0
    %2308 = vmatprep.subr.mxu0 0.0
    %2309 = vmatpush1.msra.mxu0 0.0
    %2310 = vmatprep.subr.mxu0 0.0
    %2311 = vmatpush1.msra.mxu0 0.0
    %2312 = vmatprep.subr.mxu0 0.0
    %2313 = vmatpush1.msra.mxu0 0.0
    %2314 = vmatprep.subr.mxu0 0.0
    %2315 = vmatpush1.msra.mxu0 0.0
    %2316 = vmatprep.subr.mxu0 0.0
    %2317 = vmatpush1.msra.mxu0 0.0
    %2318 = vmatprep.subr.mxu0 0.0
    %2319 = vmatpush1.msra.mxu0 0.0
    %2320 = vmatprep.subr.mxu0 0.0
    %2321 = vmatpush1.msra.mxu0 0.0
    %2322 = vmatprep.subr.mxu0 0.0
    %2323 = vmatpush1.msra.mxu0 0.0
    %2324 = vmatprep.mubr.f32.mxu0 0.0
    %2325 = vmatmul.mubr.f32.gmra.mrb[0].mxu0 %v2235
    %v2326 = vpop.f32.mrb[0].mxu0
    %v2327 = vadd.f32 %v2259, %v2326
    %v2328 = vpop.f32.mrb[0].mxu0
    %2329 = vmatprep.mubr.f32.mxu0 0.0
    %2330 = vmatmul.mubr.f32.gmra.mrb[0].mxu0 %v2236
    %v2331 = vpop.f32.mrb[0].mxu0
    %v2332 = vadd.f32 %v2259, %v2331
    %v2333 = vpop.f32.mrb[0].mxu0
    %2334 = vmatprep.mubr.f32.mxu0 0.0
    %2335 = vmatmul.mubr.f32.gmra.mrb[0].mxu0 %v2237
    %v2336 = vpop.f32.mrb[0].mxu0
    %v2337 = vadd.f32 %v2259, %v2336
    %v2338 = vpop.f32.mrb[0].mxu0
    %2339 = vmatprep.mubr.f32.mxu0 0.0
    %2340 = vmatmul.mubr.f32.gmra.mrb[0].mxu0 %v2238
    %v2341 = vpop.f32.mrb[0].mxu0
    %v2342 = vadd.f32 %v2259, %v2341
    %v2343 = vpop.f32.mrb[0].mxu0
    %2344 = vdwg.mxu0
    %2345 = vmatprep.subr.mxu0 0.0
    %2346 = vmatpush1.msra.mxu0 %v2327
    %2347 = vmatprep.subr.mxu0 0.0
    %2348 = vmatpush1.msra.mxu0 %v2332
    %2349 = vmatprep.subr.mxu0 0.0
    %2350 = vmatpush1.msra.mxu0 %v2337
    %2351 = vmatprep.subr.mxu0 0.0
    %2352 = vmatpush1.msra.mxu0 %v2342
    %2353 = vmatprep.subr.mxu0 0.0
    %2354 = vmatpush1.msra.mxu0 0.0
    %2355 = vmatprep.subr.mxu0 0.0
    %2356 = vmatpush1.msra.mxu0 0.0
    %2357 = vmatprep.subr.mxu0 0.0
    %2358 = vmatpush1.msra.mxu0 0.0
    %2359 = vmatprep.subr.mxu0 0.0
    %2360 = vmatpush1.msra.mxu0 0.0
    %2361 = vmatprep.subr.mxu0 0.0
    %2362 = vmatpush1.msra.mxu0 0.0
    %2363 = vmatprep.subr.mxu0 0.0
    %2364 = vmatpush1.msra.mxu0 0.0
    %2365 = vmatprep.subr.mxu0 0.0
    %2366 = vmatpush1.msra.mxu0 0.0
    %2367 = vmatprep.subr.mxu0 0.0
    %2368 = vmatpush1.msra.mxu0 0.0
    %2369 = vmatprep.subr.mxu0 0.0
    %2370 = vmatpush1.msra.mxu0 0.0
    %2371 = vmatprep.subr.mxu0 0.0
    %2372 = vmatpush1.msra.mxu0 0.0
    %2373 = vmatprep.subr.mxu0 0.0
    %2374 = vmatpush1.msra.mxu0 0.0
    %2375 = vmatprep.subr.mxu0 0.0
    %2376 = vmatpush1.msra.mxu0 0.0
    %2377 = vmatprep.subr.mxu0 0.0
    %2378 = vmatpush1.msra.mxu0 0.0
    %2379 = vmatprep.subr.mxu0 0.0
    %2380 = vmatpush1.msra.mxu0 0.0
    %2381 = vmatprep.subr.mxu0 0.0
    %2382 = vmatpush1.msra.mxu0 0.0
    %2383 = vmatprep.subr.mxu0 0.0
    %2384 = vmatpush1.msra.mxu0 0.0
    %2385 = vmatprep.subr.mxu0 0.0
    %2386 = vmatpush1.msra.mxu0 0.0
    %2387 = vmatprep.subr.mxu0 0.0
    %2388 = vmatpush1.msra.mxu0 0.0
    %2389 = vmatprep.subr.mxu0 0.0
    %2390 = vmatpush1.msra.mxu0 0.0
    %2391 = vmatprep.subr.mxu0 0.0
    %2392 = vmatpush1.msra.mxu0 0.0
    %2393 = vmatprep.subr.mxu0 0.0
    %2394 = vmatpush1.msra.mxu0 0.0
    %2395 = vmatprep.subr.mxu0 0.0
    %2396 = vmatpush1.msra.mxu0 0.0
    %2397 = vmatprep.subr.mxu0 0.0
    %2398 = vmatpush1.msra.mxu0 0.0
    %2399 = vmatprep.subr.mxu0 0.0
    %2400 = vmatpush1.msra.mxu0 0.0
    %2401 = vmatprep.subr.mxu0 0.0
    %2402 = vmatpush1.msra.mxu0 0.0
    %2403 = vmatprep.subr.mxu0 0.0
    %2404 = vmatpush1.msra.mxu0 0.0
    %2405 = vmatprep.subr.mxu0 0.0
    %2406 = vmatpush1.msra.mxu0 0.0
    %2407 = vmatprep.subr.mxu0 0.0
    %2408 = vmatpush1.msra.mxu0 0.0
    %2409 = vmatprep.mubr.f32.mxu0 0.0
    %2410 = vmatmul.mubr.f32.gmra.mrb[0].mxu0 %v479
    %v2411 = vpop.f32.mrb[0].mxu0
    %v2412 = vadd.f32 0.0, %v2411
    %v2413 = vpop.f32.mrb[0].mxu0
    %2414 = vmatprep.mubr.f32.mxu0 0.0
    %2415 = vmatmul.mubr.f32.gmra.mrb[0].mxu0 %v482
    %v2416 = vpop.f32.mrb[0].mxu0
    %v2417 = vadd.f32 0.0, %v2416
    %v2418 = vpop.f32.mrb[0].mxu0
    %2419 = vmatprep.mubr.f32.mxu0 0.0
    %2420 = vmatmul.mubr.f32.gmra.mrb[0].mxu0 %v485
    %v2421 = vpop.f32.mrb[0].mxu0
    %v2422 = vadd.f32 0.0, %v2421
    %v2423 = vpop.f32.mrb[0].mxu0
    %2424 = vmatprep.mubr.f32.mxu0 0.0
    %2425 = vmatmul.mubr.f32.gmra.mrb[0].mxu0 %v488
    %v2426 = vpop.f32.mrb[0].mxu0
    %v2427 = vadd.f32 0.0, %v2426
    %v2428 = vpop.f32.mrb[0].mxu0
    %2429 = vmatprep.mubr.f32.mxu0 0.0
    %2430 = vmatmul.mubr.f32.gmra.mrb[0].mxu0 %v491
    %v2431 = vpop.f32.mrb[0].mxu0
    %v2432 = vadd.f32 0.0, %v2431
    %v2433 = vpop.f32.mrb[0].mxu0
    %2434 = vmatprep.mubr.f32.mxu0 0.0
    %2435 = vmatmul.mubr.f32.gmra.mrb[0].mxu0 %v494
    %v2436 = vpop.f32.mrb[0].mxu0
    %v2437 = vadd.f32 0.0, %v2436
    %v2438 = vpop.f32.mrb[0].mxu0
    %2439 = vmatprep.mubr.f32.mxu0 0.0
    %2440 = vmatmul.mubr.f32.gmra.mrb[0].mxu0 %v497
    %v2441 = vpop.f32.mrb[0].mxu0
    %v2442 = vadd.f32 0.0, %v2441
    %v2443 = vpop.f32.mrb[0].mxu0
    %2444 = vmatprep.mubr.f32.mxu0 0.0
    %2445 = vmatmul.mubr.f32.gmra.mrb[0].mxu0 %v500
    %v2446 = vpop.f32.mrb[0].mxu0
    %v2447 = vadd.f32 0.0, %v2446
    %v2448 = vpop.f32.mrb[0].mxu0
    %2449 = vmatprep.mubr.f32.mxu0 0.0
    %2450 = vmatmul.mubr.f32.gmra.mrb[0].mxu0 %v503
    %v2451 = vpop.f32.mrb[0].mxu0
    %v2452 = vadd.f32 0.0, %v2451
    %v2453 = vpop.f32.mrb[0].mxu0
    %2454 = vmatprep.mubr.f32.mxu0 0.0
    %2455 = vmatmul.mubr.f32.gmra.mrb[0].mxu0 %v506
    %v2456 = vpop.f32.mrb[0].mxu0
    %v2457 = vadd.f32 0.0, %v2456
    %v2458 = vpop.f32.mrb[0].mxu0
    %2459 = vmatprep.mubr.f32.mxu0 0.0
    %2460 = vmatmul.mubr.f32.gmra.mrb[0].mxu0 %v509
    %v2461 = vpop.f32.mrb[0].mxu0
    %v2462 = vadd.f32 0.0, %v2461
    %v2463 = vpop.f32.mrb[0].mxu0
    %2464 = vmatprep.mubr.f32.mxu0 0.0
    %2465 = vmatmul.mubr.f32.gmra.mrb[0].mxu0 %v512
    %v2466 = vpop.f32.mrb[0].mxu0
    %v2467 = vadd.f32 0.0, %v2466
    %v2468 = vpop.f32.mrb[0].mxu0
    %2469 = vmatprep.mubr.f32.mxu0 0.0
    %2470 = vmatmul.mubr.f32.gmra.mrb[0].mxu0 %v515
    %v2471 = vpop.f32.mrb[0].mxu0
    %v2472 = vadd.f32 0.0, %v2471
    %v2473 = vpop.f32.mrb[0].mxu0
    %2474 = vmatprep.mubr.f32.mxu0 0.0
    %2475 = vmatmul.mubr.f32.gmra.mrb[0].mxu0 %v518
    %v2476 = vpop.f32.mrb[0].mxu0
    %v2477 = vadd.f32 0.0, %v2476
    %v2478 = vpop.f32.mrb[0].mxu0
    %2479 = vmatprep.mubr.f32.mxu0 0.0
    %2480 = vmatmul.mubr.f32.gmra.mrb[0].mxu0 %v521
    %v2481 = vpop.f32.mrb[0].mxu0
    %v2482 = vadd.f32 0.0, %v2481
    %v2483 = vpop.f32.mrb[0].mxu0
    %2484 = vmatprep.mubr.f32.mxu0 0.0
    %2485 = vmatmul.mubr.f32.gmra.mrb[0].mxu0 %v524
    %v2486 = vpop.f32.mrb[0].mxu0
    %v2487 = vadd.f32 0.0, %v2486
    %v2488 = vpop.f32.mrb[0].mxu0
    %2489 = vdwg.mxu0
    %2490 = vmatprep.subr.mxu0 0.0
    %2491 = vmatpush1.msra.mxu0 %v2327
    %2492 = vmatprep.subr.mxu0 0.0
    %2493 = vmatpush1.msra.mxu0 %v2332
    %2494 = vmatprep.subr.mxu0 0.0
    %2495 = vmatpush1.msra.mxu0 %v2337
    %2496 = vmatprep.subr.mxu0 0.0
    %2497 = vmatpush1.msra.mxu0 %v2342
    %2498 = vmatprep.subr.mxu0 0.0
    %2499 = vmatpush1.msra.mxu0 0.0
    %2500 = vmatprep.subr.mxu0 0.0
    %2501 = vmatpush1.msra.mxu0 0.0
    %2502 = vmatprep.subr.mxu0 0.0
    %2503 = vmatpush1.msra.mxu0 0.0
    %2504 = vmatprep.subr.mxu0 0.0
    %2505 = vmatpush1.msra.mxu0 0.0
    %2506 = vmatprep.subr.mxu0 0.0
    %2507 = vmatpush1.msra.mxu0 0.0
    %2508 = vmatprep.subr.mxu0 0.0
    %2509 = vmatpush1.msra.mxu0 0.0
    %2510 = vmatprep.subr.mxu0 0.0
    %2511 = vmatpush1.msra.mxu0 0.0
    %2512 = vmatprep.subr.mxu0 0.0
    %2513 = vmatpush1.msra.mxu0 0.0
    %2514 = vmatprep.subr.mxu0 0.0
    %2515 = vmatpush1.msra.mxu0 0.0
    %2516 = vmatprep.subr.mxu0 0.0
    %2517 = vmatpush1.msra.mxu0 0.0
    %2518 = vmatprep.subr.mxu0 0.0
    %2519 = vmatpush1.msra.mxu0 0.0
    %2520 = vmatprep.subr.mxu0 0.0
    %2521 = vmatpush1.msra.mxu0 0.0
    %2522 = vmatprep.subr.mxu0 0.0
    %2523 = vmatpush1.msra.mxu0 0.0
    %2524 = vmatprep.subr.mxu0 0.0
    %2525 = vmatpush1.msra.mxu0 0.0
    %2526 = vmatprep.subr.mxu0 0.0
    %2527 = vmatpush1.msra.mxu0 0.0
    %2528 = vmatprep.subr.mxu0 0.0
    %2529 = vmatpush1.msra.mxu0 0.0
    %2530 = vmatprep.subr.mxu0 0.0
    %2531 = vmatpush1.msra.mxu0 0.0
    %2532 = vmatprep.subr.mxu0 0.0
    %2533 = vmatpush1.msra.mxu0 0.0
    %2534 = vmatprep.subr.mxu0 0.0
    %2535 = vmatpush1.msra.mxu0 0.0
    %2536 = vmatprep.subr.mxu0 0.0
    %2537 = vmatpush1.msra.mxu0 0.0
    %2538 = vmatprep.subr.mxu0 0.0
    %2539 = vmatpush1.msra.mxu0 0.0
    %2540 = vmatprep.subr.mxu0 0.0
    %2541 = vmatpush1.msra.mxu0 0.0
    %2542 = vmatprep.subr.mxu0 0.0
    %2543 = vmatpush1.msra.mxu0 0.0
    %2544 = vmatprep.subr.mxu0 0.0
    %2545 = vmatpush1.msra.mxu0 0.0
    %2546 = vmatprep.subr.mxu0 0.0
    %2547 = vmatpush1.msra.mxu0 0.0
    %2548 = vmatprep.subr.mxu0 0.0
    %2549 = vmatpush1.msra.mxu0 0.0
    %2550 = vmatprep.subr.mxu0 0.0
    %2551 = vmatpush1.msra.mxu0 0.0
    %2552 = vmatprep.subr.mxu0 0.0
    %2553 = vmatpush1.msra.mxu0 0.0
    %2554 = vmatprep.mubr.f32.mxu0 0.0
    %2555 = vmatmul.mubr.f32.gmra.mrb[0].mxu0 %v672
    %v2556 = vpop.f32.mrb[0].mxu0
    %v2557 = vadd.f32 0.0, %v2556
    %v2558 = vpop.f32.mrb[0].mxu0
    %2559 = vmatprep.mubr.f32.mxu0 0.0
    %2560 = vmatmul.mubr.f32.gmra.mrb[0].mxu0 %v675
    %v2561 = vpop.f32.mrb[0].mxu0
    %v2562 = vadd.f32 0.0, %v2561
    %v2563 = vpop.f32.mrb[0].mxu0
    %2564 = vmatprep.mubr.f32.mxu0 0.0
    %2565 = vmatmul.mubr.f32.gmra.mrb[0].mxu0 %v678
    %v2566 = vpop.f32.mrb[0].mxu0
    %v2567 = vadd.f32 0.0, %v2566
    %v2568 = vpop.f32.mrb[0].mxu0
    %2569 = vmatprep.mubr.f32.mxu0 0.0
    %2570 = vmatmul.mubr.f32.gmra.mrb[0].mxu0 %v681
    %v2571 = vpop.f32.mrb[0].mxu0
    %v2572 = vadd.f32 0.0, %v2571
    %v2573 = vpop.f32.mrb[0].mxu0
    %2574 = vmatprep.mubr.f32.mxu0 0.0
    %2575 = vmatmul.mubr.f32.gmra.mrb[0].mxu0 %v684
    %v2576 = vpop.f32.mrb[0].mxu0
    %v2577 = vadd.f32 0.0, %v2576
    %v2578 = vpop.f32.mrb[0].mxu0
    %2579 = vmatprep.mubr.f32.mxu0 0.0
    %2580 = vmatmul.mubr.f32.gmra.mrb[0].mxu0 %v687
    %v2581 = vpop.f32.mrb[0].mxu0
    %v2582 = vadd.f32 0.0, %v2581
    %v2583 = vpop.f32.mrb[0].mxu0
    %2584 = vmatprep.mubr.f32.mxu0 0.0
    %2585 = vmatmul.mubr.f32.gmra.mrb[0].mxu0 %v690
    %v2586 = vpop.f32.mrb[0].mxu0
    %v2587 = vadd.f32 0.0, %v2586
    %v2588 = vpop.f32.mrb[0].mxu0
    %2589 = vmatprep.mubr.f32.mxu0 0.0
    %2590 = vmatmul.mubr.f32.gmra.mrb[0].mxu0 %v693
    %v2591 = vpop.f32.mrb[0].mxu0
    %v2592 = vadd.f32 0.0, %v2591
    %v2593 = vpop.f32.mrb[0].mxu0
    %2594 = vmatprep.mubr.f32.mxu0 0.0
    %2595 = vmatmul.mubr.f32.gmra.mrb[0].mxu0 %v696
    %v2596 = vpop.f32.mrb[0].mxu0
    %v2597 = vadd.f32 0.0, %v2596
    %v2598 = vpop.f32.mrb[0].mxu0
    %2599 = vmatprep.mubr.f32.mxu0 0.0
    %2600 = vmatmul.mubr.f32.gmra.mrb[0].mxu0 %v699
    %v2601 = vpop.f32.mrb[0].mxu0
    %v2602 = vadd.f32 0.0, %v2601
    %v2603 = vpop.f32.mrb[0].mxu0
    %2604 = vmatprep.mubr.f32.mxu0 0.0
    %2605 = vmatmul.mubr.f32.gmra.mrb[0].mxu0 %v702
    %v2606 = vpop.f32.mrb[0].mxu0
    %v2607 = vadd.f32 0.0, %v2606
    %v2608 = vpop.f32.mrb[0].mxu0
    %2609 = vmatprep.mubr.f32.mxu0 0.0
    %2610 = vmatmul.mubr.f32.gmra.mrb[0].mxu0 %v705
    %v2611 = vpop.f32.mrb[0].mxu0
    %v2612 = vadd.f32 0.0, %v2611
    %v2613 = vpop.f32.mrb[0].mxu0
    %2614 = vmatprep.mubr.f32.mxu0 0.0
    %2615 = vmatmul.mubr.f32.gmra.mrb[0].mxu0 %v708
    %v2616 = vpop.f32.mrb[0].mxu0
    %v2617 = vadd.f32 0.0, %v2616
    %v2618 = vpop.f32.mrb[0].mxu0
    %2619 = vmatprep.mubr.f32.mxu0 0.0
    %2620 = vmatmul.mubr.f32.gmra.mrb[0].mxu0 %v711
    %v2621 = vpop.f32.mrb[0].mxu0
    %v2622 = vadd.f32 0.0, %v2621
    %v2623 = vpop.f32.mrb[0].mxu0
    %2624 = vmatprep.mubr.f32.mxu0 0.0
    %2625 = vmatmul.mubr.f32.gmra.mrb[0].mxu0 %v714
    %v2626 = vpop.f32.mrb[0].mxu0
    %v2627 = vadd.f32 0.0, %v2626
    %v2628 = vpop.f32.mrb[0].mxu0
    %2629 = vmatprep.mubr.f32.mxu0 0.0
    %2630 = vmatmul.mubr.f32.gmra.mrb[0].mxu0 %v717
    %v2631 = vpop.f32.mrb[0].mxu0
    %v2632 = vadd.f32 0.0, %v2631
    %v2633 = vpop.f32.mrb[0].mxu0
    %2634 = vdwg.mxu0
    %v2635 = vld [vmem:[#allocation5 + $0x398] sm:$0xff]
    %v2636 = vld [vmem:[#allocation5 + $0x3a0] sm:$0xff]
    %v2637 = vld [vmem:[#allocation5 + $0x3a8] sm:$0xff]
    %v2638 = vld [vmem:[#allocation5 + $0x3b0] sm:$0xff]
    %v2639 = vld [vmem:[#allocation5 + $0x3b8] sm:$0xff]
    %v2640 = vld [vmem:[#allocation5 + $0x3c0] sm:$0xff]
    %v2641 = vld [vmem:[#allocation5 + $0x3c8] sm:$0xff]
    %v2642 = vld [vmem:[#allocation5 + $0x3d0] sm:$0xff]
    %v2643 = vld [vmem:[#allocation5 + $0x3d8] sm:$0xff]
    %v2644 = vld [vmem:[#allocation5 + $0x3e0] sm:$0xff]
    %v2645 = vld [vmem:[#allocation5 + $0x3e8] sm:$0xff]
    %v2646 = vld [vmem:[#allocation5 + $0x3f0] sm:$0xff]
    %v2647 = vld [vmem:[#allocation5 + $0x3f8] sm:$0xff]
    %v2648 = vld [vmem:[#allocation5 + $0x400] sm:$0xff]
    %v2649 = vld [vmem:[#allocation5 + $0x408] sm:$0xff]
    %v2650 = vld [vmem:[#allocation5 + $0x410] sm:$0xff]
    %v2651 = vld [vmem:[#allocation5 + $0x418] sm:$0xff]
    %v2652 = vld [vmem:[#allocation5 + $0x420] sm:$0xff]
    %v2653 = vld [vmem:[#allocation5 + $0x428] sm:$0xff]
    %v2654 = vld [vmem:[#allocation5 + $0x430] sm:$0xff]
    %v2655 = vld [vmem:[#allocation5 + $0x438] sm:$0xff]
    %v2656 = vld [vmem:[#allocation5 + $0x440] sm:$0xff]
    %v2657 = vld [vmem:[#allocation5 + $0x448] sm:$0xff]
    %v2658 = vld [vmem:[#allocation5 + $0x450] sm:$0xff]
    %v2659 = vld [vmem:[#allocation5 + $0x458] sm:$0xff]
    %v2660 = vld [vmem:[#allocation5 + $0x460] sm:$0xff]
    %v2661 = vld [vmem:[#allocation5 + $0x468] sm:$0xff]
    %v2662 = vld [vmem:[#allocation5 + $0x470] sm:$0xff]
    %v2663 = vld [vmem:[#allocation5 + $0x478] sm:$0xff]
    %v2664 = vld [vmem:[#allocation5 + $0x480] sm:$0xff]
    %v2665 = vld [vmem:[#allocation5 + $0x488] sm:$0xff]
    %v2666 = vld [vmem:[#allocation5 + $0x490] sm:$0xff]
    %2667 = vmatprep.subr.mxu0 0.0
    %2668 = vmatpush1.msra.mxu0 %v2651
    %2669 = vmatprep.subr.mxu0 0.0
    %2670 = vmatpush1.msra.mxu0 %v2652
    %2671 = vmatprep.subr.mxu0 0.0
    %2672 = vmatpush1.msra.mxu0 %v2653
    %2673 = vmatprep.subr.mxu0 0.0
    %2674 = vmatpush1.msra.mxu0 %v2654
    %2675 = vmatprep.subr.mxu0 0.0
    %2676 = vmatpush1.msra.mxu0 %v2655
    %2677 = vmatprep.subr.mxu0 0.0
    %2678 = vmatpush1.msra.mxu0 %v2656
    %2679 = vmatprep.subr.mxu0 0.0
    %2680 = vmatpush1.msra.mxu0 %v2657
    %2681 = vmatprep.subr.mxu0 0.0
    %2682 = vmatpush1.msra.mxu0 %v2658
    %2683 = vmatprep.subr.mxu0 0.0
    %2684 = vmatpush1.msra.mxu0 %v2659
    %2685 = vmatprep.subr.mxu0 0.0
    %2686 = vmatpush1.msra.mxu0 %v2660
    %2687 = vmatprep.subr.mxu0 0.0
    %2688 = vmatpush1.msra.mxu0 %v2661
    %2689 = vmatprep.subr.mxu0 0.0
    %2690 = vmatpush1.msra.mxu0 %v2662
    %2691 = vmatprep.subr.mxu0 0.0
    %2692 = vmatpush1.msra.mxu0 %v2663
    %2693 = vmatprep.subr.mxu0 0.0
    %2694 = vmatpush1.msra.mxu0 %v2664
    %2695 = vmatprep.subr.mxu0 0.0
    %2696 = vmatpush1.msra.mxu0 %v2665
    %2697 = vmatprep.subr.mxu0 0.0
    %2698 = vmatpush1.msra.mxu0 %v2666
    %2699 = vmatprep.subr.mxu0 0.0
    %2700 = vmatpush1.msra.mxu0 0.0
    %2701 = vmatprep.subr.mxu0 0.0
    %2702 = vmatpush1.msra.mxu0 0.0
    %2703 = vmatprep.subr.mxu0 0.0
    %2704 = vmatpush1.msra.mxu0 0.0
    %2705 = vmatprep.subr.mxu0 0.0
    %2706 = vmatpush1.msra.mxu0 0.0
    %2707 = vmatprep.subr.mxu0 0.0
    %2708 = vmatpush1.msra.mxu0 0.0
    %2709 = vmatprep.subr.mxu0 0.0
    %2710 = vmatpush1.msra.mxu0 0.0
    %2711 = vmatprep.subr.mxu0 0.0
    %2712 = vmatpush1.msra.mxu0 0.0
    %2713 = vmatprep.subr.mxu0 0.0
    %2714 = vmatpush1.msra.mxu0 0.0
    %2715 = vmatprep.subr.mxu0 0.0
    %2716 = vmatpush1.msra.mxu0 0.0
    %2717 = vmatprep.subr.mxu0 0.0
    %2718 = vmatpush1.msra.mxu0 0.0
    %2719 = vmatprep.subr.mxu0 0.0
    %2720 = vmatpush1.msra.mxu0 0.0
    %2721 = vmatprep.subr.mxu0 0.0
    %2722 = vmatpush1.msra.mxu0 0.0
    %2723 = vmatprep.subr.mxu0 0.0
    %2724 = vmatpush1.msra.mxu0 0.0
    %2725 = vmatprep.subr.mxu0 0.0
    %2726 = vmatpush1.msra.mxu0 0.0
    %2727 = vmatprep.subr.mxu0 0.0
    %2728 = vmatpush1.msra.mxu0 0.0
    %2729 = vmatprep.subr.mxu0 0.0
    %2730 = vmatpush1.msra.mxu0 0.0
    %2731 = vmatprep.mubr.f32.mxu0 0.0
    %2732 = vmatmul.mubr.f32.gmra.mrb[0].mxu0 %v2557
    %v2733 = vpop.f32.mrb[0].mxu0
    %v2734 = vadd.f32 0.0, %v2733
    %v2735 = vpop.f32.mrb[0].mxu0
    %2736 = vmatprep.mubr.f32.mxu0 0.0
    %2737 = vmatmul.mubr.f32.gmra.mrb[0].mxu0 %v2562
    %v2738 = vpop.f32.mrb[0].mxu0
    %v2739 = vadd.f32 0.0, %v2738
    %v2740 = vpop.f32.mrb[0].mxu0
    %2741 = vmatprep.mubr.f32.mxu0 0.0
    %2742 = vmatmul.mubr.f32.gmra.mrb[0].mxu0 %v2567
    %v2743 = vpop.f32.mrb[0].mxu0
    %v2744 = vadd.f32 0.0, %v2743
    %v2745 = vpop.f32.mrb[0].mxu0
    %2746 = vmatprep.mubr.f32.mxu0 0.0
    %2747 = vmatmul.mubr.f32.gmra.mrb[0].mxu0 %v2572
    %v2748 = vpop.f32.mrb[0].mxu0
    %v2749 = vadd.f32 0.0, %v2748
    %v2750 = vpop.f32.mrb[0].mxu0
    %2751 = vmatprep.mubr.f32.mxu0 0.0
    %2752 = vmatmul.mubr.f32.gmra.mrb[0].mxu0 %v2577
    %v2753 = vpop.f32.mrb[0].mxu0
    %v2754 = vadd.f32 0.0, %v2753
    %v2755 = vpop.f32.mrb[0].mxu0
    %2756 = vmatprep.mubr.f32.mxu0 0.0
    %2757 = vmatmul.mubr.f32.gmra.mrb[0].mxu0 %v2582
    %v2758 = vpop.f32.mrb[0].mxu0
    %v2759 = vadd.f32 0.0, %v2758
    %v2760 = vpop.f32.mrb[0].mxu0
    %2761 = vmatprep.mubr.f32.mxu0 0.0
    %2762 = vmatmul.mubr.f32.gmra.mrb[0].mxu0 %v2587
    %v2763 = vpop.f32.mrb[0].mxu0
    %v2764 = vadd.f32 0.0, %v2763
    %v2765 = vpop.f32.mrb[0].mxu0
    %2766 = vmatprep.mubr.f32.mxu0 0.0
    %2767 = vmatmul.mubr.f32.gmra.mrb[0].mxu0 %v2592
    %v2768 = vpop.f32.mrb[0].mxu0
    %v2769 = vadd.f32 0.0, %v2768
    %v2770 = vpop.f32.mrb[0].mxu0
    %2771 = vmatprep.mubr.f32.mxu0 0.0
    %2772 = vmatmul.mubr.f32.gmra.mrb[0].mxu0 %v2597
    %v2773 = vpop.f32.mrb[0].mxu0
    %v2774 = vadd.f32 0.0, %v2773
    %v2775 = vpop.f32.mrb[0].mxu0
    %2776 = vmatprep.mubr.f32.mxu0 0.0
    %2777 = vmatmul.mubr.f32.gmra.mrb[0].mxu0 %v2602
    %v2778 = vpop.f32.mrb[0].mxu0
    %v2779 = vadd.f32 0.0, %v2778
    %v2780 = vpop.f32.mrb[0].mxu0
    %2781 = vmatprep.mubr.f32.mxu0 0.0
    %2782 = vmatmul.mubr.f32.gmra.mrb[0].mxu0 %v2607
    %v2783 = vpop.f32.mrb[0].mxu0
    %v2784 = vadd.f32 0.0, %v2783
    %v2785 = vpop.f32.mrb[0].mxu0
    %2786 = vmatprep.mubr.f32.mxu0 0.0
    %2787 = vmatmul.mubr.f32.gmra.mrb[0].mxu0 %v2612
    %v2788 = vpop.f32.mrb[0].mxu0
    %v2789 = vadd.f32 0.0, %v2788
    %v2790 = vpop.f32.mrb[0].mxu0
    %2791 = vmatprep.mubr.f32.mxu0 0.0
    %2792 = vmatmul.mubr.f32.gmra.mrb[0].mxu0 %v2617
    %v2793 = vpop.f32.mrb[0].mxu0
    %v2794 = vadd.f32 0.0, %v2793
    %v2795 = vpop.f32.mrb[0].mxu0
    %2796 = vmatprep.mubr.f32.mxu0 0.0
    %2797 = vmatmul.mubr.f32.gmra.mrb[0].mxu0 %v2622
    %v2798 = vpop.f32.mrb[0].mxu0
    %v2799 = vadd.f32 0.0, %v2798
    %v2800 = vpop.f32.mrb[0].mxu0
    %2801 = vmatprep.mubr.f32.mxu0 0.0
    %2802 = vmatmul.mubr.f32.gmra.mrb[0].mxu0 %v2627
    %v2803 = vpop.f32.mrb[0].mxu0
    %v2804 = vadd.f32 0.0, %v2803
    %v2805 = vpop.f32.mrb[0].mxu0
    %2806 = vmatprep.mubr.f32.mxu0 0.0
    %2807 = vmatmul.mubr.f32.gmra.mrb[0].mxu0 %v2632
    %v2808 = vpop.f32.mrb[0].mxu0
    %v2809 = vadd.f32 0.0, %v2808
    %v2810 = vpop.f32.mrb[0].mxu0
    %2811 = vdwg.mxu0
    %2812 = vmatprep.subr.mxu0 0.0
    %2813 = vmatpush1.msra.mxu0 %v2635
    %2814 = vmatprep.subr.mxu0 0.0
    %2815 = vmatpush1.msra.mxu0 %v2636
    %2816 = vmatprep.subr.mxu0 0.0
    %2817 = vmatpush1.msra.mxu0 %v2637
    %2818 = vmatprep.subr.mxu0 0.0
    %2819 = vmatpush1.msra.mxu0 %v2638
    %2820 = vmatprep.subr.mxu0 0.0
    %2821 = vmatpush1.msra.mxu0 %v2639
    %2822 = vmatprep.subr.mxu0 0.0
    %2823 = vmatpush1.msra.mxu0 %v2640
    %2824 = vmatprep.subr.mxu0 0.0
    %2825 = vmatpush1.msra.mxu0 %v2641
    %2826 = vmatprep.subr.mxu0 0.0
    %2827 = vmatpush1.msra.mxu0 %v2642
    %2828 = vmatprep.subr.mxu0 0.0
    %2829 = vmatpush1.msra.mxu0 %v2643
    %2830 = vmatprep.subr.mxu0 0.0
    %2831 = vmatpush1.msra.mxu0 %v2644
    %2832 = vmatprep.subr.mxu0 0.0
    %2833 = vmatpush1.msra.mxu0 %v2645
    %2834 = vmatprep.subr.mxu0 0.0
    %2835 = vmatpush1.msra.mxu0 %v2646
    %2836 = vmatprep.subr.mxu0 0.0
    %2837 = vmatpush1.msra.mxu0 %v2647
    %2838 = vmatprep.subr.mxu0 0.0
    %2839 = vmatpush1.msra.mxu0 %v2648
    %2840 = vmatprep.subr.mxu0 0.0
    %2841 = vmatpush1.msra.mxu0 %v2649
    %2842 = vmatprep.subr.mxu0 0.0
    %2843 = vmatpush1.msra.mxu0 %v2650
    %2844 = vmatprep.subr.mxu0 0.0
    %2845 = vmatpush1.msra.mxu0 0.0
    %2846 = vmatprep.subr.mxu0 0.0
    %2847 = vmatpush1.msra.mxu0 0.0
    %2848 = vmatprep.subr.mxu0 0.0
    %2849 = vmatpush1.msra.mxu0 0.0
    %2850 = vmatprep.subr.mxu0 0.0
    %2851 = vmatpush1.msra.mxu0 0.0
    %2852 = vmatprep.subr.mxu0 0.0
    %2853 = vmatpush1.msra.mxu0 0.0
    %2854 = vmatprep.subr.mxu0 0.0
    %2855 = vmatpush1.msra.mxu0 0.0
    %2856 = vmatprep.subr.mxu0 0.0
    %2857 = vmatpush1.msra.mxu0 0.0
    %2858 = vmatprep.subr.mxu0 0.0
    %2859 = vmatpush1.msra.mxu0 0.0
    %2860 = vmatprep.subr.mxu0 0.0
    %2861 = vmatpush1.msra.mxu0 0.0
    %2862 = vmatprep.subr.mxu0 0.0
    %2863 = vmatpush1.msra.mxu0 0.0
    %2864 = vmatprep.subr.mxu0 0.0
    %2865 = vmatpush1.msra.mxu0 0.0
    %2866 = vmatprep.subr.mxu0 0.0
    %2867 = vmatpush1.msra.mxu0 0.0
    %2868 = vmatprep.subr.mxu0 0.0
    %2869 = vmatpush1.msra.mxu0 0.0
    %2870 = vmatprep.subr.mxu0 0.0
    %2871 = vmatpush1.msra.mxu0 0.0
    %2872 = vmatprep.subr.mxu0 0.0
    %2873 = vmatpush1.msra.mxu0 0.0
    %2874 = vmatprep.subr.mxu0 0.0
    %2875 = vmatpush1.msra.mxu0 0.0
    %2876 = vmatprep.mubr.f32.mxu0 0.0
    %2877 = vmatmul.mubr.f32.gmra.mrb[0].mxu0 %v2412
    %v2878 = vpop.f32.mrb[0].mxu0
    %v2879 = vadd.f32 %v2734, %v2878
    %v2880 = vpop.f32.mrb[0].mxu0
    %2881 = vmatprep.mubr.f32.mxu0 0.0
    %2882 = vmatmul.mubr.f32.gmra.mrb[0].mxu0 %v2417
    %v2883 = vpop.f32.mrb[0].mxu0
    %v2884 = vadd.f32 %v2739, %v2883
    %v2885 = vpop.f32.mrb[0].mxu0
    %2886 = vmatprep.mubr.f32.mxu0 0.0
    %2887 = vmatmul.mubr.f32.gmra.mrb[0].mxu0 %v2422
    %v2888 = vpop.f32.mrb[0].mxu0
    %v2889 = vadd.f32 %v2744, %v2888
    %v2890 = vpop.f32.mrb[0].mxu0
    %2891 = vmatprep.mubr.f32.mxu0 0.0
    %2892 = vmatmul.mubr.f32.gmra.mrb[0].mxu0 %v2427
    %v2893 = vpop.f32.mrb[0].mxu0
    %v2894 = vadd.f32 %v2749, %v2893
    %v2895 = vpop.f32.mrb[0].mxu0
    %2896 = vmatprep.mubr.f32.mxu0 0.0
    %2897 = vmatmul.mubr.f32.gmra.mrb[0].mxu0 %v2432
    %v2898 = vpop.f32.mrb[0].mxu0
    %v2899 = vadd.f32 %v2754, %v2898
    %v2900 = vpop.f32.mrb[0].mxu0
    %2901 = vmatprep.mubr.f32.mxu0 0.0
    %2902 = vmatmul.mubr.f32.gmra.mrb[0].mxu0 %v2437
    %v2903 = vpop.f32.mrb[0].mxu0
    %v2904 = vadd.f32 %v2759, %v2903
    %v2905 = vpop.f32.mrb[0].mxu0
    %2906 = vmatprep.mubr.f32.mxu0 0.0
    %2907 = vmatmul.mubr.f32.gmra.mrb[0].mxu0 %v2442
    %v2908 = vpop.f32.mrb[0].mxu0
    %v2909 = vadd.f32 %v2764, %v2908
    %v2910 = vpop.f32.mrb[0].mxu0
    %2911 = vmatprep.mubr.f32.mxu0 0.0
    %2912 = vmatmul.mubr.f32.gmra.mrb[0].mxu0 %v2447
    %v2913 = vpop.f32.mrb[0].mxu0
    %v2914 = vadd.f32 %v2769, %v2913
    %v2915 = vpop.f32.mrb[0].mxu0
    %2916 = vmatprep.mubr.f32.mxu0 0.0
    %2917 = vmatmul.mubr.f32.gmra.mrb[0].mxu0 %v2452
    %v2918 = vpop.f32.mrb[0].mxu0
    %v2919 = vadd.f32 %v2774, %v2918
    %v2920 = vpop.f32.mrb[0].mxu0
    %2921 = vmatprep.mubr.f32.mxu0 0.0
    %2922 = vmatmul.mubr.f32.gmra.mrb[0].mxu0 %v2457
    %v2923 = vpop.f32.mrb[0].mxu0
    %v2924 = vadd.f32 %v2779, %v2923
    %v2925 = vpop.f32.mrb[0].mxu0
    %2926 = vmatprep.mubr.f32.mxu0 0.0
    %2927 = vmatmul.mubr.f32.gmra.mrb[0].mxu0 %v2462
    %v2928 = vpop.f32.mrb[0].mxu0
    %v2929 = vadd.f32 %v2784, %v2928
    %v2930 = vpop.f32.mrb[0].mxu0
    %2931 = vmatprep.mubr.f32.mxu0 0.0
    %2932 = vmatmul.mubr.f32.gmra.mrb[0].mxu0 %v2467
    %v2933 = vpop.f32.mrb[0].mxu0
    %v2934 = vadd.f32 %v2789, %v2933
    %v2935 = vpop.f32.mrb[0].mxu0
    %2936 = vmatprep.mubr.f32.mxu0 0.0
    %2937 = vmatmul.mubr.f32.gmra.mrb[0].mxu0 %v2472
    %v2938 = vpop.f32.mrb[0].mxu0
    %v2939 = vadd.f32 %v2794, %v2938
    %v2940 = vpop.f32.mrb[0].mxu0
    %2941 = vmatprep.mubr.f32.mxu0 0.0
    %2942 = vmatmul.mubr.f32.gmra.mrb[0].mxu0 %v2477
    %v2943 = vpop.f32.mrb[0].mxu0
    %v2944 = vadd.f32 %v2799, %v2943
    %v2945 = vpop.f32.mrb[0].mxu0
    %2946 = vmatprep.mubr.f32.mxu0 0.0
    %2947 = vmatmul.mubr.f32.gmra.mrb[0].mxu0 %v2482
    %v2948 = vpop.f32.mrb[0].mxu0
    %v2949 = vadd.f32 %v2804, %v2948
    %v2950 = vpop.f32.mrb[0].mxu0
    %2951 = vmatprep.mubr.f32.mxu0 0.0
    %2952 = vmatmul.mubr.f32.gmra.mrb[0].mxu0 %v2487
    %v2953 = vpop.f32.mrb[0].mxu0
    %v2954 = vadd.f32 %v2809, %v2953
    %v2955 = vpop.f32.mrb[0].mxu0
    %2956 = vdwg.mxu0
    %v2957 = vld [vmem:[#allocation5 + $0x498] sm:$0xff]
    %2958 = vmatprep.subr.mxu0 0.0
    %2959 = vmatpush1.msra.mxu0 %v2957
    %2960 = vmatprep.subr.mxu0 0.0
    %2961 = vmatpush1.msra.mxu0 0.0
    %2962 = vmatprep.subr.mxu0 0.0
    %2963 = vmatpush1.msra.mxu0 0.0
    %2964 = vmatprep.subr.mxu0 0.0
    %2965 = vmatpush1.msra.mxu0 0.0
    %2966 = vmatprep.subr.mxu0 0.0
    %2967 = vmatpush1.msra.mxu0 0.0
    %2968 = vmatprep.subr.mxu0 0.0
    %2969 = vmatpush1.msra.mxu0 0.0
    %2970 = vmatprep.subr.mxu0 0.0
    %2971 = vmatpush1.msra.mxu0 0.0
    %2972 = vmatprep.subr.mxu0 0.0
    %2973 = vmatpush1.msra.mxu0 0.0
    %2974 = vmatprep.subr.mxu0 0.0
    %2975 = vmatpush1.msra.mxu0 0.0
    %2976 = vmatprep.subr.mxu0 0.0
    %2977 = vmatpush1.msra.mxu0 0.0
    %2978 = vmatprep.subr.mxu0 0.0
    %2979 = vmatpush1.msra.mxu0 0.0
    %2980 = vmatprep.subr.mxu0 0.0
    %2981 = vmatpush1.msra.mxu0 0.0
    %2982 = vmatprep.subr.mxu0 0.0
    %2983 = vmatpush1.msra.mxu0 0.0
    %2984 = vmatprep.subr.mxu0 0.0
    %2985 = vmatpush1.msra.mxu0 0.0
    %2986 = vmatprep.subr.mxu0 0.0
    %2987 = vmatpush1.msra.mxu0 0.0
    %2988 = vmatprep.subr.mxu0 0.0
    %2989 = vmatpush1.msra.mxu0 0.0
    %2990 = vmatprep.subr.mxu0 0.0
    %2991 = vmatpush1.msra.mxu0 0.0
    %2992 = vmatprep.subr.mxu0 0.0
    %2993 = vmatpush1.msra.mxu0 0.0
    %2994 = vmatprep.subr.mxu0 0.0
    %2995 = vmatpush1.msra.mxu0 0.0
    %2996 = vmatprep.subr.mxu0 0.0
    %2997 = vmatpush1.msra.mxu0 0.0
    %2998 = vmatprep.subr.mxu0 0.0
    %2999 = vmatpush1.msra.mxu0 0.0
    %3000 = vmatprep.subr.mxu0 0.0
    %3001 = vmatpush1.msra.mxu0 0.0
    %3002 = vmatprep.subr.mxu0 0.0
    %3003 = vmatpush1.msra.mxu0 0.0
    %3004 = vmatprep.subr.mxu0 0.0
    %3005 = vmatpush1.msra.mxu0 0.0
    %3006 = vmatprep.subr.mxu0 0.0
    %3007 = vmatpush1.msra.mxu0 0.0
    %3008 = vmatprep.subr.mxu0 0.0
    %3009 = vmatpush1.msra.mxu0 0.0
    %3010 = vmatprep.subr.mxu0 0.0
    %3011 = vmatpush1.msra.mxu0 0.0
    %3012 = vmatprep.subr.mxu0 0.0
    %3013 = vmatpush1.msra.mxu0 0.0
    %3014 = vmatprep.subr.mxu0 0.0
    %3015 = vmatpush1.msra.mxu0 0.0
    %3016 = vmatprep.subr.mxu0 0.0
    %3017 = vmatpush1.msra.mxu0 0.0
    %3018 = vmatprep.subr.mxu0 0.0
    %3019 = vmatpush1.msra.mxu0 0.0
    %3020 = vmatprep.subr.mxu0 0.0
    %3021 = vmatpush1.msra.mxu0 0.0
    %3022 = vmatprep.mubr.f32.mxu0 0.0
    %3023 = vmatmul.mubr.f32.gmra.mrb[0].mxu0 %v1189
    %v3024 = vpop.f32.mrb[0].mxu0
    %v3025 = vadd.f32 0.0, %v3024
    %v3026 = vpop.f32.mrb[0].mxu0
    %3027 = vmatprep.mubr.f32.mxu0 0.0
    %3028 = vmatmul.mubr.f32.gmra.mrb[0].mxu0 %v1192
    %v3029 = vpop.f32.mrb[0].mxu0
    %v3030 = vadd.f32 0.0, %v3029
    %v3031 = vpop.f32.mrb[0].mxu0
    %3032 = vmatprep.mubr.f32.mxu0 0.0
    %3033 = vmatmul.mubr.f32.gmra.mrb[0].mxu0 %v1195
    %v3034 = vpop.f32.mrb[0].mxu0
    %v3035 = vadd.f32 0.0, %v3034
    %v3036 = vpop.f32.mrb[0].mxu0
    %3037 = vmatprep.mubr.f32.mxu0 0.0
    %3038 = vmatmul.mubr.f32.gmra.mrb[0].mxu0 %v1198
    %v3039 = vpop.f32.mrb[0].mxu0
    %v3040 = vadd.f32 0.0, %v3039
    %v3041 = vpop.f32.mrb[0].mxu0
    %3042 = vmatprep.mubr.f32.mxu0 0.0
    %3043 = vmatmul.mubr.f32.gmra.mrb[0].mxu0 %v1201
    %v3044 = vpop.f32.mrb[0].mxu0
    %v3045 = vadd.f32 0.0, %v3044
    %v3046 = vpop.f32.mrb[0].mxu0
    %3047 = vmatprep.mubr.f32.mxu0 0.0
    %3048 = vmatmul.mubr.f32.gmra.mrb[0].mxu0 %v1204
    %v3049 = vpop.f32.mrb[0].mxu0
    %v3050 = vadd.f32 0.0, %v3049
    %v3051 = vpop.f32.mrb[0].mxu0
    %3052 = vmatprep.mubr.f32.mxu0 0.0
    %3053 = vmatmul.mubr.f32.gmra.mrb[0].mxu0 %v1207
    %v3054 = vpop.f32.mrb[0].mxu0
    %v3055 = vadd.f32 0.0, %v3054
    %v3056 = vpop.f32.mrb[0].mxu0
    %3057 = vmatprep.mubr.f32.mxu0 0.0
    %3058 = vmatmul.mubr.f32.gmra.mrb[0].mxu0 %v1210
    %v3059 = vpop.f32.mrb[0].mxu0
    %v3060 = vadd.f32 0.0, %v3059
    %v3061 = vpop.f32.mrb[0].mxu0
    %3062 = vmatprep.mubr.f32.mxu0 0.0
    %3063 = vmatmul.mubr.f32.gmra.mrb[0].mxu0 %v1213
    %v3064 = vpop.f32.mrb[0].mxu0
    %v3065 = vadd.f32 0.0, %v3064
    %v3066 = vpop.f32.mrb[0].mxu0
    %3067 = vmatprep.mubr.f32.mxu0 0.0
    %3068 = vmatmul.mubr.f32.gmra.mrb[0].mxu0 %v1216
    %v3069 = vpop.f32.mrb[0].mxu0
    %v3070 = vadd.f32 0.0, %v3069
    %v3071 = vpop.f32.mrb[0].mxu0
    %3072 = vmatprep.mubr.f32.mxu0 0.0
    %3073 = vmatmul.mubr.f32.gmra.mrb[0].mxu0 %v1219
    %v3074 = vpop.f32.mrb[0].mxu0
    %v3075 = vadd.f32 0.0, %v3074
    %v3076 = vpop.f32.mrb[0].mxu0
    %3077 = vmatprep.mubr.f32.mxu0 0.0
    %3078 = vmatmul.mubr.f32.gmra.mrb[0].mxu0 %v1222
    %v3079 = vpop.f32.mrb[0].mxu0
    %v3080 = vadd.f32 0.0, %v3079
    %v3081 = vpop.f32.mrb[0].mxu0
    %3082 = vmatprep.mubr.f32.mxu0 0.0
    %3083 = vmatmul.mubr.f32.gmra.mrb[0].mxu0 %v1225
    %v3084 = vpop.f32.mrb[0].mxu0
    %v3085 = vadd.f32 0.0, %v3084
    %v3086 = vpop.f32.mrb[0].mxu0
    %3087 = vmatprep.mubr.f32.mxu0 0.0
    %3088 = vmatmul.mubr.f32.gmra.mrb[0].mxu0 %v1228
    %v3089 = vpop.f32.mrb[0].mxu0
    %v3090 = vadd.f32 0.0, %v3089
    %v3091 = vpop.f32.mrb[0].mxu0
    %3092 = vmatprep.mubr.f32.mxu0 0.0
    %3093 = vmatmul.mubr.f32.gmra.mrb[0].mxu0 %v1231
    %v3094 = vpop.f32.mrb[0].mxu0
    %v3095 = vadd.f32 0.0, %v3094
    %v3096 = vpop.f32.mrb[0].mxu0
    %3097 = vmatprep.mubr.f32.mxu0 0.0
    %3098 = vmatmul.mubr.f32.gmra.mrb[0].mxu0 %v1234
    %v3099 = vpop.f32.mrb[0].mxu0
    %v3100 = vadd.f32 0.0, %v3099
    %v3101 = vpop.f32.mrb[0].mxu0
    %3102 = vdwg.mxu0
    %v3103 = vadd.f32 %v2879, %v3025
    %v3104 = vadd.f32 %v2884, %v3030
    %v3105 = vadd.f32 %v2889, %v3035
    %v3106 = vadd.f32 %v2894, %v3040
    %v3107 = vadd.f32 %v2899, %v3045
    %v3108 = vadd.f32 %v2904, %v3050
    %v3109 = vadd.f32 %v2909, %v3055
    %v3110 = vadd.f32 %v2914, %v3060
    %v3111 = vadd.f32 %v2919, %v3065
    %v3112 = vadd.f32 %v2924, %v3070
    %v3113 = vadd.f32 %v2929, %v3075
    %v3114 = vadd.f32 %v2934, %v3080
    %v3115 = vadd.f32 %v2939, %v3085
    %v3116 = vadd.f32 %v2944, %v3090
    %v3117 = vadd.f32 %v2949, %v3095
    %v3118 = vadd.f32 %v2954, %v3100
    %v3119 = vld [vmem:[#allocation5 + $0xc2e] sm:$0x1]
    %v3120 = vlaneseq
    %v3121 = vshrl.u32 %v3120, 7
    %v3122 = vsub.s32 0, %v3121
    %v3123 = vrot.slane %v3119, %v3122
    %v3124 = vadd.f32 %v3103, %v3123
    %v3125 = vadd.f32 %v3104, %v3123
    %v3126 = vadd.f32 %v3105, %v3123
    %v3127 = vadd.f32 %v3106, %v3123
    %v3128 = vadd.f32 %v3107, %v3123
    %v3129 = vadd.f32 %v3108, %v3123
    %v3130 = vadd.f32 %v3109, %v3123
    %v3131 = vadd.f32 %v3110, %v3123
    %v3132 = vadd.f32 %v3111, %v3123
    %v3133 = vadd.f32 %v3112, %v3123
    %v3134 = vadd.f32 %v3113, %v3123
    %v3135 = vadd.f32 %v3114, %v3123
    %v3136 = vadd.f32 %v3115, %v3123
    %v3137 = vadd.f32 %v3116, %v3123
    %v3138 = vadd.f32 %v3117, %v3123
    %v3139 = vadd.f32 %v3118, %v3123
    %v3140 = vmax.f32 %v3124, 0.0
    %v3141 = vmax.f32 %v3125, 0.0
    %v3142 = vmax.f32 %v3126, 0.0
    %v3143 = vmax.f32 %v3127, 0.0
    %v3144 = vmax.f32 %v3128, 0.0
    %v3145 = vmax.f32 %v3129, 0.0
    %v3146 = vmax.f32 %v3130, 0.0
    %v3147 = vmax.f32 %v3131, 0.0
    %v3148 = vmax.f32 %v3132, 0.0
    %v3149 = vmax.f32 %v3133, 0.0
    %v3150 = vmax.f32 %v3134, 0.0
    %v3151 = vmax.f32 %v3135, 0.0
    %v3152 = vmax.f32 %v3136, 0.0
    %v3153 = vmax.f32 %v3137, 0.0
    %v3154 = vmax.f32 %v3138, 0.0
    %v3155 = vmax.f32 %v3139, 0.0
    %v3156 = vld [vmem:[#allocation7 + $0x100] sm:$0xff]
    %v3157 = vld [vmem:[#allocation7 + $0x108] sm:$0xff]
    %v3158 = vld [vmem:[#allocation7 + $0x110] sm:$0xff]
    %v3159 = vld [vmem:[#allocation7 + $0x118] sm:$0xff]
    %v3160 = vld [vmem:[#allocation7 + $0x120] sm:$0xff]
    %v3161 = vld [vmem:[#allocation7 + $0x128] sm:$0xff]
    %v3162 = vld [vmem:[#allocation7 + $0x130] sm:$0xff]
    %v3163 = vld [vmem:[#allocation7 + $0x138] sm:$0xff]
    %v3164 = vld [vmem:[#allocation7 + $0x140] sm:$0xff]
    %v3165 = vld [vmem:[#allocation7 + $0x148] sm:$0xff]
    %v3166 = vld [vmem:[#allocation7 + $0x150] sm:$0xff]
    %v3167 = vld [vmem:[#allocation7 + $0x158] sm:$0xff]
    %v3168 = vld [vmem:[#allocation7 + $0x160] sm:$0xff]
    %v3169 = vld [vmem:[#allocation7 + $0x168] sm:$0xff]
    %v3170 = vld [vmem:[#allocation7 + $0x170] sm:$0xff]
    %v3171 = vld [vmem:[#allocation7 + $0x178] sm:$0xff]
    %v3172 = vld [vmem:[#allocation7 + $0x180] sm:$0xff]
    %v3173 = vld [vmem:[#allocation7 + $0x188] sm:$0xff]
    %v3174 = vld [vmem:[#allocation7 + $0x190] sm:$0xff]
    %v3175 = vld [vmem:[#allocation7 + $0x198] sm:$0xff]
    %v3176 = vld [vmem:[#allocation7 + $0x1a0] sm:$0xff]
    %v3177 = vld [vmem:[#allocation7 + $0x1a8] sm:$0xff]
    %v3178 = vld [vmem:[#allocation7 + $0x1b0] sm:$0xff]
    %v3179 = vld [vmem:[#allocation7 + $0x1b8] sm:$0xff]
    %v3180 = vld [vmem:[#allocation7 + $0x1c0] sm:$0xff]
    %v3181 = vld [vmem:[#allocation7 + $0x1c8] sm:$0xff]
    %v3182 = vld [vmem:[#allocation7 + $0x1d0] sm:$0xff]
    %v3183 = vld [vmem:[#allocation7 + $0x1d8] sm:$0xff]
    %v3184 = vld [vmem:[#allocation7 + $0x1e0] sm:$0xff]
    %v3185 = vld [vmem:[#allocation7 + $0x1e8] sm:$0xff]
    %v3186 = vld [vmem:[#allocation7 + $0x1f0] sm:$0xff]
    %v3187 = vld [vmem:[#allocation7 + $0x1f8] sm:$0xff]
    %s3188 = scalar_lea.vmem [#allocation7], 769
    %v3189 = vld [vmem:[%s3188] ss:$8 sm:$0x3]
    %v3191 = vlaneseq
    %v3192 = vshrl.u32 %v3191, 7
    %v3193 = vsub.s32 0, %v3192
    %v3194 = vrot.slane %v3189, %v3193
    %v3195 = vlaneseq
    %v3196 = vshrl.u32 %v3195, 7
    %v3197 = vsub.s32 1, %v3196
    %v3198 = vrot.slane %v3189, %v3197
    %3201 = vmatprep.subr.mxu0 %v3157
    %3202 = vmatpush1.msra.mxu0 %v3156
    %3203 = vmatprep.subr.mxu0 %v3159
    %3204 = vmatpush1.msra.mxu0 %v3158
    %3205 = vmatprep.subr.mxu0 %v3161
    %3206 = vmatpush1.msra.mxu0 %v3160
    %3207 = vmatprep.subr.mxu0 %v3163
    %3208 = vmatpush1.msra.mxu0 %v3162
    %3209 = vmatprep.subr.mxu0 %v3165
    %3210 = vmatpush1.msra.mxu0 %v3164
    %3211 = vmatprep.subr.mxu0 %v3167
    %3212 = vmatpush1.msra.mxu0 %v3166
    %3213 = vmatprep.subr.mxu0 %v3169
    %3214 = vmatpush1.msra.mxu0 %v3168
    %3215 = vmatprep.subr.mxu0 %v3171
    %3216 = vmatpush1.msra.mxu0 %v3170
    %3217 = vmatprep.subr.mxu0 %v3173
    %3218 = vmatpush1.msra.mxu0 %v3172
    %3219 = vmatprep.subr.mxu0 %v3175
    %3220 = vmatpush1.msra.mxu0 %v3174
    %3221 = vmatprep.subr.mxu0 %v3177
    %3222 = vmatpush1.msra.mxu0 %v3176
    %3223 = vmatprep.subr.mxu0 %v3179
    %3224 = vmatpush1.msra.mxu0 %v3178
    %3225 = vmatprep.subr.mxu0 %v3181
    %3226 = vmatpush1.msra.mxu0 %v3180
    %3227 = vmatprep.subr.mxu0 %v3183
    %3228 = vmatpush1.msra.mxu0 %v3182
    %3229 = vmatprep.subr.mxu0 %v3185
    %3230 = vmatpush1.msra.mxu0 %v3184
    %3231 = vmatprep.subr.mxu0 %v3187
    %3232 = vmatpush1.msra.mxu0 %v3186
    %3233 = vmatprep.subr.mxu0 0.0
    %3234 = vmatpush1.msra.mxu0 0.0
    %3235 = vmatprep.subr.mxu0 0.0
    %3236 = vmatpush1.msra.mxu0 0.0
    %3237 = vmatprep.subr.mxu0 0.0
    %3238 = vmatpush1.msra.mxu0 0.0
    %3239 = vmatprep.subr.mxu0 0.0
    %3240 = vmatpush1.msra.mxu0 0.0
    %3241 = vmatprep.subr.mxu0 0.0
    %3242 = vmatpush1.msra.mxu0 0.0
    %3243 = vmatprep.subr.mxu0 0.0
    %3244 = vmatpush1.msra.mxu0 0.0
    %3245 = vmatprep.subr.mxu0 0.0
    %3246 = vmatpush1.msra.mxu0 0.0
    %3247 = vmatprep.subr.mxu0 0.0
    %3248 = vmatpush1.msra.mxu0 0.0
    %3249 = vmatprep.subr.mxu0 0.0
    %3250 = vmatpush1.msra.mxu0 0.0
    %3251 = vmatprep.subr.mxu0 0.0
    %3252 = vmatpush1.msra.mxu0 0.0
    %3253 = vmatprep.subr.mxu0 0.0
    %3254 = vmatpush1.msra.mxu0 0.0
    %3255 = vmatprep.subr.mxu0 0.0
    %3256 = vmatpush1.msra.mxu0 0.0
    %3257 = vmatprep.subr.mxu0 0.0
    %3258 = vmatpush1.msra.mxu0 0.0
    %3259 = vmatprep.subr.mxu0 0.0
    %3260 = vmatpush1.msra.mxu0 0.0
    %3261 = vmatprep.subr.mxu0 0.0
    %3262 = vmatpush1.msra.mxu0 0.0
    %3263 = vmatprep.subr.mxu0 0.0
    %3264 = vmatpush1.msra.mxu0 0.0
    %3265 = vmatprep.mubr.f32.mxu0 0.0
    %3266 = vmatmul.mubr.f32.gmra.mrb[0].mxu0 %v3140
    %v3267 = vpop.f32.mrb[0].mxu0
    %v3268 = vadd.f32 %v3194, %v3267
    %v3269 = vpop.f32.mrb[0].mxu0
    %v3270 = vadd.f32 %v3198, %v3269
    %3271 = vmatprep.mubr.f32.mxu0 0.0
    %3272 = vmatmul.mubr.f32.gmra.mrb[0].mxu0 %v3141
    %v3273 = vpop.f32.mrb[0].mxu0
    %v3274 = vadd.f32 %v3194, %v3273
    %v3275 = vpop.f32.mrb[0].mxu0
    %v3276 = vadd.f32 %v3198, %v3275
    %3277 = vmatprep.mubr.f32.mxu0 0.0
    %3278 = vmatmul.mubr.f32.gmra.mrb[0].mxu0 %v3142
    %v3279 = vpop.f32.mrb[0].mxu0
    %v3280 = vadd.f32 %v3194, %v3279
    %v3281 = vpop.f32.mrb[0].mxu0
    %v3282 = vadd.f32 %v3198, %v3281
    %3283 = vmatprep.mubr.f32.mxu0 0.0
    %3284 = vmatmul.mubr.f32.gmra.mrb[0].mxu0 %v3143
    %v3285 = vpop.f32.mrb[0].mxu0
    %v3286 = vadd.f32 %v3194, %v3285
    %v3287 = vpop.f32.mrb[0].mxu0
    %v3288 = vadd.f32 %v3198, %v3287
    %3289 = vmatprep.mubr.f32.mxu0 0.0
    %3290 = vmatmul.mubr.f32.gmra.mrb[0].mxu0 %v3144
    %v3291 = vpop.f32.mrb[0].mxu0
    %v3292 = vadd.f32 %v3194, %v3291
    %v3293 = vpop.f32.mrb[0].mxu0
    %v3294 = vadd.f32 %v3198, %v3293
    %3295 = vmatprep.mubr.f32.mxu0 0.0
    %3296 = vmatmul.mubr.f32.gmra.mrb[0].mxu0 %v3145
    %v3297 = vpop.f32.mrb[0].mxu0
    %v3298 = vadd.f32 %v3194, %v3297
    %v3299 = vpop.f32.mrb[0].mxu0
    %v3300 = vadd.f32 %v3198, %v3299
    %3301 = vmatprep.mubr.f32.mxu0 0.0
    %3302 = vmatmul.mubr.f32.gmra.mrb[0].mxu0 %v3146
    %v3303 = vpop.f32.mrb[0].mxu0
    %v3304 = vadd.f32 %v3194, %v3303
    %v3305 = vpop.f32.mrb[0].mxu0
    %v3306 = vadd.f32 %v3198, %v3305
    %3307 = vmatprep.mubr.f32.mxu0 0.0
    %3308 = vmatmul.mubr.f32.gmra.mrb[0].mxu0 %v3147
    %v3309 = vpop.f32.mrb[0].mxu0
    %v3310 = vadd.f32 %v3194, %v3309
    %v3311 = vpop.f32.mrb[0].mxu0
    %v3312 = vadd.f32 %v3198, %v3311
    %3313 = vmatprep.mubr.f32.mxu0 0.0
    %3314 = vmatmul.mubr.f32.gmra.mrb[0].mxu0 %v3148
    %v3315 = vpop.f32.mrb[0].mxu0
    %v3316 = vadd.f32 %v3194, %v3315
    %v3317 = vpop.f32.mrb[0].mxu0
    %v3318 = vadd.f32 %v3198, %v3317
    %3319 = vmatprep.mubr.f32.mxu0 0.0
    %3320 = vmatmul.mubr.f32.gmra.mrb[0].mxu0 %v3149
    %v3321 = vpop.f32.mrb[0].mxu0
    %v3322 = vadd.f32 %v3194, %v3321
    %v3323 = vpop.f32.mrb[0].mxu0
    %v3324 = vadd.f32 %v3198, %v3323
    %3325 = vmatprep.mubr.f32.mxu0 0.0
    %3326 = vmatmul.mubr.f32.gmra.mrb[0].mxu0 %v3150
    %v3327 = vpop.f32.mrb[0].mxu0
    %v3328 = vadd.f32 %v3194, %v3327
    %v3329 = vpop.f32.mrb[0].mxu0
    %v3330 = vadd.f32 %v3198, %v3329
    %3331 = vmatprep.mubr.f32.mxu0 0.0
    %3332 = vmatmul.mubr.f32.gmra.mrb[0].mxu0 %v3151
    %v3333 = vpop.f32.mrb[0].mxu0
    %v3334 = vadd.f32 %v3194, %v3333
    %v3335 = vpop.f32.mrb[0].mxu0
    %v3336 = vadd.f32 %v3198, %v3335
    %3337 = vmatprep.mubr.f32.mxu0 0.0
    %3338 = vmatmul.mubr.f32.gmra.mrb[0].mxu0 %v3152
    %v3339 = vpop.f32.mrb[0].mxu0
    %v3340 = vadd.f32 %v3194, %v3339
    %v3341 = vpop.f32.mrb[0].mxu0
    %v3342 = vadd.f32 %v3198, %v3341
    %3343 = vmatprep.mubr.f32.mxu0 0.0
    %3344 = vmatmul.mubr.f32.gmra.mrb[0].mxu0 %v3153
    %v3345 = vpop.f32.mrb[0].mxu0
    %v3346 = vadd.f32 %v3194, %v3345
    %v3347 = vpop.f32.mrb[0].mxu0
    %v3348 = vadd.f32 %v3198, %v3347
    %3349 = vmatprep.mubr.f32.mxu0 0.0
    %3350 = vmatmul.mubr.f32.gmra.mrb[0].mxu0 %v3154
    %v3351 = vpop.f32.mrb[0].mxu0
    %v3352 = vadd.f32 %v3194, %v3351
    %v3353 = vpop.f32.mrb[0].mxu0
    %v3354 = vadd.f32 %v3198, %v3353
    %3355 = vmatprep.mubr.f32.mxu0 0.0
    %3356 = vmatmul.mubr.f32.gmra.mrb[0].mxu0 %v3155
    %v3357 = vpop.f32.mrb[0].mxu0
    %v3358 = vadd.f32 %v3194, %v3357
    %v3359 = vpop.f32.mrb[0].mxu0
    %v3360 = vadd.f32 %v3198, %v3359
    %3361 = vdwg.mxu0
    %v3362 = vmax.f32 %v3268, 0.0
    %v3363 = vmax.f32 %v3270, 0.0
    %v3364 = vmax.f32 %v3274, 0.0
    %v3365 = vmax.f32 %v3276, 0.0
    %v3366 = vmax.f32 %v3280, 0.0
    %v3367 = vmax.f32 %v3282, 0.0
    %v3368 = vmax.f32 %v3286, 0.0
    %v3369 = vmax.f32 %v3288, 0.0
    %v3370 = vmax.f32 %v3292, 0.0
    %v3371 = vmax.f32 %v3294, 0.0
    %v3372 = vmax.f32 %v3298, 0.0
    %v3373 = vmax.f32 %v3300, 0.0
    %v3374 = vmax.f32 %v3304, 0.0
    %v3375 = vmax.f32 %v3306, 0.0
    %v3376 = vmax.f32 %v3310, 0.0
    %v3377 = vmax.f32 %v3312, 0.0
    %v3378 = vmax.f32 %v3316, 0.0
    %v3379 = vmax.f32 %v3318, 0.0
    %v3380 = vmax.f32 %v3322, 0.0
    %v3381 = vmax.f32 %v3324, 0.0
    %v3382 = vmax.f32 %v3328, 0.0
    %v3383 = vmax.f32 %v3330, 0.0
    %v3384 = vmax.f32 %v3334, 0.0
    %v3385 = vmax.f32 %v3336, 0.0
    %v3386 = vmax.f32 %v3340, 0.0
    %v3387 = vmax.f32 %v3342, 0.0
    %v3388 = vmax.f32 %v3346, 0.0
    %v3389 = vmax.f32 %v3348, 0.0
    %v3390 = vmax.f32 %v3352, 0.0
    %v3391 = vmax.f32 %v3354, 0.0
    %v3392 = vmax.f32 %v3358, 0.0
    %v3393 = vmax.f32 %v3360, 0.0
    %v3394 = vld [vmem:[#allocation5 + $0x4a0] sm:$0xff]
    %v3395 = vld [vmem:[#allocation5 + $0x4a8] sm:$0xff]
    %v3396 = vld [vmem:[#allocation5 + $0x4b0] sm:$0xff]
    %v3397 = vld [vmem:[#allocation5 + $0x4b8] sm:$0xff]
    %v3398 = vld [vmem:[#allocation5 + $0x4c0] sm:$0xff]
    %v3399 = vld [vmem:[#allocation5 + $0x4c8] sm:$0xff]
    %v3400 = vld [vmem:[#allocation5 + $0x4d0] sm:$0xff]
    %v3401 = vld [vmem:[#allocation5 + $0x4d8] sm:$0xff]
    %v3402 = vld [vmem:[#allocation5 + $0x4e0] sm:$0xff]
    %v3403 = vld [vmem:[#allocation5 + $0x4e8] sm:$0xff]
    %v3404 = vld [vmem:[#allocation5 + $0x4f0] sm:$0xff]
    %v3405 = vld [vmem:[#allocation5 + $0x4f8] sm:$0xff]
    %v3406 = vld [vmem:[#allocation5 + $0x500] sm:$0xff]
    %v3407 = vld [vmem:[#allocation5 + $0x508] sm:$0xff]
    %v3408 = vld [vmem:[#allocation5 + $0x510] sm:$0xff]
    %v3409 = vld [vmem:[#allocation5 + $0x518] sm:$0xff]
    %v3410 = vld [vmem:[#allocation5 + $0x520] sm:$0xff]
    %v3411 = vld [vmem:[#allocation5 + $0x528] sm:$0xff]
    %v3412 = vld [vmem:[#allocation5 + $0x530] sm:$0xff]
    %v3413 = vld [vmem:[#allocation5 + $0x538] sm:$0xff]
    %v3414 = vld [vmem:[#allocation5 + $0x540] sm:$0xff]
    %v3415 = vld [vmem:[#allocation5 + $0x548] sm:$0xff]
    %v3416 = vld [vmem:[#allocation5 + $0x550] sm:$0xff]
    %v3417 = vld [vmem:[#allocation5 + $0x558] sm:$0xff]
    %v3418 = vld [vmem:[#allocation5 + $0x560] sm:$0xff]
    %v3419 = vld [vmem:[#allocation5 + $0x568] sm:$0xff]
    %v3420 = vld [vmem:[#allocation5 + $0x570] sm:$0xff]
    %v3421 = vld [vmem:[#allocation5 + $0x578] sm:$0xff]
    %v3422 = vld [vmem:[#allocation5 + $0x580] sm:$0xff]
    %v3423 = vld [vmem:[#allocation5 + $0x588] sm:$0xff]
    %v3424 = vld [vmem:[#allocation5 + $0x590] sm:$0xff]
    %v3425 = vld [vmem:[#allocation5 + $0x598] sm:$0xff]
    %v3426 = vld [vmem:[#allocation5 + $0xc2f] sm:$0x1]
    %v3427 = vlaneseq
    %v3428 = vshrl.u32 %v3427, 7
    %v3429 = vsub.s32 0, %v3428
    %v3430 = vrot.slane %v3426, %v3429
    %3431 = vmatprep.subr.mxu0 0.0
    %3432 = vmatpush1.msra.mxu0 %v3394
    %3433 = vmatprep.subr.mxu0 0.0
    %3434 = vmatpush1.msra.mxu0 %v3395
    %3435 = vmatprep.subr.mxu0 0.0
    %3436 = vmatpush1.msra.mxu0 %v3396
    %3437 = vmatprep.subr.mxu0 0.0
    %3438 = vmatpush1.msra.mxu0 %v3397
    %3439 = vmatprep.subr.mxu0 0.0
    %3440 = vmatpush1.msra.mxu0 %v3398
    %3441 = vmatprep.subr.mxu0 0.0
    %3442 = vmatpush1.msra.mxu0 %v3399
    %3443 = vmatprep.subr.mxu0 0.0
    %3444 = vmatpush1.msra.mxu0 %v3400
    %3445 = vmatprep.subr.mxu0 0.0
    %3446 = vmatpush1.msra.mxu0 %v3401
    %3447 = vmatprep.subr.mxu0 0.0
    %3448 = vmatpush1.msra.mxu0 %v3402
    %3449 = vmatprep.subr.mxu0 0.0
    %3450 = vmatpush1.msra.mxu0 %v3403
    %3451 = vmatprep.subr.mxu0 0.0
    %3452 = vmatpush1.msra.mxu0 %v3404
    %3453 = vmatprep.subr.mxu0 0.0
    %3454 = vmatpush1.msra.mxu0 %v3405
    %3455 = vmatprep.subr.mxu0 0.0
    %3456 = vmatpush1.msra.mxu0 %v3406
    %3457 = vmatprep.subr.mxu0 0.0
    %3458 = vmatpush1.msra.mxu0 %v3407
    %3459 = vmatprep.subr.mxu0 0.0
    %3460 = vmatpush1.msra.mxu0 %v3408
    %3461 = vmatprep.subr.mxu0 0.0
    %3462 = vmatpush1.msra.mxu0 %v3409
    %3463 = vmatprep.subr.mxu0 0.0
    %3464 = vmatpush1.msra.mxu0 %v3410
    %3465 = vmatprep.subr.mxu0 0.0
    %3466 = vmatpush1.msra.mxu0 %v3411
    %3467 = vmatprep.subr.mxu0 0.0
    %3468 = vmatpush1.msra.mxu0 %v3412
    %3469 = vmatprep.subr.mxu0 0.0
    %3470 = vmatpush1.msra.mxu0 %v3413
    %3471 = vmatprep.subr.mxu0 0.0
    %3472 = vmatpush1.msra.mxu0 %v3414
    %3473 = vmatprep.subr.mxu0 0.0
    %3474 = vmatpush1.msra.mxu0 %v3415
    %3475 = vmatprep.subr.mxu0 0.0
    %3476 = vmatpush1.msra.mxu0 %v3416
    %3477 = vmatprep.subr.mxu0 0.0
    %3478 = vmatpush1.msra.mxu0 %v3417
    %3479 = vmatprep.subr.mxu0 0.0
    %3480 = vmatpush1.msra.mxu0 %v3418
    %3481 = vmatprep.subr.mxu0 0.0
    %3482 = vmatpush1.msra.mxu0 %v3419
    %3483 = vmatprep.subr.mxu0 0.0
    %3484 = vmatpush1.msra.mxu0 %v3420
    %3485 = vmatprep.subr.mxu0 0.0
    %3486 = vmatpush1.msra.mxu0 %v3421
    %3487 = vmatprep.subr.mxu0 0.0
    %3488 = vmatpush1.msra.mxu0 %v3422
    %3489 = vmatprep.subr.mxu0 0.0
    %3490 = vmatpush1.msra.mxu0 %v3423
    %3491 = vmatprep.subr.mxu0 0.0
    %3492 = vmatpush1.msra.mxu0 %v3424
    %3493 = vmatprep.subr.mxu0 0.0
    %3494 = vmatpush1.msra.mxu0 %v3425
    %3495 = vmatprep.mubr.f32.mxu0 %v3363
    %3496 = vmatmul.mubr.f32.gmra.mrb[0].mxu0 %v3362
    %v3497 = vpop.f32.mrb[0].mxu0
    %v3498 = vadd.f32 %v3430, %v3497
    %v3499 = vpop.f32.mrb[0].mxu0
    %3500 = vmatprep.mubr.f32.mxu0 %v3365
    %3501 = vmatmul.mubr.f32.gmra.mrb[0].mxu0 %v3364
    %v3502 = vpop.f32.mrb[0].mxu0
    %v3503 = vadd.f32 %v3430, %v3502
    %v3504 = vpop.f32.mrb[0].mxu0
    %3505 = vmatprep.mubr.f32.mxu0 %v3367
    %3506 = vmatmul.mubr.f32.gmra.mrb[0].mxu0 %v3366
    %v3507 = vpop.f32.mrb[0].mxu0
    %v3508 = vadd.f32 %v3430, %v3507
    %v3509 = vpop.f32.mrb[0].mxu0
    %3510 = vmatprep.mubr.f32.mxu0 %v3369
    %3511 = vmatmul.mubr.f32.gmra.mrb[0].mxu0 %v3368
    %v3512 = vpop.f32.mrb[0].mxu0
    %v3513 = vadd.f32 %v3430, %v3512
    %v3514 = vpop.f32.mrb[0].mxu0
    %3515 = vmatprep.mubr.f32.mxu0 %v3371
    %3516 = vmatmul.mubr.f32.gmra.mrb[0].mxu0 %v3370
    %v3517 = vpop.f32.mrb[0].mxu0
    %v3518 = vadd.f32 %v3430, %v3517
    %v3519 = vpop.f32.mrb[0].mxu0
    %3520 = vmatprep.mubr.f32.mxu0 %v3373
    %3521 = vmatmul.mubr.f32.gmra.mrb[0].mxu0 %v3372
    %v3522 = vpop.f32.mrb[0].mxu0
    %v3523 = vadd.f32 %v3430, %v3522
    %v3524 = vpop.f32.mrb[0].mxu0
    %3525 = vmatprep.mubr.f32.mxu0 %v3375
    %3526 = vmatmul.mubr.f32.gmra.mrb[0].mxu0 %v3374
    %v3527 = vpop.f32.mrb[0].mxu0
    %v3528 = vadd.f32 %v3430, %v3527
    %v3529 = vpop.f32.mrb[0].mxu0
    %3530 = vmatprep.mubr.f32.mxu0 %v3377
    %3531 = vmatmul.mubr.f32.gmra.mrb[0].mxu0 %v3376
    %v3532 = vpop.f32.mrb[0].mxu0
    %v3533 = vadd.f32 %v3430, %v3532
    %v3534 = vpop.f32.mrb[0].mxu0
    %3535 = vmatprep.mubr.f32.mxu0 %v3379
    %3536 = vmatmul.mubr.f32.gmra.mrb[0].mxu0 %v3378
    %v3537 = vpop.f32.mrb[0].mxu0
    %v3538 = vadd.f32 %v3430, %v3537
    %v3539 = vpop.f32.mrb[0].mxu0
    %3540 = vmatprep.mubr.f32.mxu0 %v3381
    %3541 = vmatmul.mubr.f32.gmra.mrb[0].mxu0 %v3380
    %v3542 = vpop.f32.mrb[0].mxu0
    %v3543 = vadd.f32 %v3430, %v3542
    %v3544 = vpop.f32.mrb[0].mxu0
    %3545 = vmatprep.mubr.f32.mxu0 %v3383
    %3546 = vmatmul.mubr.f32.gmra.mrb[0].mxu0 %v3382
    %v3547 = vpop.f32.mrb[0].mxu0
    %v3548 = vadd.f32 %v3430, %v3547
    %v3549 = vpop.f32.mrb[0].mxu0
    %3550 = vmatprep.mubr.f32.mxu0 %v3385
    %3551 = vmatmul.mubr.f32.gmra.mrb[0].mxu0 %v3384
    %v3552 = vpop.f32.mrb[0].mxu0
    %v3553 = vadd.f32 %v3430, %v3552
    %v3554 = vpop.f32.mrb[0].mxu0
    %3555 = vmatprep.mubr.f32.mxu0 %v3387
    %3556 = vmatmul.mubr.f32.gmra.mrb[0].mxu0 %v3386
    %v3557 = vpop.f32.mrb[0].mxu0
    %v3558 = vadd.f32 %v3430, %v3557
    %v3559 = vpop.f32.mrb[0].mxu0
    %3560 = vmatprep.mubr.f32.mxu0 %v3389
    %3561 = vmatmul.mubr.f32.gmra.mrb[0].mxu0 %v3388
    %v3562 = vpop.f32.mrb[0].mxu0
    %v3563 = vadd.f32 %v3430, %v3562
    %v3564 = vpop.f32.mrb[0].mxu0
    %3565 = vmatprep.mubr.f32.mxu0 %v3391
    %3566 = vmatmul.mubr.f32.gmra.mrb[0].mxu0 %v3390
    %v3567 = vpop.f32.mrb[0].mxu0
    %v3568 = vadd.f32 %v3430, %v3567
    %v3569 = vpop.f32.mrb[0].mxu0
    %3570 = vmatprep.mubr.f32.mxu0 %v3393
    %3571 = vmatmul.mubr.f32.gmra.mrb[0].mxu0 %v3392
    %v3572 = vpop.f32.mrb[0].mxu0
    %v3573 = vadd.f32 %v3430, %v3572
    %v3574 = vpop.f32.mrb[0].mxu0
    %3575 = vdwg.mxu0
    %v3576 = vmax.f32 %v3498, 0.0
    %v3577 = vmax.f32 %v3503, 0.0
    %v3578 = vmax.f32 %v3508, 0.0
    %v3579 = vmax.f32 %v3513, 0.0
    %v3580 = vmax.f32 %v3518, 0.0
    %v3581 = vmax.f32 %v3523, 0.0
    %v3582 = vmax.f32 %v3528, 0.0
    %v3583 = vmax.f32 %v3533, 0.0
    %v3584 = vmax.f32 %v3538, 0.0
    %v3585 = vmax.f32 %v3543, 0.0
    %v3586 = vmax.f32 %v3548, 0.0
    %v3587 = vmax.f32 %v3553, 0.0
    %v3588 = vmax.f32 %v3558, 0.0
    %v3589 = vmax.f32 %v3563, 0.0
    %v3590 = vmax.f32 %v3568, 0.0
    %v3591 = vmax.f32 %v3573, 0.0
    %v3592 = vld [vmem:[#allocation5 + $0x5a0] sm:$0xff]
    %v3593 = vld [vmem:[#allocation5 + $0x5a8] sm:$0xff]
    %v3594 = vld [vmem:[#allocation5 + $0x5b0] sm:$0xff]
    %v3595 = vld [vmem:[#allocation5 + $0x5b8] sm:$0xff]
    %v3596 = vld [vmem:[#allocation5 + $0x5c0] sm:$0xff]
    %v3597 = vld [vmem:[#allocation5 + $0x5c8] sm:$0xff]
    %v3598 = vld [vmem:[#allocation5 + $0x5d0] sm:$0xff]
    %v3599 = vld [vmem:[#allocation5 + $0x5d8] sm:$0xff]
    %v3600 = vld [vmem:[#allocation5 + $0x5e0] sm:$0xff]
    %v3601 = vld [vmem:[#allocation5 + $0x5e8] sm:$0xff]
    %v3602 = vld [vmem:[#allocation5 + $0x5f0] sm:$0xff]
    %v3603 = vld [vmem:[#allocation5 + $0x5f8] sm:$0xff]
    %v3604 = vld [vmem:[#allocation5 + $0x600] sm:$0xff]
    %v3605 = vld [vmem:[#allocation5 + $0x608] sm:$0xff]
    %v3606 = vld [vmem:[#allocation5 + $0x610] sm:$0xff]
    %v3607 = vld [vmem:[#allocation5 + $0x618] sm:$0xff]
    %v3608 = vld [vmem:[#allocation5 + $0xc30] sm:$0x1]
    %v3609 = vlaneseq
    %v3610 = vshrl.u32 %v3609, 7
    %v3611 = vsub.s32 0, %v3610
    %v3612 = vrot.slane %v3608, %v3611
    %3613 = vmatprep.subr.mxu0 0.0
    %3614 = vmatpush1.msra.mxu0 %v3592
    %3615 = vmatprep.subr.mxu0 0.0
    %3616 = vmatpush1.msra.mxu0 %v3593
    %3617 = vmatprep.subr.mxu0 0.0
    %3618 = vmatpush1.msra.mxu0 %v3594
    %3619 = vmatprep.subr.mxu0 0.0
    %3620 = vmatpush1.msra.mxu0 %v3595
    %3621 = vmatprep.subr.mxu0 0.0
    %3622 = vmatpush1.msra.mxu0 %v3596
    %3623 = vmatprep.subr.mxu0 0.0
    %3624 = vmatpush1.msra.mxu0 %v3597
    %3625 = vmatprep.subr.mxu0 0.0
    %3626 = vmatpush1.msra.mxu0 %v3598
    %3627 = vmatprep.subr.mxu0 0.0
    %3628 = vmatpush1.msra.mxu0 %v3599
    %3629 = vmatprep.subr.mxu0 0.0
    %3630 = vmatpush1.msra.mxu0 %v3600
    %3631 = vmatprep.subr.mxu0 0.0
    %3632 = vmatpush1.msra.mxu0 %v3601
    %3633 = vmatprep.subr.mxu0 0.0
    %3634 = vmatpush1.msra.mxu0 %v3602
    %3635 = vmatprep.subr.mxu0 0.0
    %3636 = vmatpush1.msra.mxu0 %v3603
    %3637 = vmatprep.subr.mxu0 0.0
    %3638 = vmatpush1.msra.mxu0 %v3604
    %3639 = vmatprep.subr.mxu0 0.0
    %3640 = vmatpush1.msra.mxu0 %v3605
    %3641 = vmatprep.subr.mxu0 0.0
    %3642 = vmatpush1.msra.mxu0 %v3606
    %3643 = vmatprep.subr.mxu0 0.0
    %3644 = vmatpush1.msra.mxu0 %v3607
    %3645 = vmatprep.subr.mxu0 0.0
    %3646 = vmatpush1.msra.mxu0 0.0
    %3647 = vmatprep.subr.mxu0 0.0
    %3648 = vmatpush1.msra.mxu0 0.0
    %3649 = vmatprep.subr.mxu0 0.0
    %3650 = vmatpush1.msra.mxu0 0.0
    %3651 = vmatprep.subr.mxu0 0.0
    %3652 = vmatpush1.msra.mxu0 0.0
    %3653 = vmatprep.subr.mxu0 0.0
    %3654 = vmatpush1.msra.mxu0 0.0
    %3655 = vmatprep.subr.mxu0 0.0
    %3656 = vmatpush1.msra.mxu0 0.0
    %3657 = vmatprep.subr.mxu0 0.0
    %3658 = vmatpush1.msra.mxu0 0.0
    %3659 = vmatprep.subr.mxu0 0.0
    %3660 = vmatpush1.msra.mxu0 0.0
    %3661 = vmatprep.subr.mxu0 0.0
    %3662 = vmatpush1.msra.mxu0 0.0
    %3663 = vmatprep.subr.mxu0 0.0
    %3664 = vmatpush1.msra.mxu0 0.0
    %3665 = vmatprep.subr.mxu0 0.0
    %3666 = vmatpush1.msra.mxu0 0.0
    %3667 = vmatprep.subr.mxu0 0.0
    %3668 = vmatpush1.msra.mxu0 0.0
    %3669 = vmatprep.subr.mxu0 0.0
    %3670 = vmatpush1.msra.mxu0 0.0
    %3671 = vmatprep.subr.mxu0 0.0
    %3672 = vmatpush1.msra.mxu0 0.0
    %3673 = vmatprep.subr.mxu0 0.0
    %3674 = vmatpush1.msra.mxu0 0.0
    %3675 = vmatprep.subr.mxu0 0.0
    %3676 = vmatpush1.msra.mxu0 0.0
    %3677 = vmatprep.mubr.f32.mxu0 0.0
    %3678 = vmatmul.mubr.f32.gmra.mrb[0].mxu0 %v3576
    %v3679 = vpop.f32.mrb[0].mxu0
    %v3680 = vadd.f32 %v3612, %v3679
    %v3681 = vpop.f32.mrb[0].mxu0
    %3682 = vmatprep.mubr.f32.mxu0 0.0
    %3683 = vmatmul.mubr.f32.gmra.mrb[0].mxu0 %v3577
    %v3684 = vpop.f32.mrb[0].mxu0
    %v3685 = vadd.f32 %v3612, %v3684
    %v3686 = vpop.f32.mrb[0].mxu0
    %3687 = vmatprep.mubr.f32.mxu0 0.0
    %3688 = vmatmul.mubr.f32.gmra.mrb[0].mxu0 %v3578
    %v3689 = vpop.f32.mrb[0].mxu0
    %v3690 = vadd.f32 %v3612, %v3689
    %v3691 = vpop.f32.mrb[0].mxu0
    %3692 = vmatprep.mubr.f32.mxu0 0.0
    %3693 = vmatmul.mubr.f32.gmra.mrb[0].mxu0 %v3579
    %v3694 = vpop.f32.mrb[0].mxu0
    %v3695 = vadd.f32 %v3612, %v3694
    %v3696 = vpop.f32.mrb[0].mxu0
    %3697 = vmatprep.mubr.f32.mxu0 0.0
    %3698 = vmatmul.mubr.f32.gmra.mrb[0].mxu0 %v3580
    %v3699 = vpop.f32.mrb[0].mxu0
    %v3700 = vadd.f32 %v3612, %v3699
    %v3701 = vpop.f32.mrb[0].mxu0
    %3702 = vmatprep.mubr.f32.mxu0 0.0
    %3703 = vmatmul.mubr.f32.gmra.mrb[0].mxu0 %v3581
    %v3704 = vpop.f32.mrb[0].mxu0
    %v3705 = vadd.f32 %v3612, %v3704
    %v3706 = vpop.f32.mrb[0].mxu0
    %3707 = vmatprep.mubr.f32.mxu0 0.0
    %3708 = vmatmul.mubr.f32.gmra.mrb[0].mxu0 %v3582
    %v3709 = vpop.f32.mrb[0].mxu0
    %v3710 = vadd.f32 %v3612, %v3709
    %v3711 = vpop.f32.mrb[0].mxu0
    %3712 = vmatprep.mubr.f32.mxu0 0.0
    %3713 = vmatmul.mubr.f32.gmra.mrb[0].mxu0 %v3583
    %v3714 = vpop.f32.mrb[0].mxu0
    %v3715 = vadd.f32 %v3612, %v3714
    %v3716 = vpop.f32.mrb[0].mxu0
    %3717 = vmatprep.mubr.f32.mxu0 0.0
    %3718 = vmatmul.mubr.f32.gmra.mrb[0].mxu0 %v3584
    %v3719 = vpop.f32.mrb[0].mxu0
    %v3720 = vadd.f32 %v3612, %v3719
    %v3721 = vpop.f32.mrb[0].mxu0
    %3722 = vmatprep.mubr.f32.mxu0 0.0
    %3723 = vmatmul.mubr.f32.gmra.mrb[0].mxu0 %v3585
    %v3724 = vpop.f32.mrb[0].mxu0
    %v3725 = vadd.f32 %v3612, %v3724
    %v3726 = vpop.f32.mrb[0].mxu0
    %3727 = vmatprep.mubr.f32.mxu0 0.0
    %3728 = vmatmul.mubr.f32.gmra.mrb[0].mxu0 %v3586
    %v3729 = vpop.f32.mrb[0].mxu0
    %v3730 = vadd.f32 %v3612, %v3729
    %v3731 = vpop.f32.mrb[0].mxu0
    %3732 = vmatprep.mubr.f32.mxu0 0.0
    %3733 = vmatmul.mubr.f32.gmra.mrb[0].mxu0 %v3587
    %v3734 = vpop.f32.mrb[0].mxu0
    %v3735 = vadd.f32 %v3612, %v3734
    %v3736 = vpop.f32.mrb[0].mxu0
    %3737 = vmatprep.mubr.f32.mxu0 0.0
    %3738 = vmatmul.mubr.f32.gmra.mrb[0].mxu0 %v3588
    %v3739 = vpop.f32.mrb[0].mxu0
    %v3740 = vadd.f32 %v3612, %v3739
    %v3741 = vpop.f32.mrb[0].mxu0
    %3742 = vmatprep.mubr.f32.mxu0 0.0
    %3743 = vmatmul.mubr.f32.gmra.mrb[0].mxu0 %v3589
    %v3744 = vpop.f32.mrb[0].mxu0
    %v3745 = vadd.f32 %v3612, %v3744
    %v3746 = vpop.f32.mrb[0].mxu0
    %3747 = vmatprep.mubr.f32.mxu0 0.0
    %3748 = vmatmul.mubr.f32.gmra.mrb[0].mxu0 %v3590
    %v3749 = vpop.f32.mrb[0].mxu0
    %v3750 = vadd.f32 %v3612, %v3749
    %v3751 = vpop.f32.mrb[0].mxu0
    %3752 = vmatprep.mubr.f32.mxu0 0.0
    %3753 = vmatmul.mubr.f32.gmra.mrb[0].mxu0 %v3591
    %v3754 = vpop.f32.mrb[0].mxu0
    %v3755 = vadd.f32 %v3612, %v3754
    %v3756 = vpop.f32.mrb[0].mxu0
    %3757 = vdwg.mxu0
    %3758 = vmatprep.subr.mxu0 0.0
    %3759 = vmatpush1.msra.mxu0 %v3680
    %3760 = vmatprep.subr.mxu0 0.0
    %3761 = vmatpush1.msra.mxu0 %v3685
    %3762 = vmatprep.subr.mxu0 0.0
    %3763 = vmatpush1.msra.mxu0 %v3690
    %3764 = vmatprep.subr.mxu0 0.0
    %3765 = vmatpush1.msra.mxu0 %v3695
    %3766 = vmatprep.subr.mxu0 0.0
    %3767 = vmatpush1.msra.mxu0 %v3700
    %3768 = vmatprep.subr.mxu0 0.0
    %3769 = vmatpush1.msra.mxu0 %v3705
    %3770 = vmatprep.subr.mxu0 0.0
    %3771 = vmatpush1.msra.mxu0 %v3710
    %3772 = vmatprep.subr.mxu0 0.0
    %3773 = vmatpush1.msra.mxu0 %v3715
    %3774 = vmatprep.subr.mxu0 0.0
    %3775 = vmatpush1.msra.mxu0 %v3720
    %3776 = vmatprep.subr.mxu0 0.0
    %3777 = vmatpush1.msra.mxu0 %v3725
    %3778 = vmatprep.subr.mxu0 0.0
    %3779 = vmatpush1.msra.mxu0 %v3730
    %3780 = vmatprep.subr.mxu0 0.0
    %3781 = vmatpush1.msra.mxu0 %v3735
    %3782 = vmatprep.subr.mxu0 0.0
    %3783 = vmatpush1.msra.mxu0 %v3740
    %3784 = vmatprep.subr.mxu0 0.0
    %3785 = vmatpush1.msra.mxu0 %v3745
    %3786 = vmatprep.subr.mxu0 0.0
    %3787 = vmatpush1.msra.mxu0 %v3750
    %3788 = vmatprep.subr.mxu0 0.0
    %3789 = vmatpush1.msra.mxu0 %v3755
    %3790 = vmatprep.subr.mxu0 0.0
    %3791 = vmatpush1.msra.mxu0 0.0
    %3792 = vmatprep.subr.mxu0 0.0
    %3793 = vmatpush1.msra.mxu0 0.0
    %3794 = vmatprep.subr.mxu0 0.0
    %3795 = vmatpush1.msra.mxu0 0.0
    %3796 = vmatprep.subr.mxu0 0.0
    %3797 = vmatpush1.msra.mxu0 0.0
    %3798 = vmatprep.subr.mxu0 0.0
    %3799 = vmatpush1.msra.mxu0 0.0
    %3800 = vmatprep.subr.mxu0 0.0
    %3801 = vmatpush1.msra.mxu0 0.0
    %3802 = vmatprep.subr.mxu0 0.0
    %3803 = vmatpush1.msra.mxu0 0.0
    %3804 = vmatprep.subr.mxu0 0.0
    %3805 = vmatpush1.msra.mxu0 0.0
    %3806 = vmatprep.subr.mxu0 0.0
    %3807 = vmatpush1.msra.mxu0 0.0
    %3808 = vmatprep.subr.mxu0 0.0
    %3809 = vmatpush1.msra.mxu0 0.0
    %3810 = vmatprep.subr.mxu0 0.0
    %3811 = vmatpush1.msra.mxu0 0.0
    %3812 = vmatprep.subr.mxu0 0.0
    %3813 = vmatpush1.msra.mxu0 0.0
    %3814 = vmatprep.subr.mxu0 0.0
    %3815 = vmatpush1.msra.mxu0 0.0
    %3816 = vmatprep.subr.mxu0 0.0
    %3817 = vmatpush1.msra.mxu0 0.0
    %3818 = vmatprep.subr.mxu0 0.0
    %3819 = vmatpush1.msra.mxu0 0.0
    %3820 = vmatprep.subr.mxu0 0.0
    %3821 = vmatpush1.msra.mxu0 0.0
    %3822 = vmatprep.mubr.f32.mxu0 0.0
    %3823 = vmatmul.mubr.f32.gmra.mrb[0].mxu0 %v313
    %v3824 = vpop.f32.mrb[0].mxu0
    %v3825 = vadd.f32 0.0, %v3824
    %v3826 = vpop.f32.mrb[0].mxu0
    %3827 = vmatprep.mubr.f32.mxu0 0.0
    %3828 = vmatmul.mubr.f32.gmra.mrb[0].mxu0 %v314
    %v3829 = vpop.f32.mrb[0].mxu0
    %v3830 = vadd.f32 0.0, %v3829
    %v3831 = vpop.f32.mrb[0].mxu0
    %3832 = vmatprep.mubr.f32.mxu0 0.0
    %3833 = vmatmul.mubr.f32.gmra.mrb[0].mxu0 %v315
    %v3834 = vpop.f32.mrb[0].mxu0
    %v3835 = vadd.f32 0.0, %v3834
    %v3836 = vpop.f32.mrb[0].mxu0
    %3837 = vmatprep.mubr.f32.mxu0 0.0
    %3838 = vmatmul.mubr.f32.gmra.mrb[0].mxu0 %v316
    %v3839 = vpop.f32.mrb[0].mxu0
    %v3840 = vadd.f32 0.0, %v3839
    %v3841 = vpop.f32.mrb[0].mxu0
    %3842 = vdwg.mxu0
    %v3843 = vmul.f32 %v3825, %v338
    %v3844 = vmul.f32 %v3830, %v340
    %v3845 = vmul.f32 %v3835, %v342
    %v3846 = vmul.f32 %v3840, %v344
    %v3847 = vadd.f32 %v2327, %v3843
    %v3848 = vadd.f32 %v2332, %v3844
    %v3849 = vadd.f32 %v2337, %v3845
    %v3850 = vadd.f32 %v2342, %v3846
    %v3851 = vld [vmem:[#allocation5 + $0x620] sm:$0xff]
    %v3852 = vld [vmem:[#allocation5 + $0x628] sm:$0xff]
    %v3853 = vld [vmem:[#allocation5 + $0x630] sm:$0xff]
    %v3854 = vld [vmem:[#allocation5 + $0x638] sm:$0xff]
    %v3855 = vld [vmem:[#allocation5 + $0x640] sm:$0xff]
    %v3856 = vld [vmem:[#allocation5 + $0x648] sm:$0xff]
    %v3857 = vld [vmem:[#allocation5 + $0x650] sm:$0xff]
    %v3858 = vld [vmem:[#allocation5 + $0x658] sm:$0xff]
    %v3859 = vld [vmem:[#allocation5 + $0x660] sm:$0xff]
    %v3860 = vld [vmem:[#allocation5 + $0x668] sm:$0xff]
    %v3861 = vld [vmem:[#allocation5 + $0x670] sm:$0xff]
    %v3862 = vld [vmem:[#allocation5 + $0x678] sm:$0xff]
    %v3863 = vld [vmem:[#allocation5 + $0x680] sm:$0xff]
    %v3864 = vld [vmem:[#allocation5 + $0x688] sm:$0xff]
    %v3865 = vld [vmem:[#allocation5 + $0x690] sm:$0xff]
    %v3866 = vld [vmem:[#allocation5 + $0x698] sm:$0xff]
    %v3867 = vld [vmem:[#allocation5 + $0xc31] sm:$0x1]
    %v3868 = vlaneseq
    %v3869 = vshrl.u32 %v3868, 7
    %v3870 = vsub.s32 0, %v3869
    %v3871 = vrot.slane %v3867, %v3870
    %3872 = vmatprep.subr.mxu0 0.0
    %3873 = vmatpush1.msra.mxu0 %v3851
    %3874 = vmatprep.subr.mxu0 0.0
    %3875 = vmatpush1.msra.mxu0 %v3852
    %3876 = vmatprep.subr.mxu0 0.0
    %3877 = vmatpush1.msra.mxu0 %v3853
    %3878 = vmatprep.subr.mxu0 0.0
    %3879 = vmatpush1.msra.mxu0 %v3854
    %3880 = vmatprep.subr.mxu0 0.0
    %3881 = vmatpush1.msra.mxu0 %v3855
    %3882 = vmatprep.subr.mxu0 0.0
    %3883 = vmatpush1.msra.mxu0 %v3856
    %3884 = vmatprep.subr.mxu0 0.0
    %3885 = vmatpush1.msra.mxu0 %v3857
    %3886 = vmatprep.subr.mxu0 0.0
    %3887 = vmatpush1.msra.mxu0 %v3858
    %3888 = vmatprep.subr.mxu0 0.0
    %3889 = vmatpush1.msra.mxu0 %v3859
    %3890 = vmatprep.subr.mxu0 0.0
    %3891 = vmatpush1.msra.mxu0 %v3860
    %3892 = vmatprep.subr.mxu0 0.0
    %3893 = vmatpush1.msra.mxu0 %v3861
    %3894 = vmatprep.subr.mxu0 0.0
    %3895 = vmatpush1.msra.mxu0 %v3862
    %3896 = vmatprep.subr.mxu0 0.0
    %3897 = vmatpush1.msra.mxu0 %v3863
    %3898 = vmatprep.subr.mxu0 0.0
    %3899 = vmatpush1.msra.mxu0 %v3864
    %3900 = vmatprep.subr.mxu0 0.0
    %3901 = vmatpush1.msra.mxu0 %v3865
    %3902 = vmatprep.subr.mxu0 0.0
    %3903 = vmatpush1.msra.mxu0 %v3866
    %3904 = vmatprep.subr.mxu0 0.0
    %3905 = vmatpush1.msra.mxu0 0.0
    %3906 = vmatprep.subr.mxu0 0.0
    %3907 = vmatpush1.msra.mxu0 0.0
    %3908 = vmatprep.subr.mxu0 0.0
    %3909 = vmatpush1.msra.mxu0 0.0
    %3910 = vmatprep.subr.mxu0 0.0
    %3911 = vmatpush1.msra.mxu0 0.0
    %3912 = vmatprep.subr.mxu0 0.0
    %3913 = vmatpush1.msra.mxu0 0.0
    %3914 = vmatprep.subr.mxu0 0.0
    %3915 = vmatpush1.msra.mxu0 0.0
    %3916 = vmatprep.subr.mxu0 0.0
    %3917 = vmatpush1.msra.mxu0 0.0
    %3918 = vmatprep.subr.mxu0 0.0
    %3919 = vmatpush1.msra.mxu0 0.0
    %3920 = vmatprep.subr.mxu0 0.0
    %3921 = vmatpush1.msra.mxu0 0.0
    %3922 = vmatprep.subr.mxu0 0.0
    %3923 = vmatpush1.msra.mxu0 0.0
    %3924 = vmatprep.subr.mxu0 0.0
    %3925 = vmatpush1.msra.mxu0 0.0
    %3926 = vmatprep.subr.mxu0 0.0
    %3927 = vmatpush1.msra.mxu0 0.0
    %3928 = vmatprep.subr.mxu0 0.0
    %3929 = vmatpush1.msra.mxu0 0.0
    %3930 = vmatprep.subr.mxu0 0.0
    %3931 = vmatpush1.msra.mxu0 0.0
    %3932 = vmatprep.subr.mxu0 0.0
    %3933 = vmatpush1.msra.mxu0 0.0
    %3934 = vmatprep.subr.mxu0 0.0
    %3935 = vmatpush1.msra.mxu0 0.0
    %3936 = vmatprep.mubr.f32.mxu0 0.0
    %3937 = vmatmul.mubr.f32.gmra.mrb[0].mxu0 %v3847
    %v3938 = vpop.f32.mrb[0].mxu0
    %v3939 = vadd.f32 %v3871, %v3938
    %v3940 = vpop.f32.mrb[0].mxu0
    %3941 = vmatprep.mubr.f32.mxu0 0.0
    %3942 = vmatmul.mubr.f32.gmra.mrb[0].mxu0 %v3848
    %v3943 = vpop.f32.mrb[0].mxu0
    %v3944 = vadd.f32 %v3871, %v3943
    %v3945 = vpop.f32.mrb[0].mxu0
    %3946 = vmatprep.mubr.f32.mxu0 0.0
    %3947 = vmatmul.mubr.f32.gmra.mrb[0].mxu0 %v3849
    %v3948 = vpop.f32.mrb[0].mxu0
    %v3949 = vadd.f32 %v3871, %v3948
    %v3950 = vpop.f32.mrb[0].mxu0
    %3951 = vmatprep.mubr.f32.mxu0 0.0
    %3952 = vmatmul.mubr.f32.gmra.mrb[0].mxu0 %v3850
    %v3953 = vpop.f32.mrb[0].mxu0
    %v3954 = vadd.f32 %v3871, %v3953
    %v3955 = vpop.f32.mrb[0].mxu0
    %3956 = vdwg.mxu0
    %v3957 = vmax.f32 %v3939, 0.0
    %v3958 = vmax.f32 %v3944, 0.0
    %v3959 = vmax.f32 %v3949, 0.0
    %v3960 = vmax.f32 %v3954, 0.0
    %v3961 = vld [vmem:[#allocation5 + $0x6a0] sm:$0xff]
    %v3962 = vld [vmem:[#allocation5 + $0x6a8] sm:$0xff]
    %v3963 = vld [vmem:[#allocation5 + $0x6b0] sm:$0xff]
    %v3964 = vld [vmem:[#allocation5 + $0x6b8] sm:$0xff]
    %v3965 = vld [vmem:[#allocation5 + $0x6c0] sm:$0xff]
    %v3966 = vld [vmem:[#allocation5 + $0x6c8] sm:$0xff]
    %v3967 = vld [vmem:[#allocation5 + $0x6d0] sm:$0xff]
    %v3968 = vld [vmem:[#allocation5 + $0x6d8] sm:$0xff]
    %v3969 = vld [vmem:[#allocation5 + $0x6e0] sm:$0xff]
    %v3970 = vld [vmem:[#allocation5 + $0x6e8] sm:$0xff]
    %v3971 = vld [vmem:[#allocation5 + $0x6f0] sm:$0xff]
    %v3972 = vld [vmem:[#allocation5 + $0x6f8] sm:$0xff]
    %v3973 = vld [vmem:[#allocation5 + $0x700] sm:$0xff]
    %v3974 = vld [vmem:[#allocation5 + $0x708] sm:$0xff]
    %v3975 = vld [vmem:[#allocation5 + $0x710] sm:$0xff]
    %v3976 = vld [vmem:[#allocation5 + $0x718] sm:$0xff]
    %v3977 = vld [vmem:[#allocation5 + $0xc32] sm:$0x1]
    %v3978 = vlaneseq
    %v3979 = vshrl.u32 %v3978, 7
    %v3980 = vsub.s32 0, %v3979
    %v3981 = vrot.slane %v3977, %v3980
    %3982 = vmatprep.subr.mxu0 0.0
    %3983 = vmatpush1.msra.mxu0 %v3961
    %3984 = vmatprep.subr.mxu0 0.0
    %3985 = vmatpush1.msra.mxu0 %v3962
    %3986 = vmatprep.subr.mxu0 0.0
    %3987 = vmatpush1.msra.mxu0 %v3963
    %3988 = vmatprep.subr.mxu0 0.0
    %3989 = vmatpush1.msra.mxu0 %v3964
    %3990 = vmatprep.subr.mxu0 0.0
    %3991 = vmatpush1.msra.mxu0 %v3965
    %3992 = vmatprep.subr.mxu0 0.0
    %3993 = vmatpush1.msra.mxu0 %v3966
    %3994 = vmatprep.subr.mxu0 0.0
    %3995 = vmatpush1.msra.mxu0 %v3967
    %3996 = vmatprep.subr.mxu0 0.0
    %3997 = vmatpush1.msra.mxu0 %v3968
    %3998 = vmatprep.subr.mxu0 0.0
    %3999 = vmatpush1.msra.mxu0 %v3969
    %4000 = vmatprep.subr.mxu0 0.0
    %4001 = vmatpush1.msra.mxu0 %v3970
    %4002 = vmatprep.subr.mxu0 0.0
    %4003 = vmatpush1.msra.mxu0 %v3971
    %4004 = vmatprep.subr.mxu0 0.0
    %4005 = vmatpush1.msra.mxu0 %v3972
    %4006 = vmatprep.subr.mxu0 0.0
    %4007 = vmatpush1.msra.mxu0 %v3973
    %4008 = vmatprep.subr.mxu0 0.0
    %4009 = vmatpush1.msra.mxu0 %v3974
    %4010 = vmatprep.subr.mxu0 0.0
    %4011 = vmatpush1.msra.mxu0 %v3975
    %4012 = vmatprep.subr.mxu0 0.0
    %4013 = vmatpush1.msra.mxu0 %v3976
    %4014 = vmatprep.subr.mxu0 0.0
    %4015 = vmatpush1.msra.mxu0 0.0
    %4016 = vmatprep.subr.mxu0 0.0
    %4017 = vmatpush1.msra.mxu0 0.0
    %4018 = vmatprep.subr.mxu0 0.0
    %4019 = vmatpush1.msra.mxu0 0.0
    %4020 = vmatprep.subr.mxu0 0.0
    %4021 = vmatpush1.msra.mxu0 0.0
    %4022 = vmatprep.subr.mxu0 0.0
    %4023 = vmatpush1.msra.mxu0 0.0
    %4024 = vmatprep.subr.mxu0 0.0
    %4025 = vmatpush1.msra.mxu0 0.0
    %4026 = vmatprep.subr.mxu0 0.0
    %4027 = vmatpush1.msra.mxu0 0.0
    %4028 = vmatprep.subr.mxu0 0.0
    %4029 = vmatpush1.msra.mxu0 0.0
    %4030 = vmatprep.subr.mxu0 0.0
    %4031 = vmatpush1.msra.mxu0 0.0
    %4032 = vmatprep.subr.mxu0 0.0
    %4033 = vmatpush1.msra.mxu0 0.0
    %4034 = vmatprep.subr.mxu0 0.0
    %4035 = vmatpush1.msra.mxu0 0.0
    %4036 = vmatprep.subr.mxu0 0.0
    %4037 = vmatpush1.msra.mxu0 0.0
    %4038 = vmatprep.subr.mxu0 0.0
    %4039 = vmatpush1.msra.mxu0 0.0
    %4040 = vmatprep.subr.mxu0 0.0
    %4041 = vmatpush1.msra.mxu0 0.0
    %4042 = vmatprep.subr.mxu0 0.0
    %4043 = vmatpush1.msra.mxu0 0.0
    %4044 = vmatprep.subr.mxu0 0.0
    %4045 = vmatpush1.msra.mxu0 0.0
    %4046 = vmatprep.mubr.f32.mxu0 0.0
    %4047 = vmatmul.mubr.f32.gmra.mrb[0].mxu0 %v3957
    %v4048 = vpop.f32.mrb[0].mxu0
    %v4049 = vadd.f32 %v3981, %v4048
    %v4050 = vpop.f32.mrb[0].mxu0
    %4051 = vmatprep.mubr.f32.mxu0 0.0
    %4052 = vmatmul.mubr.f32.gmra.mrb[0].mxu0 %v3958
    %v4053 = vpop.f32.mrb[0].mxu0
    %v4054 = vadd.f32 %v3981, %v4053
    %v4055 = vpop.f32.mrb[0].mxu0
    %4056 = vmatprep.mubr.f32.mxu0 0.0
    %4057 = vmatmul.mubr.f32.gmra.mrb[0].mxu0 %v3959
    %v4058 = vpop.f32.mrb[0].mxu0
    %v4059 = vadd.f32 %v3981, %v4058
    %v4060 = vpop.f32.mrb[0].mxu0
    %4061 = vmatprep.mubr.f32.mxu0 0.0
    %4062 = vmatmul.mubr.f32.gmra.mrb[0].mxu0 %v3960
    %v4063 = vpop.f32.mrb[0].mxu0
    %v4064 = vadd.f32 %v3981, %v4063
    %v4065 = vpop.f32.mrb[0].mxu0
    %4066 = vdwg.mxu0
    %4067 = vmatprep.subr.mxu0 0.0
    %4068 = vmatpush1.msra.mxu0 %v4049
    %4069 = vmatprep.subr.mxu0 0.0
    %4070 = vmatpush1.msra.mxu0 %v4054
    %4071 = vmatprep.subr.mxu0 0.0
    %4072 = vmatpush1.msra.mxu0 %v4059
    %4073 = vmatprep.subr.mxu0 0.0
    %4074 = vmatpush1.msra.mxu0 %v4064
    %4075 = vmatprep.subr.mxu0 0.0
    %4076 = vmatpush1.msra.mxu0 0.0
    %4077 = vmatprep.subr.mxu0 0.0
    %4078 = vmatpush1.msra.mxu0 0.0
    %4079 = vmatprep.subr.mxu0 0.0
    %4080 = vmatpush1.msra.mxu0 0.0
    %4081 = vmatprep.subr.mxu0 0.0
    %4082 = vmatpush1.msra.mxu0 0.0
    %4083 = vmatprep.subr.mxu0 0.0
    %4084 = vmatpush1.msra.mxu0 0.0
    %4085 = vmatprep.subr.mxu0 0.0
    %4086 = vmatpush1.msra.mxu0 0.0
    %4087 = vmatprep.subr.mxu0 0.0
    %4088 = vmatpush1.msra.mxu0 0.0
    %4089 = vmatprep.subr.mxu0 0.0
    %4090 = vmatpush1.msra.mxu0 0.0
    %4091 = vmatprep.subr.mxu0 0.0
    %4092 = vmatpush1.msra.mxu0 0.0
    %4093 = vmatprep.subr.mxu0 0.0
    %4094 = vmatpush1.msra.mxu0 0.0
    %4095 = vmatprep.subr.mxu0 0.0
    %4096 = vmatpush1.msra.mxu0 0.0
    %4097 = vmatprep.subr.mxu0 0.0
    %4098 = vmatpush1.msra.mxu0 0.0
    %4099 = vmatprep.subr.mxu0 0.0
    %4100 = vmatpush1.msra.mxu0 0.0
    %4101 = vmatprep.subr.mxu0 0.0
    %4102 = vmatpush1.msra.mxu0 0.0
    %4103 = vmatprep.subr.mxu0 0.0
    %4104 = vmatpush1.msra.mxu0 0.0
    %4105 = vmatprep.subr.mxu0 0.0
    %4106 = vmatpush1.msra.mxu0 0.0
    %4107 = vmatprep.subr.mxu0 0.0
    %4108 = vmatpush1.msra.mxu0 0.0
    %4109 = vmatprep.subr.mxu0 0.0
    %4110 = vmatpush1.msra.mxu0 0.0
    %4111 = vmatprep.subr.mxu0 0.0
    %4112 = vmatpush1.msra.mxu0 0.0
    %4113 = vmatprep.subr.mxu0 0.0
    %4114 = vmatpush1.msra.mxu0 0.0
    %4115 = vmatprep.subr.mxu0 0.0
    %4116 = vmatpush1.msra.mxu0 0.0
    %4117 = vmatprep.subr.mxu0 0.0
    %4118 = vmatpush1.msra.mxu0 0.0
    %4119 = vmatprep.subr.mxu0 0.0
    %4120 = vmatpush1.msra.mxu0 0.0
    %4121 = vmatprep.subr.mxu0 0.0
    %4122 = vmatpush1.msra.mxu0 0.0
    %4123 = vmatprep.subr.mxu0 0.0
    %4124 = vmatpush1.msra.mxu0 0.0
    %4125 = vmatprep.subr.mxu0 0.0
    %4126 = vmatpush1.msra.mxu0 0.0
    %4127 = vmatprep.subr.mxu0 0.0
    %4128 = vmatpush1.msra.mxu0 0.0
    %4129 = vmatprep.subr.mxu0 0.0
    %4130 = vmatpush1.msra.mxu0 0.0
    %4131 = vmatprep.mubr.f32.mxu0 0.0
    %4132 = vmatmul.mubr.f32.gmra.mrb[0].mxu0 %v479
    %v4133 = vpop.f32.mrb[0].mxu0
    %v4134 = vadd.f32 0.0, %v4133
    %v4135 = vpop.f32.mrb[0].mxu0
    %4136 = vmatprep.mubr.f32.mxu0 0.0
    %4137 = vmatmul.mubr.f32.gmra.mrb[0].mxu0 %v482
    %v4138 = vpop.f32.mrb[0].mxu0
    %v4139 = vadd.f32 0.0, %v4138
    %v4140 = vpop.f32.mrb[0].mxu0
    %4141 = vmatprep.mubr.f32.mxu0 0.0
    %4142 = vmatmul.mubr.f32.gmra.mrb[0].mxu0 %v485
    %v4143 = vpop.f32.mrb[0].mxu0
    %v4144 = vadd.f32 0.0, %v4143
    %v4145 = vpop.f32.mrb[0].mxu0
    %4146 = vmatprep.mubr.f32.mxu0 0.0
    %4147 = vmatmul.mubr.f32.gmra.mrb[0].mxu0 %v488
    %v4148 = vpop.f32.mrb[0].mxu0
    %v4149 = vadd.f32 0.0, %v4148
    %v4150 = vpop.f32.mrb[0].mxu0
    %4151 = vmatprep.mubr.f32.mxu0 0.0
    %4152 = vmatmul.mubr.f32.gmra.mrb[0].mxu0 %v491
    %v4153 = vpop.f32.mrb[0].mxu0
    %v4154 = vadd.f32 0.0, %v4153
    %v4155 = vpop.f32.mrb[0].mxu0
    %4156 = vmatprep.mubr.f32.mxu0 0.0
    %4157 = vmatmul.mubr.f32.gmra.mrb[0].mxu0 %v494
    %v4158 = vpop.f32.mrb[0].mxu0
    %v4159 = vadd.f32 0.0, %v4158
    %v4160 = vpop.f32.mrb[0].mxu0
    %4161 = vmatprep.mubr.f32.mxu0 0.0
    %4162 = vmatmul.mubr.f32.gmra.mrb[0].mxu0 %v497
    %v4163 = vpop.f32.mrb[0].mxu0
    %v4164 = vadd.f32 0.0, %v4163
    %v4165 = vpop.f32.mrb[0].mxu0
    %4166 = vmatprep.mubr.f32.mxu0 0.0
    %4167 = vmatmul.mubr.f32.gmra.mrb[0].mxu0 %v500
    %v4168 = vpop.f32.mrb[0].mxu0
    %v4169 = vadd.f32 0.0, %v4168
    %v4170 = vpop.f32.mrb[0].mxu0
    %4171 = vmatprep.mubr.f32.mxu0 0.0
    %4172 = vmatmul.mubr.f32.gmra.mrb[0].mxu0 %v503
    %v4173 = vpop.f32.mrb[0].mxu0
    %v4174 = vadd.f32 0.0, %v4173
    %v4175 = vpop.f32.mrb[0].mxu0
    %4176 = vmatprep.mubr.f32.mxu0 0.0
    %4177 = vmatmul.mubr.f32.gmra.mrb[0].mxu0 %v506
    %v4178 = vpop.f32.mrb[0].mxu0
    %v4179 = vadd.f32 0.0, %v4178
    %v4180 = vpop.f32.mrb[0].mxu0
    %4181 = vmatprep.mubr.f32.mxu0 0.0
    %4182 = vmatmul.mubr.f32.gmra.mrb[0].mxu0 %v509
    %v4183 = vpop.f32.mrb[0].mxu0
    %v4184 = vadd.f32 0.0, %v4183
    %v4185 = vpop.f32.mrb[0].mxu0
    %4186 = vmatprep.mubr.f32.mxu0 0.0
    %4187 = vmatmul.mubr.f32.gmra.mrb[0].mxu0 %v512
    %v4188 = vpop.f32.mrb[0].mxu0
    %v4189 = vadd.f32 0.0, %v4188
    %v4190 = vpop.f32.mrb[0].mxu0
    %4191 = vmatprep.mubr.f32.mxu0 0.0
    %4192 = vmatmul.mubr.f32.gmra.mrb[0].mxu0 %v515
    %v4193 = vpop.f32.mrb[0].mxu0
    %v4194 = vadd.f32 0.0, %v4193
    %v4195 = vpop.f32.mrb[0].mxu0
    %4196 = vmatprep.mubr.f32.mxu0 0.0
    %4197 = vmatmul.mubr.f32.gmra.mrb[0].mxu0 %v518
    %v4198 = vpop.f32.mrb[0].mxu0
    %v4199 = vadd.f32 0.0, %v4198
    %v4200 = vpop.f32.mrb[0].mxu0
    %4201 = vmatprep.mubr.f32.mxu0 0.0
    %4202 = vmatmul.mubr.f32.gmra.mrb[0].mxu0 %v521
    %v4203 = vpop.f32.mrb[0].mxu0
    %v4204 = vadd.f32 0.0, %v4203
    %v4205 = vpop.f32.mrb[0].mxu0
    %4206 = vmatprep.mubr.f32.mxu0 0.0
    %4207 = vmatmul.mubr.f32.gmra.mrb[0].mxu0 %v524
    %v4208 = vpop.f32.mrb[0].mxu0
    %v4209 = vadd.f32 0.0, %v4208
    %v4210 = vpop.f32.mrb[0].mxu0
    %4211 = vdwg.mxu0
    %4212 = vmatprep.subr.mxu0 0.0
    %4213 = vmatpush1.msra.mxu0 %v4049
    %4214 = vmatprep.subr.mxu0 0.0
    %4215 = vmatpush1.msra.mxu0 %v4054
    %4216 = vmatprep.subr.mxu0 0.0
    %4217 = vmatpush1.msra.mxu0 %v4059
    %4218 = vmatprep.subr.mxu0 0.0
    %4219 = vmatpush1.msra.mxu0 %v4064
    %4220 = vmatprep.subr.mxu0 0.0
    %4221 = vmatpush1.msra.mxu0 0.0
    %4222 = vmatprep.subr.mxu0 0.0
    %4223 = vmatpush1.msra.mxu0 0.0
    %4224 = vmatprep.subr.mxu0 0.0
    %4225 = vmatpush1.msra.mxu0 0.0
    %4226 = vmatprep.subr.mxu0 0.0
    %4227 = vmatpush1.msra.mxu0 0.0
    %4228 = vmatprep.subr.mxu0 0.0
    %4229 = vmatpush1.msra.mxu0 0.0
    %4230 = vmatprep.subr.mxu0 0.0
    %4231 = vmatpush1.msra.mxu0 0.0
    %4232 = vmatprep.subr.mxu0 0.0
    %4233 = vmatpush1.msra.mxu0 0.0
    %4234 = vmatprep.subr.mxu0 0.0
    %4235 = vmatpush1.msra.mxu0 0.0
    %4236 = vmatprep.subr.mxu0 0.0
    %4237 = vmatpush1.msra.mxu0 0.0
    %4238 = vmatprep.subr.mxu0 0.0
    %4239 = vmatpush1.msra.mxu0 0.0
    %4240 = vmatprep.subr.mxu0 0.0
    %4241 = vmatpush1.msra.mxu0 0.0
    %4242 = vmatprep.subr.mxu0 0.0
    %4243 = vmatpush1.msra.mxu0 0.0
    %4244 = vmatprep.subr.mxu0 0.0
    %4245 = vmatpush1.msra.mxu0 0.0
    %4246 = vmatprep.subr.mxu0 0.0
    %4247 = vmatpush1.msra.mxu0 0.0
    %4248 = vmatprep.subr.mxu0 0.0
    %4249 = vmatpush1.msra.mxu0 0.0
    %4250 = vmatprep.subr.mxu0 0.0
    %4251 = vmatpush1.msra.mxu0 0.0
    %4252 = vmatprep.subr.mxu0 0.0
    %4253 = vmatpush1.msra.mxu0 0.0
    %4254 = vmatprep.subr.mxu0 0.0
    %4255 = vmatpush1.msra.mxu0 0.0
    %4256 = vmatprep.subr.mxu0 0.0
    %4257 = vmatpush1.msra.mxu0 0.0
    %4258 = vmatprep.subr.mxu0 0.0
    %4259 = vmatpush1.msra.mxu0 0.0
    %4260 = vmatprep.subr.mxu0 0.0
    %4261 = vmatpush1.msra.mxu0 0.0
    %4262 = vmatprep.subr.mxu0 0.0
    %4263 = vmatpush1.msra.mxu0 0.0
    %4264 = vmatprep.subr.mxu0 0.0
    %4265 = vmatpush1.msra.mxu0 0.0
    %4266 = vmatprep.subr.mxu0 0.0
    %4267 = vmatpush1.msra.mxu0 0.0
    %4268 = vmatprep.subr.mxu0 0.0
    %4269 = vmatpush1.msra.mxu0 0.0
    %4270 = vmatprep.subr.mxu0 0.0
    %4271 = vmatpush1.msra.mxu0 0.0
    %4272 = vmatprep.subr.mxu0 0.0
    %4273 = vmatpush1.msra.mxu0 0.0
    %4274 = vmatprep.subr.mxu0 0.0
    %4275 = vmatpush1.msra.mxu0 0.0
    %4276 = vmatprep.mubr.f32.mxu0 0.0
    %4277 = vmatmul.mubr.f32.gmra.mrb[0].mxu0 %v672
    %v4278 = vpop.f32.mrb[0].mxu0
    %v4279 = vadd.f32 0.0, %v4278
    %v4280 = vpop.f32.mrb[0].mxu0
    %4281 = vmatprep.mubr.f32.mxu0 0.0
    %4282 = vmatmul.mubr.f32.gmra.mrb[0].mxu0 %v675
    %v4283 = vpop.f32.mrb[0].mxu0
    %v4284 = vadd.f32 0.0, %v4283
    %v4285 = vpop.f32.mrb[0].mxu0
    %4286 = vmatprep.mubr.f32.mxu0 0.0
    %4287 = vmatmul.mubr.f32.gmra.mrb[0].mxu0 %v678
    %v4288 = vpop.f32.mrb[0].mxu0
    %v4289 = vadd.f32 0.0, %v4288
    %v4290 = vpop.f32.mrb[0].mxu0
    %4291 = vmatprep.mubr.f32.mxu0 0.0
    %4292 = vmatmul.mubr.f32.gmra.mrb[0].mxu0 %v681
    %v4293 = vpop.f32.mrb[0].mxu0
    %v4294 = vadd.f32 0.0, %v4293
    %v4295 = vpop.f32.mrb[0].mxu0
    %4296 = vmatprep.mubr.f32.mxu0 0.0
    %4297 = vmatmul.mubr.f32.gmra.mrb[0].mxu0 %v684
    %v4298 = vpop.f32.mrb[0].mxu0
    %v4299 = vadd.f32 0.0, %v4298
    %v4300 = vpop.f32.mrb[0].mxu0
    %4301 = vmatprep.mubr.f32.mxu0 0.0
    %4302 = vmatmul.mubr.f32.gmra.mrb[0].mxu0 %v687
    %v4303 = vpop.f32.mrb[0].mxu0
    %v4304 = vadd.f32 0.0, %v4303
    %v4305 = vpop.f32.mrb[0].mxu0
    %4306 = vmatprep.mubr.f32.mxu0 0.0
    %4307 = vmatmul.mubr.f32.gmra.mrb[0].mxu0 %v690
    %v4308 = vpop.f32.mrb[0].mxu0
    %v4309 = vadd.f32 0.0, %v4308
    %v4310 = vpop.f32.mrb[0].mxu0
    %4311 = vmatprep.mubr.f32.mxu0 0.0
    %4312 = vmatmul.mubr.f32.gmra.mrb[0].mxu0 %v693
    %v4313 = vpop.f32.mrb[0].mxu0
    %v4314 = vadd.f32 0.0, %v4313
    %v4315 = vpop.f32.mrb[0].mxu0
    %4316 = vmatprep.mubr.f32.mxu0 0.0
    %4317 = vmatmul.mubr.f32.gmra.mrb[0].mxu0 %v696
    %v4318 = vpop.f32.mrb[0].mxu0
    %v4319 = vadd.f32 0.0, %v4318
    %v4320 = vpop.f32.mrb[0].mxu0
    %4321 = vmatprep.mubr.f32.mxu0 0.0
    %4322 = vmatmul.mubr.f32.gmra.mrb[0].mxu0 %v699
    %v4323 = vpop.f32.mrb[0].mxu0
    %v4324 = vadd.f32 0.0, %v4323
    %v4325 = vpop.f32.mrb[0].mxu0
    %4326 = vmatprep.mubr.f32.mxu0 0.0
    %4327 = vmatmul.mubr.f32.gmra.mrb[0].mxu0 %v702
    %v4328 = vpop.f32.mrb[0].mxu0
    %v4329 = vadd.f32 0.0, %v4328
    %v4330 = vpop.f32.mrb[0].mxu0
    %4331 = vmatprep.mubr.f32.mxu0 0.0
    %4332 = vmatmul.mubr.f32.gmra.mrb[0].mxu0 %v705
    %v4333 = vpop.f32.mrb[0].mxu0
    %v4334 = vadd.f32 0.0, %v4333
    %v4335 = vpop.f32.mrb[0].mxu0
    %4336 = vmatprep.mubr.f32.mxu0 0.0
    %4337 = vmatmul.mubr.f32.gmra.mrb[0].mxu0 %v708
    %v4338 = vpop.f32.mrb[0].mxu0
    %v4339 = vadd.f32 0.0, %v4338
    %v4340 = vpop.f32.mrb[0].mxu0
    %4341 = vmatprep.mubr.f32.mxu0 0.0
    %4342 = vmatmul.mubr.f32.gmra.mrb[0].mxu0 %v711
    %v4343 = vpop.f32.mrb[0].mxu0
    %v4344 = vadd.f32 0.0, %v4343
    %v4345 = vpop.f32.mrb[0].mxu0
    %4346 = vmatprep.mubr.f32.mxu0 0.0
    %4347 = vmatmul.mubr.f32.gmra.mrb[0].mxu0 %v714
    %v4348 = vpop.f32.mrb[0].mxu0
    %v4349 = vadd.f32 0.0, %v4348
    %v4350 = vpop.f32.mrb[0].mxu0
    %4351 = vmatprep.mubr.f32.mxu0 0.0
    %4352 = vmatmul.mubr.f32.gmra.mrb[0].mxu0 %v717
    %v4353 = vpop.f32.mrb[0].mxu0
    %v4354 = vadd.f32 0.0, %v4353
    %v4355 = vpop.f32.mrb[0].mxu0
    %4356 = vdwg.mxu0
    %v4357 = vld [vmem:[#allocation5 + $0x720] sm:$0xff]
    %v4358 = vld [vmem:[#allocation5 + $0x728] sm:$0xff]
    %v4359 = vld [vmem:[#allocation5 + $0x730] sm:$0xff]
    %v4360 = vld [vmem:[#allocation5 + $0x738] sm:$0xff]
    %v4361 = vld [vmem:[#allocation5 + $0x740] sm:$0xff]
    %v4362 = vld [vmem:[#allocation5 + $0x748] sm:$0xff]
    %v4363 = vld [vmem:[#allocation5 + $0x750] sm:$0xff]
    %v4364 = vld [vmem:[#allocation5 + $0x758] sm:$0xff]
    %v4365 = vld [vmem:[#allocation5 + $0x760] sm:$0xff]
    %v4366 = vld [vmem:[#allocation5 + $0x768] sm:$0xff]
    %v4367 = vld [vmem:[#allocation5 + $0x770] sm:$0xff]
    %v4368 = vld [vmem:[#allocation5 + $0x778] sm:$0xff]
    %v4369 = vld [vmem:[#allocation5 + $0x780] sm:$0xff]
    %v4370 = vld [vmem:[#allocation5 + $0x788] sm:$0xff]
    %v4371 = vld [vmem:[#allocation5 + $0x790] sm:$0xff]
    %v4372 = vld [vmem:[#allocation5 + $0x798] sm:$0xff]
    %v4373 = vld [vmem:[#allocation5 + $0x7a0] sm:$0xff]
    %v4374 = vld [vmem:[#allocation5 + $0x7a8] sm:$0xff]
    %v4375 = vld [vmem:[#allocation5 + $0x7b0] sm:$0xff]
    %v4376 = vld [vmem:[#allocation5 + $0x7b8] sm:$0xff]
    %v4377 = vld [vmem:[#allocation5 + $0x7c0] sm:$0xff]
    %v4378 = vld [vmem:[#allocation5 + $0x7c8] sm:$0xff]
    %v4379 = vld [vmem:[#allocation5 + $0x7d0] sm:$0xff]
    %v4380 = vld [vmem:[#allocation5 + $0x7d8] sm:$0xff]
    %v4381 = vld [vmem:[#allocation5 + $0x7e0] sm:$0xff]
    %v4382 = vld [vmem:[#allocation5 + $0x7e8] sm:$0xff]
    %v4383 = vld [vmem:[#allocation5 + $0x7f0] sm:$0xff]
    %v4384 = vld [vmem:[#allocation5 + $0x7f8] sm:$0xff]
    %v4385 = vld [vmem:[#allocation5 + $0x800] sm:$0xff]
    %v4386 = vld [vmem:[#allocation5 + $0x808] sm:$0xff]
    %v4387 = vld [vmem:[#allocation5 + $0x810] sm:$0xff]
    %v4388 = vld [vmem:[#allocation5 + $0x818] sm:$0xff]
    %4389 = vmatprep.subr.mxu0 0.0
    %4390 = vmatpush1.msra.mxu0 %v4373
    %4391 = vmatprep.subr.mxu0 0.0
    %4392 = vmatpush1.msra.mxu0 %v4374
    %4393 = vmatprep.subr.mxu0 0.0
    %4394 = vmatpush1.msra.mxu0 %v4375
    %4395 = vmatprep.subr.mxu0 0.0
    %4396 = vmatpush1.msra.mxu0 %v4376
    %4397 = vmatprep.subr.mxu0 0.0
    %4398 = vmatpush1.msra.mxu0 %v4377
    %4399 = vmatprep.subr.mxu0 0.0
    %4400 = vmatpush1.msra.mxu0 %v4378
    %4401 = vmatprep.subr.mxu0 0.0
    %4402 = vmatpush1.msra.mxu0 %v4379
    %4403 = vmatprep.subr.mxu0 0.0
    %4404 = vmatpush1.msra.mxu0 %v4380
    %4405 = vmatprep.subr.mxu0 0.0
    %4406 = vmatpush1.msra.mxu0 %v4381
    %4407 = vmatprep.subr.mxu0 0.0
    %4408 = vmatpush1.msra.mxu0 %v4382
    %4409 = vmatprep.subr.mxu0 0.0
    %4410 = vmatpush1.msra.mxu0 %v4383
    %4411 = vmatprep.subr.mxu0 0.0
    %4412 = vmatpush1.msra.mxu0 %v4384
    %4413 = vmatprep.subr.mxu0 0.0
    %4414 = vmatpush1.msra.mxu0 %v4385
    %4415 = vmatprep.subr.mxu0 0.0
    %4416 = vmatpush1.msra.mxu0 %v4386
    %4417 = vmatprep.subr.mxu0 0.0
    %4418 = vmatpush1.msra.mxu0 %v4387
    %4419 = vmatprep.subr.mxu0 0.0
    %4420 = vmatpush1.msra.mxu0 %v4388
    %4421 = vmatprep.subr.mxu0 0.0
    %4422 = vmatpush1.msra.mxu0 0.0
    %4423 = vmatprep.subr.mxu0 0.0
    %4424 = vmatpush1.msra.mxu0 0.0
    %4425 = vmatprep.subr.mxu0 0.0
    %4426 = vmatpush1.msra.mxu0 0.0
    %4427 = vmatprep.subr.mxu0 0.0
    %4428 = vmatpush1.msra.mxu0 0.0
    %4429 = vmatprep.subr.mxu0 0.0
    %4430 = vmatpush1.msra.mxu0 0.0
    %4431 = vmatprep.subr.mxu0 0.0
    %4432 = vmatpush1.msra.mxu0 0.0
    %4433 = vmatprep.subr.mxu0 0.0
    %4434 = vmatpush1.msra.mxu0 0.0
    %4435 = vmatprep.subr.mxu0 0.0
    %4436 = vmatpush1.msra.mxu0 0.0
    %4437 = vmatprep.subr.mxu0 0.0
    %4438 = vmatpush1.msra.mxu0 0.0
    %4439 = vmatprep.subr.mxu0 0.0
    %4440 = vmatpush1.msra.mxu0 0.0
    %4441 = vmatprep.subr.mxu0 0.0
    %4442 = vmatpush1.msra.mxu0 0.0
    %4443 = vmatprep.subr.mxu0 0.0
    %4444 = vmatpush1.msra.mxu0 0.0
    %4445 = vmatprep.subr.mxu0 0.0
    %4446 = vmatpush1.msra.mxu0 0.0
    %4447 = vmatprep.subr.mxu0 0.0
    %4448 = vmatpush1.msra.mxu0 0.0
    %4449 = vmatprep.subr.mxu0 0.0
    %4450 = vmatpush1.msra.mxu0 0.0
    %4451 = vmatprep.subr.mxu0 0.0
    %4452 = vmatpush1.msra.mxu0 0.0
    %4453 = vmatprep.mubr.f32.mxu0 0.0
    %4454 = vmatmul.mubr.f32.gmra.mrb[0].mxu0 %v4279
    %v4455 = vpop.f32.mrb[0].mxu0
    %v4456 = vadd.f32 0.0, %v4455
    %v4457 = vpop.f32.mrb[0].mxu0
    %4458 = vmatprep.mubr.f32.mxu0 0.0
    %4459 = vmatmul.mubr.f32.gmra.mrb[0].mxu0 %v4284
    %v4460 = vpop.f32.mrb[0].mxu0
    %v4461 = vadd.f32 0.0, %v4460
    %v4462 = vpop.f32.mrb[0].mxu0
    %4463 = vmatprep.mubr.f32.mxu0 0.0
    %4464 = vmatmul.mubr.f32.gmra.mrb[0].mxu0 %v4289
    %v4465 = vpop.f32.mrb[0].mxu0
    %v4466 = vadd.f32 0.0, %v4465
    %v4467 = vpop.f32.mrb[0].mxu0
    %4468 = vmatprep.mubr.f32.mxu0 0.0
    %4469 = vmatmul.mubr.f32.gmra.mrb[0].mxu0 %v4294
    %v4470 = vpop.f32.mrb[0].mxu0
    %v4471 = vadd.f32 0.0, %v4470
    %v4472 = vpop.f32.mrb[0].mxu0
    %4473 = vmatprep.mubr.f32.mxu0 0.0
    %4474 = vmatmul.mubr.f32.gmra.mrb[0].mxu0 %v4299
    %v4475 = vpop.f32.mrb[0].mxu0
    %v4476 = vadd.f32 0.0, %v4475
    %v4477 = vpop.f32.mrb[0].mxu0
    %4478 = vmatprep.mubr.f32.mxu0 0.0
    %4479 = vmatmul.mubr.f32.gmra.mrb[0].mxu0 %v4304
    %v4480 = vpop.f32.mrb[0].mxu0
    %v4481 = vadd.f32 0.0, %v4480
    %v4482 = vpop.f32.mrb[0].mxu0
    %4483 = vmatprep.mubr.f32.mxu0 0.0
    %4484 = vmatmul.mubr.f32.gmra.mrb[0].mxu0 %v4309
    %v4485 = vpop.f32.mrb[0].mxu0
    %v4486 = vadd.f32 0.0, %v4485
    %v4487 = vpop.f32.mrb[0].mxu0
    %4488 = vmatprep.mubr.f32.mxu0 0.0
    %4489 = vmatmul.mubr.f32.gmra.mrb[0].mxu0 %v4314
    %v4490 = vpop.f32.mrb[0].mxu0
    %v4491 = vadd.f32 0.0, %v4490
    %v4492 = vpop.f32.mrb[0].mxu0
    %4493 = vmatprep.mubr.f32.mxu0 0.0
    %4494 = vmatmul.mubr.f32.gmra.mrb[0].mxu0 %v4319
    %v4495 = vpop.f32.mrb[0].mxu0
    %v4496 = vadd.f32 0.0, %v4495
    %v4497 = vpop.f32.mrb[0].mxu0
    %4498 = vmatprep.mubr.f32.mxu0 0.0
    %4499 = vmatmul.mubr.f32.gmra.mrb[0].mxu0 %v4324
    %v4500 = vpop.f32.mrb[0].mxu0
    %v4501 = vadd.f32 0.0, %v4500
    %v4502 = vpop.f32.mrb[0].mxu0
    %4503 = vmatprep.mubr.f32.mxu0 0.0
    %4504 = vmatmul.mubr.f32.gmra.mrb[0].mxu0 %v4329
    %v4505 = vpop.f32.mrb[0].mxu0
    %v4506 = vadd.f32 0.0, %v4505
    %v4507 = vpop.f32.mrb[0].mxu0
    %4508 = vmatprep.mubr.f32.mxu0 0.0
    %4509 = vmatmul.mubr.f32.gmra.mrb[0].mxu0 %v4334
    %v4510 = vpop.f32.mrb[0].mxu0
    %v4511 = vadd.f32 0.0, %v4510
    %v4512 = vpop.f32.mrb[0].mxu0
    %4513 = vmatprep.mubr.f32.mxu0 0.0
    %4514 = vmatmul.mubr.f32.gmra.mrb[0].mxu0 %v4339
    %v4515 = vpop.f32.mrb[0].mxu0
    %v4516 = vadd.f32 0.0, %v4515
    %v4517 = vpop.f32.mrb[0].mxu0
    %4518 = vmatprep.mubr.f32.mxu0 0.0
    %4519 = vmatmul.mubr.f32.gmra.mrb[0].mxu0 %v4344
    %v4520 = vpop.f32.mrb[0].mxu0
    %v4521 = vadd.f32 0.0, %v4520
    %v4522 = vpop.f32.mrb[0].mxu0
    %4523 = vmatprep.mubr.f32.mxu0 0.0
    %4524 = vmatmul.mubr.f32.gmra.mrb[0].mxu0 %v4349
    %v4525 = vpop.f32.mrb[0].mxu0
    %v4526 = vadd.f32 0.0, %v4525
    %v4527 = vpop.f32.mrb[0].mxu0
    %4528 = vmatprep.mubr.f32.mxu0 0.0
    %4529 = vmatmul.mubr.f32.gmra.mrb[0].mxu0 %v4354
    %v4530 = vpop.f32.mrb[0].mxu0
    %v4531 = vadd.f32 0.0, %v4530
    %v4532 = vpop.f32.mrb[0].mxu0
    %4533 = vdwg.mxu0
    %4534 = vmatprep.subr.mxu0 0.0
    %4535 = vmatpush1.msra.mxu0 %v4357
    %4536 = vmatprep.subr.mxu0 0.0
    %4537 = vmatpush1.msra.mxu0 %v4358
    %4538 = vmatprep.subr.mxu0 0.0
    %4539 = vmatpush1.msra.mxu0 %v4359
    %4540 = vmatprep.subr.mxu0 0.0
    %4541 = vmatpush1.msra.mxu0 %v4360
    %4542 = vmatprep.subr.mxu0 0.0
    %4543 = vmatpush1.msra.mxu0 %v4361
    %4544 = vmatprep.subr.mxu0 0.0
    %4545 = vmatpush1.msra.mxu0 %v4362
    %4546 = vmatprep.subr.mxu0 0.0
    %4547 = vmatpush1.msra.mxu0 %v4363
    %4548 = vmatprep.subr.mxu0 0.0
    %4549 = vmatpush1.msra.mxu0 %v4364
    %4550 = vmatprep.subr.mxu0 0.0
    %4551 = vmatpush1.msra.mxu0 %v4365
    %4552 = vmatprep.subr.mxu0 0.0
    %4553 = vmatpush1.msra.mxu0 %v4366
    %4554 = vmatprep.subr.mxu0 0.0
    %4555 = vmatpush1.msra.mxu0 %v4367
    %4556 = vmatprep.subr.mxu0 0.0
    %4557 = vmatpush1.msra.mxu0 %v4368
    %4558 = vmatprep.subr.mxu0 0.0
    %4559 = vmatpush1.msra.mxu0 %v4369
    %4560 = vmatprep.subr.mxu0 0.0
    %4561 = vmatpush1.msra.mxu0 %v4370
    %4562 = vmatprep.subr.mxu0 0.0
    %4563 = vmatpush1.msra.mxu0 %v4371
    %4564 = vmatprep.subr.mxu0 0.0
    %4565 = vmatpush1.msra.mxu0 %v4372
    %4566 = vmatprep.subr.mxu0 0.0
    %4567 = vmatpush1.msra.mxu0 0.0
    %4568 = vmatprep.subr.mxu0 0.0
    %4569 = vmatpush1.msra.mxu0 0.0
    %4570 = vmatprep.subr.mxu0 0.0
    %4571 = vmatpush1.msra.mxu0 0.0
    %4572 = vmatprep.subr.mxu0 0.0
    %4573 = vmatpush1.msra.mxu0 0.0
    %4574 = vmatprep.subr.mxu0 0.0
    %4575 = vmatpush1.msra.mxu0 0.0
    %4576 = vmatprep.subr.mxu0 0.0
    %4577 = vmatpush1.msra.mxu0 0.0
    %4578 = vmatprep.subr.mxu0 0.0
    %4579 = vmatpush1.msra.mxu0 0.0
    %4580 = vmatprep.subr.mxu0 0.0
    %4581 = vmatpush1.msra.mxu0 0.0
    %4582 = vmatprep.subr.mxu0 0.0
    %4583 = vmatpush1.msra.mxu0 0.0
    %4584 = vmatprep.subr.mxu0 0.0
    %4585 = vmatpush1.msra.mxu0 0.0
    %4586 = vmatprep.subr.mxu0 0.0
    %4587 = vmatpush1.msra.mxu0 0.0
    %4588 = vmatprep.subr.mxu0 0.0
    %4589 = vmatpush1.msra.mxu0 0.0
    %4590 = vmatprep.subr.mxu0 0.0
    %4591 = vmatpush1.msra.mxu0 0.0
    %4592 = vmatprep.subr.mxu0 0.0
    %4593 = vmatpush1.msra.mxu0 0.0
    %4594 = vmatprep.subr.mxu0 0.0
    %4595 = vmatpush1.msra.mxu0 0.0
    %4596 = vmatprep.subr.mxu0 0.0
    %4597 = vmatpush1.msra.mxu0 0.0
    %4598 = vmatprep.mubr.f32.mxu0 0.0
    %4599 = vmatmul.mubr.f32.gmra.mrb[0].mxu0 %v4134
    %v4600 = vpop.f32.mrb[0].mxu0
    %v4601 = vadd.f32 %v4456, %v4600
    %v4602 = vpop.f32.mrb[0].mxu0
    %4603 = vmatprep.mubr.f32.mxu0 0.0
    %4604 = vmatmul.mubr.f32.gmra.mrb[0].mxu0 %v4139
    %v4605 = vpop.f32.mrb[0].mxu0
    %v4606 = vadd.f32 %v4461, %v4605
    %v4607 = vpop.f32.mrb[0].mxu0
    %4608 = vmatprep.mubr.f32.mxu0 0.0
    %4609 = vmatmul.mubr.f32.gmra.mrb[0].mxu0 %v4144
    %v4610 = vpop.f32.mrb[0].mxu0
    %v4611 = vadd.f32 %v4466, %v4610
    %v4612 = vpop.f32.mrb[0].mxu0
    %4613 = vmatprep.mubr.f32.mxu0 0.0
    %4614 = vmatmul.mubr.f32.gmra.mrb[0].mxu0 %v4149
    %v4615 = vpop.f32.mrb[0].mxu0
    %v4616 = vadd.f32 %v4471, %v4615
    %v4617 = vpop.f32.mrb[0].mxu0
    %4618 = vmatprep.mubr.f32.mxu0 0.0
    %4619 = vmatmul.mubr.f32.gmra.mrb[0].mxu0 %v4154
    %v4620 = vpop.f32.mrb[0].mxu0
    %v4621 = vadd.f32 %v4476, %v4620
    %v4622 = vpop.f32.mrb[0].mxu0
    %4623 = vmatprep.mubr.f32.mxu0 0.0
    %4624 = vmatmul.mubr.f32.gmra.mrb[0].mxu0 %v4159
    %v4625 = vpop.f32.mrb[0].mxu0
    %v4626 = vadd.f32 %v4481, %v4625
    %v4627 = vpop.f32.mrb[0].mxu0
    %4628 = vmatprep.mubr.f32.mxu0 0.0
    %4629 = vmatmul.mubr.f32.gmra.mrb[0].mxu0 %v4164
    %v4630 = vpop.f32.mrb[0].mxu0
    %v4631 = vadd.f32 %v4486, %v4630
    %v4632 = vpop.f32.mrb[0].mxu0
    %4633 = vmatprep.mubr.f32.mxu0 0.0
    %4634 = vmatmul.mubr.f32.gmra.mrb[0].mxu0 %v4169
    %v4635 = vpop.f32.mrb[0].mxu0
    %v4636 = vadd.f32 %v4491, %v4635
    %v4637 = vpop.f32.mrb[0].mxu0
    %4638 = vmatprep.mubr.f32.mxu0 0.0
    %4639 = vmatmul.mubr.f32.gmra.mrb[0].mxu0 %v4174
    %v4640 = vpop.f32.mrb[0].mxu0
    %v4641 = vadd.f32 %v4496, %v4640
    %v4642 = vpop.f32.mrb[0].mxu0
    %4643 = vmatprep.mubr.f32.mxu0 0.0
    %4644 = vmatmul.mubr.f32.gmra.mrb[0].mxu0 %v4179
    %v4645 = vpop.f32.mrb[0].mxu0
    %v4646 = vadd.f32 %v4501, %v4645
    %v4647 = vpop.f32.mrb[0].mxu0
    %4648 = vmatprep.mubr.f32.mxu0 0.0
    %4649 = vmatmul.mubr.f32.gmra.mrb[0].mxu0 %v4184
    %v4650 = vpop.f32.mrb[0].mxu0
    %v4651 = vadd.f32 %v4506, %v4650
    %v4652 = vpop.f32.mrb[0].mxu0
    %4653 = vmatprep.mubr.f32.mxu0 0.0
    %4654 = vmatmul.mubr.f32.gmra.mrb[0].mxu0 %v4189
    %v4655 = vpop.f32.mrb[0].mxu0
    %v4656 = vadd.f32 %v4511, %v4655
    %v4657 = vpop.f32.mrb[0].mxu0
    %4658 = vmatprep.mubr.f32.mxu0 0.0
    %4659 = vmatmul.mubr.f32.gmra.mrb[0].mxu0 %v4194
    %v4660 = vpop.f32.mrb[0].mxu0
    %v4661 = vadd.f32 %v4516, %v4660
    %v4662 = vpop.f32.mrb[0].mxu0
    %4663 = vmatprep.mubr.f32.mxu0 0.0
    %4664 = vmatmul.mubr.f32.gmra.mrb[0].mxu0 %v4199
    %v4665 = vpop.f32.mrb[0].mxu0
    %v4666 = vadd.f32 %v4521, %v4665
    %v4667 = vpop.f32.mrb[0].mxu0
    %4668 = vmatprep.mubr.f32.mxu0 0.0
    %4669 = vmatmul.mubr.f32.gmra.mrb[0].mxu0 %v4204
    %v4670 = vpop.f32.mrb[0].mxu0
    %v4671 = vadd.f32 %v4526, %v4670
    %v4672 = vpop.f32.mrb[0].mxu0
    %4673 = vmatprep.mubr.f32.mxu0 0.0
    %4674 = vmatmul.mubr.f32.gmra.mrb[0].mxu0 %v4209
    %v4675 = vpop.f32.mrb[0].mxu0
    %v4676 = vadd.f32 %v4531, %v4675
    %v4677 = vpop.f32.mrb[0].mxu0
    %4678 = vdwg.mxu0
    %v4679 = vld [vmem:[#allocation5 + $0x820] sm:$0xff]
    %4680 = vmatprep.subr.mxu0 0.0
    %4681 = vmatpush1.msra.mxu0 %v4679
    %4682 = vmatprep.subr.mxu0 0.0
    %4683 = vmatpush1.msra.mxu0 0.0
    %4684 = vmatprep.subr.mxu0 0.0
    %4685 = vmatpush1.msra.mxu0 0.0
    %4686 = vmatprep.subr.mxu0 0.0
    %4687 = vmatpush1.msra.mxu0 0.0
    %4688 = vmatprep.subr.mxu0 0.0
    %4689 = vmatpush1.msra.mxu0 0.0
    %4690 = vmatprep.subr.mxu0 0.0
    %4691 = vmatpush1.msra.mxu0 0.0
    %4692 = vmatprep.subr.mxu0 0.0
    %4693 = vmatpush1.msra.mxu0 0.0
    %4694 = vmatprep.subr.mxu0 0.0
    %4695 = vmatpush1.msra.mxu0 0.0
    %4696 = vmatprep.subr.mxu0 0.0
    %4697 = vmatpush1.msra.mxu0 0.0
    %4698 = vmatprep.subr.mxu0 0.0
    %4699 = vmatpush1.msra.mxu0 0.0
    %4700 = vmatprep.subr.mxu0 0.0
    %4701 = vmatpush1.msra.mxu0 0.0
    %4702 = vmatprep.subr.mxu0 0.0
    %4703 = vmatpush1.msra.mxu0 0.0
    %4704 = vmatprep.subr.mxu0 0.0
    %4705 = vmatpush1.msra.mxu0 0.0
    %4706 = vmatprep.subr.mxu0 0.0
    %4707 = vmatpush1.msra.mxu0 0.0
    %4708 = vmatprep.subr.mxu0 0.0
    %4709 = vmatpush1.msra.mxu0 0.0
    %4710 = vmatprep.subr.mxu0 0.0
    %4711 = vmatpush1.msra.mxu0 0.0
    %4712 = vmatprep.subr.mxu0 0.0
    %4713 = vmatpush1.msra.mxu0 0.0
    %4714 = vmatprep.subr.mxu0 0.0
    %4715 = vmatpush1.msra.mxu0 0.0
    %4716 = vmatprep.subr.mxu0 0.0
    %4717 = vmatpush1.msra.mxu0 0.0
    %4718 = vmatprep.subr.mxu0 0.0
    %4719 = vmatpush1.msra.mxu0 0.0
    %4720 = vmatprep.subr.mxu0 0.0
    %4721 = vmatpush1.msra.mxu0 0.0
    %4722 = vmatprep.subr.mxu0 0.0
    %4723 = vmatpush1.msra.mxu0 0.0
    %4724 = vmatprep.subr.mxu0 0.0
    %4725 = vmatpush1.msra.mxu0 0.0
    %4726 = vmatprep.subr.mxu0 0.0
    %4727 = vmatpush1.msra.mxu0 0.0
    %4728 = vmatprep.subr.mxu0 0.0
    %4729 = vmatpush1.msra.mxu0 0.0
    %4730 = vmatprep.subr.mxu0 0.0
    %4731 = vmatpush1.msra.mxu0 0.0
    %4732 = vmatprep.subr.mxu0 0.0
    %4733 = vmatpush1.msra.mxu0 0.0
    %4734 = vmatprep.subr.mxu0 0.0
    %4735 = vmatpush1.msra.mxu0 0.0
    %4736 = vmatprep.subr.mxu0 0.0
    %4737 = vmatpush1.msra.mxu0 0.0
    %4738 = vmatprep.subr.mxu0 0.0
    %4739 = vmatpush1.msra.mxu0 0.0
    %4740 = vmatprep.subr.mxu0 0.0
    %4741 = vmatpush1.msra.mxu0 0.0
    %4742 = vmatprep.subr.mxu0 0.0
    %4743 = vmatpush1.msra.mxu0 0.0
    %4744 = vmatprep.mubr.f32.mxu0 0.0
    %4745 = vmatmul.mubr.f32.gmra.mrb[0].mxu0 %v1189
    %v4746 = vpop.f32.mrb[0].mxu0
    %v4747 = vadd.f32 0.0, %v4746
    %v4748 = vpop.f32.mrb[0].mxu0
    %4749 = vmatprep.mubr.f32.mxu0 0.0
    %4750 = vmatmul.mubr.f32.gmra.mrb[0].mxu0 %v1192
    %v4751 = vpop.f32.mrb[0].mxu0
    %v4752 = vadd.f32 0.0, %v4751
    %v4753 = vpop.f32.mrb[0].mxu0
    %4754 = vmatprep.mubr.f32.mxu0 0.0
    %4755 = vmatmul.mubr.f32.gmra.mrb[0].mxu0 %v1195
    %v4756 = vpop.f32.mrb[0].mxu0
    %v4757 = vadd.f32 0.0, %v4756
    %v4758 = vpop.f32.mrb[0].mxu0
    %4759 = vmatprep.mubr.f32.mxu0 0.0
    %4760 = vmatmul.mubr.f32.gmra.mrb[0].mxu0 %v1198
    %v4761 = vpop.f32.mrb[0].mxu0
    %v4762 = vadd.f32 0.0, %v4761
    %v4763 = vpop.f32.mrb[0].mxu0
    %4764 = vmatprep.mubr.f32.mxu0 0.0
    %4765 = vmatmul.mubr.f32.gmra.mrb[0].mxu0 %v1201
    %v4766 = vpop.f32.mrb[0].mxu0
    %v4767 = vadd.f32 0.0, %v4766
    %v4768 = vpop.f32.mrb[0].mxu0
    %4769 = vmatprep.mubr.f32.mxu0 0.0
    %4770 = vmatmul.mubr.f32.gmra.mrb[0].mxu0 %v1204
    %v4771 = vpop.f32.mrb[0].mxu0
    %v4772 = vadd.f32 0.0, %v4771
    %v4773 = vpop.f32.mrb[0].mxu0
    %4774 = vmatprep.mubr.f32.mxu0 0.0
    %4775 = vmatmul.mubr.f32.gmra.mrb[0].mxu0 %v1207
    %v4776 = vpop.f32.mrb[0].mxu0
    %v4777 = vadd.f32 0.0, %v4776
    %v4778 = vpop.f32.mrb[0].mxu0
    %4779 = vmatprep.mubr.f32.mxu0 0.0
    %4780 = vmatmul.mubr.f32.gmra.mrb[0].mxu0 %v1210
    %v4781 = vpop.f32.mrb[0].mxu0
    %v4782 = vadd.f32 0.0, %v4781
    %v4783 = vpop.f32.mrb[0].mxu0
    %4784 = vmatprep.mubr.f32.mxu0 0.0
    %4785 = vmatmul.mubr.f32.gmra.mrb[0].mxu0 %v1213
    %v4786 = vpop.f32.mrb[0].mxu0
    %v4787 = vadd.f32 0.0, %v4786
    %v4788 = vpop.f32.mrb[0].mxu0
    %4789 = vmatprep.mubr.f32.mxu0 0.0
    %4790 = vmatmul.mubr.f32.gmra.mrb[0].mxu0 %v1216
    %v4791 = vpop.f32.mrb[0].mxu0
    %v4792 = vadd.f32 0.0, %v4791
    %v4793 = vpop.f32.mrb[0].mxu0
    %4794 = vmatprep.mubr.f32.mxu0 0.0
    %4795 = vmatmul.mubr.f32.gmra.mrb[0].mxu0 %v1219
    %v4796 = vpop.f32.mrb[0].mxu0
    %v4797 = vadd.f32 0.0, %v4796
    %v4798 = vpop.f32.mrb[0].mxu0
    %4799 = vmatprep.mubr.f32.mxu0 0.0
    %4800 = vmatmul.mubr.f32.gmra.mrb[0].mxu0 %v1222
    %v4801 = vpop.f32.mrb[0].mxu0
    %v4802 = vadd.f32 0.0, %v4801
    %v4803 = vpop.f32.mrb[0].mxu0
    %4804 = vmatprep.mubr.f32.mxu0 0.0
    %4805 = vmatmul.mubr.f32.gmra.mrb[0].mxu0 %v1225
    %v4806 = vpop.f32.mrb[0].mxu0
    %v4807 = vadd.f32 0.0, %v4806
    %v4808 = vpop.f32.mrb[0].mxu0
    %4809 = vmatprep.mubr.f32.mxu0 0.0
    %4810 = vmatmul.mubr.f32.gmra.mrb[0].mxu0 %v1228
    %v4811 = vpop.f32.mrb[0].mxu0
    %v4812 = vadd.f32 0.0, %v4811
    %v4813 = vpop.f32.mrb[0].mxu0
    %4814 = vmatprep.mubr.f32.mxu0 0.0
    %4815 = vmatmul.mubr.f32.gmra.mrb[0].mxu0 %v1231
    %v4816 = vpop.f32.mrb[0].mxu0
    %v4817 = vadd.f32 0.0, %v4816
    %v4818 = vpop.f32.mrb[0].mxu0
    %4819 = vmatprep.mubr.f32.mxu0 0.0
    %4820 = vmatmul.mubr.f32.gmra.mrb[0].mxu0 %v1234
    %v4821 = vpop.f32.mrb[0].mxu0
    %v4822 = vadd.f32 0.0, %v4821
    %v4823 = vpop.f32.mrb[0].mxu0
    %4824 = vdwg.mxu0
    %v4825 = vadd.f32 %v4601, %v4747
    %v4826 = vadd.f32 %v4606, %v4752
    %v4827 = vadd.f32 %v4611, %v4757
    %v4828 = vadd.f32 %v4616, %v4762
    %v4829 = vadd.f32 %v4621, %v4767
    %v4830 = vadd.f32 %v4626, %v4772
    %v4831 = vadd.f32 %v4631, %v4777
    %v4832 = vadd.f32 %v4636, %v4782
    %v4833 = vadd.f32 %v4641, %v4787
    %v4834 = vadd.f32 %v4646, %v4792
    %v4835 = vadd.f32 %v4651, %v4797
    %v4836 = vadd.f32 %v4656, %v4802
    %v4837 = vadd.f32 %v4661, %v4807
    %v4838 = vadd.f32 %v4666, %v4812
    %v4839 = vadd.f32 %v4671, %v4817
    %v4840 = vadd.f32 %v4676, %v4822
    %v4841 = vld [vmem:[#allocation5 + $0xc33] sm:$0x1]
    %v4842 = vlaneseq
    %v4843 = vshrl.u32 %v4842, 7
    %v4844 = vsub.s32 0, %v4843
    %v4845 = vrot.slane %v4841, %v4844
    %v4846 = vadd.f32 %v4825, %v4845
    %v4847 = vadd.f32 %v4826, %v4845
    %v4848 = vadd.f32 %v4827, %v4845
    %v4849 = vadd.f32 %v4828, %v4845
    %v4850 = vadd.f32 %v4829, %v4845
    %v4851 = vadd.f32 %v4830, %v4845
    %v4852 = vadd.f32 %v4831, %v4845
    %v4853 = vadd.f32 %v4832, %v4845
    %v4854 = vadd.f32 %v4833, %v4845
    %v4855 = vadd.f32 %v4834, %v4845
    %v4856 = vadd.f32 %v4835, %v4845
    %v4857 = vadd.f32 %v4836, %v4845
    %v4858 = vadd.f32 %v4837, %v4845
    %v4859 = vadd.f32 %v4838, %v4845
    %v4860 = vadd.f32 %v4839, %v4845
    %v4861 = vadd.f32 %v4840, %v4845
    %v4862 = vmax.f32 %v4846, 0.0
    %v4863 = vmax.f32 %v4847, 0.0
    %v4864 = vmax.f32 %v4848, 0.0
    %v4865 = vmax.f32 %v4849, 0.0
    %v4866 = vmax.f32 %v4850, 0.0
    %v4867 = vmax.f32 %v4851, 0.0
    %v4868 = vmax.f32 %v4852, 0.0
    %v4869 = vmax.f32 %v4853, 0.0
    %v4870 = vmax.f32 %v4854, 0.0
    %v4871 = vmax.f32 %v4855, 0.0
    %v4872 = vmax.f32 %v4856, 0.0
    %v4873 = vmax.f32 %v4857, 0.0
    %v4874 = vmax.f32 %v4858, 0.0
    %v4875 = vmax.f32 %v4859, 0.0
    %v4876 = vmax.f32 %v4860, 0.0
    %v4877 = vmax.f32 %v4861, 0.0
    %v4878 = vld [vmem:[#allocation7 + $0x200] sm:$0xff]
    %v4879 = vld [vmem:[#allocation7 + $0x208] sm:$0xff]
    %v4880 = vld [vmem:[#allocation7 + $0x210] sm:$0xff]
    %v4881 = vld [vmem:[#allocation7 + $0x218] sm:$0xff]
    %v4882 = vld [vmem:[#allocation7 + $0x220] sm:$0xff]
    %v4883 = vld [vmem:[#allocation7 + $0x228] sm:$0xff]
    %v4884 = vld [vmem:[#allocation7 + $0x230] sm:$0xff]
    %v4885 = vld [vmem:[#allocation7 + $0x238] sm:$0xff]
    %v4886 = vld [vmem:[#allocation7 + $0x240] sm:$0xff]
    %v4887 = vld [vmem:[#allocation7 + $0x248] sm:$0xff]
    %v4888 = vld [vmem:[#allocation7 + $0x250] sm:$0xff]
    %v4889 = vld [vmem:[#allocation7 + $0x258] sm:$0xff]
    %v4890 = vld [vmem:[#allocation7 + $0x260] sm:$0xff]
    %v4891 = vld [vmem:[#allocation7 + $0x268] sm:$0xff]
    %v4892 = vld [vmem:[#allocation7 + $0x270] sm:$0xff]
    %v4893 = vld [vmem:[#allocation7 + $0x278] sm:$0xff]
    %v4894 = vld [vmem:[#allocation7 + $0x280] sm:$0xff]
    %v4895 = vld [vmem:[#allocation7 + $0x288] sm:$0xff]
    %v4896 = vld [vmem:[#allocation7 + $0x290] sm:$0xff]
    %v4897 = vld [vmem:[#allocation7 + $0x298] sm:$0xff]
    %v4898 = vld [vmem:[#allocation7 + $0x2a0] sm:$0xff]
    %v4899 = vld [vmem:[#allocation7 + $0x2a8] sm:$0xff]
    %v4900 = vld [vmem:[#allocation7 + $0x2b0] sm:$0xff]
    %v4901 = vld [vmem:[#allocation7 + $0x2b8] sm:$0xff]
    %v4902 = vld [vmem:[#allocation7 + $0x2c0] sm:$0xff]
    %v4903 = vld [vmem:[#allocation7 + $0x2c8] sm:$0xff]
    %v4904 = vld [vmem:[#allocation7 + $0x2d0] sm:$0xff]
    %v4905 = vld [vmem:[#allocation7 + $0x2d8] sm:$0xff]
    %v4906 = vld [vmem:[#allocation7 + $0x2e0] sm:$0xff]
    %v4907 = vld [vmem:[#allocation7 + $0x2e8] sm:$0xff]
    %v4908 = vld [vmem:[#allocation7 + $0x2f0] sm:$0xff]
    %v4909 = vld [vmem:[#allocation7 + $0x2f8] sm:$0xff]
    %s4910 = scalar_lea.vmem [#allocation7], 770
    %v4911 = vld [vmem:[%s4910] ss:$8 sm:$0x3]
    %v4913 = vlaneseq
    %v4914 = vshrl.u32 %v4913, 7
    %v4915 = vsub.s32 0, %v4914
    %v4916 = vrot.slane %v4911, %v4915
    %v4917 = vlaneseq
    %v4918 = vshrl.u32 %v4917, 7
    %v4919 = vsub.s32 1, %v4918
    %v4920 = vrot.slane %v4911, %v4919
    %4923 = vmatprep.subr.mxu0 %v4879
    %4924 = vmatpush1.msra.mxu0 %v4878
    %4925 = vmatprep.subr.mxu0 %v4881
    %4926 = vmatpush1.msra.mxu0 %v4880
    %4927 = vmatprep.subr.mxu0 %v4883
    %4928 = vmatpush1.msra.mxu0 %v4882
    %4929 = vmatprep.subr.mxu0 %v4885
    %4930 = vmatpush1.msra.mxu0 %v4884
    %4931 = vmatprep.subr.mxu0 %v4887
    %4932 = vmatpush1.msra.mxu0 %v4886
    %4933 = vmatprep.subr.mxu0 %v4889
    %4934 = vmatpush1.msra.mxu0 %v4888
    %4935 = vmatprep.subr.mxu0 %v4891
    %4936 = vmatpush1.msra.mxu0 %v4890
    %4937 = vmatprep.subr.mxu0 %v4893
    %4938 = vmatpush1.msra.mxu0 %v4892
    %4939 = vmatprep.subr.mxu0 %v4895
    %4940 = vmatpush1.msra.mxu0 %v4894
    %4941 = vmatprep.subr.mxu0 %v4897
    %4942 = vmatpush1.msra.mxu0 %v4896
    %4943 = vmatprep.subr.mxu0 %v4899
    %4944 = vmatpush1.msra.mxu0 %v4898
    %4945 = vmatprep.subr.mxu0 %v4901
    %4946 = vmatpush1.msra.mxu0 %v4900
    %4947 = vmatprep.subr.mxu0 %v4903
    %4948 = vmatpush1.msra.mxu0 %v4902
    %4949 = vmatprep.subr.mxu0 %v4905
    %4950 = vmatpush1.msra.mxu0 %v4904
    %4951 = vmatprep.subr.mxu0 %v4907
    %4952 = vmatpush1.msra.mxu0 %v4906
    %4953 = vmatprep.subr.mxu0 %v4909
    %4954 = vmatpush1.msra.mxu0 %v4908
    %4955 = vmatprep.subr.mxu0 0.0
    %4956 = vmatpush1.msra.mxu0 0.0
    %4957 = vmatprep.subr.mxu0 0.0
    %4958 = vmatpush1.msra.mxu0 0.0
    %4959 = vmatprep.subr.mxu0 0.0
    %4960 = vmatpush1.msra.mxu0 0.0
    %4961 = vmatprep.subr.mxu0 0.0
    %4962 = vmatpush1.msra.mxu0 0.0
    %4963 = vmatprep.subr.mxu0 0.0
    %4964 = vmatpush1.msra.mxu0 0.0
    %4965 = vmatprep.subr.mxu0 0.0
    %4966 = vmatpush1.msra.mxu0 0.0
    %4967 = vmatprep.subr.mxu0 0.0
    %4968 = vmatpush1.msra.mxu0 0.0
    %4969 = vmatprep.subr.mxu0 0.0
    %4970 = vmatpush1.msra.mxu0 0.0
    %4971 = vmatprep.subr.mxu0 0.0
    %4972 = vmatpush1.msra.mxu0 0.0
    %4973 = vmatprep.subr.mxu0 0.0
    %4974 = vmatpush1.msra.mxu0 0.0
    %4975 = vmatprep.subr.mxu0 0.0
    %4976 = vmatpush1.msra.mxu0 0.0
    %4977 = vmatprep.subr.mxu0 0.0
    %4978 = vmatpush1.msra.mxu0 0.0
    %4979 = vmatprep.subr.mxu0 0.0
    %4980 = vmatpush1.msra.mxu0 0.0
    %4981 = vmatprep.subr.mxu0 0.0
    %4982 = vmatpush1.msra.mxu0 0.0
    %4983 = vmatprep.subr.mxu0 0.0
    %4984 = vmatpush1.msra.mxu0 0.0
    %4985 = vmatprep.subr.mxu0 0.0
    %4986 = vmatpush1.msra.mxu0 0.0
    %4987 = vmatprep.mubr.f32.mxu0 0.0
    %4988 = vmatmul.mubr.f32.gmra.mrb[0].mxu0 %v4862
    %v4989 = vpop.f32.mrb[0].mxu0
    %v4990 = vadd.f32 %v4916, %v4989
    %v4991 = vpop.f32.mrb[0].mxu0
    %v4992 = vadd.f32 %v4920, %v4991
    %4993 = vmatprep.mubr.f32.mxu0 0.0
    %4994 = vmatmul.mubr.f32.gmra.mrb[0].mxu0 %v4863
    %v4995 = vpop.f32.mrb[0].mxu0
    %v4996 = vadd.f32 %v4916, %v4995
    %v4997 = vpop.f32.mrb[0].mxu0
    %v4998 = vadd.f32 %v4920, %v4997
    %4999 = vmatprep.mubr.f32.mxu0 0.0
    %5000 = vmatmul.mubr.f32.gmra.mrb[0].mxu0 %v4864
    %v5001 = vpop.f32.mrb[0].mxu0
    %v5002 = vadd.f32 %v4916, %v5001
    %v5003 = vpop.f32.mrb[0].mxu0
    %v5004 = vadd.f32 %v4920, %v5003
    %5005 = vmatprep.mubr.f32.mxu0 0.0
    %5006 = vmatmul.mubr.f32.gmra.mrb[0].mxu0 %v4865
    %v5007 = vpop.f32.mrb[0].mxu0
    %v5008 = vadd.f32 %v4916, %v5007
    %v5009 = vpop.f32.mrb[0].mxu0
    %v5010 = vadd.f32 %v4920, %v5009
    %5011 = vmatprep.mubr.f32.mxu0 0.0
    %5012 = vmatmul.mubr.f32.gmra.mrb[0].mxu0 %v4866
    %v5013 = vpop.f32.mrb[0].mxu0
    %v5014 = vadd.f32 %v4916, %v5013
    %v5015 = vpop.f32.mrb[0].mxu0
    %v5016 = vadd.f32 %v4920, %v5015
    %5017 = vmatprep.mubr.f32.mxu0 0.0
    %5018 = vmatmul.mubr.f32.gmra.mrb[0].mxu0 %v4867
    %v5019 = vpop.f32.mrb[0].mxu0
    %v5020 = vadd.f32 %v4916, %v5019
    %v5021 = vpop.f32.mrb[0].mxu0
    %v5022 = vadd.f32 %v4920, %v5021
    %5023 = vmatprep.mubr.f32.mxu0 0.0
    %5024 = vmatmul.mubr.f32.gmra.mrb[0].mxu0 %v4868
    %v5025 = vpop.f32.mrb[0].mxu0
    %v5026 = vadd.f32 %v4916, %v5025
    %v5027 = vpop.f32.mrb[0].mxu0
    %v5028 = vadd.f32 %v4920, %v5027
    %5029 = vmatprep.mubr.f32.mxu0 0.0
    %5030 = vmatmul.mubr.f32.gmra.mrb[0].mxu0 %v4869
    %v5031 = vpop.f32.mrb[0].mxu0
    %v5032 = vadd.f32 %v4916, %v5031
    %v5033 = vpop.f32.mrb[0].mxu0
    %v5034 = vadd.f32 %v4920, %v5033
    %5035 = vmatprep.mubr.f32.mxu0 0.0
    %5036 = vmatmul.mubr.f32.gmra.mrb[0].mxu0 %v4870
    %v5037 = vpop.f32.mrb[0].mxu0
    %v5038 = vadd.f32 %v4916, %v5037
    %v5039 = vpop.f32.mrb[0].mxu0
    %v5040 = vadd.f32 %v4920, %v5039
    %5041 = vmatprep.mubr.f32.mxu0 0.0
    %5042 = vmatmul.mubr.f32.gmra.mrb[0].mxu0 %v4871
    %v5043 = vpop.f32.mrb[0].mxu0
    %v5044 = vadd.f32 %v4916, %v5043
    %v5045 = vpop.f32.mrb[0].mxu0
    %v5046 = vadd.f32 %v4920, %v5045
    %5047 = vmatprep.mubr.f32.mxu0 0.0
    %5048 = vmatmul.mubr.f32.gmra.mrb[0].mxu0 %v4872
    %v5049 = vpop.f32.mrb[0].mxu0
    %v5050 = vadd.f32 %v4916, %v5049
    %v5051 = vpop.f32.mrb[0].mxu0
    %v5052 = vadd.f32 %v4920, %v5051
    %5053 = vmatprep.mubr.f32.mxu0 0.0
    %5054 = vmatmul.mubr.f32.gmra.mrb[0].mxu0 %v4873
    %v5055 = vpop.f32.mrb[0].mxu0
    %v5056 = vadd.f32 %v4916, %v5055
    %v5057 = vpop.f32.mrb[0].mxu0
    %v5058 = vadd.f32 %v4920, %v5057
    %5059 = vmatprep.mubr.f32.mxu0 0.0
    %5060 = vmatmul.mubr.f32.gmra.mrb[0].mxu0 %v4874
    %v5061 = vpop.f32.mrb[0].mxu0
    %v5062 = vadd.f32 %v4916, %v5061
    %v5063 = vpop.f32.mrb[0].mxu0
    %v5064 = vadd.f32 %v4920, %v5063
    %5065 = vmatprep.mubr.f32.mxu0 0.0
    %5066 = vmatmul.mubr.f32.gmra.mrb[0].mxu0 %v4875
    %v5067 = vpop.f32.mrb[0].mxu0
    %v5068 = vadd.f32 %v4916, %v5067
    %v5069 = vpop.f32.mrb[0].mxu0
    %v5070 = vadd.f32 %v4920, %v5069
    %5071 = vmatprep.mubr.f32.mxu0 0.0
    %5072 = vmatmul.mubr.f32.gmra.mrb[0].mxu0 %v4876
    %v5073 = vpop.f32.mrb[0].mxu0
    %v5074 = vadd.f32 %v4916, %v5073
    %v5075 = vpop.f32.mrb[0].mxu0
    %v5076 = vadd.f32 %v4920, %v5075
    %5077 = vmatprep.mubr.f32.mxu0 0.0
    %5078 = vmatmul.mubr.f32.gmra.mrb[0].mxu0 %v4877
    %v5079 = vpop.f32.mrb[0].mxu0
    %v5080 = vadd.f32 %v4916, %v5079
    %v5081 = vpop.f32.mrb[0].mxu0
    %v5082 = vadd.f32 %v4920, %v5081
    %5083 = vdwg.mxu0
    %v5084 = vmax.f32 %v4990, 0.0
    %v5085 = vmax.f32 %v4992, 0.0
    %v5086 = vmax.f32 %v4996, 0.0
    %v5087 = vmax.f32 %v4998, 0.0
    %v5088 = vmax.f32 %v5002, 0.0
    %v5089 = vmax.f32 %v5004, 0.0
    %v5090 = vmax.f32 %v5008, 0.0
    %v5091 = vmax.f32 %v5010, 0.0
    %v5092 = vmax.f32 %v5014, 0.0
    %v5093 = vmax.f32 %v5016, 0.0
    %v5094 = vmax.f32 %v5020, 0.0
    %v5095 = vmax.f32 %v5022, 0.0
    %v5096 = vmax.f32 %v5026, 0.0
    %v5097 = vmax.f32 %v5028, 0.0
    %v5098 = vmax.f32 %v5032, 0.0
    %v5099 = vmax.f32 %v5034, 0.0
    %v5100 = vmax.f32 %v5038, 0.0
    %v5101 = vmax.f32 %v5040, 0.0
    %v5102 = vmax.f32 %v5044, 0.0
    %v5103 = vmax.f32 %v5046, 0.0
    %v5104 = vmax.f32 %v5050, 0.0
    %v5105 = vmax.f32 %v5052, 0.0
    %v5106 = vmax.f32 %v5056, 0.0
    %v5107 = vmax.f32 %v5058, 0.0
    %v5108 = vmax.f32 %v5062, 0.0
    %v5109 = vmax.f32 %v5064, 0.0
    %v5110 = vmax.f32 %v5068, 0.0
    %v5111 = vmax.f32 %v5070, 0.0
    %v5112 = vmax.f32 %v5074, 0.0
    %v5113 = vmax.f32 %v5076, 0.0
    %v5114 = vmax.f32 %v5080, 0.0
    %v5115 = vmax.f32 %v5082, 0.0
    %v5116 = vld [vmem:[#allocation5 + $0x828] sm:$0xff]
    %v5117 = vld [vmem:[#allocation5 + $0x830] sm:$0xff]
    %v5118 = vld [vmem:[#allocation5 + $0x838] sm:$0xff]
    %v5119 = vld [vmem:[#allocation5 + $0x840] sm:$0xff]
    %v5120 = vld [vmem:[#allocation5 + $0x848] sm:$0xff]
    %v5121 = vld [vmem:[#allocation5 + $0x850] sm:$0xff]
    %v5122 = vld [vmem:[#allocation5 + $0x858] sm:$0xff]
    %v5123 = vld [vmem:[#allocation5 + $0x860] sm:$0xff]
    %v5124 = vld [vmem:[#allocation5 + $0x868] sm:$0xff]
    %v5125 = vld [vmem:[#allocation5 + $0x870] sm:$0xff]
    %v5126 = vld [vmem:[#allocation5 + $0x878] sm:$0xff]
    %v5127 = vld [vmem:[#allocation5 + $0x880] sm:$0xff]
    %v5128 = vld [vmem:[#allocation5 + $0x888] sm:$0xff]
    %v5129 = vld [vmem:[#allocation5 + $0x890] sm:$0xff]
    %v5130 = vld [vmem:[#allocation5 + $0x898] sm:$0xff]
    %v5131 = vld [vmem:[#allocation5 + $0x8a0] sm:$0xff]
    %v5132 = vld [vmem:[#allocation5 + $0x8a8] sm:$0xff]
    %v5133 = vld [vmem:[#allocation5 + $0x8b0] sm:$0xff]
    %v5134 = vld [vmem:[#allocation5 + $0x8b8] sm:$0xff]
    %v5135 = vld [vmem:[#allocation5 + $0x8c0] sm:$0xff]
    %v5136 = vld [vmem:[#allocation5 + $0x8c8] sm:$0xff]
    %v5137 = vld [vmem:[#allocation5 + $0x8d0] sm:$0xff]
    %v5138 = vld [vmem:[#allocation5 + $0x8d8] sm:$0xff]
    %v5139 = vld [vmem:[#allocation5 + $0x8e0] sm:$0xff]
    %v5140 = vld [vmem:[#allocation5 + $0x8e8] sm:$0xff]
    %v5141 = vld [vmem:[#allocation5 + $0x8f0] sm:$0xff]
    %v5142 = vld [vmem:[#allocation5 + $0x8f8] sm:$0xff]
    %v5143 = vld [vmem:[#allocation5 + $0x900] sm:$0xff]
    %v5144 = vld [vmem:[#allocation5 + $0x908] sm:$0xff]
    %v5145 = vld [vmem:[#allocation5 + $0x910] sm:$0xff]
    %v5146 = vld [vmem:[#allocation5 + $0x918] sm:$0xff]
    %v5147 = vld [vmem:[#allocation5 + $0x920] sm:$0xff]
    %v5148 = vld [vmem:[#allocation5 + $0xc34] sm:$0x1]
    %v5149 = vlaneseq
    %v5150 = vshrl.u32 %v5149, 7
    %v5151 = vsub.s32 0, %v5150
    %v5152 = vrot.slane %v5148, %v5151
    %5153 = vmatprep.subr.mxu0 0.0
    %5154 = vmatpush1.msra.mxu0 %v5116
    %5155 = vmatprep.subr.mxu0 0.0
    %5156 = vmatpush1.msra.mxu0 %v5117
    %5157 = vmatprep.subr.mxu0 0.0
    %5158 = vmatpush1.msra.mxu0 %v5118
    %5159 = vmatprep.subr.mxu0 0.0
    %5160 = vmatpush1.msra.mxu0 %v5119
    %5161 = vmatprep.subr.mxu0 0.0
    %5162 = vmatpush1.msra.mxu0 %v5120
    %5163 = vmatprep.subr.mxu0 0.0
    %5164 = vmatpush1.msra.mxu0 %v5121
    %5165 = vmatprep.subr.mxu0 0.0
    %5166 = vmatpush1.msra.mxu0 %v5122
    %5167 = vmatprep.subr.mxu0 0.0
    %5168 = vmatpush1.msra.mxu0 %v5123
    %5169 = vmatprep.subr.mxu0 0.0
    %5170 = vmatpush1.msra.mxu0 %v5124
    %5171 = vmatprep.subr.mxu0 0.0
    %5172 = vmatpush1.msra.mxu0 %v5125
    %5173 = vmatprep.subr.mxu0 0.0
    %5174 = vmatpush1.msra.mxu0 %v5126
    %5175 = vmatprep.subr.mxu0 0.0
    %5176 = vmatpush1.msra.mxu0 %v5127
    %5177 = vmatprep.subr.mxu0 0.0
    %5178 = vmatpush1.msra.mxu0 %v5128
    %5179 = vmatprep.subr.mxu0 0.0
    %5180 = vmatpush1.msra.mxu0 %v5129
    %5181 = vmatprep.subr.mxu0 0.0
    %5182 = vmatpush1.msra.mxu0 %v5130
    %5183 = vmatprep.subr.mxu0 0.0
    %5184 = vmatpush1.msra.mxu0 %v5131
    %5185 = vmatprep.subr.mxu0 0.0
    %5186 = vmatpush1.msra.mxu0 %v5132
    %5187 = vmatprep.subr.mxu0 0.0
    %5188 = vmatpush1.msra.mxu0 %v5133
    %5189 = vmatprep.subr.mxu0 0.0
    %5190 = vmatpush1.msra.mxu0 %v5134
    %5191 = vmatprep.subr.mxu0 0.0
    %5192 = vmatpush1.msra.mxu0 %v5135
    %5193 = vmatprep.subr.mxu0 0.0
    %5194 = vmatpush1.msra.mxu0 %v5136
    %5195 = vmatprep.subr.mxu0 0.0
    %5196 = vmatpush1.msra.mxu0 %v5137
    %5197 = vmatprep.subr.mxu0 0.0
    %5198 = vmatpush1.msra.mxu0 %v5138
    %5199 = vmatprep.subr.mxu0 0.0
    %5200 = vmatpush1.msra.mxu0 %v5139
    %5201 = vmatprep.subr.mxu0 0.0
    %5202 = vmatpush1.msra.mxu0 %v5140
    %5203 = vmatprep.subr.mxu0 0.0
    %5204 = vmatpush1.msra.mxu0 %v5141
    %5205 = vmatprep.subr.mxu0 0.0
    %5206 = vmatpush1.msra.mxu0 %v5142
    %5207 = vmatprep.subr.mxu0 0.0
    %5208 = vmatpush1.msra.mxu0 %v5143
    %5209 = vmatprep.subr.mxu0 0.0
    %5210 = vmatpush1.msra.mxu0 %v5144
    %5211 = vmatprep.subr.mxu0 0.0
    %5212 = vmatpush1.msra.mxu0 %v5145
    %5213 = vmatprep.subr.mxu0 0.0
    %5214 = vmatpush1.msra.mxu0 %v5146
    %5215 = vmatprep.subr.mxu0 0.0
    %5216 = vmatpush1.msra.mxu0 %v5147
    %5217 = vmatprep.mubr.f32.mxu0 %v5085
    %5218 = vmatmul.mubr.f32.gmra.mrb[0].mxu0 %v5084
    %v5219 = vpop.f32.mrb[0].mxu0
    %v5220 = vadd.f32 %v5152, %v5219
    %v5221 = vpop.f32.mrb[0].mxu0
    %5222 = vmatprep.mubr.f32.mxu0 %v5087
    %5223 = vmatmul.mubr.f32.gmra.mrb[0].mxu0 %v5086
    %v5224 = vpop.f32.mrb[0].mxu0
    %v5225 = vadd.f32 %v5152, %v5224
    %v5226 = vpop.f32.mrb[0].mxu0
    %5227 = vmatprep.mubr.f32.mxu0 %v5089
    %5228 = vmatmul.mubr.f32.gmra.mrb[0].mxu0 %v5088
    %v5229 = vpop.f32.mrb[0].mxu0
    %v5230 = vadd.f32 %v5152, %v5229
    %v5231 = vpop.f32.mrb[0].mxu0
    %5232 = vmatprep.mubr.f32.mxu0 %v5091
    %5233 = vmatmul.mubr.f32.gmra.mrb[0].mxu0 %v5090
    %v5234 = vpop.f32.mrb[0].mxu0
    %v5235 = vadd.f32 %v5152, %v5234
    %v5236 = vpop.f32.mrb[0].mxu0
    %5237 = vmatprep.mubr.f32.mxu0 %v5093
    %5238 = vmatmul.mubr.f32.gmra.mrb[0].mxu0 %v5092
    %v5239 = vpop.f32.mrb[0].mxu0
    %v5240 = vadd.f32 %v5152, %v5239
    %v5241 = vpop.f32.mrb[0].mxu0
    %5242 = vmatprep.mubr.f32.mxu0 %v5095
    %5243 = vmatmul.mubr.f32.gmra.mrb[0].mxu0 %v5094
    %v5244 = vpop.f32.mrb[0].mxu0
    %v5245 = vadd.f32 %v5152, %v5244
    %v5246 = vpop.f32.mrb[0].mxu0
    %5247 = vmatprep.mubr.f32.mxu0 %v5097
    %5248 = vmatmul.mubr.f32.gmra.mrb[0].mxu0 %v5096
    %v5249 = vpop.f32.mrb[0].mxu0
    %v5250 = vadd.f32 %v5152, %v5249
    %v5251 = vpop.f32.mrb[0].mxu0
    %5252 = vmatprep.mubr.f32.mxu0 %v5099
    %5253 = vmatmul.mubr.f32.gmra.mrb[0].mxu0 %v5098
    %v5254 = vpop.f32.mrb[0].mxu0
    %v5255 = vadd.f32 %v5152, %v5254
    %v5256 = vpop.f32.mrb[0].mxu0
    %5257 = vmatprep.mubr.f32.mxu0 %v5101
    %5258 = vmatmul.mubr.f32.gmra.mrb[0].mxu0 %v5100
    %v5259 = vpop.f32.mrb[0].mxu0
    %v5260 = vadd.f32 %v5152, %v5259
    %v5261 = vpop.f32.mrb[0].mxu0
    %5262 = vmatprep.mubr.f32.mxu0 %v5103
    %5263 = vmatmul.mubr.f32.gmra.mrb[0].mxu0 %v5102
    %v5264 = vpop.f32.mrb[0].mxu0
    %v5265 = vadd.f32 %v5152, %v5264
    %v5266 = vpop.f32.mrb[0].mxu0
    %5267 = vmatprep.mubr.f32.mxu0 %v5105
    %5268 = vmatmul.mubr.f32.gmra.mrb[0].mxu0 %v5104
    %v5269 = vpop.f32.mrb[0].mxu0
    %v5270 = vadd.f32 %v5152, %v5269
    %v5271 = vpop.f32.mrb[0].mxu0
    %5272 = vmatprep.mubr.f32.mxu0 %v5107
    %5273 = vmatmul.mubr.f32.gmra.mrb[0].mxu0 %v5106
    %v5274 = vpop.f32.mrb[0].mxu0
    %v5275 = vadd.f32 %v5152, %v5274
    %v5276 = vpop.f32.mrb[0].mxu0
    %5277 = vmatprep.mubr.f32.mxu0 %v5109
    %5278 = vmatmul.mubr.f32.gmra.mrb[0].mxu0 %v5108
    %v5279 = vpop.f32.mrb[0].mxu0
    %v5280 = vadd.f32 %v5152, %v5279
    %v5281 = vpop.f32.mrb[0].mxu0
    %5282 = vmatprep.mubr.f32.mxu0 %v5111
    %5283 = vmatmul.mubr.f32.gmra.mrb[0].mxu0 %v5110
    %v5284 = vpop.f32.mrb[0].mxu0
    %v5285 = vadd.f32 %v5152, %v5284
    %v5286 = vpop.f32.mrb[0].mxu0
    %5287 = vmatprep.mubr.f32.mxu0 %v5113
    %5288 = vmatmul.mubr.f32.gmra.mrb[0].mxu0 %v5112
    %v5289 = vpop.f32.mrb[0].mxu0
    %v5290 = vadd.f32 %v5152, %v5289
    %v5291 = vpop.f32.mrb[0].mxu0
    %5292 = vmatprep.mubr.f32.mxu0 %v5115
    %5293 = vmatmul.mubr.f32.gmra.mrb[0].mxu0 %v5114
    %v5294 = vpop.f32.mrb[0].mxu0
    %v5295 = vadd.f32 %v5152, %v5294
    %v5296 = vpop.f32.mrb[0].mxu0
    %5297 = vdwg.mxu0
    %v5298 = vmax.f32 %v5220, 0.0
    %v5299 = vmax.f32 %v5225, 0.0
    %v5300 = vmax.f32 %v5230, 0.0
    %v5301 = vmax.f32 %v5235, 0.0
    %v5302 = vmax.f32 %v5240, 0.0
    %v5303 = vmax.f32 %v5245, 0.0
    %v5304 = vmax.f32 %v5250, 0.0
    %v5305 = vmax.f32 %v5255, 0.0
    %v5306 = vmax.f32 %v5260, 0.0
    %v5307 = vmax.f32 %v5265, 0.0
    %v5308 = vmax.f32 %v5270, 0.0
    %v5309 = vmax.f32 %v5275, 0.0
    %v5310 = vmax.f32 %v5280, 0.0
    %v5311 = vmax.f32 %v5285, 0.0
    %v5312 = vmax.f32 %v5290, 0.0
    %v5313 = vmax.f32 %v5295, 0.0
    %v5314 = vld [vmem:[#allocation5 + $0x928] sm:$0xff]
    %v5315 = vld [vmem:[#allocation5 + $0x930] sm:$0xff]
    %v5316 = vld [vmem:[#allocation5 + $0x938] sm:$0xff]
    %v5317 = vld [vmem:[#allocation5 + $0x940] sm:$0xff]
    %v5318 = vld [vmem:[#allocation5 + $0x948] sm:$0xff]
    %v5319 = vld [vmem:[#allocation5 + $0x950] sm:$0xff]
    %v5320 = vld [vmem:[#allocation5 + $0x958] sm:$0xff]
    %v5321 = vld [vmem:[#allocation5 + $0x960] sm:$0xff]
    %v5322 = vld [vmem:[#allocation5 + $0x968] sm:$0xff]
    %v5323 = vld [vmem:[#allocation5 + $0x970] sm:$0xff]
    %v5324 = vld [vmem:[#allocation5 + $0x978] sm:$0xff]
    %v5325 = vld [vmem:[#allocation5 + $0x980] sm:$0xff]
    %v5326 = vld [vmem:[#allocation5 + $0x988] sm:$0xff]
    %v5327 = vld [vmem:[#allocation5 + $0x990] sm:$0xff]
    %v5328 = vld [vmem:[#allocation5 + $0x998] sm:$0xff]
    %v5329 = vld [vmem:[#allocation5 + $0x9a0] sm:$0xff]
    %v5330 = vld [vmem:[#allocation5 + $0xc35] sm:$0x1]
    %v5331 = vlaneseq
    %v5332 = vshrl.u32 %v5331, 7
    %v5333 = vsub.s32 0, %v5332
    %v5334 = vrot.slane %v5330, %v5333
    %5335 = vmatprep.subr.mxu0 0.0
    %5336 = vmatpush1.msra.mxu0 %v5314
    %5337 = vmatprep.subr.mxu0 0.0
    %5338 = vmatpush1.msra.mxu0 %v5315
    %5339 = vmatprep.subr.mxu0 0.0
    %5340 = vmatpush1.msra.mxu0 %v5316
    %5341 = vmatprep.subr.mxu0 0.0
    %5342 = vmatpush1.msra.mxu0 %v5317
    %5343 = vmatprep.subr.mxu0 0.0
    %5344 = vmatpush1.msra.mxu0 %v5318
    %5345 = vmatprep.subr.mxu0 0.0
    %5346 = vmatpush1.msra.mxu0 %v5319
    %5347 = vmatprep.subr.mxu0 0.0
    %5348 = vmatpush1.msra.mxu0 %v5320
    %5349 = vmatprep.subr.mxu0 0.0
    %5350 = vmatpush1.msra.mxu0 %v5321
    %5351 = vmatprep.subr.mxu0 0.0
    %5352 = vmatpush1.msra.mxu0 %v5322
    %5353 = vmatprep.subr.mxu0 0.0
    %5354 = vmatpush1.msra.mxu0 %v5323
    %5355 = vmatprep.subr.mxu0 0.0
    %5356 = vmatpush1.msra.mxu0 %v5324
    %5357 = vmatprep.subr.mxu0 0.0
    %5358 = vmatpush1.msra.mxu0 %v5325
    %5359 = vmatprep.subr.mxu0 0.0
    %5360 = vmatpush1.msra.mxu0 %v5326
    %5361 = vmatprep.subr.mxu0 0.0
    %5362 = vmatpush1.msra.mxu0 %v5327
    %5363 = vmatprep.subr.mxu0 0.0
    %5364 = vmatpush1.msra.mxu0 %v5328
    %5365 = vmatprep.subr.mxu0 0.0
    %5366 = vmatpush1.msra.mxu0 %v5329
    %5367 = vmatprep.subr.mxu0 0.0
    %5368 = vmatpush1.msra.mxu0 0.0
    %5369 = vmatprep.subr.mxu0 0.0
    %5370 = vmatpush1.msra.mxu0 0.0
    %5371 = vmatprep.subr.mxu0 0.0
    %5372 = vmatpush1.msra.mxu0 0.0
    %5373 = vmatprep.subr.mxu0 0.0
    %5374 = vmatpush1.msra.mxu0 0.0
    %5375 = vmatprep.subr.mxu0 0.0
    %5376 = vmatpush1.msra.mxu0 0.0
    %5377 = vmatprep.subr.mxu0 0.0
    %5378 = vmatpush1.msra.mxu0 0.0
    %5379 = vmatprep.subr.mxu0 0.0
    %5380 = vmatpush1.msra.mxu0 0.0
    %5381 = vmatprep.subr.mxu0 0.0
    %5382 = vmatpush1.msra.mxu0 0.0
    %5383 = vmatprep.subr.mxu0 0.0
    %5384 = vmatpush1.msra.mxu0 0.0
    %5385 = vmatprep.subr.mxu0 0.0
    %5386 = vmatpush1.msra.mxu0 0.0
    %5387 = vmatprep.subr.mxu0 0.0
    %5388 = vmatpush1.msra.mxu0 0.0
    %5389 = vmatprep.subr.mxu0 0.0
    %5390 = vmatpush1.msra.mxu0 0.0
    %5391 = vmatprep.subr.mxu0 0.0
    %5392 = vmatpush1.msra.mxu0 0.0
    %5393 = vmatprep.subr.mxu0 0.0
    %5394 = vmatpush1.msra.mxu0 0.0
    %5395 = vmatprep.subr.mxu0 0.0
    %5396 = vmatpush1.msra.mxu0 0.0
    %5397 = vmatprep.subr.mxu0 0.0
    %5398 = vmatpush1.msra.mxu0 0.0
    %5399 = vmatprep.mubr.f32.mxu0 0.0
    %5400 = vmatmul.mubr.f32.gmra.mrb[0].mxu0 %v5298
    %v5401 = vpop.f32.mrb[0].mxu0
    %v5402 = vadd.f32 %v5334, %v5401
    %v5403 = vpop.f32.mrb[0].mxu0
    %5404 = vmatprep.mubr.f32.mxu0 0.0
    %5405 = vmatmul.mubr.f32.gmra.mrb[0].mxu0 %v5299
    %v5406 = vpop.f32.mrb[0].mxu0
    %v5407 = vadd.f32 %v5334, %v5406
    %v5408 = vpop.f32.mrb[0].mxu0
    %5409 = vmatprep.mubr.f32.mxu0 0.0
    %5410 = vmatmul.mubr.f32.gmra.mrb[0].mxu0 %v5300
    %v5411 = vpop.f32.mrb[0].mxu0
    %v5412 = vadd.f32 %v5334, %v5411
    %v5413 = vpop.f32.mrb[0].mxu0
    %5414 = vmatprep.mubr.f32.mxu0 0.0
    %5415 = vmatmul.mubr.f32.gmra.mrb[0].mxu0 %v5301
    %v5416 = vpop.f32.mrb[0].mxu0
    %v5417 = vadd.f32 %v5334, %v5416
    %v5418 = vpop.f32.mrb[0].mxu0
    %5419 = vmatprep.mubr.f32.mxu0 0.0
    %5420 = vmatmul.mubr.f32.gmra.mrb[0].mxu0 %v5302
    %v5421 = vpop.f32.mrb[0].mxu0
    %v5422 = vadd.f32 %v5334, %v5421
    %v5423 = vpop.f32.mrb[0].mxu0
    %5424 = vmatprep.mubr.f32.mxu0 0.0
    %5425 = vmatmul.mubr.f32.gmra.mrb[0].mxu0 %v5303
    %v5426 = vpop.f32.mrb[0].mxu0
    %v5427 = vadd.f32 %v5334, %v5426
    %v5428 = vpop.f32.mrb[0].mxu0
    %5429 = vmatprep.mubr.f32.mxu0 0.0
    %5430 = vmatmul.mubr.f32.gmra.mrb[0].mxu0 %v5304
    %v5431 = vpop.f32.mrb[0].mxu0
    %v5432 = vadd.f32 %v5334, %v5431
    %v5433 = vpop.f32.mrb[0].mxu0
    %5434 = vmatprep.mubr.f32.mxu0 0.0
    %5435 = vmatmul.mubr.f32.gmra.mrb[0].mxu0 %v5305
    %v5436 = vpop.f32.mrb[0].mxu0
    %v5437 = vadd.f32 %v5334, %v5436
    %v5438 = vpop.f32.mrb[0].mxu0
    %5439 = vmatprep.mubr.f32.mxu0 0.0
    %5440 = vmatmul.mubr.f32.gmra.mrb[0].mxu0 %v5306
    %v5441 = vpop.f32.mrb[0].mxu0
    %v5442 = vadd.f32 %v5334, %v5441
    %v5443 = vpop.f32.mrb[0].mxu0
    %5444 = vmatprep.mubr.f32.mxu0 0.0
    %5445 = vmatmul.mubr.f32.gmra.mrb[0].mxu0 %v5307
    %v5446 = vpop.f32.mrb[0].mxu0
    %v5447 = vadd.f32 %v5334, %v5446
    %v5448 = vpop.f32.mrb[0].mxu0
    %5449 = vmatprep.mubr.f32.mxu0 0.0
    %5450 = vmatmul.mubr.f32.gmra.mrb[0].mxu0 %v5308
    %v5451 = vpop.f32.mrb[0].mxu0
    %v5452 = vadd.f32 %v5334, %v5451
    %v5453 = vpop.f32.mrb[0].mxu0
    %5454 = vmatprep.mubr.f32.mxu0 0.0
    %5455 = vmatmul.mubr.f32.gmra.mrb[0].mxu0 %v5309
    %v5456 = vpop.f32.mrb[0].mxu0
    %v5457 = vadd.f32 %v5334, %v5456
    %v5458 = vpop.f32.mrb[0].mxu0
    %5459 = vmatprep.mubr.f32.mxu0 0.0
    %5460 = vmatmul.mubr.f32.gmra.mrb[0].mxu0 %v5310
    %v5461 = vpop.f32.mrb[0].mxu0
    %v5462 = vadd.f32 %v5334, %v5461
    %v5463 = vpop.f32.mrb[0].mxu0
    %5464 = vmatprep.mubr.f32.mxu0 0.0
    %5465 = vmatmul.mubr.f32.gmra.mrb[0].mxu0 %v5311
    %v5466 = vpop.f32.mrb[0].mxu0
    %v5467 = vadd.f32 %v5334, %v5466
    %v5468 = vpop.f32.mrb[0].mxu0
    %5469 = vmatprep.mubr.f32.mxu0 0.0
    %5470 = vmatmul.mubr.f32.gmra.mrb[0].mxu0 %v5312
    %v5471 = vpop.f32.mrb[0].mxu0
    %v5472 = vadd.f32 %v5334, %v5471
    %v5473 = vpop.f32.mrb[0].mxu0
    %5474 = vmatprep.mubr.f32.mxu0 0.0
    %5475 = vmatmul.mubr.f32.gmra.mrb[0].mxu0 %v5313
    %v5476 = vpop.f32.mrb[0].mxu0
    %v5477 = vadd.f32 %v5334, %v5476
    %v5478 = vpop.f32.mrb[0].mxu0
    %5479 = vdwg.mxu0
    %5480 = vmatprep.subr.mxu0 0.0
    %5481 = vmatpush1.msra.mxu0 %v5402
    %5482 = vmatprep.subr.mxu0 0.0
    %5483 = vmatpush1.msra.mxu0 %v5407
    %5484 = vmatprep.subr.mxu0 0.0
    %5485 = vmatpush1.msra.mxu0 %v5412
    %5486 = vmatprep.subr.mxu0 0.0
    %5487 = vmatpush1.msra.mxu0 %v5417
    %5488 = vmatprep.subr.mxu0 0.0
    %5489 = vmatpush1.msra.mxu0 %v5422
    %5490 = vmatprep.subr.mxu0 0.0
    %5491 = vmatpush1.msra.mxu0 %v5427
    %5492 = vmatprep.subr.mxu0 0.0
    %5493 = vmatpush1.msra.mxu0 %v5432
    %5494 = vmatprep.subr.mxu0 0.0
    %5495 = vmatpush1.msra.mxu0 %v5437
    %5496 = vmatprep.subr.mxu0 0.0
    %5497 = vmatpush1.msra.mxu0 %v5442
    %5498 = vmatprep.subr.mxu0 0.0
    %5499 = vmatpush1.msra.mxu0 %v5447
    %5500 = vmatprep.subr.mxu0 0.0
    %5501 = vmatpush1.msra.mxu0 %v5452
    %5502 = vmatprep.subr.mxu0 0.0
    %5503 = vmatpush1.msra.mxu0 %v5457
    %5504 = vmatprep.subr.mxu0 0.0
    %5505 = vmatpush1.msra.mxu0 %v5462
    %5506 = vmatprep.subr.mxu0 0.0
    %5507 = vmatpush1.msra.mxu0 %v5467
    %5508 = vmatprep.subr.mxu0 0.0
    %5509 = vmatpush1.msra.mxu0 %v5472
    %5510 = vmatprep.subr.mxu0 0.0
    %5511 = vmatpush1.msra.mxu0 %v5477
    %5512 = vmatprep.subr.mxu0 0.0
    %5513 = vmatpush1.msra.mxu0 0.0
    %5514 = vmatprep.subr.mxu0 0.0
    %5515 = vmatpush1.msra.mxu0 0.0
    %5516 = vmatprep.subr.mxu0 0.0
    %5517 = vmatpush1.msra.mxu0 0.0
    %5518 = vmatprep.subr.mxu0 0.0
    %5519 = vmatpush1.msra.mxu0 0.0
    %5520 = vmatprep.subr.mxu0 0.0
    %5521 = vmatpush1.msra.mxu0 0.0
    %5522 = vmatprep.subr.mxu0 0.0
    %5523 = vmatpush1.msra.mxu0 0.0
    %5524 = vmatprep.subr.mxu0 0.0
    %5525 = vmatpush1.msra.mxu0 0.0
    %5526 = vmatprep.subr.mxu0 0.0
    %5527 = vmatpush1.msra.mxu0 0.0
    %5528 = vmatprep.subr.mxu0 0.0
    %5529 = vmatpush1.msra.mxu0 0.0
    %5530 = vmatprep.subr.mxu0 0.0
    %5531 = vmatpush1.msra.mxu0 0.0
    %5532 = vmatprep.subr.mxu0 0.0
    %5533 = vmatpush1.msra.mxu0 0.0
    %5534 = vmatprep.subr.mxu0 0.0
    %5535 = vmatpush1.msra.mxu0 0.0
    %5536 = vmatprep.subr.mxu0 0.0
    %5537 = vmatpush1.msra.mxu0 0.0
    %5538 = vmatprep.subr.mxu0 0.0
    %5539 = vmatpush1.msra.mxu0 0.0
    %5540 = vmatprep.subr.mxu0 0.0
    %5541 = vmatpush1.msra.mxu0 0.0
    %5542 = vmatprep.subr.mxu0 0.0
    %5543 = vmatpush1.msra.mxu0 0.0
    %5544 = vmatprep.mubr.f32.mxu0 0.0
    %5545 = vmatmul.mubr.f32.gmra.mrb[0].mxu0 %v313
    %v5546 = vpop.f32.mrb[0].mxu0
    %v5547 = vadd.f32 0.0, %v5546
    %v5548 = vpop.f32.mrb[0].mxu0
    %5549 = vmatprep.mubr.f32.mxu0 0.0
    %5550 = vmatmul.mubr.f32.gmra.mrb[0].mxu0 %v314
    %v5551 = vpop.f32.mrb[0].mxu0
    %v5552 = vadd.f32 0.0, %v5551
    %v5553 = vpop.f32.mrb[0].mxu0
    %5554 = vmatprep.mubr.f32.mxu0 0.0
    %5555 = vmatmul.mubr.f32.gmra.mrb[0].mxu0 %v315
    %v5556 = vpop.f32.mrb[0].mxu0
    %v5557 = vadd.f32 0.0, %v5556
    %v5558 = vpop.f32.mrb[0].mxu0
    %5559 = vmatprep.mubr.f32.mxu0 0.0
    %5560 = vmatmul.mubr.f32.gmra.mrb[0].mxu0 %v316
    %v5561 = vpop.f32.mrb[0].mxu0
    %v5562 = vadd.f32 0.0, %v5561
    %v5563 = vpop.f32.mrb[0].mxu0
    %5564 = vdwg.mxu0
    %v5565 = vmul.f32 %v5547, %v338
    %v5566 = vmul.f32 %v5552, %v340
    %v5567 = vmul.f32 %v5557, %v342
    %v5568 = vmul.f32 %v5562, %v344
    %v5569 = vadd.f32 %v4049, %v5565
    %v5570 = vadd.f32 %v4054, %v5566
    %v5571 = vadd.f32 %v4059, %v5567
    %v5572 = vadd.f32 %v4064, %v5568
    %v5573 = vld [vmem:[#allocation5 + $0x9a8] sm:$0xff]
    %v5574 = vld [vmem:[#allocation5 + $0x9b0] sm:$0xff]
    %v5575 = vld [vmem:[#allocation5 + $0x9b8] sm:$0xff]
    %v5576 = vld [vmem:[#allocation5 + $0x9c0] sm:$0xff]
    %v5577 = vld [vmem:[#allocation5 + $0x9c8] sm:$0xff]
    %v5578 = vld [vmem:[#allocation5 + $0x9d0] sm:$0xff]
    %v5579 = vld [vmem:[#allocation5 + $0x9d8] sm:$0xff]
    %v5580 = vld [vmem:[#allocation5 + $0x9e0] sm:$0xff]
    %v5581 = vld [vmem:[#allocation5 + $0x9e8] sm:$0xff]
    %v5582 = vld [vmem:[#allocation5 + $0x9f0] sm:$0xff]
    %v5583 = vld [vmem:[#allocation5 + $0x9f8] sm:$0xff]
    %v5584 = vld [vmem:[#allocation5 + $0xa00] sm:$0xff]
    %v5585 = vld [vmem:[#allocation5 + $0xa08] sm:$0xff]
    %v5586 = vld [vmem:[#allocation5 + $0xa10] sm:$0xff]
    %v5587 = vld [vmem:[#allocation5 + $0xa18] sm:$0xff]
    %v5588 = vld [vmem:[#allocation5 + $0xa20] sm:$0xff]
    %v5589 = vld [vmem:[#allocation5 + $0xc36] sm:$0x1]
    %v5590 = vlaneseq
    %v5591 = vshrl.u32 %v5590, 7
    %v5592 = vsub.s32 0, %v5591
    %v5593 = vrot.slane %v5589, %v5592
    %5594 = vmatprep.subr.mxu0 0.0
    %5595 = vmatpush1.msra.mxu0 %v5573
    %5596 = vmatprep.subr.mxu0 0.0
    %5597 = vmatpush1.msra.mxu0 %v5574
    %5598 = vmatprep.subr.mxu0 0.0
    %5599 = vmatpush1.msra.mxu0 %v5575
    %5600 = vmatprep.subr.mxu0 0.0
    %5601 = vmatpush1.msra.mxu0 %v5576
    %5602 = vmatprep.subr.mxu0 0.0
    %5603 = vmatpush1.msra.mxu0 %v5577
    %5604 = vmatprep.subr.mxu0 0.0
    %5605 = vmatpush1.msra.mxu0 %v5578
    %5606 = vmatprep.subr.mxu0 0.0
    %5607 = vmatpush1.msra.mxu0 %v5579
    %5608 = vmatprep.subr.mxu0 0.0
    %5609 = vmatpush1.msra.mxu0 %v5580
    %5610 = vmatprep.subr.mxu0 0.0
    %5611 = vmatpush1.msra.mxu0 %v5581
    %5612 = vmatprep.subr.mxu0 0.0
    %5613 = vmatpush1.msra.mxu0 %v5582
    %5614 = vmatprep.subr.mxu0 0.0
    %5615 = vmatpush1.msra.mxu0 %v5583
    %5616 = vmatprep.subr.mxu0 0.0
    %5617 = vmatpush1.msra.mxu0 %v5584
    %5618 = vmatprep.subr.mxu0 0.0
    %5619 = vmatpush1.msra.mxu0 %v5585
    %5620 = vmatprep.subr.mxu0 0.0
    %5621 = vmatpush1.msra.mxu0 %v5586
    %5622 = vmatprep.subr.mxu0 0.0
    %5623 = vmatpush1.msra.mxu0 %v5587
    %5624 = vmatprep.subr.mxu0 0.0
    %5625 = vmatpush1.msra.mxu0 %v5588
    %5626 = vmatprep.subr.mxu0 0.0
    %5627 = vmatpush1.msra.mxu0 0.0
    %5628 = vmatprep.subr.mxu0 0.0
    %5629 = vmatpush1.msra.mxu0 0.0
    %5630 = vmatprep.subr.mxu0 0.0
    %5631 = vmatpush1.msra.mxu0 0.0
    %5632 = vmatprep.subr.mxu0 0.0
    %5633 = vmatpush1.msra.mxu0 0.0
    %5634 = vmatprep.subr.mxu0 0.0
    %5635 = vmatpush1.msra.mxu0 0.0
    %5636 = vmatprep.subr.mxu0 0.0
    %5637 = vmatpush1.msra.mxu0 0.0
    %5638 = vmatprep.subr.mxu0 0.0
    %5639 = vmatpush1.msra.mxu0 0.0
    %5640 = vmatprep.subr.mxu0 0.0
    %5641 = vmatpush1.msra.mxu0 0.0
    %5642 = vmatprep.subr.mxu0 0.0
    %5643 = vmatpush1.msra.mxu0 0.0
    %5644 = vmatprep.subr.mxu0 0.0
    %5645 = vmatpush1.msra.mxu0 0.0
    %5646 = vmatprep.subr.mxu0 0.0
    %5647 = vmatpush1.msra.mxu0 0.0
    %5648 = vmatprep.subr.mxu0 0.0
    %5649 = vmatpush1.msra.mxu0 0.0
    %5650 = vmatprep.subr.mxu0 0.0
    %5651 = vmatpush1.msra.mxu0 0.0
    %5652 = vmatprep.subr.mxu0 0.0
    %5653 = vmatpush1.msra.mxu0 0.0
    %5654 = vmatprep.subr.mxu0 0.0
    %5655 = vmatpush1.msra.mxu0 0.0
    %5656 = vmatprep.subr.mxu0 0.0
    %5657 = vmatpush1.msra.mxu0 0.0
    %5658 = vmatprep.mubr.f32.mxu0 0.0
    %5659 = vmatmul.mubr.f32.gmra.mrb[0].mxu0 %v5569
    %v5660 = vpop.f32.mrb[0].mxu0
    %v5661 = vadd.f32 %v5593, %v5660
    %v5662 = vpop.f32.mrb[0].mxu0
    %5663 = vmatprep.mubr.f32.mxu0 0.0
    %5664 = vmatmul.mubr.f32.gmra.mrb[0].mxu0 %v5570
    %v5665 = vpop.f32.mrb[0].mxu0
    %v5666 = vadd.f32 %v5593, %v5665
    %v5667 = vpop.f32.mrb[0].mxu0
    %5668 = vmatprep.mubr.f32.mxu0 0.0
    %5669 = vmatmul.mubr.f32.gmra.mrb[0].mxu0 %v5571
    %v5670 = vpop.f32.mrb[0].mxu0
    %v5671 = vadd.f32 %v5593, %v5670
    %v5672 = vpop.f32.mrb[0].mxu0
    %5673 = vmatprep.mubr.f32.mxu0 0.0
    %5674 = vmatmul.mubr.f32.gmra.mrb[0].mxu0 %v5572
    %v5675 = vpop.f32.mrb[0].mxu0
    %v5676 = vadd.f32 %v5593, %v5675
    %v5677 = vpop.f32.mrb[0].mxu0
    %5678 = vdwg.mxu0
    %v5679 = vmax.f32 %v5661, 0.0
    %v5680 = vmax.f32 %v5666, 0.0
    %v5681 = vmax.f32 %v5671, 0.0
    %v5682 = vmax.f32 %v5676, 0.0
    %v5683 = vld [vmem:[#allocation5 + $0xa28] sm:$0xff]
    %v5684 = vld [vmem:[#allocation5 + $0xa30] sm:$0xff]
    %v5685 = vld [vmem:[#allocation5 + $0xa38] sm:$0xff]
    %v5686 = vld [vmem:[#allocation5 + $0xa40] sm:$0xff]
    %v5687 = vld [vmem:[#allocation5 + $0xa48] sm:$0xff]
    %v5688 = vld [vmem:[#allocation5 + $0xa50] sm:$0xff]
    %v5689 = vld [vmem:[#allocation5 + $0xa58] sm:$0xff]
    %v5690 = vld [vmem:[#allocation5 + $0xa60] sm:$0xff]
    %v5691 = vld [vmem:[#allocation5 + $0xa68] sm:$0xff]
    %v5692 = vld [vmem:[#allocation5 + $0xa70] sm:$0xff]
    %v5693 = vld [vmem:[#allocation5 + $0xa78] sm:$0xff]
    %v5694 = vld [vmem:[#allocation5 + $0xa80] sm:$0xff]
    %v5695 = vld [vmem:[#allocation5 + $0xa88] sm:$0xff]
    %v5696 = vld [vmem:[#allocation5 + $0xa90] sm:$0xff]
    %v5697 = vld [vmem:[#allocation5 + $0xa98] sm:$0xff]
    %v5698 = vld [vmem:[#allocation5 + $0xaa0] sm:$0xff]
    %v5699 = vld [vmem:[#allocation5 + $0xc37] sm:$0x1]
    %v5700 = vlaneseq
    %v5701 = vshrl.u32 %v5700, 7
    %v5702 = vsub.s32 0, %v5701
    %v5703 = vrot.slane %v5699, %v5702
    %5704 = vmatprep.subr.mxu0 0.0
    %5705 = vmatpush1.msra.mxu0 %v5683
    %5706 = vmatprep.subr.mxu0 0.0
    %5707 = vmatpush1.msra.mxu0 %v5684
    %5708 = vmatprep.subr.mxu0 0.0
    %5709 = vmatpush1.msra.mxu0 %v5685
    %5710 = vmatprep.subr.mxu0 0.0
    %5711 = vmatpush1.msra.mxu0 %v5686
    %5712 = vmatprep.subr.mxu0 0.0
    %5713 = vmatpush1.msra.mxu0 %v5687
    %5714 = vmatprep.subr.mxu0 0.0
    %5715 = vmatpush1.msra.mxu0 %v5688
    %5716 = vmatprep.subr.mxu0 0.0
    %5717 = vmatpush1.msra.mxu0 %v5689
    %5718 = vmatprep.subr.mxu0 0.0
    %5719 = vmatpush1.msra.mxu0 %v5690
    %5720 = vmatprep.subr.mxu0 0.0
    %5721 = vmatpush1.msra.mxu0 %v5691
    %5722 = vmatprep.subr.mxu0 0.0
    %5723 = vmatpush1.msra.mxu0 %v5692
    %5724 = vmatprep.subr.mxu0 0.0
    %5725 = vmatpush1.msra.mxu0 %v5693
    %5726 = vmatprep.subr.mxu0 0.0
    %5727 = vmatpush1.msra.mxu0 %v5694
    %5728 = vmatprep.subr.mxu0 0.0
    %5729 = vmatpush1.msra.mxu0 %v5695
    %5730 = vmatprep.subr.mxu0 0.0
    %5731 = vmatpush1.msra.mxu0 %v5696
    %5732 = vmatprep.subr.mxu0 0.0
    %5733 = vmatpush1.msra.mxu0 %v5697
    %5734 = vmatprep.subr.mxu0 0.0
    %5735 = vmatpush1.msra.mxu0 %v5698
    %5736 = vmatprep.subr.mxu0 0.0
    %5737 = vmatpush1.msra.mxu0 0.0
    %5738 = vmatprep.subr.mxu0 0.0
    %5739 = vmatpush1.msra.mxu0 0.0
    %5740 = vmatprep.subr.mxu0 0.0
    %5741 = vmatpush1.msra.mxu0 0.0
    %5742 = vmatprep.subr.mxu0 0.0
    %5743 = vmatpush1.msra.mxu0 0.0
    %5744 = vmatprep.subr.mxu0 0.0
    %5745 = vmatpush1.msra.mxu0 0.0
    %5746 = vmatprep.subr.mxu0 0.0
    %5747 = vmatpush1.msra.mxu0 0.0
    %5748 = vmatprep.subr.mxu0 0.0
    %5749 = vmatpush1.msra.mxu0 0.0
    %5750 = vmatprep.subr.mxu0 0.0
    %5751 = vmatpush1.msra.mxu0 0.0
    %5752 = vmatprep.subr.mxu0 0.0
    %5753 = vmatpush1.msra.mxu0 0.0
    %5754 = vmatprep.subr.mxu0 0.0
    %5755 = vmatpush1.msra.mxu0 0.0
    %5756 = vmatprep.subr.mxu0 0.0
    %5757 = vmatpush1.msra.mxu0 0.0
    %5758 = vmatprep.subr.mxu0 0.0
    %5759 = vmatpush1.msra.mxu0 0.0
    %5760 = vmatprep.subr.mxu0 0.0
    %5761 = vmatpush1.msra.mxu0 0.0
    %5762 = vmatprep.subr.mxu0 0.0
    %5763 = vmatpush1.msra.mxu0 0.0
    %5764 = vmatprep.subr.mxu0 0.0
    %5765 = vmatpush1.msra.mxu0 0.0
    %5766 = vmatprep.subr.mxu0 0.0
    %5767 = vmatpush1.msra.mxu0 0.0
    %5768 = vmatprep.mubr.f32.mxu0 0.0
    %5769 = vmatmul.mubr.f32.gmra.mrb[0].mxu0 %v5679
    %v5770 = vpop.f32.mrb[0].mxu0
    %v5771 = vadd.f32 %v5703, %v5770
    %v5772 = vpop.f32.mrb[0].mxu0
    %5773 = vmatprep.mubr.f32.mxu0 0.0
    %5774 = vmatmul.mubr.f32.gmra.mrb[0].mxu0 %v5680
    %v5775 = vpop.f32.mrb[0].mxu0
    %v5776 = vadd.f32 %v5703, %v5775
    %v5777 = vpop.f32.mrb[0].mxu0
    %5778 = vmatprep.mubr.f32.mxu0 0.0
    %5779 = vmatmul.mubr.f32.gmra.mrb[0].mxu0 %v5681
    %v5780 = vpop.f32.mrb[0].mxu0
    %v5781 = vadd.f32 %v5703, %v5780
    %v5782 = vpop.f32.mrb[0].mxu0
    %5783 = vmatprep.mubr.f32.mxu0 0.0
    %5784 = vmatmul.mubr.f32.gmra.mrb[0].mxu0 %v5682
    %v5785 = vpop.f32.mrb[0].mxu0
    %v5786 = vadd.f32 %v5703, %v5785
    %v5787 = vpop.f32.mrb[0].mxu0
    %5788 = vdwg.mxu0
    %v5789 = vld [vmem:[#allocation5 + $0xaa8] sm:$0xff]
    %v5790 = vld [vmem:[#allocation5 + $0xab0] sm:$0xff]
    %v5791 = vld [vmem:[#allocation5 + $0xab8] sm:$0xff]
    %v5792 = vld [vmem:[#allocation5 + $0xac0] sm:$0xff]
    %v5793 = vld [vmem:[#allocation5 + $0xac8] sm:$0xff]
    %v5794 = vld [vmem:[#allocation5 + $0xad0] sm:$0xff]
    %v5795 = vld [vmem:[#allocation5 + $0xad8] sm:$0xff]
    %v5796 = vld [vmem:[#allocation5 + $0xae0] sm:$0xff]
    %v5797 = vld [vmem:[#allocation5 + $0xae8] sm:$0xff]
    %v5798 = vld [vmem:[#allocation5 + $0xaf0] sm:$0xff]
    %v5799 = vld [vmem:[#allocation5 + $0xaf8] sm:$0xff]
    %v5800 = vld [vmem:[#allocation5 + $0xb00] sm:$0xff]
    %v5801 = vld [vmem:[#allocation5 + $0xb08] sm:$0xff]
    %v5802 = vld [vmem:[#allocation5 + $0xb10] sm:$0xff]
    %v5803 = vld [vmem:[#allocation5 + $0xb18] sm:$0xff]
    %v5804 = vld [vmem:[#allocation5 + $0xb20] sm:$0xff]
    %v5805 = vld [vmem:[#allocation5 + $0xc38] sm:$0x1]
    %v5806 = vlaneseq
    %v5807 = vshrl.u32 %v5806, 7
    %v5808 = vsub.s32 0, %v5807
    %v5809 = vrot.slane %v5805, %v5808
    %5810 = vmatprep.subr.mxu0 0.0
    %5811 = vmatpush1.msra.mxu0 %v5789
    %5812 = vmatprep.subr.mxu0 0.0
    %5813 = vmatpush1.msra.mxu0 %v5790
    %5814 = vmatprep.subr.mxu0 0.0
    %5815 = vmatpush1.msra.mxu0 %v5791
    %5816 = vmatprep.subr.mxu0 0.0
    %5817 = vmatpush1.msra.mxu0 %v5792
    %5818 = vmatprep.subr.mxu0 0.0
    %5819 = vmatpush1.msra.mxu0 %v5793
    %5820 = vmatprep.subr.mxu0 0.0
    %5821 = vmatpush1.msra.mxu0 %v5794
    %5822 = vmatprep.subr.mxu0 0.0
    %5823 = vmatpush1.msra.mxu0 %v5795
    %5824 = vmatprep.subr.mxu0 0.0
    %5825 = vmatpush1.msra.mxu0 %v5796
    %5826 = vmatprep.subr.mxu0 0.0
    %5827 = vmatpush1.msra.mxu0 %v5797
    %5828 = vmatprep.subr.mxu0 0.0
    %5829 = vmatpush1.msra.mxu0 %v5798
    %5830 = vmatprep.subr.mxu0 0.0
    %5831 = vmatpush1.msra.mxu0 %v5799
    %5832 = vmatprep.subr.mxu0 0.0
    %5833 = vmatpush1.msra.mxu0 %v5800
    %5834 = vmatprep.subr.mxu0 0.0
    %5835 = vmatpush1.msra.mxu0 %v5801
    %5836 = vmatprep.subr.mxu0 0.0
    %5837 = vmatpush1.msra.mxu0 %v5802
    %5838 = vmatprep.subr.mxu0 0.0
    %5839 = vmatpush1.msra.mxu0 %v5803
    %5840 = vmatprep.subr.mxu0 0.0
    %5841 = vmatpush1.msra.mxu0 %v5804
    %5842 = vmatprep.subr.mxu0 0.0
    %5843 = vmatpush1.msra.mxu0 0.0
    %5844 = vmatprep.subr.mxu0 0.0
    %5845 = vmatpush1.msra.mxu0 0.0
    %5846 = vmatprep.subr.mxu0 0.0
    %5847 = vmatpush1.msra.mxu0 0.0
    %5848 = vmatprep.subr.mxu0 0.0
    %5849 = vmatpush1.msra.mxu0 0.0
    %5850 = vmatprep.subr.mxu0 0.0
    %5851 = vmatpush1.msra.mxu0 0.0
    %5852 = vmatprep.subr.mxu0 0.0
    %5853 = vmatpush1.msra.mxu0 0.0
    %5854 = vmatprep.subr.mxu0 0.0
    %5855 = vmatpush1.msra.mxu0 0.0
    %5856 = vmatprep.subr.mxu0 0.0
    %5857 = vmatpush1.msra.mxu0 0.0
    %5858 = vmatprep.subr.mxu0 0.0
    %5859 = vmatpush1.msra.mxu0 0.0
    %5860 = vmatprep.subr.mxu0 0.0
    %5861 = vmatpush1.msra.mxu0 0.0
    %5862 = vmatprep.subr.mxu0 0.0
    %5863 = vmatpush1.msra.mxu0 0.0
    %5864 = vmatprep.subr.mxu0 0.0
    %5865 = vmatpush1.msra.mxu0 0.0
    %5866 = vmatprep.subr.mxu0 0.0
    %5867 = vmatpush1.msra.mxu0 0.0
    %5868 = vmatprep.subr.mxu0 0.0
    %5869 = vmatpush1.msra.mxu0 0.0
    %5870 = vmatprep.subr.mxu0 0.0
    %5871 = vmatpush1.msra.mxu0 0.0
    %5872 = vmatprep.subr.mxu0 0.0
    %5873 = vmatpush1.msra.mxu0 0.0
    %5874 = vmatprep.mubr.f32.mxu0 0.0
    %5875 = vmatmul.mubr.f32.gmra.mrb[0].mxu0 %v5771
    %v5876 = vpop.f32.mrb[0].mxu0
    %v5877 = vadd.f32 %v5809, %v5876
    %v5878 = vpop.f32.mrb[0].mxu0
    %5879 = vmatprep.mubr.f32.mxu0 0.0
    %5880 = vmatmul.mubr.f32.gmra.mrb[0].mxu0 %v5776
    %v5881 = vpop.f32.mrb[0].mxu0
    %v5882 = vadd.f32 %v5809, %v5881
    %v5883 = vpop.f32.mrb[0].mxu0
    %5884 = vmatprep.mubr.f32.mxu0 0.0
    %5885 = vmatmul.mubr.f32.gmra.mrb[0].mxu0 %v5781
    %v5886 = vpop.f32.mrb[0].mxu0
    %v5887 = vadd.f32 %v5809, %v5886
    %v5888 = vpop.f32.mrb[0].mxu0
    %5889 = vmatprep.mubr.f32.mxu0 0.0
    %5890 = vmatmul.mubr.f32.gmra.mrb[0].mxu0 %v5786
    %v5891 = vpop.f32.mrb[0].mxu0
    %v5892 = vadd.f32 %v5809, %v5891
    %v5893 = vpop.f32.mrb[0].mxu0
    %5894 = vdwg.mxu0
    %v5895 = vmax.f32 %v5877, 0.0
    %v5896 = vmax.f32 %v5882, 0.0
    %v5897 = vmax.f32 %v5887, 0.0
    %v5898 = vmax.f32 %v5892, 0.0
    %v5899 = vld [vmem:[#allocation5 + $0xb28] sm:$0xff]
    %v5900 = vld [vmem:[#allocation5 + $0xb30] sm:$0xff]
    %v5901 = vld [vmem:[#allocation5 + $0xb38] sm:$0xff]
    %v5902 = vld [vmem:[#allocation5 + $0xb40] sm:$0xff]
    %v5903 = vld [vmem:[#allocation5 + $0xb48] sm:$0xff]
    %v5904 = vld [vmem:[#allocation5 + $0xb50] sm:$0xff]
    %v5905 = vld [vmem:[#allocation5 + $0xb58] sm:$0xff]
    %v5906 = vld [vmem:[#allocation5 + $0xb60] sm:$0xff]
    %v5907 = vld [vmem:[#allocation5 + $0xb68] sm:$0xff]
    %v5908 = vld [vmem:[#allocation5 + $0xb70] sm:$0xff]
    %v5909 = vld [vmem:[#allocation5 + $0xb78] sm:$0xff]
    %v5910 = vld [vmem:[#allocation5 + $0xb80] sm:$0xff]
    %v5911 = vld [vmem:[#allocation5 + $0xb88] sm:$0xff]
    %v5912 = vld [vmem:[#allocation5 + $0xb90] sm:$0xff]
    %v5913 = vld [vmem:[#allocation5 + $0xb98] sm:$0xff]
    %v5914 = vld [vmem:[#allocation5 + $0xba0] sm:$0xff]
    %v5915 = vld [vmem:[#allocation5 + $0xc39] sm:$0x1]
    %v5916 = vlaneseq
    %v5917 = vshrl.u32 %v5916, 7
    %v5918 = vsub.s32 0, %v5917
    %v5919 = vrot.slane %v5915, %v5918
    %5920 = vmatprep.subr.mxu0 0.0
    %5921 = vmatpush1.msra.mxu0 %v5899
    %5922 = vmatprep.subr.mxu0 0.0
    %5923 = vmatpush1.msra.mxu0 %v5900
    %5924 = vmatprep.subr.mxu0 0.0
    %5925 = vmatpush1.msra.mxu0 %v5901
    %5926 = vmatprep.subr.mxu0 0.0
    %5927 = vmatpush1.msra.mxu0 %v5902
    %5928 = vmatprep.subr.mxu0 0.0
    %5929 = vmatpush1.msra.mxu0 %v5903
    %5930 = vmatprep.subr.mxu0 0.0
    %5931 = vmatpush1.msra.mxu0 %v5904
    %5932 = vmatprep.subr.mxu0 0.0
    %5933 = vmatpush1.msra.mxu0 %v5905
    %5934 = vmatprep.subr.mxu0 0.0
    %5935 = vmatpush1.msra.mxu0 %v5906
    %5936 = vmatprep.subr.mxu0 0.0
    %5937 = vmatpush1.msra.mxu0 %v5907
    %5938 = vmatprep.subr.mxu0 0.0
    %5939 = vmatpush1.msra.mxu0 %v5908
    %5940 = vmatprep.subr.mxu0 0.0
    %5941 = vmatpush1.msra.mxu0 %v5909
    %5942 = vmatprep.subr.mxu0 0.0
    %5943 = vmatpush1.msra.mxu0 %v5910
    %5944 = vmatprep.subr.mxu0 0.0
    %5945 = vmatpush1.msra.mxu0 %v5911
    %5946 = vmatprep.subr.mxu0 0.0
    %5947 = vmatpush1.msra.mxu0 %v5912
    %5948 = vmatprep.subr.mxu0 0.0
    %5949 = vmatpush1.msra.mxu0 %v5913
    %5950 = vmatprep.subr.mxu0 0.0
    %5951 = vmatpush1.msra.mxu0 %v5914
    %5952 = vmatprep.subr.mxu0 0.0
    %5953 = vmatpush1.msra.mxu0 0.0
    %5954 = vmatprep.subr.mxu0 0.0
    %5955 = vmatpush1.msra.mxu0 0.0
    %5956 = vmatprep.subr.mxu0 0.0
    %5957 = vmatpush1.msra.mxu0 0.0
    %5958 = vmatprep.subr.mxu0 0.0
    %5959 = vmatpush1.msra.mxu0 0.0
    %5960 = vmatprep.subr.mxu0 0.0
    %5961 = vmatpush1.msra.mxu0 0.0
    %5962 = vmatprep.subr.mxu0 0.0
    %5963 = vmatpush1.msra.mxu0 0.0
    %5964 = vmatprep.subr.mxu0 0.0
    %5965 = vmatpush1.msra.mxu0 0.0
    %5966 = vmatprep.subr.mxu0 0.0
    %5967 = vmatpush1.msra.mxu0 0.0
    %5968 = vmatprep.subr.mxu0 0.0
    %5969 = vmatpush1.msra.mxu0 0.0
    %5970 = vmatprep.subr.mxu0 0.0
    %5971 = vmatpush1.msra.mxu0 0.0
    %5972 = vmatprep.subr.mxu0 0.0
    %5973 = vmatpush1.msra.mxu0 0.0
    %5974 = vmatprep.subr.mxu0 0.0
    %5975 = vmatpush1.msra.mxu0 0.0
    %5976 = vmatprep.subr.mxu0 0.0
    %5977 = vmatpush1.msra.mxu0 0.0
    %5978 = vmatprep.subr.mxu0 0.0
    %5979 = vmatpush1.msra.mxu0 0.0
    %5980 = vmatprep.subr.mxu0 0.0
    %5981 = vmatpush1.msra.mxu0 0.0
    %5982 = vmatprep.subr.mxu0 0.0
    %5983 = vmatpush1.msra.mxu0 0.0
    %5984 = vmatprep.mubr.f32.mxu0 0.0
    %5985 = vmatmul.mubr.f32.gmra.mrb[0].mxu0 %v5895
    %v5986 = vpop.f32.mrb[0].mxu0
    %v5987 = vadd.f32 %v5919, %v5986
    %v5988 = vpop.f32.mrb[0].mxu0
    %5989 = vmatprep.mubr.f32.mxu0 0.0
    %5990 = vmatmul.mubr.f32.gmra.mrb[0].mxu0 %v5896
    %v5991 = vpop.f32.mrb[0].mxu0
    %v5992 = vadd.f32 %v5919, %v5991
    %v5993 = vpop.f32.mrb[0].mxu0
    %5994 = vmatprep.mubr.f32.mxu0 0.0
    %5995 = vmatmul.mubr.f32.gmra.mrb[0].mxu0 %v5897
    %v5996 = vpop.f32.mrb[0].mxu0
    %v5997 = vadd.f32 %v5919, %v5996
    %v5998 = vpop.f32.mrb[0].mxu0
    %5999 = vmatprep.mubr.f32.mxu0 0.0
    %6000 = vmatmul.mubr.f32.gmra.mrb[0].mxu0 %v5898
    %v6001 = vpop.f32.mrb[0].mxu0
    %v6002 = vadd.f32 %v5919, %v6001
    %v6003 = vpop.f32.mrb[0].mxu0
    %6004 = vdwg.mxu0
    %v6005 = vmax.f32 %v5987, 0.0
    %v6006 = vmax.f32 %v5992, 0.0
    %v6007 = vmax.f32 %v5997, 0.0
    %v6008 = vmax.f32 %v6002, 0.0
    %v6009 = vld [vmem:[#allocation5 + $0xba8] sm:$0xff]
    %v6010 = vld [vmem:[#allocation5 + $0xbb0] sm:$0xff]
    %v6011 = vld [vmem:[#allocation5 + $0xbb8] sm:$0xff]
    %v6012 = vld [vmem:[#allocation5 + $0xbc0] sm:$0xff]
    %v6013 = vld [vmem:[#allocation5 + $0xbc8] sm:$0xff]
    %v6014 = vld [vmem:[#allocation5 + $0xbd0] sm:$0xff]
    %v6015 = vld [vmem:[#allocation5 + $0xbd8] sm:$0xff]
    %v6016 = vld [vmem:[#allocation5 + $0xbe0] sm:$0xff]
    %v6017 = vld [vmem:[#allocation5 + $0xbe8] sm:$0xff]
    %v6018 = vld [vmem:[#allocation5 + $0xbf0] sm:$0xff]
    %v6019 = vld [vmem:[#allocation5 + $0xbf8] sm:$0xff]
    %v6020 = vld [vmem:[#allocation5 + $0xc00] sm:$0xff]
    %v6021 = vld [vmem:[#allocation5 + $0xc08] sm:$0xff]
    %v6022 = vld [vmem:[#allocation5 + $0xc10] sm:$0xff]
    %v6023 = vld [vmem:[#allocation5 + $0xc18] sm:$0xff]
    %v6024 = vld [vmem:[#allocation5 + $0xc20] sm:$0xff]
    %v6025 = vld [vmem:[#allocation5 + $0xc3a] sm:$0x1]
    %v6026 = vlaneseq
    %v6027 = vshrl.u32 %v6026, 7
    %v6028 = vsub.s32 0, %v6027
    %v6029 = vrot.slane %v6025, %v6028
    %6030 = vmatprep.subr.mxu0 0.0
    %6031 = vmatpush1.msra.mxu0 %v6009
    %6032 = vmatprep.subr.mxu0 0.0
    %6033 = vmatpush1.msra.mxu0 %v6010
    %6034 = vmatprep.subr.mxu0 0.0
    %6035 = vmatpush1.msra.mxu0 %v6011
    %6036 = vmatprep.subr.mxu0 0.0
    %6037 = vmatpush1.msra.mxu0 %v6012
    %6038 = vmatprep.subr.mxu0 0.0
    %6039 = vmatpush1.msra.mxu0 %v6013
    %6040 = vmatprep.subr.mxu0 0.0
    %6041 = vmatpush1.msra.mxu0 %v6014
    %6042 = vmatprep.subr.mxu0 0.0
    %6043 = vmatpush1.msra.mxu0 %v6015
    %6044 = vmatprep.subr.mxu0 0.0
    %6045 = vmatpush1.msra.mxu0 %v6016
    %6046 = vmatprep.subr.mxu0 0.0
    %6047 = vmatpush1.msra.mxu0 %v6017
    %6048 = vmatprep.subr.mxu0 0.0
    %6049 = vmatpush1.msra.mxu0 %v6018
    %6050 = vmatprep.subr.mxu0 0.0
    %6051 = vmatpush1.msra.mxu0 %v6019
    %6052 = vmatprep.subr.mxu0 0.0
    %6053 = vmatpush1.msra.mxu0 %v6020
    %6054 = vmatprep.subr.mxu0 0.0
    %6055 = vmatpush1.msra.mxu0 %v6021
    %6056 = vmatprep.subr.mxu0 0.0
    %6057 = vmatpush1.msra.mxu0 %v6022
    %6058 = vmatprep.subr.mxu0 0.0
    %6059 = vmatpush1.msra.mxu0 %v6023
    %6060 = vmatprep.subr.mxu0 0.0
    %6061 = vmatpush1.msra.mxu0 %v6024
    %6062 = vmatprep.subr.mxu0 0.0
    %6063 = vmatpush1.msra.mxu0 0.0
    %6064 = vmatprep.subr.mxu0 0.0
    %6065 = vmatpush1.msra.mxu0 0.0
    %6066 = vmatprep.subr.mxu0 0.0
    %6067 = vmatpush1.msra.mxu0 0.0
    %6068 = vmatprep.subr.mxu0 0.0
    %6069 = vmatpush1.msra.mxu0 0.0
    %6070 = vmatprep.subr.mxu0 0.0
    %6071 = vmatpush1.msra.mxu0 0.0
    %6072 = vmatprep.subr.mxu0 0.0
    %6073 = vmatpush1.msra.mxu0 0.0
    %6074 = vmatprep.subr.mxu0 0.0
    %6075 = vmatpush1.msra.mxu0 0.0
    %6076 = vmatprep.subr.mxu0 0.0
    %6077 = vmatpush1.msra.mxu0 0.0
    %6078 = vmatprep.subr.mxu0 0.0
    %6079 = vmatpush1.msra.mxu0 0.0
    %6080 = vmatprep.subr.mxu0 0.0
    %6081 = vmatpush1.msra.mxu0 0.0
    %6082 = vmatprep.subr.mxu0 0.0
    %6083 = vmatpush1.msra.mxu0 0.0
    %6084 = vmatprep.subr.mxu0 0.0
    %6085 = vmatpush1.msra.mxu0 0.0
    %6086 = vmatprep.subr.mxu0 0.0
    %6087 = vmatpush1.msra.mxu0 0.0
    %6088 = vmatprep.subr.mxu0 0.0
    %6089 = vmatpush1.msra.mxu0 0.0
    %6090 = vmatprep.subr.mxu0 0.0
    %6091 = vmatpush1.msra.mxu0 0.0
    %6092 = vmatprep.subr.mxu0 0.0
    %6093 = vmatpush1.msra.mxu0 0.0
    %6094 = vmatprep.mubr.f32.mxu0 0.0
    %6095 = vmatmul.mubr.f32.gmra.mrb[0].mxu0 %v6005
    %v6096 = vpop.f32.mrb[0].mxu0
    %v6097 = vadd.f32 %v6029, %v6096
    %v6098 = vpop.f32.mrb[0].mxu0
    %6099 = vmatprep.mubr.f32.mxu0 0.0
    %6100 = vmatmul.mubr.f32.gmra.mrb[0].mxu0 %v6006
    %v6101 = vpop.f32.mrb[0].mxu0
    %v6102 = vadd.f32 %v6029, %v6101
    %v6103 = vpop.f32.mrb[0].mxu0
    %6104 = vmatprep.mubr.f32.mxu0 0.0
    %6105 = vmatmul.mubr.f32.gmra.mrb[0].mxu0 %v6007
    %v6106 = vpop.f32.mrb[0].mxu0
    %v6107 = vadd.f32 %v6029, %v6106
    %v6108 = vpop.f32.mrb[0].mxu0
    %6109 = vmatprep.mubr.f32.mxu0 0.0
    %6110 = vmatmul.mubr.f32.gmra.mrb[0].mxu0 %v6008
    %v6111 = vpop.f32.mrb[0].mxu0
    %v6112 = vadd.f32 %v6029, %v6111
    %v6113 = vpop.f32.mrb[0].mxu0
    %6114 = vdwg.mxu0
    %v6116 = vsel %vm477, %v324, 0
    %6118 = vmatprep.subr.mxu0 0.0
    %6119 = vmatpush1.msra.mxu0 %v6097
    %6120 = vmatprep.subr.mxu0 0.0
    %6121 = vmatpush1.msra.mxu0 %v6102
    %6122 = vmatprep.subr.mxu0 0.0
    %6123 = vmatpush1.msra.mxu0 %v6107
    %6124 = vmatprep.subr.mxu0 0.0
    %6125 = vmatpush1.msra.mxu0 %v6112
    %6126 = vmatprep.subr.mxu0 0.0
    %6127 = vmatpush1.msra.mxu0 0.0
    %6128 = vmatprep.subr.mxu0 0.0
    %6129 = vmatpush1.msra.mxu0 0.0
    %6130 = vmatprep.subr.mxu0 0.0
    %6131 = vmatpush1.msra.mxu0 0.0
    %6132 = vmatprep.subr.mxu0 0.0
    %6133 = vmatpush1.msra.mxu0 0.0
    %6134 = vmatprep.subr.mxu0 0.0
    %6135 = vmatpush1.msra.mxu0 0.0
    %6136 = vmatprep.subr.mxu0 0.0
    %6137 = vmatpush1.msra.mxu0 0.0
    %6138 = vmatprep.subr.mxu0 0.0
    %6139 = vmatpush1.msra.mxu0 0.0
    %6140 = vmatprep.subr.mxu0 0.0
    %6141 = vmatpush1.msra.mxu0 0.0
    %6142 = vmatprep.subr.mxu0 0.0
    %6143 = vmatpush1.msra.mxu0 0.0
    %6144 = vmatprep.subr.mxu0 0.0
    %6145 = vmatpush1.msra.mxu0 0.0
    %6146 = vmatprep.subr.mxu0 0.0
    %6147 = vmatpush1.msra.mxu0 0.0
    %6148 = vmatprep.subr.mxu0 0.0
    %6149 = vmatpush1.msra.mxu0 0.0
    %6150 = vmatprep.subr.mxu0 0.0
    %6151 = vmatpush1.msra.mxu0 0.0
    %6152 = vmatprep.subr.mxu0 0.0
    %6153 = vmatpush1.msra.mxu0 0.0
    %6154 = vmatprep.subr.mxu0 0.0
    %6155 = vmatpush1.msra.mxu0 0.0
    %6156 = vmatprep.subr.mxu0 0.0
    %6157 = vmatpush1.msra.mxu0 0.0
    %6158 = vmatprep.subr.mxu0 0.0
    %6159 = vmatpush1.msra.mxu0 0.0
    %6160 = vmatprep.subr.mxu0 0.0
    %6161 = vmatpush1.msra.mxu0 0.0
    %6162 = vmatprep.subr.mxu0 0.0
    %6163 = vmatpush1.msra.mxu0 0.0
    %6164 = vmatprep.subr.mxu0 0.0
    %6165 = vmatpush1.msra.mxu0 0.0
    %6166 = vmatprep.subr.mxu0 0.0
    %6167 = vmatpush1.msra.mxu0 0.0
    %6168 = vmatprep.subr.mxu0 0.0
    %6169 = vmatpush1.msra.mxu0 0.0
    %6170 = vmatprep.subr.mxu0 0.0
    %6171 = vmatpush1.msra.mxu0 0.0
    %6172 = vmatprep.subr.mxu0 0.0
    %6173 = vmatpush1.msra.mxu0 0.0
    %6174 = vmatprep.subr.mxu0 0.0
    %6175 = vmatpush1.msra.mxu0 0.0
    %6176 = vmatprep.subr.mxu0 0.0
    %6177 = vmatpush1.msra.mxu0 0.0
    %6178 = vmatprep.subr.mxu0 0.0
    %6179 = vmatpush1.msra.mxu0 0.0
    %6180 = vmatprep.subr.mxu0 0.0
    %6181 = vmatpush1.msra.mxu0 0.0
    %6182 = vmatprep.mubr.f32.mxu0 0.0
    %6183 = vmatmul.mubr.f32.gmra.mrb[0].mxu0 %v6116
    %v6184 = vpop.f32.mrb[0].mxu0
    %v6185 = vadd.f32 0.0, %v6184
    %v6186 = vpop.f32.mrb[0].mxu0
    %6187 = vdwg.mxu0
    %v6188 = vmul.f32 %v6185, %v351
    %6189 = vst [vmem:[#allocation8] sm:$0x3] %v6188
    // Predicated region
    $region46: #{gnn_forward.1} parent=1 // pred_check
      _
    $region47: #{gnn_forward.1} parent=1 // pred_check_branch
      %6191 = sbr.rel (0) target = $region49
    $region48: #{gnn_forward.1} parent=1 // pred_region
      %s6193 = ssub.s32 32, 32
      %6194 = vsyncadd [#allocation4], %s6193
      %s6196 = sshll.u32 [#allocation8], 4
      %s6197 = int_to_ptr.vmem [resolvable:$true] %s6196
      %6199 = dma.vmem_to_hbm [thread:$0]  %s6197, 32, %s8, [#allocation4]
    $region49: #{gnn_forward.1} parent=1 // pred_fallthru
      _
    // Predicated region
    $region50: #{gnn_forward.1} parent=1 // pred_check
      _
    $region51: #{gnn_forward.1} parent=1 // pred_check_branch
      %6201 = sbr.rel (0) target = $region53
    $region52: #{gnn_forward.1} parent=1 // pred_region
      %6202 = dma.done [#allocation4], 32
    $region53: #{gnn_forward.1} parent=1 // pred_fallthru
      _
    %6203 = vsyncpa [#allocation3], 1
    %6204 = vsyncpa [#allocation6], 1
    %6205 = vsyncpa [#allocation4], 1

</llo_original>
